<compile_context>
chip_gen: v7x
topology: tpu7x:2x2x1
jax: 0.10.0
libtpu: 0.0.40
codegen_flags: <defaults>
</compile_context>

<pallas_src>
import functools
import math

import jax
import jax.numpy as jnp
from jax.experimental import pallas as pl
from jax.experimental.pallas import tpu as pltpu


def _exact_gelu(x):
    # F.gelu default (approximate='none'): 0.5 * x * (1 + erf(x / sqrt(2)))
    return 0.5 * x * (1.0 + jax.lax.erf(x * (1.0 / math.sqrt(2.0))))


def _edge_nri_kernel(
    node_ref,        # [Kb, N, C]
    edges_in_ref,    # [R, C]      (R = Kb * N * N)
    w_send_ref,      # [C, C]   w_node2edge[:C]
    w_recv_ref,      # [C, C]   w_node2edge[C:]
    b_n2e_ref,       # [1, C]
    w1_se_ref,       # [C, H]   edge_self_evolve layer 1
    b1_se_ref,       # [1, H]
    w2_se_ref,       # [H, C]   edge_self_evolve layer 2
    b2_se_ref,       # [1, C]
    w1_ev_ref,       # [C, H]   w_edge2value layer 1
    b1_ev_ref,       # [1, H]
    w2_ev_ref,       # [1, H]   w_edge2value layer 2 weight, as a row
    b2_ev_ref,       # [1, 1]
    edges_z_ref,     # [R, C]   (output)
    value_ref,       # [Kb, E]  (output, lane-dense)
):
    kb, n, c = node_ref.shape
    e = n * n
    r = kb * e
    h = w1_ev_ref.shape[1]

    # node2edge: project the Kb*N node rows once (MXU work / N compared with
    # projecting the broadcast edge operand) and broadcast-add on the VPU.
    node2 = node_ref[...].reshape(kb * n, c)                           # free reshape
    send_p = jnp.dot(node2, w_send_ref[...],
                     preferred_element_type=jnp.float32).reshape(kb, n, c)
    recv_p = jnp.dot(node2, w_recv_ref[...],
                     preferred_element_type=jnp.float32).reshape(kb, n, c)
    ef = send_p[:, :, None, :] + recv_p[:, None, :, :] + b_n2e_ref[...]
    ef = _exact_gelu(ef).reshape(r, c)                                 # [R, C]

    # LayerNorm(C, elementwise_affine=False), eps = 1e-5
    x = edges_in_ref[...]                                              # [R, C]
    mu = jnp.mean(x, axis=-1, keepdims=True)
    var = jnp.mean((x - mu) * (x - mu), axis=-1, keepdims=True)
    xn = (x - mu) * jax.lax.rsqrt(var + 1e-5)

    # edge_self_evolve: Linear(C, H) -> ReLU -> Linear(H, C)
    hs = jnp.dot(xn, w1_se_ref[...], preferred_element_type=jnp.float32) + b1_se_ref[...]
    hs = jnp.maximum(hs, 0.0)
    es = jnp.dot(hs, w2_se_ref[...], preferred_element_type=jnp.float32) + b2_se_ref[...]

    # edges_z = dropout(edges_from_node + edges_self); dropout p=0 -> identity
    z = ef + es                                                        # [R, C]
    edges_z_ref[...] = z.astype(edges_z_ref.dtype)

    # edge_2_value = relu(Linear(C, H) -> ReLU -> Linear(H, 1)).
    # H->1 projection on the VPU; result stored as a lane-dense (Kb, E) block.
    hv = jnp.dot(z, w1_ev_ref[...], preferred_element_type=jnp.float32) + b1_ev_ref[...]
    hv = jnp.maximum(hv, 0.0)                                          # [R, H]
    hv3 = hv.reshape(kb, e, h)                                         # free leading split
    v = jnp.sum(hv3 * w2_ev_ref[...], axis=-1) + b2_ev_ref[...]        # [Kb, E]
    value_ref[...] = jnp.maximum(v, 0.0).astype(value_ref.dtype)


def _pad128(x):
    return ((x + 127) // 128) * 128


def _step_vmem_bytes(kb, num_atoms, channels):
    """Conservative f32 VMEM footprint of one grid step: every block's last
    dim rounded up to 128 lanes, x2 for double buffering, plus the live
    [R, *] compute intermediates and double-buffered weights."""
    n, c = num_atoms, channels
    e = n * n
    hdim = max(1, c // 2)
    r = kb * e
    cp, hp, ep = _pad128(c), _pad128(hdim), _pad128(e)
    blocks = 2 * 4 * (kb * n * cp          # node in
                      + r * cp             # edges_in
                      + r * cp             # edges_z out
                      + kb * ep)           # value out (lane-dense)
    live = 4 * (5 * r * cp                 # ef, x, xn, es, z
                + 2 * r * hp               # hs, hv
                + kb * ep                  # v
                + 2 * kb * n * cp)         # send_p, recv_p
    weights = 2 * 4 * (2 * c * cp + cp
                       + 2 * (c * hp + hp)
                       + hdim * cp + cp
                       + hp + 128)
    return blocks + live + weights


def _num_tensorcores():
    """TensorCores reachable by a 'parallel' grid axis on this chip."""
    try:
        kind = jax.devices()[0].device_kind.lower()
    except Exception:
        return 1
    if any(t in kind for t in ("v7", "7x", "v4", "v5p")):
        return 2          # v7x: 2 TCs/chip; v4/v5p: megacore pair
    return 1              # v5e / v6e: single TensorCore


def _choose_samples_per_step(num_samples, num_atoms, channels,
                             vmem_budget_bytes=24 << 20, num_cores=None):
    """Largest divisor of K whose padded footprint fits the VMEM budget.
    Single-TC chips take the maximum (grid is a serial loop, so fewer, bigger
    steps win); multi-TC chips keep the grid a multiple of the core count."""
    if num_cores is None:
        num_cores = _num_tensorcores()
    divisors = [d for d in range(1, num_samples + 1) if num_samples % d == 0]
    fits = [d for d in divisors
            if _step_vmem_bytes(d, num_atoms, channels) <= vmem_budget_bytes]
    if not fits:
        fits = [1]
    # value-output block puts Kb on the sublane axis: keep it 8-aligned unless
    # it spans the whole array.
    aligned = [d for d in fits if d == num_samples or d % 8 == 0] or fits
    if num_cores > 1:
        multi = [d for d in aligned if (num_samples // d) % num_cores == 0]
        if multi:
            return max(multi)
    return max(aligned)


def edge_nri_forward(node_inputs, edges_input, num_atoms, params,
                     samples_per_step=None):
    """node_inputs: [K*N, C], edges_input: [K*N*N, C]
       -> (edges_z [K*N*N, C], edge_2_value [K, N*N])."""
    C = node_inputs.shape[1]
    N = num_atoms
    E = N * N
    H = C // 2
    K = node_inputs.shape[0] // N

    if samples_per_step is None:
        samples_per_step = _choose_samples_per_step(K, N, C)
    Kb = samples_per_step
    assert K % Kb == 0, "samples_per_step must divide the number of samples"
    G = K // Kb                      # grid steps
    R = Kb * E                       # edge rows processed per grid step

    node_b = node_inputs.reshape(K, N, C)

    # Split w_node2edge so the kernel never concatenates along the lane axis:
    # cat([s, r]) @ W == s @ W[:C] + r @ W[C:].
    w_n2e = params["w_n2e"]
    w_send = w_n2e[:C]
    w_recv = w_n2e[C:]
    w2_ev_row = params["w2_ev"].reshape(1, H)        # [H, 1] -> [1, H]

    def const(shape):
        return pl.BlockSpec(shape, lambda g, _nd=len(shape): (0,) * _nd)

    in_specs = [
        pl.BlockSpec((Kb, N, C), lambda g: (g, 0, 0)),   # node_b
        pl.BlockSpec((R, C), lambda g: (g, 0)),          # edges_input (flat rows)
        const((C, C)), const((C, C)), const((1, C)),     # w_send, w_recv, b_n2e
        const((C, H)), const((1, H)),                    # edge_self_evolve layer 1
        const((H, C)), const((1, C)),                    # edge_self_evolve layer 2
        const((C, H)), const((1, H)),                    # w_edge2value layer 1
        const((1, H)), const((1, 1)),                    # w_edge2value layer 2 (+ bias)
    ]
    out_specs = [
        pl.BlockSpec((R, C), lambda g: (g, 0)),          # edges_z
        pl.BlockSpec((Kb, E), lambda g: (g, 0)),         # edge_2_value (lane-dense)
    ]

    # Explicit scoped-VMEM limit: v5e defaults to 16 MiB scoped, v7x has only
    # 64 MiB physical per TC; keep the limit >= default 32 MiB and <= 48 MiB.
    step_bytes = _step_vmem_bytes(Kb, N, C)
    vmem_limit = int(min(max(32 << 20, step_bytes + (4 << 20)), 48 << 20))

    edges_z, value = pl.pallas_call(
        _edge_nri_kernel,
        out_shape=(
            jax.ShapeDtypeStruct((K * E, C), jnp.float32),
            jax.ShapeDtypeStruct((K, E), jnp.float32),
        ),
        grid_spec=pltpu.PrefetchScalarGridSpec(
            num_scalar_prefetch=0,
            grid=(G,),
            in_specs=in_specs,
            out_specs=out_specs,
        ),
        compiler_params=pltpu.CompilerParams(
            dimension_semantics=("parallel",),
            vmem_limit_bytes=vmem_limit),
    )(
        node_b, edges_input,
        w_send, w_recv, params["b_n2e"],
        params["w1_se"], params["b1_se"], params["w2_se"], params["b2_se"],
        params["w1_ev"], params["b1_ev"], w2_ev_row, params["b2_ev"],
    )

    return edges_z, value          # edges_z already [K*E, C]; value already [K, E]


def edge_nri_reference(node_inputs, edges_input, num_atoms, params):
    """Pure-JAX reference mirroring the PyTorch forward."""
    C = node_inputs.shape[1]
    N = num_atoms
    E = N * N
    K = node_inputs.shape[0] // N

    node_b = node_inputs.reshape(K, N, C)
    rows = jnp.repeat(jnp.arange(N), N)
    cols = jnp.tile(jnp.arange(N), N)
    senders = node_b[:, rows, :]
    receivers = node_b[:, cols, :]
    edges = jnp.concatenate([senders, receivers], axis=-1)
    ef = _exact_gelu(edges @ params["w_n2e"] + params["b_n2e"])

    x = edges_input
    mu = jnp.mean(x, axis=-1, keepdims=True)
    var = jnp.mean((x - mu) ** 2, axis=-1, keepdims=True)
    xn = (x - mu) / jnp.sqrt(var + 1e-5)
    h = jnp.maximum(xn @ params["w1_se"] + params["b1_se"], 0.0)
    es = (h @ params["w2_se"] + params["b2_se"]).reshape(K, E, C)

    z = ef + es
    hv = jnp.maximum(z @ params["w1_ev"] + params["b1_ev"], 0.0)
    v = jnp.squeeze(jnp.maximum(hv @ params["w2_ev"] + params["b2_ev"], 0.0), axis=-1)
    return z.reshape(-1, C), v


def make_params(key, in_channels):
    C = in_channels
    H = C // 2
    ks = jax.random.split(key, 8)
    scale = 0.1
    return {
        "w_n2e": scale * jax.random.normal(ks[0], (2 * C, C), jnp.float32),
        "b_n2e": scale * jax.random.normal(ks[1], (1, C), jnp.float32),
        "w1_se": scale * jax.random.normal(ks[2], (C, H), jnp.float32),
        "b1_se": jnp.zeros((1, H), jnp.float32),
        "w2_se": scale * jax.random.normal(ks[3], (H, C), jnp.float32),
        "b2_se": jnp.zeros((1, C), jnp.float32),
        "w1_ev": scale * jax.random.normal(ks[4], (C, H), jnp.float32),
        "b1_ev": jnp.zeros((1, H), jnp.float32),
        "w2_ev": scale * jax.random.normal(ks[5], (H, 1), jnp.float32),
        "b2_ev": jnp.zeros((1, 1), jnp.float32),
    }


if __name__ == "__main__":
    K = 16           # samples (time steps)
    N = 8            # num_atoms
    C = 32           # in_channels == node feature dim == edge feature dim
    E = N * N

    key = jax.random.PRNGKey(0)
    k_node, k_edge, k_par = jax.random.split(key, 3)
    node_inputs = jax.random.normal(k_node, (K * N, C), jnp.float32)     # [K*N, D]
    edges_input = jax.random.normal(k_edge, (K * E, C), jnp.float32)     # [K*N*N, D]
    params = make_params(k_par, C)

    fwd = jax.jit(functools.partial(edge_nri_forward, num_atoms=N, params=params))
    edges_z, edge_2_value = fwd(node_inputs, edges_input)
    jax.block_until_ready((edges_z, edge_2_value))

    ref_z, ref_v = edge_nri_reference(node_inputs, edges_input, N, params)
    assert edges_z.shape == (K * E, C) and edge_2_value.shape == (K, E)
    assert jnp.allclose(edges_z, ref_z, atol=2e-4, rtol=2e-4)
    assert jnp.allclose(edge_2_value, ref_v, atol=2e-4, rtol=2e-4)

    print("KERNEL_OK")
</pallas_src>

<mosaic_0001>
module attributes {stable_mosaic.version = 11 : i64} {
  func.func @_edge_nri_kernel(%arg0: i32, %arg1: memref<16x8x32xf32, #tpu.memory_space<vmem>>, %arg2: memref<1024x32xf32, #tpu.memory_space<vmem>>, %arg3: memref<32x32xf32, #tpu.memory_space<vmem>>, %arg4: memref<32x32xf32, #tpu.memory_space<vmem>>, %arg5: memref<1x32xf32, #tpu.memory_space<vmem>>, %arg6: memref<32x16xf32, #tpu.memory_space<vmem>>, %arg7: memref<1x16xf32, #tpu.memory_space<vmem>>, %arg8: memref<16x32xf32, #tpu.memory_space<vmem>>, %arg9: memref<1x32xf32, #tpu.memory_space<vmem>>, %arg10: memref<32x16xf32, #tpu.memory_space<vmem>>, %arg11: memref<1x16xf32, #tpu.memory_space<vmem>>, %arg12: memref<1x16xf32, #tpu.memory_space<vmem>>, %arg13: memref<1x1xf32, #tpu.memory_space<vmem>>, %arg14: memref<1024x32xf32, #tpu.memory_space<vmem>>, %arg15: memref<16x64xf32, #tpu.memory_space<vmem>>) attributes {dimension_semantics = [#tpu.dimension_semantics<parallel>], iteration_bounds = array<i64: 1>, scalar_prefetch = 0 : i64, scratch_operands = 0 : i64, tpu.core_type = #tpu.core_type<tc>, window_params = [{transform_indices = @transform_0, window_bounds = array<i64: 16, 8, 32>}, {transform_indices = @transform_1, window_bounds = array<i64: 1024, 32>}, {pipeline_mode = #tpu.pipeline_mode<synchronous>, transform_indices = @transform_2, window_bounds = array<i64: 32, 32>}, {pipeline_mode = #tpu.pipeline_mode<synchronous>, transform_indices = @transform_3, window_bounds = array<i64: 32, 32>}, {pipeline_mode = #tpu.pipeline_mode<synchronous>, transform_indices = @transform_4, window_bounds = array<i64: 1, 32>}, {pipeline_mode = #tpu.pipeline_mode<synchronous>, transform_indices = @transform_5, window_bounds = array<i64: 32, 16>}, {pipeline_mode = #tpu.pipeline_mode<synchronous>, transform_indices = @transform_6, window_bounds = array<i64: 1, 16>}, {pipeline_mode = #tpu.pipeline_mode<synchronous>, transform_indices = @transform_7, window_bounds = array<i64: 16, 32>}, {pipeline_mode = #tpu.pipeline_mode<synchronous>, transform_indices = @transform_8, window_bounds = array<i64: 1, 32>}, {pipeline_mode = #tpu.pipeline_mode<synchronous>, transform_indices = @transform_9, window_bounds = array<i64: 32, 16>}, {pipeline_mode = #tpu.pipeline_mode<synchronous>, transform_indices = @transform_10, window_bounds = array<i64: 1, 16>}, {pipeline_mode = #tpu.pipeline_mode<synchronous>, transform_indices = @transform_11, window_bounds = array<i64: 1, 16>}, {pipeline_mode = #tpu.pipeline_mode<synchronous>, transform_indices = @transform_12, window_bounds = array<i64: 1, 1>}, {transform_indices = @transform_13, window_bounds = array<i64: 1024, 32>}, {transform_indices = @transform_14, window_bounds = array<i64: 16, 64>}]} {
    %c0 = arith.constant 0 : index
    %c0_0 = arith.constant 0 : index
    %c0_1 = arith.constant 0 : index
    %0 = vector.load %arg1[%c0, %c0_0, %c0_1] : memref<16x8x32xf32, #tpu.memory_space<vmem>>, vector<16x8x32xf32>
    %1 = vector.shape_cast %0 : vector<16x8x32xf32> to vector<128x32xf32>
    %c0_2 = arith.constant 0 : index
    %c0_3 = arith.constant 0 : index
    %2 = vector.load %arg3[%c0_2, %c0_3] : memref<32x32xf32, #tpu.memory_space<vmem>>, vector<32x32xf32>
    %cst = arith.constant dense<0.000000e+00> : vector<128x32xf32>
    %3 = tpu.matmul %1, %2, %cst {dimension_numbers = #tpu.dot_dimension_numbers<[1], [0], [0], [1], [0, 0, 1, 1], [], []>} : vector<128x32xf32>, vector<32x32xf32>, vector<128x32xf32> -> vector<128x32xf32>
    %4 = vector.shape_cast %3 : vector<128x32xf32> to vector<16x8x32xf32>
    %c0_4 = arith.constant 0 : index
    %c0_5 = arith.constant 0 : index
    %5 = vector.load %arg4[%c0_4, %c0_5] : memref<32x32xf32, #tpu.memory_space<vmem>>, vector<32x32xf32>
    %cst_6 = arith.constant dense<0.000000e+00> : vector<128x32xf32>
    %6 = tpu.matmul %1, %5, %cst_6 {dimension_numbers = #tpu.dot_dimension_numbers<[1], [0], [0], [1], [0, 0, 1, 1], [], []>} : vector<128x32xf32>, vector<32x32xf32>, vector<128x32xf32> -> vector<128x32xf32>
    %7 = vector.shape_cast %6 : vector<128x32xf32> to vector<16x8x32xf32>
    %8 = vector.shape_cast %4 : vector<16x8x32xf32> to vector<16x8x1x32xf32>
    %9 = vector.shape_cast %7 : vector<16x8x32xf32> to vector<16x1x8x32xf32>
    %10 = vector.broadcast %8 : vector<16x8x1x32xf32> to vector<16x8x8x32xf32>
    %11 = vector.broadcast %9 : vector<16x1x8x32xf32> to vector<16x8x8x32xf32>
    %12 = arith.addf %10, %11 : vector<16x8x8x32xf32>
    %c0_7 = arith.constant 0 : index
    %c0_8 = arith.constant 0 : index
    %13 = vector.load %arg5[%c0_7, %c0_8] : memref<1x32xf32, #tpu.memory_space<vmem>>, vector<1x32xf32>
    %14 = vector.shape_cast %13 : vector<1x32xf32> to vector<1x1x1x32xf32>
    %15 = vector.broadcast %14 : vector<1x1x1x32xf32> to vector<16x8x8x32xf32>
    %16 = arith.addf %12, %15 : vector<16x8x8x32xf32>
    %cst_9 = arith.constant 5.000000e-01 : f32
    %17 = vector.broadcast %cst_9 : f32 to vector<16x8x8x32xf32>
    %18 = arith.mulf %17, %16 : vector<16x8x8x32xf32>
    %cst_10 = arith.constant 0.707106769 : f32
    %19 = vector.broadcast %cst_10 : f32 to vector<16x8x8x32xf32>
    %20 = arith.mulf %16, %19 : vector<16x8x8x32xf32>
    %21 = math.erf %20 : vector<16x8x8x32xf32>
    %cst_11 = arith.constant 1.000000e+00 : f32
    %22 = vector.broadcast %cst_11 : f32 to vector<16x8x8x32xf32>
    %23 = arith.addf %22, %21 : vector<16x8x8x32xf32>
    %24 = arith.mulf %18, %23 : vector<16x8x8x32xf32>
    %25 = vector.shape_cast %24 : vector<16x8x8x32xf32> to vector<1024x32xf32>
    %c0_12 = arith.constant 0 : index
    %c0_13 = arith.constant 0 : index
    %26 = vector.load %arg2[%c0_12, %c0_13] : memref<1024x32xf32, #tpu.memory_space<vmem>>, vector<1024x32xf32>
    %cst_14 = arith.constant dense<0.000000e+00> : vector<1024xf32>
    %27 = vector.multi_reduction <add>, %26, %cst_14 [1] : vector<1024x32xf32> to vector<1024xf32>
    %28 = vector.shape_cast %27 : vector<1024xf32> to vector<1024x1xf32>
    %cst_15 = arith.constant 3.200000e+01 : f32
    %29 = vector.broadcast %cst_15 : f32 to vector<1024x1xf32>
    %30 = arith.divf %28, %29 : vector<1024x1xf32>
    %31 = vector.broadcast %30 : vector<1024x1xf32> to vector<1024x32xf32>
    %32 = arith.subf %26, %31 : vector<1024x32xf32>
    %33 = vector.broadcast %30 : vector<1024x1xf32> to vector<1024x32xf32>
    %34 = arith.subf %26, %33 : vector<1024x32xf32>
    %35 = arith.mulf %32, %34 : vector<1024x32xf32>
    %cst_16 = arith.constant dense<0.000000e+00> : vector<1024xf32>
    %36 = vector.multi_reduction <add>, %35, %cst_16 [1] : vector<1024x32xf32> to vector<1024xf32>
    %37 = vector.shape_cast %36 : vector<1024xf32> to vector<1024x1xf32>
    %cst_17 = arith.constant 3.200000e+01 : f32
    %38 = vector.broadcast %cst_17 : f32 to vector<1024x1xf32>
    %39 = arith.divf %37, %38 : vector<1024x1xf32>
    %40 = vector.broadcast %30 : vector<1024x1xf32> to vector<1024x32xf32>
    %41 = arith.subf %26, %40 : vector<1024x32xf32>
    %cst_18 = arith.constant 9.99999974E-6 : f32
    %42 = vector.broadcast %cst_18 : f32 to vector<1024x1xf32>
    %43 = arith.addf %39, %42 : vector<1024x1xf32>
    %44 = math.rsqrt %43 : vector<1024x1xf32>
    %45 = vector.broadcast %44 : vector<1024x1xf32> to vector<1024x32xf32>
    %46 = arith.mulf %41, %45 : vector<1024x32xf32>
    %c0_19 = arith.constant 0 : index
    %c0_20 = arith.constant 0 : index
    %47 = vector.load %arg6[%c0_19, %c0_20] : memref<32x16xf32, #tpu.memory_space<vmem>>, vector<32x16xf32>
    %cst_21 = arith.constant dense<0.000000e+00> : vector<1024x16xf32>
    %48 = tpu.matmul %46, %47, %cst_21 {dimension_numbers = #tpu.dot_dimension_numbers<[1], [0], [0], [1], [0, 0, 1, 1], [], []>} : vector<1024x32xf32>, vector<32x16xf32>, vector<1024x16xf32> -> vector<1024x16xf32>
    %c0_22 = arith.constant 0 : index
    %c0_23 = arith.constant 0 : index
    %49 = vector.load %arg7[%c0_22, %c0_23] : memref<1x16xf32, #tpu.memory_space<vmem>>, vector<1x16xf32>
    %50 = vector.broadcast %49 : vector<1x16xf32> to vector<1024x16xf32>
    %51 = arith.addf %48, %50 : vector<1024x16xf32>
    %cst_24 = arith.constant 0.000000e+00 : f32
    %52 = vector.broadcast %cst_24 : f32 to vector<1024x16xf32>
    %53 = arith.maximumf %51, %52 : vector<1024x16xf32>
    %c0_25 = arith.constant 0 : index
    %c0_26 = arith.constant 0 : index
    %54 = vector.load %arg8[%c0_25, %c0_26] : memref<16x32xf32, #tpu.memory_space<vmem>>, vector<16x32xf32>
    %cst_27 = arith.constant dense<0.000000e+00> : vector<1024x32xf32>
    %55 = tpu.matmul %53, %54, %cst_27 {dimension_numbers = #tpu.dot_dimension_numbers<[1], [0], [0], [1], [0, 0, 1, 1], [], []>} : vector<1024x16xf32>, vector<16x32xf32>, vector<1024x32xf32> -> vector<1024x32xf32>
    %c0_28 = arith.constant 0 : index
    %c0_29 = arith.constant 0 : index
    %56 = vector.load %arg9[%c0_28, %c0_29] : memref<1x32xf32, #tpu.memory_space<vmem>>, vector<1x32xf32>
    %57 = vector.broadcast %56 : vector<1x32xf32> to vector<1024x32xf32>
    %58 = arith.addf %55, %57 : vector<1024x32xf32>
    %59 = arith.addf %25, %58 : vector<1024x32xf32>
    %c0_30 = arith.constant 0 : index
    %c0_31 = arith.constant 0 : index
    %60 = vector.load %arg14[%c0_30, %c0_31] : memref<1024x32xf32, #tpu.memory_space<vmem>>, vector<1024x32xf32>
    tpu.vector_store %arg14[%c0_30, %c0_31], %59 {strides = array<i32>} : memref<1024x32xf32, #tpu.memory_space<vmem>>, vector<1024x32xf32>,
    %c0_32 = arith.constant 0 : index
    %c0_33 = arith.constant 0 : index
    %61 = vector.load %arg10[%c0_32, %c0_33] : memref<32x16xf32, #tpu.memory_space<vmem>>, vector<32x16xf32>
    %cst_34 = arith.constant dense<0.000000e+00> : vector<1024x16xf32>
    %62 = tpu.matmul %59, %61, %cst_34 {dimension_numbers = #tpu.dot_dimension_numbers<[1], [0], [0], [1], [0, 0, 1, 1], [], []>} : vector<1024x32xf32>, vector<32x16xf32>, vector<1024x16xf32> -> vector<1024x16xf32>
    %c0_35 = arith.constant 0 : index
    %c0_36 = arith.constant 0 : index
    %63 = vector.load %arg11[%c0_35, %c0_36] : memref<1x16xf32, #tpu.memory_space<vmem>>, vector<1x16xf32>
    %64 = vector.broadcast %63 : vector<1x16xf32> to vector<1024x16xf32>
    %65 = arith.addf %62, %64 : vector<1024x16xf32>
    %cst_37 = arith.constant 0.000000e+00 : f32
    %66 = vector.broadcast %cst_37 : f32 to vector<1024x16xf32>
    %67 = arith.maximumf %65, %66 : vector<1024x16xf32>
    %68 = vector.shape_cast %67 : vector<1024x16xf32> to vector<16x64x16xf32>
    %c0_38 = arith.constant 0 : index
    %c0_39 = arith.constant 0 : index
    %69 = vector.load %arg12[%c0_38, %c0_39] : memref<1x16xf32, #tpu.memory_space<vmem>>, vector<1x16xf32>
    %70 = vector.shape_cast %69 : vector<1x16xf32> to vector<1x1x16xf32>
    %71 = vector.broadcast %70 : vector<1x1x16xf32> to vector<16x64x16xf32>
    %72 = arith.mulf %68, %71 : vector<16x64x16xf32>
    %cst_40 = arith.constant dense<0.000000e+00> : vector<16x64xf32>
    %73 = vector.multi_reduction <add>, %72, %cst_40 [2] : vector<16x64x16xf32> to vector<16x64xf32>
    %c0_41 = arith.constant 0 : index
    %c0_42 = arith.constant 0 : index
    %74 = vector.load %arg13[%c0_41, %c0_42] : memref<1x1xf32, #tpu.memory_space<vmem>>, vector<1x1xf32>
    %75 = vector.broadcast %74 : vector<1x1xf32> to vector<16x64xf32>
    %76 = arith.addf %73, %75 : vector<16x64xf32>
    %cst_43 = arith.constant 0.000000e+00 : f32
    %77 = vector.broadcast %cst_43 : f32 to vector<16x64xf32>
    %78 = arith.maximumf %76, %77 : vector<16x64xf32>
    %c0_44 = arith.constant 0 : index
    %c0_45 = arith.constant 0 : index
    %79 = vector.load %arg15[%c0_44, %c0_45] : memref<16x64xf32, #tpu.memory_space<vmem>>, vector<16x64xf32>
    tpu.vector_store %arg15[%c0_44, %c0_45], %78 {strides = array<i32>} : memref<16x64xf32, #tpu.memory_space<vmem>>, vector<16x64xf32>,
    return
  }
  func.func @transform_0(%arg0: i32) -> (i32, i32, i32) {
    %c0_i32 = arith.constant 0 : i32
    %c0_i32_0 = arith.constant 0 : i32
    %c0_i32_1 = arith.constant 0 : i32
    return %arg0, %c0_i32, %c0_i32_0 : i32, i32, i32
  }
  func.func @transform_1(%arg0: i32) -> (i32, i32) {
    %c0_i32 = arith.constant 0 : i32
    %c0_i32_0 = arith.constant 0 : i32
    return %arg0, %c0_i32 : i32, i32
  }
  func.func @transform_2(%arg0: i32) -> (i32, i32) {
    %c0_i32 = arith.constant 0 : i32
    %c0_i32_0 = arith.constant 0 : i32
    %c0_i32_1 = arith.constant 0 : i32
    return %c0_i32, %c0_i32_0 : i32, i32
  }
  func.func @transform_3(%arg0: i32) -> (i32, i32) {
    %c0_i32 = arith.constant 0 : i32
    %c0_i32_0 = arith.constant 0 : i32
    %c0_i32_1 = arith.constant 0 : i32
    return %c0_i32, %c0_i32_0 : i32, i32
  }
  func.func @transform_4(%arg0: i32) -> (i32, i32) {
    %c0_i32 = arith.constant 0 : i32
    %c0_i32_0 = arith.constant 0 : i32
    %c0_i32_1 = arith.constant 0 : i32
    return %c0_i32, %c0_i32_0 : i32, i32
  }
  func.func @transform_5(%arg0: i32) -> (i32, i32) {
    %c0_i32 = arith.constant 0 : i32
    %c0_i32_0 = arith.constant 0 : i32
    %c0_i32_1 = arith.constant 0 : i32
    return %c0_i32, %c0_i32_0 : i32, i32
  }
  func.func @transform_6(%arg0: i32) -> (i32, i32) {
    %c0_i32 = arith.constant 0 : i32
    %c0_i32_0 = arith.constant 0 : i32
    %c0_i32_1 = arith.constant 0 : i32
    return %c0_i32, %c0_i32_0 : i32, i32
  }
  func.func @transform_7(%arg0: i32) -> (i32, i32) {
    %c0_i32 = arith.constant 0 : i32
    %c0_i32_0 = arith.constant 0 : i32
    %c0_i32_1 = arith.constant 0 : i32
    return %c0_i32, %c0_i32_0 : i32, i32
  }
  func.func @transform_8(%arg0: i32) -> (i32, i32) {
    %c0_i32 = arith.constant 0 : i32
    %c0_i32_0 = arith.constant 0 : i32
    %c0_i32_1 = arith.constant 0 : i32
    return %c0_i32, %c0_i32_0 : i32, i32
  }
  func.func @transform_9(%arg0: i32) -> (i32, i32) {
    %c0_i32 = arith.constant 0 : i32
    %c0_i32_0 = arith.constant 0 : i32
    %c0_i32_1 = arith.constant 0 : i32
    return %c0_i32, %c0_i32_0 : i32, i32
  }
  func.func @transform_10(%arg0: i32) -> (i32, i32) {
    %c0_i32 = arith.constant 0 : i32
    %c0_i32_0 = arith.constant 0 : i32
    %c0_i32_1 = arith.constant 0 : i32
    return %c0_i32, %c0_i32_0 : i32, i32
  }
  func.func @transform_11(%arg0: i32) -> (i32, i32) {
    %c0_i32 = arith.constant 0 : i32
    %c0_i32_0 = arith.constant 0 : i32
    %c0_i32_1 = arith.constant 0 : i32
    return %c0_i32, %c0_i32_0 : i32, i32
  }
  func.func @transform_12(%arg0: i32) -> (i32, i32) {
    %c0_i32 = arith.constant 0 : i32
    %c0_i32_0 = arith.constant 0 : i32
    %c0_i32_1 = arith.constant 0 : i32
    return %c0_i32, %c0_i32_0 : i32, i32
  }
  func.func @transform_13(%arg0: i32) -> (i32, i32) {
    %c0_i32 = arith.constant 0 : i32
    %c0_i32_0 = arith.constant 0 : i32
    return %arg0, %c0_i32 : i32, i32
  }
  func.func @transform_14(%arg0: i32) -> (i32, i32) {
    %c0_i32 = arith.constant 0 : i32
    %c0_i32_0 = arith.constant 0 : i32
    return %arg0, %c0_i32 : i32, i32
  }
}

</mosaic_0001>

<llo_original>
// kernel: edge_nri_forward.1
$region0: #{edge_nri_forward.1}
  #allocation0 [shape = 'u32[]', space=smem, size = 0x4, offset = 0x4, fixed_abs, tag = 'smem constant byte address 0x4 - core index']
  #allocation1 [shape = 'u32[144,128]{1,0:T(1,128)}', space=vmem, size = 0x12000, scoped, tag = 'internal scratch']
  #allocation2 [shape = 'f32[1,1]{1,0:T(1,128)S(1)}', space=vmem, size = 0x200, scoped, tag = 'scoped memory for edge_nri_forward.1']
  %s0 = inlined_call_operand.vmem [shape: f32[16,8,32], index: 0, kind: input, shape index: {}]
  %s1 = inlined_call_operand.vmem [shape: f32[1024,32], index: 1, kind: input, shape index: {}]
  %s2 = inlined_call_operand.vmem [shape: f32[32,32], index: 2, kind: input, shape index: {}]
  %s3 = inlined_call_operand.vmem [shape: f32[32,32], index: 3, kind: input, shape index: {}]
  %s4 = inlined_call_operand.vmem [shape: f32[1,32], index: 4, kind: input, shape index: {}]
  %s5 = inlined_call_operand.vmem [shape: f32[32,16], index: 5, kind: input, shape index: {}]
  %s6 = inlined_call_operand.vmem [shape: f32[1,16], index: 6, kind: input, shape index: {}, may-alias: {6,10}]
  %s7 = inlined_call_operand.vmem [shape: f32[16,32], index: 7, kind: input, shape index: {}]
  %s8 = inlined_call_operand.vmem [shape: f32[1,32], index: 8, kind: input, shape index: {}]
  %s9 = inlined_call_operand.vmem [shape: f32[32,16], index: 9, kind: input, shape index: {}]
  %s10 = inlined_call_operand.vmem [shape: f32[1,16], index: 10, kind: input, shape index: {}, may-alias: {6,10}]
  %s11 = inlined_call_operand.vmem [shape: f32[1,16], index: 11, kind: input, shape index: {}]
  %s12 = inlined_call_operand.<no memory space> [shape: f32[1,1], index: 12, kind: input, shape index: {}]
  %s13 = inlined_call_operand.vmem [shape: f32[1024,32], index: 13, kind: output, shape index: {0}]
  %s14 = inlined_call_operand.hbm [shape: f32[16,64], index: 14, kind: output, shape index: {1}]
  %15 = xla_tuple %s13, %s14
  %s16 = sld [smem:[#allocation0]]
  $region70: #{edge_nri_forward.1} parent=0
    _
  %s18 = ssub.s32 1, %s16
  %s19 = scalar_select 0, %s18, %s16
  %v20 = vstv %s12
  %21 = vst [vmem:[#allocation2] sm:$0x1] %v20
  $region1: #{edge_nri_forward.1} parent=0
    #allocation3 [shape = 'u8[8192]{0}', space=vmem, size = 0x2000, scoped, tag = 'output window, operand 1, single buffered']
    #allocation4 [shape = 's32[1]{0}', space=sflag, size = 0x4, scoped, tag = 'scoped memory for edge_nri_forward.1']
    %22 = vsyncpa [#allocation4], 0
    // Predicated region
    $region2: #{edge_nri_forward.1} parent=1 // pred_check
      _
    $region3: #{edge_nri_forward.1} parent=1 // pred_check_branch
      %24 = sbr.rel (0) target = $region5
    $region4: #{edge_nri_forward.1} parent=1 // pred_region
      _
    $region5: #{edge_nri_forward.1} parent=1 // pred_fallthru
      _
    // Predicated region
    $region6: #{edge_nri_forward.1} parent=1 // pred_check
      _
    $region7: #{edge_nri_forward.1} parent=1 // pred_check_branch
      %26 = sbr.rel (0) target = $region9
    $region8: #{edge_nri_forward.1} parent=1 // pred_region
      _
    $region9: #{edge_nri_forward.1} parent=1 // pred_fallthru
      _
    // Predicated region
    $region10: #{edge_nri_forward.1} parent=1 // pred_check
      _
    $region11: #{edge_nri_forward.1} parent=1 // pred_check_branch
      %28 = sbr.rel (0) target = $region13
    $region12: #{edge_nri_forward.1} parent=1 // pred_region
      _
    $region13: #{edge_nri_forward.1} parent=1 // pred_fallthru
      _
    // Predicated region
    $region14: #{edge_nri_forward.1} parent=1 // pred_check
      _
    $region15: #{edge_nri_forward.1} parent=1 // pred_check_branch
      %30 = sbr.rel (0) target = $region17
    $region16: #{edge_nri_forward.1} parent=1 // pred_region
      _
    $region17: #{edge_nri_forward.1} parent=1 // pred_fallthru
      _
    // Predicated region
    $region18: #{edge_nri_forward.1} parent=1 // pred_check
      _
    $region19: #{edge_nri_forward.1} parent=1 // pred_check_branch
      %32 = sbr.rel (0) target = $region21
    $region20: #{edge_nri_forward.1} parent=1 // pred_region
      _
    $region21: #{edge_nri_forward.1} parent=1 // pred_fallthru
      _
    // Predicated region
    $region22: #{edge_nri_forward.1} parent=1 // pred_check
      _
    $region23: #{edge_nri_forward.1} parent=1 // pred_check_branch
      %34 = sbr.rel (0) target = $region25
    $region24: #{edge_nri_forward.1} parent=1 // pred_region
      _
    $region25: #{edge_nri_forward.1} parent=1 // pred_fallthru
      _
    // Predicated region
    $region26: #{edge_nri_forward.1} parent=1 // pred_check
      _
    $region27: #{edge_nri_forward.1} parent=1 // pred_check_branch
      %36 = sbr.rel (0) target = $region29
    $region28: #{edge_nri_forward.1} parent=1 // pred_region
      _
    $region29: #{edge_nri_forward.1} parent=1 // pred_fallthru
      _
    // Predicated region
    $region30: #{edge_nri_forward.1} parent=1 // pred_check
      _
    $region31: #{edge_nri_forward.1} parent=1 // pred_check_branch
      %38 = sbr.rel (0) target = $region33
    $region32: #{edge_nri_forward.1} parent=1 // pred_region
      _
    $region33: #{edge_nri_forward.1} parent=1 // pred_fallthru
      _
    // Predicated region
    $region34: #{edge_nri_forward.1} parent=1 // pred_check
      _
    $region35: #{edge_nri_forward.1} parent=1 // pred_check_branch
      %40 = sbr.rel (0) target = $region37
    $region36: #{edge_nri_forward.1} parent=1 // pred_region
      _
    $region37: #{edge_nri_forward.1} parent=1 // pred_fallthru
      _
    // Predicated region
    $region38: #{edge_nri_forward.1} parent=1 // pred_check
      _
    $region39: #{edge_nri_forward.1} parent=1 // pred_check_branch
      %42 = sbr.rel (0) target = $region41
    $region40: #{edge_nri_forward.1} parent=1 // pred_region
      _
    $region41: #{edge_nri_forward.1} parent=1 // pred_fallthru
      _
    // Predicated region
    $region42: #{edge_nri_forward.1} parent=1 // pred_check
      _
    $region43: #{edge_nri_forward.1} parent=1 // pred_check_branch
      %44 = sbr.rel (0) target = $region45
    $region44: #{edge_nri_forward.1} parent=1 // pred_region
      _
    $region45: #{edge_nri_forward.1} parent=1 // pred_fallthru
      _
    // Predicated region
    $region46: #{edge_nri_forward.1} parent=1 // pred_check
      _
    $region47: #{edge_nri_forward.1} parent=1 // pred_check_branch
      %46 = sbr.rel (0) target = $region49
    $region48: #{edge_nri_forward.1} parent=1 // pred_region
      _
    $region49: #{edge_nri_forward.1} parent=1 // pred_fallthru
      _
    // Predicated region
    $region50: #{edge_nri_forward.1} parent=1 // pred_check
      _
    $region51: #{edge_nri_forward.1} parent=1 // pred_check_branch
      %48 = sbr.rel (0) target = $region53
    $region52: #{edge_nri_forward.1} parent=1 // pred_region
      _
    $region53: #{edge_nri_forward.1} parent=1 // pred_fallthru
      _
    %v49 = vld [vmem:[%s0] sm:$0xff]
    %v50 = vld [vmem:[%s0 + $0x8] sm:$0xff]
    %v51 = vld [vmem:[%s0 + $0x10] sm:$0xff]
    %v52 = vld [vmem:[%s0 + $0x18] sm:$0xff]
    %v53 = vld [vmem:[%s0 + $0x20] sm:$0xff]
    %v54 = vld [vmem:[%s0 + $0x28] sm:$0xff]
    %v55 = vld [vmem:[%s0 + $0x30] sm:$0xff]
    %v56 = vld [vmem:[%s0 + $0x38] sm:$0xff]
    %v57 = vld [vmem:[%s0 + $0x40] sm:$0xff]
    %v58 = vld [vmem:[%s0 + $0x48] sm:$0xff]
    %v59 = vld [vmem:[%s0 + $0x50] sm:$0xff]
    %v60 = vld [vmem:[%s0 + $0x58] sm:$0xff]
    %v61 = vld [vmem:[%s0 + $0x60] sm:$0xff]
    %v62 = vld [vmem:[%s0 + $0x68] sm:$0xff]
    %v63 = vld [vmem:[%s0 + $0x70] sm:$0xff]
    %v64 = vld [vmem:[%s0 + $0x78] sm:$0xff]
    %v65 = vld [vmem:[%s2] sm:$0xff]
    %v66 = vld [vmem:[%s2 + $0x8] sm:$0xff]
    %v67 = vld [vmem:[%s2 + $0x10] sm:$0xff]
    %v68 = vld [vmem:[%s2 + $0x18] sm:$0xff]
    %vm69 = vcmask 261120
    %v71 = vsel %vm69, %v49, 0
    %v74 = vsel %vm69, %v50, 0
    %v77 = vsel %vm69, %v51, 0
    %v80 = vsel %vm69, %v52, 0
    %v83 = vsel %vm69, %v53, 0
    %v86 = vsel %vm69, %v54, 0
    %v89 = vsel %vm69, %v55, 0
    %v92 = vsel %vm69, %v56, 0
    %v95 = vsel %vm69, %v57, 0
    %v98 = vsel %vm69, %v58, 0
    %v101 = vsel %vm69, %v59, 0
    %v104 = vsel %vm69, %v60, 0
    %v107 = vsel %vm69, %v61, 0
    %v110 = vsel %vm69, %v62, 0
    %v113 = vsel %vm69, %v63, 0
    %v116 = vsel %vm69, %v64, 0
    %118 = vmatprep.subr.mxu0 0.0
    %119 = vmatpush1.msra.mxu0 %v65
    %120 = vmatprep.subr.mxu0 0.0
    %121 = vmatpush1.msra.mxu0 %v66
    %122 = vmatprep.subr.mxu0 0.0
    %123 = vmatpush1.msra.mxu0 %v67
    %124 = vmatprep.subr.mxu0 0.0
    %125 = vmatpush1.msra.mxu0 %v68
    %126 = vmatprep.subr.mxu0 0.0
    %127 = vmatpush1.msra.mxu0 0.0
    %128 = vmatprep.subr.mxu0 0.0
    %129 = vmatpush1.msra.mxu0 0.0
    %130 = vmatprep.subr.mxu0 0.0
    %131 = vmatpush1.msra.mxu0 0.0
    %132 = vmatprep.subr.mxu0 0.0
    %133 = vmatpush1.msra.mxu0 0.0
    %134 = vmatprep.subr.mxu0 0.0
    %135 = vmatpush1.msra.mxu0 0.0
    %136 = vmatprep.subr.mxu0 0.0
    %137 = vmatpush1.msra.mxu0 0.0
    %138 = vmatprep.subr.mxu0 0.0
    %139 = vmatpush1.msra.mxu0 0.0
    %140 = vmatprep.subr.mxu0 0.0
    %141 = vmatpush1.msra.mxu0 0.0
    %142 = vmatprep.subr.mxu0 0.0
    %143 = vmatpush1.msra.mxu0 0.0
    %144 = vmatprep.subr.mxu0 0.0
    %145 = vmatpush1.msra.mxu0 0.0
    %146 = vmatprep.subr.mxu0 0.0
    %147 = vmatpush1.msra.mxu0 0.0
    %148 = vmatprep.subr.mxu0 0.0
    %149 = vmatpush1.msra.mxu0 0.0
    %150 = vmatprep.subr.mxu0 0.0
    %151 = vmatpush1.msra.mxu0 0.0
    %152 = vmatprep.subr.mxu0 0.0
    %153 = vmatpush1.msra.mxu0 0.0
    %154 = vmatprep.subr.mxu0 0.0
    %155 = vmatpush1.msra.mxu0 0.0
    %156 = vmatprep.subr.mxu0 0.0
    %157 = vmatpush1.msra.mxu0 0.0
    %158 = vmatprep.subr.mxu0 0.0
    %159 = vmatpush1.msra.mxu0 0.0
    %160 = vmatprep.subr.mxu0 0.0
    %161 = vmatpush1.msra.mxu0 0.0
    %162 = vmatprep.subr.mxu0 0.0
    %163 = vmatpush1.msra.mxu0 0.0
    %164 = vmatprep.subr.mxu0 0.0
    %165 = vmatpush1.msra.mxu0 0.0
    %166 = vmatprep.subr.mxu0 0.0
    %167 = vmatpush1.msra.mxu0 0.0
    %168 = vmatprep.subr.mxu0 0.0
    %169 = vmatpush1.msra.mxu0 0.0
    %170 = vmatprep.subr.mxu0 0.0
    %171 = vmatpush1.msra.mxu0 0.0
    %172 = vmatprep.subr.mxu0 0.0
    %173 = vmatpush1.msra.mxu0 0.0
    %174 = vmatprep.subr.mxu0 0.0
    %175 = vmatpush1.msra.mxu0 0.0
    %176 = vmatprep.subr.mxu0 0.0
    %177 = vmatpush1.msra.mxu0 0.0
    %178 = vmatprep.subr.mxu0 0.0
    %179 = vmatpush1.msra.mxu0 0.0
    %180 = vmatprep.subr.mxu0 0.0
    %181 = vmatpush1.msra.mxu0 0.0
    %182 = vmatprep.mubr.f32.mxu0 0.0
    %183 = vmatmul.mubr.f32.gmra.mrb[0].mxu0 %v71
    %v184 = vpop.f32.mrb[0].mxu0
    %v185 = vadd.f32 0.0, %v184
    %v186 = vpop.f32.mrb[0].mxu0
    %187 = vmatprep.mubr.f32.mxu0 0.0
    %188 = vmatmul.mubr.f32.gmra.mrb[0].mxu0 %v74
    %v189 = vpop.f32.mrb[0].mxu0
    %v190 = vadd.f32 0.0, %v189
    %v191 = vpop.f32.mrb[0].mxu0
    %192 = vmatprep.mubr.f32.mxu0 0.0
    %193 = vmatmul.mubr.f32.gmra.mrb[0].mxu0 %v77
    %v194 = vpop.f32.mrb[0].mxu0
    %v195 = vadd.f32 0.0, %v194
    %v196 = vpop.f32.mrb[0].mxu0
    %197 = vmatprep.mubr.f32.mxu0 0.0
    %198 = vmatmul.mubr.f32.gmra.mrb[0].mxu0 %v80
    %v199 = vpop.f32.mrb[0].mxu0
    %v200 = vadd.f32 0.0, %v199
    %v201 = vpop.f32.mrb[0].mxu0
    %202 = vmatprep.mubr.f32.mxu0 0.0
    %203 = vmatmul.mubr.f32.gmra.mrb[0].mxu0 %v83
    %v204 = vpop.f32.mrb[0].mxu0
    %v205 = vadd.f32 0.0, %v204
    %v206 = vpop.f32.mrb[0].mxu0
    %207 = vmatprep.mubr.f32.mxu0 0.0
    %208 = vmatmul.mubr.f32.gmra.mrb[0].mxu0 %v86
    %v209 = vpop.f32.mrb[0].mxu0
    %v210 = vadd.f32 0.0, %v209
    %v211 = vpop.f32.mrb[0].mxu0
    %212 = vmatprep.mubr.f32.mxu0 0.0
    %213 = vmatmul.mubr.f32.gmra.mrb[0].mxu0 %v89
    %v214 = vpop.f32.mrb[0].mxu0
    %v215 = vadd.f32 0.0, %v214
    %v216 = vpop.f32.mrb[0].mxu0
    %217 = vmatprep.mubr.f32.mxu0 0.0
    %218 = vmatmul.mubr.f32.gmra.mrb[0].mxu0 %v92
    %v219 = vpop.f32.mrb[0].mxu0
    %v220 = vadd.f32 0.0, %v219
    %v221 = vpop.f32.mrb[0].mxu0
    %222 = vmatprep.mubr.f32.mxu0 0.0
    %223 = vmatmul.mubr.f32.gmra.mrb[0].mxu0 %v95
    %v224 = vpop.f32.mrb[0].mxu0
    %v225 = vadd.f32 0.0, %v224
    %v226 = vpop.f32.mrb[0].mxu0
    %227 = vmatprep.mubr.f32.mxu0 0.0
    %228 = vmatmul.mubr.f32.gmra.mrb[0].mxu0 %v98
    %v229 = vpop.f32.mrb[0].mxu0
    %v230 = vadd.f32 0.0, %v229
    %v231 = vpop.f32.mrb[0].mxu0
    %232 = vmatprep.mubr.f32.mxu0 0.0
    %233 = vmatmul.mubr.f32.gmra.mrb[0].mxu0 %v101
    %v234 = vpop.f32.mrb[0].mxu0
    %v235 = vadd.f32 0.0, %v234
    %v236 = vpop.f32.mrb[0].mxu0
    %237 = vmatprep.mubr.f32.mxu0 0.0
    %238 = vmatmul.mubr.f32.gmra.mrb[0].mxu0 %v104
    %v239 = vpop.f32.mrb[0].mxu0
    %v240 = vadd.f32 0.0, %v239
    %v241 = vpop.f32.mrb[0].mxu0
    %242 = vmatprep.mubr.f32.mxu0 0.0
    %243 = vmatmul.mubr.f32.gmra.mrb[0].mxu0 %v107
    %v244 = vpop.f32.mrb[0].mxu0
    %v245 = vadd.f32 0.0, %v244
    %v246 = vpop.f32.mrb[0].mxu0
    %247 = vmatprep.mubr.f32.mxu0 0.0
    %248 = vmatmul.mubr.f32.gmra.mrb[0].mxu0 %v110
    %v249 = vpop.f32.mrb[0].mxu0
    %v250 = vadd.f32 0.0, %v249
    %v251 = vpop.f32.mrb[0].mxu0
    %252 = vmatprep.mubr.f32.mxu0 0.0
    %253 = vmatmul.mubr.f32.gmra.mrb[0].mxu0 %v113
    %v254 = vpop.f32.mrb[0].mxu0
    %v255 = vadd.f32 0.0, %v254
    %v256 = vpop.f32.mrb[0].mxu0
    %257 = vmatprep.mubr.f32.mxu0 0.0
    %258 = vmatmul.mubr.f32.gmra.mrb[0].mxu0 %v116
    %v259 = vpop.f32.mrb[0].mxu0
    %v260 = vadd.f32 0.0, %v259
    %v261 = vpop.f32.mrb[0].mxu0
    %262 = vdwg.mxu0
    %v263 = vld [vmem:[%s3] sm:$0xff]
    %v264 = vld [vmem:[%s3 + $0x8] sm:$0xff]
    %v265 = vld [vmem:[%s3 + $0x10] sm:$0xff]
    %v266 = vld [vmem:[%s3 + $0x18] sm:$0xff]
    %267 = vmatprep.subr.mxu0 0.0
    %268 = vmatpush1.msra.mxu0 %v263
    %269 = vmatprep.subr.mxu0 0.0
    %270 = vmatpush1.msra.mxu0 %v264
    %271 = vmatprep.subr.mxu0 0.0
    %272 = vmatpush1.msra.mxu0 %v265
    %273 = vmatprep.subr.mxu0 0.0
    %274 = vmatpush1.msra.mxu0 %v266
    %275 = vmatprep.subr.mxu0 0.0
    %276 = vmatpush1.msra.mxu0 0.0
    %277 = vmatprep.subr.mxu0 0.0
    %278 = vmatpush1.msra.mxu0 0.0
    %279 = vmatprep.subr.mxu0 0.0
    %280 = vmatpush1.msra.mxu0 0.0
    %281 = vmatprep.subr.mxu0 0.0
    %282 = vmatpush1.msra.mxu0 0.0
    %283 = vmatprep.subr.mxu0 0.0
    %284 = vmatpush1.msra.mxu0 0.0
    %285 = vmatprep.subr.mxu0 0.0
    %286 = vmatpush1.msra.mxu0 0.0
    %287 = vmatprep.subr.mxu0 0.0
    %288 = vmatpush1.msra.mxu0 0.0
    %289 = vmatprep.subr.mxu0 0.0
    %290 = vmatpush1.msra.mxu0 0.0
    %291 = vmatprep.subr.mxu0 0.0
    %292 = vmatpush1.msra.mxu0 0.0
    %293 = vmatprep.subr.mxu0 0.0
    %294 = vmatpush1.msra.mxu0 0.0
    %295 = vmatprep.subr.mxu0 0.0
    %296 = vmatpush1.msra.mxu0 0.0
    %297 = vmatprep.subr.mxu0 0.0
    %298 = vmatpush1.msra.mxu0 0.0
    %299 = vmatprep.subr.mxu0 0.0
    %300 = vmatpush1.msra.mxu0 0.0
    %301 = vmatprep.subr.mxu0 0.0
    %302 = vmatpush1.msra.mxu0 0.0
    %303 = vmatprep.subr.mxu0 0.0
    %304 = vmatpush1.msra.mxu0 0.0
    %305 = vmatprep.subr.mxu0 0.0
    %306 = vmatpush1.msra.mxu0 0.0
    %307 = vmatprep.subr.mxu0 0.0
    %308 = vmatpush1.msra.mxu0 0.0
    %309 = vmatprep.subr.mxu0 0.0
    %310 = vmatpush1.msra.mxu0 0.0
    %311 = vmatprep.subr.mxu0 0.0
    %312 = vmatpush1.msra.mxu0 0.0
    %313 = vmatprep.subr.mxu0 0.0
    %314 = vmatpush1.msra.mxu0 0.0
    %315 = vmatprep.subr.mxu0 0.0
    %316 = vmatpush1.msra.mxu0 0.0
    %317 = vmatprep.subr.mxu0 0.0
    %318 = vmatpush1.msra.mxu0 0.0
    %319 = vmatprep.subr.mxu0 0.0
    %320 = vmatpush1.msra.mxu0 0.0
    %321 = vmatprep.subr.mxu0 0.0
    %322 = vmatpush1.msra.mxu0 0.0
    %323 = vmatprep.subr.mxu0 0.0
    %324 = vmatpush1.msra.mxu0 0.0
    %325 = vmatprep.subr.mxu0 0.0
    %326 = vmatpush1.msra.mxu0 0.0
    %327 = vmatprep.subr.mxu0 0.0
    %328 = vmatpush1.msra.mxu0 0.0
    %329 = vmatprep.subr.mxu0 0.0
    %330 = vmatpush1.msra.mxu0 0.0
    %331 = vmatprep.mubr.f32.mxu0 0.0
    %332 = vmatmul.mubr.f32.gmra.mrb[0].mxu0 %v71
    %v333 = vpop.f32.mrb[0].mxu0
    %v334 = vadd.f32 0.0, %v333
    %v335 = vpop.f32.mrb[0].mxu0
    %336 = vmatprep.mubr.f32.mxu0 0.0
    %337 = vmatmul.mubr.f32.gmra.mrb[0].mxu0 %v74
    %v338 = vpop.f32.mrb[0].mxu0
    %v339 = vadd.f32 0.0, %v338
    %v340 = vpop.f32.mrb[0].mxu0
    %341 = vmatprep.mubr.f32.mxu0 0.0
    %342 = vmatmul.mubr.f32.gmra.mrb[0].mxu0 %v77
    %v343 = vpop.f32.mrb[0].mxu0
    %v344 = vadd.f32 0.0, %v343
    %v345 = vpop.f32.mrb[0].mxu0
    %346 = vmatprep.mubr.f32.mxu0 0.0
    %347 = vmatmul.mubr.f32.gmra.mrb[0].mxu0 %v80
    %v348 = vpop.f32.mrb[0].mxu0
    %v349 = vadd.f32 0.0, %v348
    %v350 = vpop.f32.mrb[0].mxu0
    %351 = vmatprep.mubr.f32.mxu0 0.0
    %352 = vmatmul.mubr.f32.gmra.mrb[0].mxu0 %v83
    %v353 = vpop.f32.mrb[0].mxu0
    %v354 = vadd.f32 0.0, %v353
    %v355 = vpop.f32.mrb[0].mxu0
    %356 = vmatprep.mubr.f32.mxu0 0.0
    %357 = vmatmul.mubr.f32.gmra.mrb[0].mxu0 %v86
    %v358 = vpop.f32.mrb[0].mxu0
    %v359 = vadd.f32 0.0, %v358
    %v360 = vpop.f32.mrb[0].mxu0
    %361 = vmatprep.mubr.f32.mxu0 0.0
    %362 = vmatmul.mubr.f32.gmra.mrb[0].mxu0 %v89
    %v363 = vpop.f32.mrb[0].mxu0
    %v364 = vadd.f32 0.0, %v363
    %v365 = vpop.f32.mrb[0].mxu0
    %366 = vmatprep.mubr.f32.mxu0 0.0
    %367 = vmatmul.mubr.f32.gmra.mrb[0].mxu0 %v92
    %v368 = vpop.f32.mrb[0].mxu0
    %v369 = vadd.f32 0.0, %v368
    %v370 = vpop.f32.mrb[0].mxu0
    %371 = vmatprep.mubr.f32.mxu0 0.0
    %372 = vmatmul.mubr.f32.gmra.mrb[0].mxu0 %v95
    %v373 = vpop.f32.mrb[0].mxu0
    %v374 = vadd.f32 0.0, %v373
    %v375 = vpop.f32.mrb[0].mxu0
    %376 = vmatprep.mubr.f32.mxu0 0.0
    %377 = vmatmul.mubr.f32.gmra.mrb[0].mxu0 %v98
    %v378 = vpop.f32.mrb[0].mxu0
    %v379 = vadd.f32 0.0, %v378
    %v380 = vpop.f32.mrb[0].mxu0
    %381 = vmatprep.mubr.f32.mxu0 0.0
    %382 = vmatmul.mubr.f32.gmra.mrb[0].mxu0 %v101
    %v383 = vpop.f32.mrb[0].mxu0
    %v384 = vadd.f32 0.0, %v383
    %v385 = vpop.f32.mrb[0].mxu0
    %386 = vmatprep.mubr.f32.mxu0 0.0
    %387 = vmatmul.mubr.f32.gmra.mrb[0].mxu0 %v104
    %v388 = vpop.f32.mrb[0].mxu0
    %v389 = vadd.f32 0.0, %v388
    %v390 = vpop.f32.mrb[0].mxu0
    %391 = vmatprep.mubr.f32.mxu0 0.0
    %392 = vmatmul.mubr.f32.gmra.mrb[0].mxu0 %v107
    %v393 = vpop.f32.mrb[0].mxu0
    %v394 = vadd.f32 0.0, %v393
    %v395 = vpop.f32.mrb[0].mxu0
    %396 = vmatprep.mubr.f32.mxu0 0.0
    %397 = vmatmul.mubr.f32.gmra.mrb[0].mxu0 %v110
    %v398 = vpop.f32.mrb[0].mxu0
    %v399 = vadd.f32 0.0, %v398
    %v400 = vpop.f32.mrb[0].mxu0
    %401 = vmatprep.mubr.f32.mxu0 0.0
    %402 = vmatmul.mubr.f32.gmra.mrb[0].mxu0 %v113
    %v403 = vpop.f32.mrb[0].mxu0
    %v404 = vadd.f32 0.0, %v403
    %v405 = vpop.f32.mrb[0].mxu0
    %406 = vmatprep.mubr.f32.mxu0 0.0
    %407 = vmatmul.mubr.f32.gmra.mrb[0].mxu0 %v116
    %v408 = vpop.f32.mrb[0].mxu0
    %v409 = vadd.f32 0.0, %v408
    %v410 = vpop.f32.mrb[0].mxu0
    %411 = vdwg.mxu0
    %v428 = vcombine.high %v185, %v185
    %v430 = vunpack.c.l.s4 1966171168
    %v431 = vunpack.c.0.s8 %v430
    %v432 = vlaneseq
    %v433 = vshrl.u32 %v432, 7
    %v434 = vsub.s32 %v431, %v433
    %v435 = vrot.slane %v185, %v434
    %v437 = vunpack.c.l.s4 1966171168
    %v438 = vunpack.c.0.s8 %v437
    %v439 = vlaneseq
    %v440 = vshrl.u32 %v439, 7
    %v441 = vsub.s32 %v438, %v440
    %v442 = vrot.slane %v428, %v441
    %v443 = vcombine.high %v435, %v435
    %v444 = vcombine.high %v442, %v442
    %v446 = vunpack.c.l.s4 1966171168
    %v447 = vunpack.c.0.s8 %v446
    %v448 = vlaneseq
    %v449 = vshrl.u32 %v448, 7
    %v450 = vsub.s32 %v447, %v449
    %v451 = vrot.slane %v435, %v450
    %v453 = vunpack.c.l.s4 1966171168
    %v454 = vunpack.c.0.s8 %v453
    %v455 = vlaneseq
    %v456 = vshrl.u32 %v455, 7
    %v457 = vsub.s32 %v454, %v456
    %v458 = vrot.slane %v442, %v457
    %v460 = vunpack.c.l.s4 1966171168
    %v461 = vunpack.c.0.s8 %v460
    %v462 = vlaneseq
    %v463 = vshrl.u32 %v462, 7
    %v464 = vsub.s32 %v461, %v463
    %v465 = vrot.slane %v443, %v464
    %v467 = vunpack.c.l.s4 1966171168
    %v468 = vunpack.c.0.s8 %v467
    %v469 = vlaneseq
    %v470 = vshrl.u32 %v469, 7
    %v471 = vsub.s32 %v468, %v470
    %v472 = vrot.slane %v444, %v471
    %v473 = vcombine.high %v451, %v451
    %v474 = vcombine.high %v458, %v458
    %v475 = vcombine.high %v465, %v465
    %v476 = vcombine.high %v472, %v472
    %v477 = vcombine.high %v190, %v190
    %v479 = vunpack.c.l.s4 1966171168
    %v480 = vunpack.c.0.s8 %v479
    %v481 = vlaneseq
    %v482 = vshrl.u32 %v481, 7
    %v483 = vsub.s32 %v480, %v482
    %v484 = vrot.slane %v190, %v483
    %v486 = vunpack.c.l.s4 1966171168
    %v487 = vunpack.c.0.s8 %v486
    %v488 = vlaneseq
    %v489 = vshrl.u32 %v488, 7
    %v490 = vsub.s32 %v487, %v489
    %v491 = vrot.slane %v477, %v490
    %v492 = vcombine.high %v484, %v484
    %v493 = vcombine.high %v491, %v491
    %v495 = vunpack.c.l.s4 1966171168
    %v496 = vunpack.c.0.s8 %v495
    %v497 = vlaneseq
    %v498 = vshrl.u32 %v497, 7
    %v499 = vsub.s32 %v496, %v498
    %v500 = vrot.slane %v484, %v499
    %v502 = vunpack.c.l.s4 1966171168
    %v503 = vunpack.c.0.s8 %v502
    %v504 = vlaneseq
    %v505 = vshrl.u32 %v504, 7
    %v506 = vsub.s32 %v503, %v505
    %v507 = vrot.slane %v491, %v506
    %v509 = vunpack.c.l.s4 1966171168
    %v510 = vunpack.c.0.s8 %v509
    %v511 = vlaneseq
    %v512 = vshrl.u32 %v511, 7
    %v513 = vsub.s32 %v510, %v512
    %v514 = vrot.slane %v492, %v513
    %v516 = vunpack.c.l.s4 1966171168
    %v517 = vunpack.c.0.s8 %v516
    %v518 = vlaneseq
    %v519 = vshrl.u32 %v518, 7
    %v520 = vsub.s32 %v517, %v519
    %v521 = vrot.slane %v493, %v520
    %v522 = vcombine.high %v500, %v500
    %v523 = vcombine.high %v507, %v507
    %v524 = vcombine.high %v514, %v514
    %v525 = vcombine.high %v521, %v521
    %v526 = vcombine.high %v195, %v195
    %v528 = vunpack.c.l.s4 1966171168
    %v529 = vunpack.c.0.s8 %v528
    %v530 = vlaneseq
    %v531 = vshrl.u32 %v530, 7
    %v532 = vsub.s32 %v529, %v531
    %v533 = vrot.slane %v195, %v532
    %v535 = vunpack.c.l.s4 1966171168
    %v536 = vunpack.c.0.s8 %v535
    %v537 = vlaneseq
    %v538 = vshrl.u32 %v537, 7
    %v539 = vsub.s32 %v536, %v538
    %v540 = vrot.slane %v526, %v539
    %v541 = vcombine.high %v533, %v533
    %v542 = vcombine.high %v540, %v540
    %v544 = vunpack.c.l.s4 1966171168
    %v545 = vunpack.c.0.s8 %v544
    %v546 = vlaneseq
    %v547 = vshrl.u32 %v546, 7
    %v548 = vsub.s32 %v545, %v547
    %v549 = vrot.slane %v533, %v548
    %v551 = vunpack.c.l.s4 1966171168
    %v552 = vunpack.c.0.s8 %v551
    %v553 = vlaneseq
    %v554 = vshrl.u32 %v553, 7
    %v555 = vsub.s32 %v552, %v554
    %v556 = vrot.slane %v540, %v555
    %v558 = vunpack.c.l.s4 1966171168
    %v559 = vunpack.c.0.s8 %v558
    %v560 = vlaneseq
    %v561 = vshrl.u32 %v560, 7
    %v562 = vsub.s32 %v559, %v561
    %v563 = vrot.slane %v541, %v562
    %v565 = vunpack.c.l.s4 1966171168
    %v566 = vunpack.c.0.s8 %v565
    %v567 = vlaneseq
    %v568 = vshrl.u32 %v567, 7
    %v569 = vsub.s32 %v566, %v568
    %v570 = vrot.slane %v542, %v569
    %v571 = vcombine.high %v549, %v549
    %v572 = vcombine.high %v556, %v556
    %v573 = vcombine.high %v563, %v563
    %v574 = vcombine.high %v570, %v570
    %v575 = vcombine.high %v200, %v200
    %v577 = vunpack.c.l.s4 1966171168
    %v578 = vunpack.c.0.s8 %v577
    %v579 = vlaneseq
    %v580 = vshrl.u32 %v579, 7
    %v581 = vsub.s32 %v578, %v580
    %v582 = vrot.slane %v200, %v581
    %v584 = vunpack.c.l.s4 1966171168
    %v585 = vunpack.c.0.s8 %v584
    %v586 = vlaneseq
    %v587 = vshrl.u32 %v586, 7
    %v588 = vsub.s32 %v585, %v587
    %v589 = vrot.slane %v575, %v588
    %v590 = vcombine.high %v582, %v582
    %v591 = vcombine.high %v589, %v589
    %v593 = vunpack.c.l.s4 1966171168
    %v594 = vunpack.c.0.s8 %v593
    %v595 = vlaneseq
    %v596 = vshrl.u32 %v595, 7
    %v597 = vsub.s32 %v594, %v596
    %v598 = vrot.slane %v582, %v597
    %v600 = vunpack.c.l.s4 1966171168
    %v601 = vunpack.c.0.s8 %v600
    %v602 = vlaneseq
    %v603 = vshrl.u32 %v602, 7
    %v604 = vsub.s32 %v601, %v603
    %v605 = vrot.slane %v589, %v604
    %v607 = vunpack.c.l.s4 1966171168
    %v608 = vunpack.c.0.s8 %v607
    %v609 = vlaneseq
    %v610 = vshrl.u32 %v609, 7
    %v611 = vsub.s32 %v608, %v610
    %v612 = vrot.slane %v590, %v611
    %v614 = vunpack.c.l.s4 1966171168
    %v615 = vunpack.c.0.s8 %v614
    %v616 = vlaneseq
    %v617 = vshrl.u32 %v616, 7
    %v618 = vsub.s32 %v615, %v617
    %v619 = vrot.slane %v591, %v618
    %v620 = vcombine.high %v598, %v598
    %v621 = vcombine.high %v605, %v605
    %v622 = vcombine.high %v612, %v612
    %v623 = vcombine.high %v619, %v619
    %v624 = vcombine.high %v205, %v205
    %v626 = vunpack.c.l.s4 1966171168
    %v627 = vunpack.c.0.s8 %v626
    %v628 = vlaneseq
    %v629 = vshrl.u32 %v628, 7
    %v630 = vsub.s32 %v627, %v629
    %v631 = vrot.slane %v205, %v630
    %v633 = vunpack.c.l.s4 1966171168
    %v634 = vunpack.c.0.s8 %v633
    %v635 = vlaneseq
    %v636 = vshrl.u32 %v635, 7
    %v637 = vsub.s32 %v634, %v636
    %v638 = vrot.slane %v624, %v637
    %v639 = vcombine.high %v631, %v631
    %v640 = vcombine.high %v638, %v638
    %v642 = vunpack.c.l.s4 1966171168
    %v643 = vunpack.c.0.s8 %v642
    %v644 = vlaneseq
    %v645 = vshrl.u32 %v644, 7
    %v646 = vsub.s32 %v643, %v645
    %v647 = vrot.slane %v631, %v646
    %v649 = vunpack.c.l.s4 1966171168
    %v650 = vunpack.c.0.s8 %v649
    %v651 = vlaneseq
    %v652 = vshrl.u32 %v651, 7
    %v653 = vsub.s32 %v650, %v652
    %v654 = vrot.slane %v638, %v653
    %v656 = vunpack.c.l.s4 1966171168
    %v657 = vunpack.c.0.s8 %v656
    %v658 = vlaneseq
    %v659 = vshrl.u32 %v658, 7
    %v660 = vsub.s32 %v657, %v659
    %v661 = vrot.slane %v639, %v660
    %v663 = vunpack.c.l.s4 1966171168
    %v664 = vunpack.c.0.s8 %v663
    %v665 = vlaneseq
    %v666 = vshrl.u32 %v665, 7
    %v667 = vsub.s32 %v664, %v666
    %v668 = vrot.slane %v640, %v667
    %v669 = vcombine.high %v647, %v647
    %v670 = vcombine.high %v654, %v654
    %v671 = vcombine.high %v661, %v661
    %v672 = vcombine.high %v668, %v668
    %v673 = vcombine.high %v210, %v210
    %v675 = vunpack.c.l.s4 1966171168
    %v676 = vunpack.c.0.s8 %v675
    %v677 = vlaneseq
    %v678 = vshrl.u32 %v677, 7
    %v679 = vsub.s32 %v676, %v678
    %v680 = vrot.slane %v210, %v679
    %v682 = vunpack.c.l.s4 1966171168
    %v683 = vunpack.c.0.s8 %v682
    %v684 = vlaneseq
    %v685 = vshrl.u32 %v684, 7
    %v686 = vsub.s32 %v683, %v685
    %v687 = vrot.slane %v673, %v686
    %v688 = vcombine.high %v680, %v680
    %v689 = vcombine.high %v687, %v687
    %v691 = vunpack.c.l.s4 1966171168
    %v692 = vunpack.c.0.s8 %v691
    %v693 = vlaneseq
    %v694 = vshrl.u32 %v693, 7
    %v695 = vsub.s32 %v692, %v694
    %v696 = vrot.slane %v680, %v695
    %v698 = vunpack.c.l.s4 1966171168
    %v699 = vunpack.c.0.s8 %v698
    %v700 = vlaneseq
    %v701 = vshrl.u32 %v700, 7
    %v702 = vsub.s32 %v699, %v701
    %v703 = vrot.slane %v687, %v702
    %v705 = vunpack.c.l.s4 1966171168
    %v706 = vunpack.c.0.s8 %v705
    %v707 = vlaneseq
    %v708 = vshrl.u32 %v707, 7
    %v709 = vsub.s32 %v706, %v708
    %v710 = vrot.slane %v688, %v709
    %v712 = vunpack.c.l.s4 1966171168
    %v713 = vunpack.c.0.s8 %v712
    %v714 = vlaneseq
    %v715 = vshrl.u32 %v714, 7
    %v716 = vsub.s32 %v713, %v715
    %v717 = vrot.slane %v689, %v716
    %v718 = vcombine.high %v696, %v696
    %v719 = vcombine.high %v703, %v703
    %v720 = vcombine.high %v710, %v710
    %v721 = vcombine.high %v717, %v717
    %v722 = vcombine.high %v215, %v215
    %v724 = vunpack.c.l.s4 1966171168
    %v725 = vunpack.c.0.s8 %v724
    %v726 = vlaneseq
    %v727 = vshrl.u32 %v726, 7
    %v728 = vsub.s32 %v725, %v727
    %v729 = vrot.slane %v215, %v728
    %v731 = vunpack.c.l.s4 1966171168
    %v732 = vunpack.c.0.s8 %v731
    %v733 = vlaneseq
    %v734 = vshrl.u32 %v733, 7
    %v735 = vsub.s32 %v732, %v734
    %v736 = vrot.slane %v722, %v735
    %v737 = vcombine.high %v729, %v729
    %v738 = vcombine.high %v736, %v736
    %v740 = vunpack.c.l.s4 1966171168
    %v741 = vunpack.c.0.s8 %v740
    %v742 = vlaneseq
    %v743 = vshrl.u32 %v742, 7
    %v744 = vsub.s32 %v741, %v743
    %v745 = vrot.slane %v729, %v744
    %v747 = vunpack.c.l.s4 1966171168
    %v748 = vunpack.c.0.s8 %v747
    %v749 = vlaneseq
    %v750 = vshrl.u32 %v749, 7
    %v751 = vsub.s32 %v748, %v750
    %v752 = vrot.slane %v736, %v751
    %v754 = vunpack.c.l.s4 1966171168
    %v755 = vunpack.c.0.s8 %v754
    %v756 = vlaneseq
    %v757 = vshrl.u32 %v756, 7
    %v758 = vsub.s32 %v755, %v757
    %v759 = vrot.slane %v737, %v758
    %v761 = vunpack.c.l.s4 1966171168
    %v762 = vunpack.c.0.s8 %v761
    %v763 = vlaneseq
    %v764 = vshrl.u32 %v763, 7
    %v765 = vsub.s32 %v762, %v764
    %v766 = vrot.slane %v738, %v765
    %v767 = vcombine.high %v745, %v745
    %v768 = vcombine.high %v752, %v752
    %v769 = vcombine.high %v759, %v759
    %v770 = vcombine.high %v766, %v766
    %v771 = vcombine.high %v220, %v220
    %v773 = vunpack.c.l.s4 1966171168
    %v774 = vunpack.c.0.s8 %v773
    %v775 = vlaneseq
    %v776 = vshrl.u32 %v775, 7
    %v777 = vsub.s32 %v774, %v776
    %v778 = vrot.slane %v220, %v777
    %v780 = vunpack.c.l.s4 1966171168
    %v781 = vunpack.c.0.s8 %v780
    %v782 = vlaneseq
    %v783 = vshrl.u32 %v782, 7
    %v784 = vsub.s32 %v781, %v783
    %v785 = vrot.slane %v771, %v784
    %v786 = vcombine.high %v778, %v778
    %v787 = vcombine.high %v785, %v785
    %v789 = vunpack.c.l.s4 1966171168
    %v790 = vunpack.c.0.s8 %v789
    %v791 = vlaneseq
    %v792 = vshrl.u32 %v791, 7
    %v793 = vsub.s32 %v790, %v792
    %v794 = vrot.slane %v778, %v793
    %v796 = vunpack.c.l.s4 1966171168
    %v797 = vunpack.c.0.s8 %v796
    %v798 = vlaneseq
    %v799 = vshrl.u32 %v798, 7
    %v800 = vsub.s32 %v797, %v799
    %v801 = vrot.slane %v785, %v800
    %v803 = vunpack.c.l.s4 1966171168
    %v804 = vunpack.c.0.s8 %v803
    %v805 = vlaneseq
    %v806 = vshrl.u32 %v805, 7
    %v807 = vsub.s32 %v804, %v806
    %v808 = vrot.slane %v786, %v807
    %v810 = vunpack.c.l.s4 1966171168
    %v811 = vunpack.c.0.s8 %v810
    %v812 = vlaneseq
    %v813 = vshrl.u32 %v812, 7
    %v814 = vsub.s32 %v811, %v813
    %v815 = vrot.slane %v787, %v814
    %v816 = vcombine.high %v794, %v794
    %v817 = vcombine.high %v801, %v801
    %v818 = vcombine.high %v808, %v808
    %v819 = vcombine.high %v815, %v815
    %v820 = vcombine.high %v225, %v225
    %v822 = vunpack.c.l.s4 1966171168
    %v823 = vunpack.c.0.s8 %v822
    %v824 = vlaneseq
    %v825 = vshrl.u32 %v824, 7
    %v826 = vsub.s32 %v823, %v825
    %v827 = vrot.slane %v225, %v826
    %v829 = vunpack.c.l.s4 1966171168
    %v830 = vunpack.c.0.s8 %v829
    %v831 = vlaneseq
    %v832 = vshrl.u32 %v831, 7
    %v833 = vsub.s32 %v830, %v832
    %v834 = vrot.slane %v820, %v833
    %v835 = vcombine.high %v827, %v827
    %v836 = vcombine.high %v834, %v834
    %v838 = vunpack.c.l.s4 1966171168
    %v839 = vunpack.c.0.s8 %v838
    %v840 = vlaneseq
    %v841 = vshrl.u32 %v840, 7
    %v842 = vsub.s32 %v839, %v841
    %v843 = vrot.slane %v827, %v842
    %v845 = vunpack.c.l.s4 1966171168
    %v846 = vunpack.c.0.s8 %v845
    %v847 = vlaneseq
    %v848 = vshrl.u32 %v847, 7
    %v849 = vsub.s32 %v846, %v848
    %v850 = vrot.slane %v834, %v849
    %v852 = vunpack.c.l.s4 1966171168
    %v853 = vunpack.c.0.s8 %v852
    %v854 = vlaneseq
    %v855 = vshrl.u32 %v854, 7
    %v856 = vsub.s32 %v853, %v855
    %v857 = vrot.slane %v835, %v856
    %v859 = vunpack.c.l.s4 1966171168
    %v860 = vunpack.c.0.s8 %v859
    %v861 = vlaneseq
    %v862 = vshrl.u32 %v861, 7
    %v863 = vsub.s32 %v860, %v862
    %v864 = vrot.slane %v836, %v863
    %v865 = vcombine.high %v843, %v843
    %v866 = vcombine.high %v850, %v850
    %v867 = vcombine.high %v857, %v857
    %v868 = vcombine.high %v864, %v864
    %v869 = vcombine.high %v230, %v230
    %v871 = vunpack.c.l.s4 1966171168
    %v872 = vunpack.c.0.s8 %v871
    %v873 = vlaneseq
    %v874 = vshrl.u32 %v873, 7
    %v875 = vsub.s32 %v872, %v874
    %v876 = vrot.slane %v230, %v875
    %v878 = vunpack.c.l.s4 1966171168
    %v879 = vunpack.c.0.s8 %v878
    %v880 = vlaneseq
    %v881 = vshrl.u32 %v880, 7
    %v882 = vsub.s32 %v879, %v881
    %v883 = vrot.slane %v869, %v882
    %v884 = vcombine.high %v876, %v876
    %v885 = vcombine.high %v883, %v883
    %v887 = vunpack.c.l.s4 1966171168
    %v888 = vunpack.c.0.s8 %v887
    %v889 = vlaneseq
    %v890 = vshrl.u32 %v889, 7
    %v891 = vsub.s32 %v888, %v890
    %v892 = vrot.slane %v876, %v891
    %v894 = vunpack.c.l.s4 1966171168
    %v895 = vunpack.c.0.s8 %v894
    %v896 = vlaneseq
    %v897 = vshrl.u32 %v896, 7
    %v898 = vsub.s32 %v895, %v897
    %v899 = vrot.slane %v883, %v898
    %v901 = vunpack.c.l.s4 1966171168
    %v902 = vunpack.c.0.s8 %v901
    %v903 = vlaneseq
    %v904 = vshrl.u32 %v903, 7
    %v905 = vsub.s32 %v902, %v904
    %v906 = vrot.slane %v884, %v905
    %v908 = vunpack.c.l.s4 1966171168
    %v909 = vunpack.c.0.s8 %v908
    %v910 = vlaneseq
    %v911 = vshrl.u32 %v910, 7
    %v912 = vsub.s32 %v909, %v911
    %v913 = vrot.slane %v885, %v912
    %v914 = vcombine.high %v892, %v892
    %v915 = vcombine.high %v899, %v899
    %v916 = vcombine.high %v906, %v906
    %v917 = vcombine.high %v913, %v913
    %v918 = vcombine.high %v235, %v235
    %v920 = vunpack.c.l.s4 1966171168
    %v921 = vunpack.c.0.s8 %v920
    %v922 = vlaneseq
    %v923 = vshrl.u32 %v922, 7
    %v924 = vsub.s32 %v921, %v923
    %v925 = vrot.slane %v235, %v924
    %v927 = vunpack.c.l.s4 1966171168
    %v928 = vunpack.c.0.s8 %v927
    %v929 = vlaneseq
    %v930 = vshrl.u32 %v929, 7
    %v931 = vsub.s32 %v928, %v930
    %v932 = vrot.slane %v918, %v931
    %v933 = vcombine.high %v925, %v925
    %v934 = vcombine.high %v932, %v932
    %v936 = vunpack.c.l.s4 1966171168
    %v937 = vunpack.c.0.s8 %v936
    %v938 = vlaneseq
    %v939 = vshrl.u32 %v938, 7
    %v940 = vsub.s32 %v937, %v939
    %v941 = vrot.slane %v925, %v940
    %v943 = vunpack.c.l.s4 1966171168
    %v944 = vunpack.c.0.s8 %v943
    %v945 = vlaneseq
    %v946 = vshrl.u32 %v945, 7
    %v947 = vsub.s32 %v944, %v946
    %v948 = vrot.slane %v932, %v947
    %v950 = vunpack.c.l.s4 1966171168
    %v951 = vunpack.c.0.s8 %v950
    %v952 = vlaneseq
    %v953 = vshrl.u32 %v952, 7
    %v954 = vsub.s32 %v951, %v953
    %v955 = vrot.slane %v933, %v954
    %v957 = vunpack.c.l.s4 1966171168
    %v958 = vunpack.c.0.s8 %v957
    %v959 = vlaneseq
    %v960 = vshrl.u32 %v959, 7
    %v961 = vsub.s32 %v958, %v960
    %v962 = vrot.slane %v934, %v961
    %v963 = vcombine.high %v941, %v941
    %v964 = vcombine.high %v948, %v948
    %v965 = vcombine.high %v955, %v955
    %v966 = vcombine.high %v962, %v962
    %v967 = vcombine.high %v240, %v240
    %v969 = vunpack.c.l.s4 1966171168
    %v970 = vunpack.c.0.s8 %v969
    %v971 = vlaneseq
    %v972 = vshrl.u32 %v971, 7
    %v973 = vsub.s32 %v970, %v972
    %v974 = vrot.slane %v240, %v973
    %v976 = vunpack.c.l.s4 1966171168
    %v977 = vunpack.c.0.s8 %v976
    %v978 = vlaneseq
    %v979 = vshrl.u32 %v978, 7
    %v980 = vsub.s32 %v977, %v979
    %v981 = vrot.slane %v967, %v980
    %v982 = vcombine.high %v974, %v974
    %v983 = vcombine.high %v981, %v981
    %v985 = vunpack.c.l.s4 1966171168
    %v986 = vunpack.c.0.s8 %v985
    %v987 = vlaneseq
    %v988 = vshrl.u32 %v987, 7
    %v989 = vsub.s32 %v986, %v988
    %v990 = vrot.slane %v974, %v989
    %v992 = vunpack.c.l.s4 1966171168
    %v993 = vunpack.c.0.s8 %v992
    %v994 = vlaneseq
    %v995 = vshrl.u32 %v994, 7
    %v996 = vsub.s32 %v993, %v995
    %v997 = vrot.slane %v981, %v996
    %v999 = vunpack.c.l.s4 1966171168
    %v1000 = vunpack.c.0.s8 %v999
    %v1001 = vlaneseq
    %v1002 = vshrl.u32 %v1001, 7
    %v1003 = vsub.s32 %v1000, %v1002
    %v1004 = vrot.slane %v982, %v1003
    %v1006 = vunpack.c.l.s4 1966171168
    %v1007 = vunpack.c.0.s8 %v1006
    %v1008 = vlaneseq
    %v1009 = vshrl.u32 %v1008, 7
    %v1010 = vsub.s32 %v1007, %v1009
    %v1011 = vrot.slane %v983, %v1010
    %v1012 = vcombine.high %v990, %v990
    %v1013 = vcombine.high %v997, %v997
    %v1014 = vcombine.high %v1004, %v1004
    %v1015 = vcombine.high %v1011, %v1011
    %v1016 = vcombine.high %v245, %v245
    %v1018 = vunpack.c.l.s4 1966171168
    %v1019 = vunpack.c.0.s8 %v1018
    %v1020 = vlaneseq
    %v1021 = vshrl.u32 %v1020, 7
    %v1022 = vsub.s32 %v1019, %v1021
    %v1023 = vrot.slane %v245, %v1022
    %v1025 = vunpack.c.l.s4 1966171168
    %v1026 = vunpack.c.0.s8 %v1025
    %v1027 = vlaneseq
    %v1028 = vshrl.u32 %v1027, 7
    %v1029 = vsub.s32 %v1026, %v1028
    %v1030 = vrot.slane %v1016, %v1029
    %v1031 = vcombine.high %v1023, %v1023
    %v1032 = vcombine.high %v1030, %v1030
    %v1034 = vunpack.c.l.s4 1966171168
    %v1035 = vunpack.c.0.s8 %v1034
    %v1036 = vlaneseq
    %v1037 = vshrl.u32 %v1036, 7
    %v1038 = vsub.s32 %v1035, %v1037
    %v1039 = vrot.slane %v1023, %v1038
    %v1041 = vunpack.c.l.s4 1966171168
    %v1042 = vunpack.c.0.s8 %v1041
    %v1043 = vlaneseq
    %v1044 = vshrl.u32 %v1043, 7
    %v1045 = vsub.s32 %v1042, %v1044
    %v1046 = vrot.slane %v1030, %v1045
    %v1048 = vunpack.c.l.s4 1966171168
    %v1049 = vunpack.c.0.s8 %v1048
    %v1050 = vlaneseq
    %v1051 = vshrl.u32 %v1050, 7
    %v1052 = vsub.s32 %v1049, %v1051
    %v1053 = vrot.slane %v1031, %v1052
    %v1055 = vunpack.c.l.s4 1966171168
    %v1056 = vunpack.c.0.s8 %v1055
    %v1057 = vlaneseq
    %v1058 = vshrl.u32 %v1057, 7
    %v1059 = vsub.s32 %v1056, %v1058
    %v1060 = vrot.slane %v1032, %v1059
    %v1061 = vcombine.high %v1039, %v1039
    %v1062 = vcombine.high %v1046, %v1046
    %v1063 = vcombine.high %v1053, %v1053
    %v1064 = vcombine.high %v1060, %v1060
    %v1065 = vcombine.high %v250, %v250
    %v1067 = vunpack.c.l.s4 1966171168
    %v1068 = vunpack.c.0.s8 %v1067
    %v1069 = vlaneseq
    %v1070 = vshrl.u32 %v1069, 7
    %v1071 = vsub.s32 %v1068, %v1070
    %v1072 = vrot.slane %v250, %v1071
    %v1074 = vunpack.c.l.s4 1966171168
    %v1075 = vunpack.c.0.s8 %v1074
    %v1076 = vlaneseq
    %v1077 = vshrl.u32 %v1076, 7
    %v1078 = vsub.s32 %v1075, %v1077
    %v1079 = vrot.slane %v1065, %v1078
    %v1080 = vcombine.high %v1072, %v1072
    %v1081 = vcombine.high %v1079, %v1079
    %v1083 = vunpack.c.l.s4 1966171168
    %v1084 = vunpack.c.0.s8 %v1083
    %v1085 = vlaneseq
    %v1086 = vshrl.u32 %v1085, 7
    %v1087 = vsub.s32 %v1084, %v1086
    %v1088 = vrot.slane %v1072, %v1087
    %v1090 = vunpack.c.l.s4 1966171168
    %v1091 = vunpack.c.0.s8 %v1090
    %v1092 = vlaneseq
    %v1093 = vshrl.u32 %v1092, 7
    %v1094 = vsub.s32 %v1091, %v1093
    %v1095 = vrot.slane %v1079, %v1094
    %v1097 = vunpack.c.l.s4 1966171168
    %v1098 = vunpack.c.0.s8 %v1097
    %v1099 = vlaneseq
    %v1100 = vshrl.u32 %v1099, 7
    %v1101 = vsub.s32 %v1098, %v1100
    %v1102 = vrot.slane %v1080, %v1101
    %v1104 = vunpack.c.l.s4 1966171168
    %v1105 = vunpack.c.0.s8 %v1104
    %v1106 = vlaneseq
    %v1107 = vshrl.u32 %v1106, 7
    %v1108 = vsub.s32 %v1105, %v1107
    %v1109 = vrot.slane %v1081, %v1108
    %v1110 = vcombine.high %v1088, %v1088
    %v1111 = vcombine.high %v1095, %v1095
    %v1112 = vcombine.high %v1102, %v1102
    %v1113 = vcombine.high %v1109, %v1109
    %v1114 = vcombine.high %v255, %v255
    %v1116 = vunpack.c.l.s4 1966171168
    %v1117 = vunpack.c.0.s8 %v1116
    %v1118 = vlaneseq
    %v1119 = vshrl.u32 %v1118, 7
    %v1120 = vsub.s32 %v1117, %v1119
    %v1121 = vrot.slane %v255, %v1120
    %v1123 = vunpack.c.l.s4 1966171168
    %v1124 = vunpack.c.0.s8 %v1123
    %v1125 = vlaneseq
    %v1126 = vshrl.u32 %v1125, 7
    %v1127 = vsub.s32 %v1124, %v1126
    %v1128 = vrot.slane %v1114, %v1127
    %v1129 = vcombine.high %v1121, %v1121
    %v1130 = vcombine.high %v1128, %v1128
    %v1132 = vunpack.c.l.s4 1966171168
    %v1133 = vunpack.c.0.s8 %v1132
    %v1134 = vlaneseq
    %v1135 = vshrl.u32 %v1134, 7
    %v1136 = vsub.s32 %v1133, %v1135
    %v1137 = vrot.slane %v1121, %v1136
    %v1139 = vunpack.c.l.s4 1966171168
    %v1140 = vunpack.c.0.s8 %v1139
    %v1141 = vlaneseq
    %v1142 = vshrl.u32 %v1141, 7
    %v1143 = vsub.s32 %v1140, %v1142
    %v1144 = vrot.slane %v1128, %v1143
    %v1146 = vunpack.c.l.s4 1966171168
    %v1147 = vunpack.c.0.s8 %v1146
    %v1148 = vlaneseq
    %v1149 = vshrl.u32 %v1148, 7
    %v1150 = vsub.s32 %v1147, %v1149
    %v1151 = vrot.slane %v1129, %v1150
    %v1153 = vunpack.c.l.s4 1966171168
    %v1154 = vunpack.c.0.s8 %v1153
    %v1155 = vlaneseq
    %v1156 = vshrl.u32 %v1155, 7
    %v1157 = vsub.s32 %v1154, %v1156
    %v1158 = vrot.slane %v1130, %v1157
    %v1159 = vcombine.high %v1137, %v1137
    %v1160 = vcombine.high %v1144, %v1144
    %v1161 = vcombine.high %v1151, %v1151
    %v1162 = vcombine.high %v1158, %v1158
    %v1163 = vcombine.high %v260, %v260
    %v1165 = vunpack.c.l.s4 1966171168
    %v1166 = vunpack.c.0.s8 %v1165
    %v1167 = vlaneseq
    %v1168 = vshrl.u32 %v1167, 7
    %v1169 = vsub.s32 %v1166, %v1168
    %v1170 = vrot.slane %v260, %v1169
    %v1172 = vunpack.c.l.s4 1966171168
    %v1173 = vunpack.c.0.s8 %v1172
    %v1174 = vlaneseq
    %v1175 = vshrl.u32 %v1174, 7
    %v1176 = vsub.s32 %v1173, %v1175
    %v1177 = vrot.slane %v1163, %v1176
    %v1178 = vcombine.high %v1170, %v1170
    %v1179 = vcombine.high %v1177, %v1177
    %v1181 = vunpack.c.l.s4 1966171168
    %v1182 = vunpack.c.0.s8 %v1181
    %v1183 = vlaneseq
    %v1184 = vshrl.u32 %v1183, 7
    %v1185 = vsub.s32 %v1182, %v1184
    %v1186 = vrot.slane %v1170, %v1185
    %v1188 = vunpack.c.l.s4 1966171168
    %v1189 = vunpack.c.0.s8 %v1188
    %v1190 = vlaneseq
    %v1191 = vshrl.u32 %v1190, 7
    %v1192 = vsub.s32 %v1189, %v1191
    %v1193 = vrot.slane %v1177, %v1192
    %v1195 = vunpack.c.l.s4 1966171168
    %v1196 = vunpack.c.0.s8 %v1195
    %v1197 = vlaneseq
    %v1198 = vshrl.u32 %v1197, 7
    %v1199 = vsub.s32 %v1196, %v1198
    %v1200 = vrot.slane %v1178, %v1199
    %v1202 = vunpack.c.l.s4 1966171168
    %v1203 = vunpack.c.0.s8 %v1202
    %v1204 = vlaneseq
    %v1205 = vshrl.u32 %v1204, 7
    %v1206 = vsub.s32 %v1203, %v1205
    %v1207 = vrot.slane %v1179, %v1206
    %v1208 = vcombine.high %v1186, %v1186
    %v1209 = vcombine.high %v1193, %v1193
    %v1210 = vcombine.high %v1200, %v1200
    %v1211 = vcombine.high %v1207, %v1207
    %v1212 = vlaneseq
    %v1213 = vshrl.u32 %v1212, 7
    %v1214 = vsub.s32 0, %v1213
    %v1215 = vrot.slane %v451, %v1214
    %v1216 = vlaneseq
    %v1217 = vshrl.u32 %v1216, 7
    %v1218 = vsub.s32 0, %v1217
    %v1219 = vrot.slane %v465, %v1218
    %v1220 = vlaneseq
    %v1221 = vshrl.u32 %v1220, 7
    %v1222 = vsub.s32 0, %v1221
    %v1223 = vrot.slane %v473, %v1222
    %v1224 = vlaneseq
    %v1225 = vshrl.u32 %v1224, 7
    %v1226 = vsub.s32 0, %v1225
    %v1227 = vrot.slane %v475, %v1226
    %v1228 = vlaneseq
    %v1229 = vshrl.u32 %v1228, 7
    %v1230 = vsub.s32 0, %v1229
    %v1231 = vrot.slane %v458, %v1230
    %v1232 = vlaneseq
    %v1233 = vshrl.u32 %v1232, 7
    %v1234 = vsub.s32 0, %v1233
    %v1235 = vrot.slane %v472, %v1234
    %v1236 = vlaneseq
    %v1237 = vshrl.u32 %v1236, 7
    %v1238 = vsub.s32 0, %v1237
    %v1239 = vrot.slane %v474, %v1238
    %v1240 = vlaneseq
    %v1241 = vshrl.u32 %v1240, 7
    %v1242 = vsub.s32 0, %v1241
    %v1243 = vrot.slane %v476, %v1242
    %v1244 = vlaneseq
    %v1245 = vshrl.u32 %v1244, 7
    %v1246 = vsub.s32 0, %v1245
    %v1247 = vrot.slane %v500, %v1246
    %v1248 = vlaneseq
    %v1249 = vshrl.u32 %v1248, 7
    %v1250 = vsub.s32 0, %v1249
    %v1251 = vrot.slane %v514, %v1250
    %v1252 = vlaneseq
    %v1253 = vshrl.u32 %v1252, 7
    %v1254 = vsub.s32 0, %v1253
    %v1255 = vrot.slane %v522, %v1254
    %v1256 = vlaneseq
    %v1257 = vshrl.u32 %v1256, 7
    %v1258 = vsub.s32 0, %v1257
    %v1259 = vrot.slane %v524, %v1258
    %v1260 = vlaneseq
    %v1261 = vshrl.u32 %v1260, 7
    %v1262 = vsub.s32 0, %v1261
    %v1263 = vrot.slane %v507, %v1262
    %v1264 = vlaneseq
    %v1265 = vshrl.u32 %v1264, 7
    %v1266 = vsub.s32 0, %v1265
    %v1267 = vrot.slane %v521, %v1266
    %v1268 = vlaneseq
    %v1269 = vshrl.u32 %v1268, 7
    %v1270 = vsub.s32 0, %v1269
    %v1271 = vrot.slane %v523, %v1270
    %v1272 = vlaneseq
    %v1273 = vshrl.u32 %v1272, 7
    %v1274 = vsub.s32 0, %v1273
    %v1275 = vrot.slane %v525, %v1274
    %v1276 = vlaneseq
    %v1277 = vshrl.u32 %v1276, 7
    %v1278 = vsub.s32 0, %v1277
    %v1279 = vrot.slane %v549, %v1278
    %v1280 = vlaneseq
    %v1281 = vshrl.u32 %v1280, 7
    %v1282 = vsub.s32 0, %v1281
    %v1283 = vrot.slane %v563, %v1282
    %v1284 = vlaneseq
    %v1285 = vshrl.u32 %v1284, 7
    %v1286 = vsub.s32 0, %v1285
    %v1287 = vrot.slane %v571, %v1286
    %v1288 = vlaneseq
    %v1289 = vshrl.u32 %v1288, 7
    %v1290 = vsub.s32 0, %v1289
    %v1291 = vrot.slane %v573, %v1290
    %v1292 = vlaneseq
    %v1293 = vshrl.u32 %v1292, 7
    %v1294 = vsub.s32 0, %v1293
    %v1295 = vrot.slane %v556, %v1294
    %v1296 = vlaneseq
    %v1297 = vshrl.u32 %v1296, 7
    %v1298 = vsub.s32 0, %v1297
    %v1299 = vrot.slane %v570, %v1298
    %v1300 = vlaneseq
    %v1301 = vshrl.u32 %v1300, 7
    %v1302 = vsub.s32 0, %v1301
    %v1303 = vrot.slane %v572, %v1302
    %v1304 = vlaneseq
    %v1305 = vshrl.u32 %v1304, 7
    %v1306 = vsub.s32 0, %v1305
    %v1307 = vrot.slane %v574, %v1306
    %v1308 = vlaneseq
    %v1309 = vshrl.u32 %v1308, 7
    %v1310 = vsub.s32 0, %v1309
    %v1311 = vrot.slane %v598, %v1310
    %v1312 = vlaneseq
    %v1313 = vshrl.u32 %v1312, 7
    %v1314 = vsub.s32 0, %v1313
    %v1315 = vrot.slane %v612, %v1314
    %v1316 = vlaneseq
    %v1317 = vshrl.u32 %v1316, 7
    %v1318 = vsub.s32 0, %v1317
    %v1319 = vrot.slane %v620, %v1318
    %v1320 = vlaneseq
    %v1321 = vshrl.u32 %v1320, 7
    %v1322 = vsub.s32 0, %v1321
    %v1323 = vrot.slane %v622, %v1322
    %v1324 = vlaneseq
    %v1325 = vshrl.u32 %v1324, 7
    %v1326 = vsub.s32 0, %v1325
    %v1327 = vrot.slane %v605, %v1326
    %v1328 = vlaneseq
    %v1329 = vshrl.u32 %v1328, 7
    %v1330 = vsub.s32 0, %v1329
    %v1331 = vrot.slane %v619, %v1330
    %v1332 = vlaneseq
    %v1333 = vshrl.u32 %v1332, 7
    %v1334 = vsub.s32 0, %v1333
    %v1335 = vrot.slane %v621, %v1334
    %v1336 = vlaneseq
    %v1337 = vshrl.u32 %v1336, 7
    %v1338 = vsub.s32 0, %v1337
    %v1339 = vrot.slane %v623, %v1338
    %v1340 = vlaneseq
    %v1341 = vshrl.u32 %v1340, 7
    %v1342 = vsub.s32 0, %v1341
    %v1343 = vrot.slane %v647, %v1342
    %v1344 = vlaneseq
    %v1345 = vshrl.u32 %v1344, 7
    %v1346 = vsub.s32 0, %v1345
    %v1347 = vrot.slane %v661, %v1346
    %v1348 = vlaneseq
    %v1349 = vshrl.u32 %v1348, 7
    %v1350 = vsub.s32 0, %v1349
    %v1351 = vrot.slane %v669, %v1350
    %v1352 = vlaneseq
    %v1353 = vshrl.u32 %v1352, 7
    %v1354 = vsub.s32 0, %v1353
    %v1355 = vrot.slane %v671, %v1354
    %v1356 = vlaneseq
    %v1357 = vshrl.u32 %v1356, 7
    %v1358 = vsub.s32 0, %v1357
    %v1359 = vrot.slane %v654, %v1358
    %v1360 = vlaneseq
    %v1361 = vshrl.u32 %v1360, 7
    %v1362 = vsub.s32 0, %v1361
    %v1363 = vrot.slane %v668, %v1362
    %v1364 = vlaneseq
    %v1365 = vshrl.u32 %v1364, 7
    %v1366 = vsub.s32 0, %v1365
    %v1367 = vrot.slane %v670, %v1366
    %v1368 = vlaneseq
    %v1369 = vshrl.u32 %v1368, 7
    %v1370 = vsub.s32 0, %v1369
    %v1371 = vrot.slane %v672, %v1370
    %v1372 = vlaneseq
    %v1373 = vshrl.u32 %v1372, 7
    %v1374 = vsub.s32 0, %v1373
    %v1375 = vrot.slane %v696, %v1374
    %v1376 = vlaneseq
    %v1377 = vshrl.u32 %v1376, 7
    %v1378 = vsub.s32 0, %v1377
    %v1379 = vrot.slane %v710, %v1378
    %v1380 = vlaneseq
    %v1381 = vshrl.u32 %v1380, 7
    %v1382 = vsub.s32 0, %v1381
    %v1383 = vrot.slane %v718, %v1382
    %v1384 = vlaneseq
    %v1385 = vshrl.u32 %v1384, 7
    %v1386 = vsub.s32 0, %v1385
    %v1387 = vrot.slane %v720, %v1386
    %v1388 = vlaneseq
    %v1389 = vshrl.u32 %v1388, 7
    %v1390 = vsub.s32 0, %v1389
    %v1391 = vrot.slane %v703, %v1390
    %v1392 = vlaneseq
    %v1393 = vshrl.u32 %v1392, 7
    %v1394 = vsub.s32 0, %v1393
    %v1395 = vrot.slane %v717, %v1394
    %v1396 = vlaneseq
    %v1397 = vshrl.u32 %v1396, 7
    %v1398 = vsub.s32 0, %v1397
    %v1399 = vrot.slane %v719, %v1398
    %v1400 = vlaneseq
    %v1401 = vshrl.u32 %v1400, 7
    %v1402 = vsub.s32 0, %v1401
    %v1403 = vrot.slane %v721, %v1402
    %v1404 = vlaneseq
    %v1405 = vshrl.u32 %v1404, 7
    %v1406 = vsub.s32 0, %v1405
    %v1407 = vrot.slane %v745, %v1406
    %v1408 = vlaneseq
    %v1409 = vshrl.u32 %v1408, 7
    %v1410 = vsub.s32 0, %v1409
    %v1411 = vrot.slane %v759, %v1410
    %v1412 = vlaneseq
    %v1413 = vshrl.u32 %v1412, 7
    %v1414 = vsub.s32 0, %v1413
    %v1415 = vrot.slane %v767, %v1414
    %v1416 = vlaneseq
    %v1417 = vshrl.u32 %v1416, 7
    %v1418 = vsub.s32 0, %v1417
    %v1419 = vrot.slane %v769, %v1418
    %v1420 = vlaneseq
    %v1421 = vshrl.u32 %v1420, 7
    %v1422 = vsub.s32 0, %v1421
    %v1423 = vrot.slane %v752, %v1422
    %v1424 = vlaneseq
    %v1425 = vshrl.u32 %v1424, 7
    %v1426 = vsub.s32 0, %v1425
    %v1427 = vrot.slane %v766, %v1426
    %v1428 = vlaneseq
    %v1429 = vshrl.u32 %v1428, 7
    %v1430 = vsub.s32 0, %v1429
    %v1431 = vrot.slane %v768, %v1430
    %v1432 = vlaneseq
    %v1433 = vshrl.u32 %v1432, 7
    %v1434 = vsub.s32 0, %v1433
    %v1435 = vrot.slane %v770, %v1434
    %v1436 = vlaneseq
    %v1437 = vshrl.u32 %v1436, 7
    %v1438 = vsub.s32 0, %v1437
    %v1439 = vrot.slane %v794, %v1438
    %v1440 = vlaneseq
    %v1441 = vshrl.u32 %v1440, 7
    %v1442 = vsub.s32 0, %v1441
    %v1443 = vrot.slane %v808, %v1442
    %v1444 = vlaneseq
    %v1445 = vshrl.u32 %v1444, 7
    %v1446 = vsub.s32 0, %v1445
    %v1447 = vrot.slane %v816, %v1446
    %v1448 = vlaneseq
    %v1449 = vshrl.u32 %v1448, 7
    %v1450 = vsub.s32 0, %v1449
    %v1451 = vrot.slane %v818, %v1450
    %v1452 = vlaneseq
    %v1453 = vshrl.u32 %v1452, 7
    %v1454 = vsub.s32 0, %v1453
    %v1455 = vrot.slane %v801, %v1454
    %v1456 = vlaneseq
    %v1457 = vshrl.u32 %v1456, 7
    %v1458 = vsub.s32 0, %v1457
    %v1459 = vrot.slane %v815, %v1458
    %v1460 = vlaneseq
    %v1461 = vshrl.u32 %v1460, 7
    %v1462 = vsub.s32 0, %v1461
    %v1463 = vrot.slane %v817, %v1462
    %v1464 = vlaneseq
    %v1465 = vshrl.u32 %v1464, 7
    %v1466 = vsub.s32 0, %v1465
    %v1467 = vrot.slane %v819, %v1466
    %v1468 = vlaneseq
    %v1469 = vshrl.u32 %v1468, 7
    %v1470 = vsub.s32 0, %v1469
    %v1471 = vrot.slane %v843, %v1470
    %v1472 = vlaneseq
    %v1473 = vshrl.u32 %v1472, 7
    %v1474 = vsub.s32 0, %v1473
    %v1475 = vrot.slane %v857, %v1474
    %v1476 = vlaneseq
    %v1477 = vshrl.u32 %v1476, 7
    %v1478 = vsub.s32 0, %v1477
    %v1479 = vrot.slane %v865, %v1478
    %v1480 = vlaneseq
    %v1481 = vshrl.u32 %v1480, 7
    %v1482 = vsub.s32 0, %v1481
    %v1483 = vrot.slane %v867, %v1482
    %v1484 = vlaneseq
    %v1485 = vshrl.u32 %v1484, 7
    %v1486 = vsub.s32 0, %v1485
    %v1487 = vrot.slane %v850, %v1486
    %v1488 = vlaneseq
    %v1489 = vshrl.u32 %v1488, 7
    %v1490 = vsub.s32 0, %v1489
    %v1491 = vrot.slane %v864, %v1490
    %v1492 = vlaneseq
    %v1493 = vshrl.u32 %v1492, 7
    %v1494 = vsub.s32 0, %v1493
    %v1495 = vrot.slane %v866, %v1494
    %v1496 = vlaneseq
    %v1497 = vshrl.u32 %v1496, 7
    %v1498 = vsub.s32 0, %v1497
    %v1499 = vrot.slane %v868, %v1498
    %v1500 = vlaneseq
    %v1501 = vshrl.u32 %v1500, 7
    %v1502 = vsub.s32 0, %v1501
    %v1503 = vrot.slane %v892, %v1502
    %v1504 = vlaneseq
    %v1505 = vshrl.u32 %v1504, 7
    %v1506 = vsub.s32 0, %v1505
    %v1507 = vrot.slane %v906, %v1506
    %v1508 = vlaneseq
    %v1509 = vshrl.u32 %v1508, 7
    %v1510 = vsub.s32 0, %v1509
    %v1511 = vrot.slane %v914, %v1510
    %v1512 = vlaneseq
    %v1513 = vshrl.u32 %v1512, 7
    %v1514 = vsub.s32 0, %v1513
    %v1515 = vrot.slane %v916, %v1514
    %v1516 = vlaneseq
    %v1517 = vshrl.u32 %v1516, 7
    %v1518 = vsub.s32 0, %v1517
    %v1519 = vrot.slane %v899, %v1518
    %v1520 = vlaneseq
    %v1521 = vshrl.u32 %v1520, 7
    %v1522 = vsub.s32 0, %v1521
    %v1523 = vrot.slane %v913, %v1522
    %v1524 = vlaneseq
    %v1525 = vshrl.u32 %v1524, 7
    %v1526 = vsub.s32 0, %v1525
    %v1527 = vrot.slane %v915, %v1526
    %v1528 = vlaneseq
    %v1529 = vshrl.u32 %v1528, 7
    %v1530 = vsub.s32 0, %v1529
    %v1531 = vrot.slane %v917, %v1530
    %v1532 = vlaneseq
    %v1533 = vshrl.u32 %v1532, 7
    %v1534 = vsub.s32 0, %v1533
    %v1535 = vrot.slane %v941, %v1534
    %v1536 = vlaneseq
    %v1537 = vshrl.u32 %v1536, 7
    %v1538 = vsub.s32 0, %v1537
    %v1539 = vrot.slane %v955, %v1538
    %v1540 = vlaneseq
    %v1541 = vshrl.u32 %v1540, 7
    %v1542 = vsub.s32 0, %v1541
    %v1543 = vrot.slane %v963, %v1542
    %v1544 = vlaneseq
    %v1545 = vshrl.u32 %v1544, 7
    %v1546 = vsub.s32 0, %v1545
    %v1547 = vrot.slane %v965, %v1546
    %v1548 = vlaneseq
    %v1549 = vshrl.u32 %v1548, 7
    %v1550 = vsub.s32 0, %v1549
    %v1551 = vrot.slane %v948, %v1550
    %v1552 = vlaneseq
    %v1553 = vshrl.u32 %v1552, 7
    %v1554 = vsub.s32 0, %v1553
    %v1555 = vrot.slane %v962, %v1554
    %v1556 = vlaneseq
    %v1557 = vshrl.u32 %v1556, 7
    %v1558 = vsub.s32 0, %v1557
    %v1559 = vrot.slane %v964, %v1558
    %v1560 = vlaneseq
    %v1561 = vshrl.u32 %v1560, 7
    %v1562 = vsub.s32 0, %v1561
    %v1563 = vrot.slane %v966, %v1562
    %v1564 = vlaneseq
    %v1565 = vshrl.u32 %v1564, 7
    %v1566 = vsub.s32 0, %v1565
    %v1567 = vrot.slane %v990, %v1566
    %v1568 = vlaneseq
    %v1569 = vshrl.u32 %v1568, 7
    %v1570 = vsub.s32 0, %v1569
    %v1571 = vrot.slane %v1004, %v1570
    %v1572 = vlaneseq
    %v1573 = vshrl.u32 %v1572, 7
    %v1574 = vsub.s32 0, %v1573
    %v1575 = vrot.slane %v1012, %v1574
    %v1576 = vlaneseq
    %v1577 = vshrl.u32 %v1576, 7
    %v1578 = vsub.s32 0, %v1577
    %v1579 = vrot.slane %v1014, %v1578
    %v1580 = vlaneseq
    %v1581 = vshrl.u32 %v1580, 7
    %v1582 = vsub.s32 0, %v1581
    %v1583 = vrot.slane %v997, %v1582
    %v1584 = vlaneseq
    %v1585 = vshrl.u32 %v1584, 7
    %v1586 = vsub.s32 0, %v1585
    %v1587 = vrot.slane %v1011, %v1586
    %v1588 = vlaneseq
    %v1589 = vshrl.u32 %v1588, 7
    %v1590 = vsub.s32 0, %v1589
    %v1591 = vrot.slane %v1013, %v1590
    %v1592 = vlaneseq
    %v1593 = vshrl.u32 %v1592, 7
    %v1594 = vsub.s32 0, %v1593
    %v1595 = vrot.slane %v1015, %v1594
    %v1596 = vlaneseq
    %v1597 = vshrl.u32 %v1596, 7
    %v1598 = vsub.s32 0, %v1597
    %v1599 = vrot.slane %v1039, %v1598
    %v1600 = vlaneseq
    %v1601 = vshrl.u32 %v1600, 7
    %v1602 = vsub.s32 0, %v1601
    %v1603 = vrot.slane %v1053, %v1602
    %v1604 = vlaneseq
    %v1605 = vshrl.u32 %v1604, 7
    %v1606 = vsub.s32 0, %v1605
    %v1607 = vrot.slane %v1061, %v1606
    %v1608 = vlaneseq
    %v1609 = vshrl.u32 %v1608, 7
    %v1610 = vsub.s32 0, %v1609
    %v1611 = vrot.slane %v1063, %v1610
    %v1612 = vlaneseq
    %v1613 = vshrl.u32 %v1612, 7
    %v1614 = vsub.s32 0, %v1613
    %v1615 = vrot.slane %v1046, %v1614
    %v1616 = vlaneseq
    %v1617 = vshrl.u32 %v1616, 7
    %v1618 = vsub.s32 0, %v1617
    %v1619 = vrot.slane %v1060, %v1618
    %v1620 = vlaneseq
    %v1621 = vshrl.u32 %v1620, 7
    %v1622 = vsub.s32 0, %v1621
    %v1623 = vrot.slane %v1062, %v1622
    %v1624 = vlaneseq
    %v1625 = vshrl.u32 %v1624, 7
    %v1626 = vsub.s32 0, %v1625
    %v1627 = vrot.slane %v1064, %v1626
    %v1628 = vlaneseq
    %v1629 = vshrl.u32 %v1628, 7
    %v1630 = vsub.s32 0, %v1629
    %v1631 = vrot.slane %v1088, %v1630
    %v1632 = vlaneseq
    %v1633 = vshrl.u32 %v1632, 7
    %v1634 = vsub.s32 0, %v1633
    %v1635 = vrot.slane %v1102, %v1634
    %v1636 = vlaneseq
    %v1637 = vshrl.u32 %v1636, 7
    %v1638 = vsub.s32 0, %v1637
    %v1639 = vrot.slane %v1110, %v1638
    %v1640 = vlaneseq
    %v1641 = vshrl.u32 %v1640, 7
    %v1642 = vsub.s32 0, %v1641
    %v1643 = vrot.slane %v1112, %v1642
    %v1644 = vlaneseq
    %v1645 = vshrl.u32 %v1644, 7
    %v1646 = vsub.s32 0, %v1645
    %v1647 = vrot.slane %v1095, %v1646
    %v1648 = vlaneseq
    %v1649 = vshrl.u32 %v1648, 7
    %v1650 = vsub.s32 0, %v1649
    %v1651 = vrot.slane %v1109, %v1650
    %v1652 = vlaneseq
    %v1653 = vshrl.u32 %v1652, 7
    %v1654 = vsub.s32 0, %v1653
    %v1655 = vrot.slane %v1111, %v1654
    %v1656 = vlaneseq
    %v1657 = vshrl.u32 %v1656, 7
    %v1658 = vsub.s32 0, %v1657
    %v1659 = vrot.slane %v1113, %v1658
    %v1660 = vlaneseq
    %v1661 = vshrl.u32 %v1660, 7
    %v1662 = vsub.s32 0, %v1661
    %v1663 = vrot.slane %v1137, %v1662
    %v1664 = vlaneseq
    %v1665 = vshrl.u32 %v1664, 7
    %v1666 = vsub.s32 0, %v1665
    %v1667 = vrot.slane %v1151, %v1666
    %v1668 = vlaneseq
    %v1669 = vshrl.u32 %v1668, 7
    %v1670 = vsub.s32 0, %v1669
    %v1671 = vrot.slane %v1159, %v1670
    %v1672 = vlaneseq
    %v1673 = vshrl.u32 %v1672, 7
    %v1674 = vsub.s32 0, %v1673
    %v1675 = vrot.slane %v1161, %v1674
    %v1676 = vlaneseq
    %v1677 = vshrl.u32 %v1676, 7
    %v1678 = vsub.s32 0, %v1677
    %v1679 = vrot.slane %v1144, %v1678
    %v1680 = vlaneseq
    %v1681 = vshrl.u32 %v1680, 7
    %v1682 = vsub.s32 0, %v1681
    %v1683 = vrot.slane %v1158, %v1682
    %v1684 = vlaneseq
    %v1685 = vshrl.u32 %v1684, 7
    %v1686 = vsub.s32 0, %v1685
    %v1687 = vrot.slane %v1160, %v1686
    %v1688 = vlaneseq
    %v1689 = vshrl.u32 %v1688, 7
    %v1690 = vsub.s32 0, %v1689
    %v1691 = vrot.slane %v1162, %v1690
    %v1692 = vlaneseq
    %v1693 = vshrl.u32 %v1692, 7
    %v1694 = vsub.s32 0, %v1693
    %v1695 = vrot.slane %v1186, %v1694
    %v1696 = vlaneseq
    %v1697 = vshrl.u32 %v1696, 7
    %v1698 = vsub.s32 0, %v1697
    %v1699 = vrot.slane %v1200, %v1698
    %v1700 = vlaneseq
    %v1701 = vshrl.u32 %v1700, 7
    %v1702 = vsub.s32 0, %v1701
    %v1703 = vrot.slane %v1208, %v1702
    %v1704 = vlaneseq
    %v1705 = vshrl.u32 %v1704, 7
    %v1706 = vsub.s32 0, %v1705
    %v1707 = vrot.slane %v1210, %v1706
    %v1708 = vlaneseq
    %v1709 = vshrl.u32 %v1708, 7
    %v1710 = vsub.s32 0, %v1709
    %v1711 = vrot.slane %v1193, %v1710
    %v1712 = vlaneseq
    %v1713 = vshrl.u32 %v1712, 7
    %v1714 = vsub.s32 0, %v1713
    %v1715 = vrot.slane %v1207, %v1714
    %v1716 = vlaneseq
    %v1717 = vshrl.u32 %v1716, 7
    %v1718 = vsub.s32 0, %v1717
    %v1719 = vrot.slane %v1209, %v1718
    %v1720 = vlaneseq
    %v1721 = vshrl.u32 %v1720, 7
    %v1722 = vsub.s32 0, %v1721
    %v1723 = vrot.slane %v1211, %v1722
    %v1852 = vadd.f32 %v1215, %v334
    %v1853 = vadd.f32 %v1219, %v334
    %v1854 = vadd.f32 %v1223, %v334
    %v1855 = vadd.f32 %v1227, %v334
    %v1856 = vadd.f32 %v1231, %v334
    %v1857 = vadd.f32 %v1235, %v334
    %v1858 = vadd.f32 %v1239, %v334
    %v1859 = vadd.f32 %v1243, %v334
    %v1860 = vadd.f32 %v1247, %v339
    %v1861 = vadd.f32 %v1251, %v339
    %v1862 = vadd.f32 %v1255, %v339
    %v1863 = vadd.f32 %v1259, %v339
    %v1864 = vadd.f32 %v1263, %v339
    %v1865 = vadd.f32 %v1267, %v339
    %v1866 = vadd.f32 %v1271, %v339
    %v1867 = vadd.f32 %v1275, %v339
    %v1868 = vadd.f32 %v1279, %v344
    %v1869 = vadd.f32 %v1283, %v344
    %v1870 = vadd.f32 %v1287, %v344
    %v1871 = vadd.f32 %v1291, %v344
    %v1872 = vadd.f32 %v1295, %v344
    %v1873 = vadd.f32 %v1299, %v344
    %v1874 = vadd.f32 %v1303, %v344
    %v1875 = vadd.f32 %v1307, %v344
    %v1876 = vadd.f32 %v1311, %v349
    %v1877 = vadd.f32 %v1315, %v349
    %v1878 = vadd.f32 %v1319, %v349
    %v1879 = vadd.f32 %v1323, %v349
    %v1880 = vadd.f32 %v1327, %v349
    %v1881 = vadd.f32 %v1331, %v349
    %v1882 = vadd.f32 %v1335, %v349
    %v1883 = vadd.f32 %v1339, %v349
    %v1884 = vadd.f32 %v1343, %v354
    %v1885 = vadd.f32 %v1347, %v354
    %v1886 = vadd.f32 %v1351, %v354
    %v1887 = vadd.f32 %v1355, %v354
    %v1888 = vadd.f32 %v1359, %v354
    %v1889 = vadd.f32 %v1363, %v354
    %v1890 = vadd.f32 %v1367, %v354
    %v1891 = vadd.f32 %v1371, %v354
    %v1892 = vadd.f32 %v1375, %v359
    %v1893 = vadd.f32 %v1379, %v359
    %v1894 = vadd.f32 %v1383, %v359
    %v1895 = vadd.f32 %v1387, %v359
    %v1896 = vadd.f32 %v1391, %v359
    %v1897 = vadd.f32 %v1395, %v359
    %v1898 = vadd.f32 %v1399, %v359
    %v1899 = vadd.f32 %v1403, %v359
    %v1900 = vadd.f32 %v1407, %v364
    %v1901 = vadd.f32 %v1411, %v364
    %v1902 = vadd.f32 %v1415, %v364
    %v1903 = vadd.f32 %v1419, %v364
    %v1904 = vadd.f32 %v1423, %v364
    %v1905 = vadd.f32 %v1427, %v364
    %v1906 = vadd.f32 %v1431, %v364
    %v1907 = vadd.f32 %v1435, %v364
    %v1908 = vadd.f32 %v1439, %v369
    %v1909 = vadd.f32 %v1443, %v369
    %v1910 = vadd.f32 %v1447, %v369
    %v1911 = vadd.f32 %v1451, %v369
    %v1912 = vadd.f32 %v1455, %v369
    %v1913 = vadd.f32 %v1459, %v369
    %v1914 = vadd.f32 %v1463, %v369
    %v1915 = vadd.f32 %v1467, %v369
    %v1916 = vadd.f32 %v1471, %v374
    %v1917 = vadd.f32 %v1475, %v374
    %v1918 = vadd.f32 %v1479, %v374
    %v1919 = vadd.f32 %v1483, %v374
    %v1920 = vadd.f32 %v1487, %v374
    %v1921 = vadd.f32 %v1491, %v374
    %v1922 = vadd.f32 %v1495, %v374
    %v1923 = vadd.f32 %v1499, %v374
    %v1924 = vadd.f32 %v1503, %v379
    %v1925 = vadd.f32 %v1507, %v379
    %v1926 = vadd.f32 %v1511, %v379
    %v1927 = vadd.f32 %v1515, %v379
    %v1928 = vadd.f32 %v1519, %v379
    %v1929 = vadd.f32 %v1523, %v379
    %v1930 = vadd.f32 %v1527, %v379
    %v1931 = vadd.f32 %v1531, %v379
    %v1932 = vadd.f32 %v1535, %v384
    %v1933 = vadd.f32 %v1539, %v384
    %v1934 = vadd.f32 %v1543, %v384
    %v1935 = vadd.f32 %v1547, %v384
    %v1936 = vadd.f32 %v1551, %v384
    %v1937 = vadd.f32 %v1555, %v384
    %v1938 = vadd.f32 %v1559, %v384
    %v1939 = vadd.f32 %v1563, %v384
    %v1940 = vadd.f32 %v1567, %v389
    %v1941 = vadd.f32 %v1571, %v389
    %v1942 = vadd.f32 %v1575, %v389
    %v1943 = vadd.f32 %v1579, %v389
    %v1944 = vadd.f32 %v1583, %v389
    %v1945 = vadd.f32 %v1587, %v389
    %v1946 = vadd.f32 %v1591, %v389
    %v1947 = vadd.f32 %v1595, %v389
    %v1948 = vadd.f32 %v1599, %v394
    %v1949 = vadd.f32 %v1603, %v394
    %v1950 = vadd.f32 %v1607, %v394
    %v1951 = vadd.f32 %v1611, %v394
    %v1952 = vadd.f32 %v1615, %v394
    %v1953 = vadd.f32 %v1619, %v394
    %v1954 = vadd.f32 %v1623, %v394
    %v1955 = vadd.f32 %v1627, %v394
    %v1956 = vadd.f32 %v1631, %v399
    %v1957 = vadd.f32 %v1635, %v399
    %v1958 = vadd.f32 %v1639, %v399
    %v1959 = vadd.f32 %v1643, %v399
    %v1960 = vadd.f32 %v1647, %v399
    %v1961 = vadd.f32 %v1651, %v399
    %v1962 = vadd.f32 %v1655, %v399
    %v1963 = vadd.f32 %v1659, %v399
    %v1964 = vadd.f32 %v1663, %v404
    %v1965 = vadd.f32 %v1667, %v404
    %v1966 = vadd.f32 %v1671, %v404
    %v1967 = vadd.f32 %v1675, %v404
    %v1968 = vadd.f32 %v1679, %v404
    %v1969 = vadd.f32 %v1683, %v404
    %v1970 = vadd.f32 %v1687, %v404
    %v1971 = vadd.f32 %v1691, %v404
    %v1972 = vadd.f32 %v1695, %v409
    %v1973 = vadd.f32 %v1699, %v409
    %v1974 = vadd.f32 %v1703, %v409
    %v1975 = vadd.f32 %v1707, %v409
    %v1976 = vadd.f32 %v1711, %v409
    %v1977 = vadd.f32 %v1715, %v409
    %v1978 = vadd.f32 %v1719, %v409
    %v1979 = vadd.f32 %v1723, %v409
    %v1980 = vld [vmem:[%s4] sm:$0x1]
    %v1982 = vlaneseq
    %v1983 = vshrl.u32 %v1982, 7
    %v1984 = vsub.s32 0, %v1983
    %v1985 = vrot.slane %v1980, %v1984
    %v1987 = vadd.f32 %v1852, %v1985
    %v1988 = vadd.f32 %v1853, %v1985
    %v1989 = vadd.f32 %v1854, %v1985
    %v1990 = vadd.f32 %v1855, %v1985
    %v1991 = vadd.f32 %v1856, %v1985
    %v1992 = vadd.f32 %v1857, %v1985
    %v1993 = vadd.f32 %v1858, %v1985
    %v1994 = vadd.f32 %v1859, %v1985
    %v1995 = vadd.f32 %v1860, %v1985
    %v1996 = vadd.f32 %v1861, %v1985
    %v1997 = vadd.f32 %v1862, %v1985
    %v1998 = vadd.f32 %v1863, %v1985
    %v1999 = vadd.f32 %v1864, %v1985
    %v2000 = vadd.f32 %v1865, %v1985
    %v2001 = vadd.f32 %v1866, %v1985
    %v2002 = vadd.f32 %v1867, %v1985
    %v2003 = vadd.f32 %v1868, %v1985
    %v2004 = vadd.f32 %v1869, %v1985
    %v2005 = vadd.f32 %v1870, %v1985
    %v2006 = vadd.f32 %v1871, %v1985
    %v2007 = vadd.f32 %v1872, %v1985
    %v2008 = vadd.f32 %v1873, %v1985
    %v2009 = vadd.f32 %v1874, %v1985
    %v2010 = vadd.f32 %v1875, %v1985
    %v2011 = vadd.f32 %v1876, %v1985
    %v2012 = vadd.f32 %v1877, %v1985
    %v2013 = vadd.f32 %v1878, %v1985
    %v2014 = vadd.f32 %v1879, %v1985
    %v2015 = vadd.f32 %v1880, %v1985
    %v2016 = vadd.f32 %v1881, %v1985
    %v2017 = vadd.f32 %v1882, %v1985
    %v2018 = vadd.f32 %v1883, %v1985
    %v2019 = vadd.f32 %v1884, %v1985
    %v2020 = vadd.f32 %v1885, %v1985
    %v2021 = vadd.f32 %v1886, %v1985
    %v2022 = vadd.f32 %v1887, %v1985
    %v2023 = vadd.f32 %v1888, %v1985
    %v2024 = vadd.f32 %v1889, %v1985
    %v2025 = vadd.f32 %v1890, %v1985
    %v2026 = vadd.f32 %v1891, %v1985
    %v2027 = vadd.f32 %v1892, %v1985
    %v2028 = vadd.f32 %v1893, %v1985
    %v2029 = vadd.f32 %v1894, %v1985
    %v2030 = vadd.f32 %v1895, %v1985
    %v2031 = vadd.f32 %v1896, %v1985
    %v2032 = vadd.f32 %v1897, %v1985
    %v2033 = vadd.f32 %v1898, %v1985
    %v2034 = vadd.f32 %v1899, %v1985
    %v2035 = vadd.f32 %v1900, %v1985
    %v2036 = vadd.f32 %v1901, %v1985
    %v2037 = vadd.f32 %v1902, %v1985
    %v2038 = vadd.f32 %v1903, %v1985
    %v2039 = vadd.f32 %v1904, %v1985
    %v2040 = vadd.f32 %v1905, %v1985
    %v2041 = vadd.f32 %v1906, %v1985
    %v2042 = vadd.f32 %v1907, %v1985
    %v2043 = vadd.f32 %v1908, %v1985
    %v2044 = vadd.f32 %v1909, %v1985
    %v2045 = vadd.f32 %v1910, %v1985
    %v2046 = vadd.f32 %v1911, %v1985
    %v2047 = vadd.f32 %v1912, %v1985
    %v2048 = vadd.f32 %v1913, %v1985
    %v2049 = vadd.f32 %v1914, %v1985
    %v2050 = vadd.f32 %v1915, %v1985
    %v2051 = vadd.f32 %v1916, %v1985
    %v2052 = vadd.f32 %v1917, %v1985
    %v2053 = vadd.f32 %v1918, %v1985
    %v2054 = vadd.f32 %v1919, %v1985
    %v2055 = vadd.f32 %v1920, %v1985
    %v2056 = vadd.f32 %v1921, %v1985
    %v2057 = vadd.f32 %v1922, %v1985
    %v2058 = vadd.f32 %v1923, %v1985
    %v2059 = vadd.f32 %v1924, %v1985
    %v2060 = vadd.f32 %v1925, %v1985
    %v2061 = vadd.f32 %v1926, %v1985
    %v2062 = vadd.f32 %v1927, %v1985
    %v2063 = vadd.f32 %v1928, %v1985
    %v2064 = vadd.f32 %v1929, %v1985
    %v2065 = vadd.f32 %v1930, %v1985
    %v2066 = vadd.f32 %v1931, %v1985
    %v2067 = vadd.f32 %v1932, %v1985
    %v2068 = vadd.f32 %v1933, %v1985
    %v2069 = vadd.f32 %v1934, %v1985
    %v2070 = vadd.f32 %v1935, %v1985
    %v2071 = vadd.f32 %v1936, %v1985
    %v2072 = vadd.f32 %v1937, %v1985
    %v2073 = vadd.f32 %v1938, %v1985
    %v2074 = vadd.f32 %v1939, %v1985
    %v2075 = vadd.f32 %v1940, %v1985
    %v2076 = vadd.f32 %v1941, %v1985
    %v2077 = vadd.f32 %v1942, %v1985
    %v2078 = vadd.f32 %v1943, %v1985
    %v2079 = vadd.f32 %v1944, %v1985
    %v2080 = vadd.f32 %v1945, %v1985
    %v2081 = vadd.f32 %v1946, %v1985
    %v2082 = vadd.f32 %v1947, %v1985
    %v2083 = vadd.f32 %v1948, %v1985
    %v2084 = vadd.f32 %v1949, %v1985
    %v2085 = vadd.f32 %v1950, %v1985
    %v2086 = vadd.f32 %v1951, %v1985
    %v2087 = vadd.f32 %v1952, %v1985
    %v2088 = vadd.f32 %v1953, %v1985
    %v2089 = vadd.f32 %v1954, %v1985
    %v2090 = vadd.f32 %v1955, %v1985
    %v2091 = vadd.f32 %v1956, %v1985
    %v2092 = vadd.f32 %v1957, %v1985
    %v2093 = vadd.f32 %v1958, %v1985
    %v2094 = vadd.f32 %v1959, %v1985
    %v2095 = vadd.f32 %v1960, %v1985
    %v2096 = vadd.f32 %v1961, %v1985
    %v2097 = vadd.f32 %v1962, %v1985
    %v2098 = vadd.f32 %v1963, %v1985
    %v2099 = vadd.f32 %v1964, %v1985
    %v2100 = vadd.f32 %v1965, %v1985
    %v2101 = vadd.f32 %v1966, %v1985
    %v2102 = vadd.f32 %v1967, %v1985
    %v2103 = vadd.f32 %v1968, %v1985
    %v2104 = vadd.f32 %v1969, %v1985
    %v2105 = vadd.f32 %v1970, %v1985
    %v2106 = vadd.f32 %v1971, %v1985
    %v2107 = vadd.f32 %v1972, %v1985
    %v2108 = vadd.f32 %v1973, %v1985
    %v2109 = vadd.f32 %v1974, %v1985
    %v2110 = vadd.f32 %v1975, %v1985
    %v2111 = vadd.f32 %v1976, %v1985
    %v2112 = vadd.f32 %v1977, %v1985
    %v2113 = vadd.f32 %v1978, %v1985
    %v2114 = vadd.f32 %v1979, %v1985
    %v2115 = vmul.f32 %v1987, 0.5
    %v2116 = vmul.f32 %v1988, 0.5
    %v2117 = vmul.f32 %v1989, 0.5
    %v2118 = vmul.f32 %v1990, 0.5
    %v2119 = vmul.f32 %v1991, 0.5
    %v2120 = vmul.f32 %v1992, 0.5
    %v2121 = vmul.f32 %v1993, 0.5
    %v2122 = vmul.f32 %v1994, 0.5
    %v2123 = vmul.f32 %v1995, 0.5
    %v2124 = vmul.f32 %v1996, 0.5
    %v2125 = vmul.f32 %v1997, 0.5
    %v2126 = vmul.f32 %v1998, 0.5
    %v2127 = vmul.f32 %v1999, 0.5
    %v2128 = vmul.f32 %v2000, 0.5
    %v2129 = vmul.f32 %v2001, 0.5
    %v2130 = vmul.f32 %v2002, 0.5
    %v2131 = vmul.f32 %v2003, 0.5
    %v2132 = vmul.f32 %v2004, 0.5
    %v2133 = vmul.f32 %v2005, 0.5
    %v2134 = vmul.f32 %v2006, 0.5
    %v2135 = vmul.f32 %v2007, 0.5
    %v2136 = vmul.f32 %v2008, 0.5
    %v2137 = vmul.f32 %v2009, 0.5
    %v2138 = vmul.f32 %v2010, 0.5
    %v2139 = vmul.f32 %v2011, 0.5
    %v2140 = vmul.f32 %v2012, 0.5
    %v2141 = vmul.f32 %v2013, 0.5
    %v2142 = vmul.f32 %v2014, 0.5
    %v2143 = vmul.f32 %v2015, 0.5
    %v2144 = vmul.f32 %v2016, 0.5
    %v2145 = vmul.f32 %v2017, 0.5
    %v2146 = vmul.f32 %v2018, 0.5
    %v2147 = vmul.f32 %v2019, 0.5
    %v2148 = vmul.f32 %v2020, 0.5
    %v2149 = vmul.f32 %v2021, 0.5
    %v2150 = vmul.f32 %v2022, 0.5
    %v2151 = vmul.f32 %v2023, 0.5
    %v2152 = vmul.f32 %v2024, 0.5
    %v2153 = vmul.f32 %v2025, 0.5
    %v2154 = vmul.f32 %v2026, 0.5
    %v2155 = vmul.f32 %v2027, 0.5
    %v2156 = vmul.f32 %v2028, 0.5
    %v2157 = vmul.f32 %v2029, 0.5
    %v2158 = vmul.f32 %v2030, 0.5
    %v2159 = vmul.f32 %v2031, 0.5
    %v2160 = vmul.f32 %v2032, 0.5
    %v2161 = vmul.f32 %v2033, 0.5
    %v2162 = vmul.f32 %v2034, 0.5
    %v2163 = vmul.f32 %v2035, 0.5
    %v2164 = vmul.f32 %v2036, 0.5
    %v2165 = vmul.f32 %v2037, 0.5
    %v2166 = vmul.f32 %v2038, 0.5
    %v2167 = vmul.f32 %v2039, 0.5
    %v2168 = vmul.f32 %v2040, 0.5
    %v2169 = vmul.f32 %v2041, 0.5
    %v2170 = vmul.f32 %v2042, 0.5
    %v2171 = vmul.f32 %v2043, 0.5
    %v2172 = vmul.f32 %v2044, 0.5
    %v2173 = vmul.f32 %v2045, 0.5
    %v2174 = vmul.f32 %v2046, 0.5
    %v2175 = vmul.f32 %v2047, 0.5
    %v2176 = vmul.f32 %v2048, 0.5
    %v2177 = vmul.f32 %v2049, 0.5
    %v2178 = vmul.f32 %v2050, 0.5
    %v2179 = vmul.f32 %v2051, 0.5
    %v2180 = vmul.f32 %v2052, 0.5
    %v2181 = vmul.f32 %v2053, 0.5
    %v2182 = vmul.f32 %v2054, 0.5
    %v2183 = vmul.f32 %v2055, 0.5
    %v2184 = vmul.f32 %v2056, 0.5
    %v2185 = vmul.f32 %v2057, 0.5
    %v2186 = vmul.f32 %v2058, 0.5
    %v2187 = vmul.f32 %v2059, 0.5
    %v2188 = vmul.f32 %v2060, 0.5
    %v2189 = vmul.f32 %v2061, 0.5
    %v2190 = vmul.f32 %v2062, 0.5
    %v2191 = vmul.f32 %v2063, 0.5
    %v2192 = vmul.f32 %v2064, 0.5
    %v2193 = vmul.f32 %v2065, 0.5
    %v2194 = vmul.f32 %v2066, 0.5
    %v2195 = vmul.f32 %v2067, 0.5
    %v2196 = vmul.f32 %v2068, 0.5
    %v2197 = vmul.f32 %v2069, 0.5
    %v2198 = vmul.f32 %v2070, 0.5
    %v2199 = vmul.f32 %v2071, 0.5
    %v2200 = vmul.f32 %v2072, 0.5
    %v2201 = vmul.f32 %v2073, 0.5
    %v2202 = vmul.f32 %v2074, 0.5
    %v2203 = vmul.f32 %v2075, 0.5
    %v2204 = vmul.f32 %v2076, 0.5
    %v2205 = vmul.f32 %v2077, 0.5
    %v2206 = vmul.f32 %v2078, 0.5
    %v2207 = vmul.f32 %v2079, 0.5
    %v2208 = vmul.f32 %v2080, 0.5
    %v2209 = vmul.f32 %v2081, 0.5
    %v2210 = vmul.f32 %v2082, 0.5
    %v2211 = vmul.f32 %v2083, 0.5
    %v2212 = vmul.f32 %v2084, 0.5
    %v2213 = vmul.f32 %v2085, 0.5
    %v2214 = vmul.f32 %v2086, 0.5
    %v2215 = vmul.f32 %v2087, 0.5
    %v2216 = vmul.f32 %v2088, 0.5
    %v2217 = vmul.f32 %v2089, 0.5
    %v2218 = vmul.f32 %v2090, 0.5
    %v2219 = vmul.f32 %v2091, 0.5
    %v2220 = vmul.f32 %v2092, 0.5
    %v2221 = vmul.f32 %v2093, 0.5
    %v2222 = vmul.f32 %v2094, 0.5
    %v2223 = vmul.f32 %v2095, 0.5
    %v2224 = vmul.f32 %v2096, 0.5
    %v2225 = vmul.f32 %v2097, 0.5
    %v2226 = vmul.f32 %v2098, 0.5
    %v2227 = vmul.f32 %v2099, 0.5
    %v2228 = vmul.f32 %v2100, 0.5
    %v2229 = vmul.f32 %v2101, 0.5
    %v2230 = vmul.f32 %v2102, 0.5
    %v2231 = vmul.f32 %v2103, 0.5
    %v2232 = vmul.f32 %v2104, 0.5
    %v2233 = vmul.f32 %v2105, 0.5
    %v2234 = vmul.f32 %v2106, 0.5
    %v2235 = vmul.f32 %v2107, 0.5
    %v2236 = vmul.f32 %v2108, 0.5
    %v2237 = vmul.f32 %v2109, 0.5
    %v2238 = vmul.f32 %v2110, 0.5
    %v2239 = vmul.f32 %v2111, 0.5
    %v2240 = vmul.f32 %v2112, 0.5
    %v2241 = vmul.f32 %v2113, 0.5
    %v2242 = vmul.f32 %v2114, 0.5
    %v2243 = vmul.f32 %v1987, 0.70710677
    %v2244 = vmul.f32 %v1988, 0.70710677
    %v2245 = vmul.f32 %v1989, 0.70710677
    %v2246 = vmul.f32 %v1990, 0.70710677
    %v2247 = vmul.f32 %v1991, 0.70710677
    %v2248 = vmul.f32 %v1992, 0.70710677
    %v2249 = vmul.f32 %v1993, 0.70710677
    %v2250 = vmul.f32 %v1994, 0.70710677
    %v2251 = vmul.f32 %v1995, 0.70710677
    %v2252 = vmul.f32 %v1996, 0.70710677
    %v2253 = vmul.f32 %v1997, 0.70710677
    %v2254 = vmul.f32 %v1998, 0.70710677
    %v2255 = vmul.f32 %v1999, 0.70710677
    %v2256 = vmul.f32 %v2000, 0.70710677
    %v2257 = vmul.f32 %v2001, 0.70710677
    %v2258 = vmul.f32 %v2002, 0.70710677
    %v2259 = vmul.f32 %v2003, 0.70710677
    %v2260 = vmul.f32 %v2004, 0.70710677
    %v2261 = vmul.f32 %v2005, 0.70710677
    %v2262 = vmul.f32 %v2006, 0.70710677
    %v2263 = vmul.f32 %v2007, 0.70710677
    %v2264 = vmul.f32 %v2008, 0.70710677
    %v2265 = vmul.f32 %v2009, 0.70710677
    %v2266 = vmul.f32 %v2010, 0.70710677
    %v2267 = vmul.f32 %v2011, 0.70710677
    %v2268 = vmul.f32 %v2012, 0.70710677
    %v2269 = vmul.f32 %v2013, 0.70710677
    %v2270 = vmul.f32 %v2014, 0.70710677
    %v2271 = vmul.f32 %v2015, 0.70710677
    %v2272 = vmul.f32 %v2016, 0.70710677
    %v2273 = vmul.f32 %v2017, 0.70710677
    %v2274 = vmul.f32 %v2018, 0.70710677
    %v2275 = vmul.f32 %v2019, 0.70710677
    %v2276 = vmul.f32 %v2020, 0.70710677
    %v2277 = vmul.f32 %v2021, 0.70710677
    %v2278 = vmul.f32 %v2022, 0.70710677
    %v2279 = vmul.f32 %v2023, 0.70710677
    %v2280 = vmul.f32 %v2024, 0.70710677
    %v2281 = vmul.f32 %v2025, 0.70710677
    %v2282 = vmul.f32 %v2026, 0.70710677
    %v2283 = vmul.f32 %v2027, 0.70710677
    %v2284 = vmul.f32 %v2028, 0.70710677
    %v2285 = vmul.f32 %v2029, 0.70710677
    %v2286 = vmul.f32 %v2030, 0.70710677
    %v2287 = vmul.f32 %v2031, 0.70710677
    %v2288 = vmul.f32 %v2032, 0.70710677
    %v2289 = vmul.f32 %v2033, 0.70710677
    %v2290 = vmul.f32 %v2034, 0.70710677
    %v2291 = vmul.f32 %v2035, 0.70710677
    %v2292 = vmul.f32 %v2036, 0.70710677
    %v2293 = vmul.f32 %v2037, 0.70710677
    %v2294 = vmul.f32 %v2038, 0.70710677
    %v2295 = vmul.f32 %v2039, 0.70710677
    %v2296 = vmul.f32 %v2040, 0.70710677
    %v2297 = vmul.f32 %v2041, 0.70710677
    %v2298 = vmul.f32 %v2042, 0.70710677
    %v2299 = vmul.f32 %v2043, 0.70710677
    %v2300 = vmul.f32 %v2044, 0.70710677
    %v2301 = vmul.f32 %v2045, 0.70710677
    %v2302 = vmul.f32 %v2046, 0.70710677
    %v2303 = vmul.f32 %v2047, 0.70710677
    %v2304 = vmul.f32 %v2048, 0.70710677
    %v2305 = vmul.f32 %v2049, 0.70710677
    %v2306 = vmul.f32 %v2050, 0.70710677
    %v2307 = vmul.f32 %v2051, 0.70710677
    %v2308 = vmul.f32 %v2052, 0.70710677
    %v2309 = vmul.f32 %v2053, 0.70710677
    %v2310 = vmul.f32 %v2054, 0.70710677
    %v2311 = vmul.f32 %v2055, 0.70710677
    %v2312 = vmul.f32 %v2056, 0.70710677
    %v2313 = vmul.f32 %v2057, 0.70710677
    %v2314 = vmul.f32 %v2058, 0.70710677
    %v2315 = vmul.f32 %v2059, 0.70710677
    %v2316 = vmul.f32 %v2060, 0.70710677
    %v2317 = vmul.f32 %v2061, 0.70710677
    %v2318 = vmul.f32 %v2062, 0.70710677
    %v2319 = vmul.f32 %v2063, 0.70710677
    %v2320 = vmul.f32 %v2064, 0.70710677
    %v2321 = vmul.f32 %v2065, 0.70710677
    %v2322 = vmul.f32 %v2066, 0.70710677
    %v2323 = vmul.f32 %v2067, 0.70710677
    %v2324 = vmul.f32 %v2068, 0.70710677
    %v2325 = vmul.f32 %v2069, 0.70710677
    %v2326 = vmul.f32 %v2070, 0.70710677
    %v2327 = vmul.f32 %v2071, 0.70710677
    %v2328 = vmul.f32 %v2072, 0.70710677
    %v2329 = vmul.f32 %v2073, 0.70710677
    %v2330 = vmul.f32 %v2074, 0.70710677
    %v2331 = vmul.f32 %v2075, 0.70710677
    %v2332 = vmul.f32 %v2076, 0.70710677
    %v2333 = vmul.f32 %v2077, 0.70710677
    %v2334 = vmul.f32 %v2078, 0.70710677
    %v2335 = vmul.f32 %v2079, 0.70710677
    %v2336 = vmul.f32 %v2080, 0.70710677
    %v2337 = vmul.f32 %v2081, 0.70710677
    %v2338 = vmul.f32 %v2082, 0.70710677
    %v2339 = vmul.f32 %v2083, 0.70710677
    %v2340 = vmul.f32 %v2084, 0.70710677
    %v2341 = vmul.f32 %v2085, 0.70710677
    %v2342 = vmul.f32 %v2086, 0.70710677
    %v2343 = vmul.f32 %v2087, 0.70710677
    %v2344 = vmul.f32 %v2088, 0.70710677
    %v2345 = vmul.f32 %v2089, 0.70710677
    %v2346 = vmul.f32 %v2090, 0.70710677
    %v2347 = vmul.f32 %v2091, 0.70710677
    %v2348 = vmul.f32 %v2092, 0.70710677
    %v2349 = vmul.f32 %v2093, 0.70710677
    %v2350 = vmul.f32 %v2094, 0.70710677
    %v2351 = vmul.f32 %v2095, 0.70710677
    %v2352 = vmul.f32 %v2096, 0.70710677
    %v2353 = vmul.f32 %v2097, 0.70710677
    %v2354 = vmul.f32 %v2098, 0.70710677
    %v2355 = vmul.f32 %v2099, 0.70710677
    %v2356 = vmul.f32 %v2100, 0.70710677
    %v2357 = vmul.f32 %v2101, 0.70710677
    %v2358 = vmul.f32 %v2102, 0.70710677
    %v2359 = vmul.f32 %v2103, 0.70710677
    %v2360 = vmul.f32 %v2104, 0.70710677
    %v2361 = vmul.f32 %v2105, 0.70710677
    %v2362 = vmul.f32 %v2106, 0.70710677
    %v2363 = vmul.f32 %v2107, 0.70710677
    %v2364 = vmul.f32 %v2108, 0.70710677
    %v2365 = vmul.f32 %v2109, 0.70710677
    %v2366 = vmul.f32 %v2110, 0.70710677
    %v2367 = vmul.f32 %v2111, 0.70710677
    %v2368 = vmul.f32 %v2112, 0.70710677
    %v2369 = vmul.f32 %v2113, 0.70710677
    %v2370 = vmul.f32 %v2114, 0.70710677
    %v2371 = verf.f32.pop %v2243
    %v2372 = verf.f32.pop %v2244
    %v2373 = verf.f32.pop %v2245
    %v2374 = verf.f32.pop %v2246
    %v2375 = verf.f32.pop %v2247
    %v2376 = verf.f32.pop %v2248
    %v2377 = verf.f32.pop %v2249
    %v2378 = verf.f32.pop %v2250
    %v2379 = verf.f32.pop %v2251
    %v2380 = verf.f32.pop %v2252
    %v2381 = verf.f32.pop %v2253
    %v2382 = verf.f32.pop %v2254
    %v2383 = verf.f32.pop %v2255
    %v2384 = verf.f32.pop %v2256
    %v2385 = verf.f32.pop %v2257
    %v2386 = verf.f32.pop %v2258
    %v2387 = verf.f32.pop %v2259
    %v2388 = verf.f32.pop %v2260
    %v2389 = verf.f32.pop %v2261
    %v2390 = verf.f32.pop %v2262
    %v2391 = verf.f32.pop %v2263
    %v2392 = verf.f32.pop %v2264
    %v2393 = verf.f32.pop %v2265
    %v2394 = verf.f32.pop %v2266
    %v2395 = verf.f32.pop %v2267
    %v2396 = verf.f32.pop %v2268
    %v2397 = verf.f32.pop %v2269
    %v2398 = verf.f32.pop %v2270
    %v2399 = verf.f32.pop %v2271
    %v2400 = verf.f32.pop %v2272
    %v2401 = verf.f32.pop %v2273
    %v2402 = verf.f32.pop %v2274
    %v2403 = verf.f32.pop %v2275
    %v2404 = verf.f32.pop %v2276
    %v2405 = verf.f32.pop %v2277
    %v2406 = verf.f32.pop %v2278
    %v2407 = verf.f32.pop %v2279
    %v2408 = verf.f32.pop %v2280
    %v2409 = verf.f32.pop %v2281
    %v2410 = verf.f32.pop %v2282
    %v2411 = verf.f32.pop %v2283
    %v2412 = verf.f32.pop %v2284
    %v2413 = verf.f32.pop %v2285
    %v2414 = verf.f32.pop %v2286
    %v2415 = verf.f32.pop %v2287
    %v2416 = verf.f32.pop %v2288
    %v2417 = verf.f32.pop %v2289
    %v2418 = verf.f32.pop %v2290
    %v2419 = verf.f32.pop %v2291
    %v2420 = verf.f32.pop %v2292
    %v2421 = verf.f32.pop %v2293
    %v2422 = verf.f32.pop %v2294
    %v2423 = verf.f32.pop %v2295
    %v2424 = verf.f32.pop %v2296
    %v2425 = verf.f32.pop %v2297
    %v2426 = verf.f32.pop %v2298
    %v2427 = verf.f32.pop %v2299
    %v2428 = verf.f32.pop %v2300
    %v2429 = verf.f32.pop %v2301
    %v2430 = verf.f32.pop %v2302
    %v2431 = verf.f32.pop %v2303
    %v2432 = verf.f32.pop %v2304
    %v2433 = verf.f32.pop %v2305
    %v2434 = verf.f32.pop %v2306
    %v2435 = verf.f32.pop %v2307
    %v2436 = verf.f32.pop %v2308
    %v2437 = verf.f32.pop %v2309
    %v2438 = verf.f32.pop %v2310
    %v2439 = verf.f32.pop %v2311
    %v2440 = verf.f32.pop %v2312
    %v2441 = verf.f32.pop %v2313
    %v2442 = verf.f32.pop %v2314
    %v2443 = verf.f32.pop %v2315
    %v2444 = verf.f32.pop %v2316
    %v2445 = verf.f32.pop %v2317
    %v2446 = verf.f32.pop %v2318
    %v2447 = verf.f32.pop %v2319
    %v2448 = verf.f32.pop %v2320
    %v2449 = verf.f32.pop %v2321
    %v2450 = verf.f32.pop %v2322
    %v2451 = verf.f32.pop %v2323
    %v2452 = verf.f32.pop %v2324
    %v2453 = verf.f32.pop %v2325
    %v2454 = verf.f32.pop %v2326
    %v2455 = verf.f32.pop %v2327
    %v2456 = verf.f32.pop %v2328
    %v2457 = verf.f32.pop %v2329
    %v2458 = verf.f32.pop %v2330
    %v2459 = verf.f32.pop %v2331
    %v2460 = verf.f32.pop %v2332
    %v2461 = verf.f32.pop %v2333
    %v2462 = verf.f32.pop %v2334
    %v2463 = verf.f32.pop %v2335
    %v2464 = verf.f32.pop %v2336
    %v2465 = verf.f32.pop %v2337
    %v2466 = verf.f32.pop %v2338
    %v2467 = verf.f32.pop %v2339
    %v2468 = verf.f32.pop %v2340
    %v2469 = verf.f32.pop %v2341
    %v2470 = verf.f32.pop %v2342
    %v2471 = verf.f32.pop %v2343
    %v2472 = verf.f32.pop %v2344
    %v2473 = verf.f32.pop %v2345
    %v2474 = verf.f32.pop %v2346
    %v2475 = verf.f32.pop %v2347
    %v2476 = verf.f32.pop %v2348
    %v2477 = verf.f32.pop %v2349
    %v2478 = verf.f32.pop %v2350
    %v2479 = verf.f32.pop %v2351
    %v2480 = verf.f32.pop %v2352
    %v2481 = verf.f32.pop %v2353
    %v2482 = verf.f32.pop %v2354
    %v2483 = verf.f32.pop %v2355
    %v2484 = verf.f32.pop %v2356
    %v2485 = verf.f32.pop %v2357
    %v2486 = verf.f32.pop %v2358
    %v2487 = verf.f32.pop %v2359
    %v2488 = verf.f32.pop %v2360
    %v2489 = verf.f32.pop %v2361
    %v2490 = verf.f32.pop %v2362
    %v2491 = verf.f32.pop %v2363
    %v2492 = verf.f32.pop %v2364
    %v2493 = verf.f32.pop %v2365
    %v2494 = verf.f32.pop %v2366
    %v2495 = verf.f32.pop %v2367
    %v2496 = verf.f32.pop %v2368
    %v2497 = verf.f32.pop %v2369
    %v2498 = verf.f32.pop %v2370
    %v2499 = vadd.f32 %v2371, 1.0
    %v2500 = vadd.f32 %v2372, 1.0
    %v2501 = vadd.f32 %v2373, 1.0
    %v2502 = vadd.f32 %v2374, 1.0
    %v2503 = vadd.f32 %v2375, 1.0
    %v2504 = vadd.f32 %v2376, 1.0
    %v2505 = vadd.f32 %v2377, 1.0
    %v2506 = vadd.f32 %v2378, 1.0
    %v2507 = vadd.f32 %v2379, 1.0
    %v2508 = vadd.f32 %v2380, 1.0
    %v2509 = vadd.f32 %v2381, 1.0
    %v2510 = vadd.f32 %v2382, 1.0
    %v2511 = vadd.f32 %v2383, 1.0
    %v2512 = vadd.f32 %v2384, 1.0
    %v2513 = vadd.f32 %v2385, 1.0
    %v2514 = vadd.f32 %v2386, 1.0
    %v2515 = vadd.f32 %v2387, 1.0
    %v2516 = vadd.f32 %v2388, 1.0
    %v2517 = vadd.f32 %v2389, 1.0
    %v2518 = vadd.f32 %v2390, 1.0
    %v2519 = vadd.f32 %v2391, 1.0
    %v2520 = vadd.f32 %v2392, 1.0
    %v2521 = vadd.f32 %v2393, 1.0
    %v2522 = vadd.f32 %v2394, 1.0
    %v2523 = vadd.f32 %v2395, 1.0
    %v2524 = vadd.f32 %v2396, 1.0
    %v2525 = vadd.f32 %v2397, 1.0
    %v2526 = vadd.f32 %v2398, 1.0
    %v2527 = vadd.f32 %v2399, 1.0
    %v2528 = vadd.f32 %v2400, 1.0
    %v2529 = vadd.f32 %v2401, 1.0
    %v2530 = vadd.f32 %v2402, 1.0
    %v2531 = vadd.f32 %v2403, 1.0
    %v2532 = vadd.f32 %v2404, 1.0
    %v2533 = vadd.f32 %v2405, 1.0
    %v2534 = vadd.f32 %v2406, 1.0
    %v2535 = vadd.f32 %v2407, 1.0
    %v2536 = vadd.f32 %v2408, 1.0
    %v2537 = vadd.f32 %v2409, 1.0
    %v2538 = vadd.f32 %v2410, 1.0
    %v2539 = vadd.f32 %v2411, 1.0
    %v2540 = vadd.f32 %v2412, 1.0
    %v2541 = vadd.f32 %v2413, 1.0
    %v2542 = vadd.f32 %v2414, 1.0
    %v2543 = vadd.f32 %v2415, 1.0
    %v2544 = vadd.f32 %v2416, 1.0
    %v2545 = vadd.f32 %v2417, 1.0
    %v2546 = vadd.f32 %v2418, 1.0
    %v2547 = vadd.f32 %v2419, 1.0
    %v2548 = vadd.f32 %v2420, 1.0
    %v2549 = vadd.f32 %v2421, 1.0
    %v2550 = vadd.f32 %v2422, 1.0
    %v2551 = vadd.f32 %v2423, 1.0
    %v2552 = vadd.f32 %v2424, 1.0
    %v2553 = vadd.f32 %v2425, 1.0
    %v2554 = vadd.f32 %v2426, 1.0
    %v2555 = vadd.f32 %v2427, 1.0
    %v2556 = vadd.f32 %v2428, 1.0
    %v2557 = vadd.f32 %v2429, 1.0
    %v2558 = vadd.f32 %v2430, 1.0
    %v2559 = vadd.f32 %v2431, 1.0
    %v2560 = vadd.f32 %v2432, 1.0
    %v2561 = vadd.f32 %v2433, 1.0
    %v2562 = vadd.f32 %v2434, 1.0
    %v2563 = vadd.f32 %v2435, 1.0
    %v2564 = vadd.f32 %v2436, 1.0
    %v2565 = vadd.f32 %v2437, 1.0
    %v2566 = vadd.f32 %v2438, 1.0
    %v2567 = vadd.f32 %v2439, 1.0
    %v2568 = vadd.f32 %v2440, 1.0
    %v2569 = vadd.f32 %v2441, 1.0
    %v2570 = vadd.f32 %v2442, 1.0
    %v2571 = vadd.f32 %v2443, 1.0
    %v2572 = vadd.f32 %v2444, 1.0
    %v2573 = vadd.f32 %v2445, 1.0
    %v2574 = vadd.f32 %v2446, 1.0
    %v2575 = vadd.f32 %v2447, 1.0
    %v2576 = vadd.f32 %v2448, 1.0
    %v2577 = vadd.f32 %v2449, 1.0
    %v2578 = vadd.f32 %v2450, 1.0
    %v2579 = vadd.f32 %v2451, 1.0
    %v2580 = vadd.f32 %v2452, 1.0
    %v2581 = vadd.f32 %v2453, 1.0
    %v2582 = vadd.f32 %v2454, 1.0
    %v2583 = vadd.f32 %v2455, 1.0
    %v2584 = vadd.f32 %v2456, 1.0
    %v2585 = vadd.f32 %v2457, 1.0
    %v2586 = vadd.f32 %v2458, 1.0
    %v2587 = vadd.f32 %v2459, 1.0
    %v2588 = vadd.f32 %v2460, 1.0
    %v2589 = vadd.f32 %v2461, 1.0
    %v2590 = vadd.f32 %v2462, 1.0
    %v2591 = vadd.f32 %v2463, 1.0
    %v2592 = vadd.f32 %v2464, 1.0
    %v2593 = vadd.f32 %v2465, 1.0
    %v2594 = vadd.f32 %v2466, 1.0
    %v2595 = vadd.f32 %v2467, 1.0
    %v2596 = vadd.f32 %v2468, 1.0
    %v2597 = vadd.f32 %v2469, 1.0
    %v2598 = vadd.f32 %v2470, 1.0
    %v2599 = vadd.f32 %v2471, 1.0
    %v2600 = vadd.f32 %v2472, 1.0
    %v2601 = vadd.f32 %v2473, 1.0
    %v2602 = vadd.f32 %v2474, 1.0
    %v2603 = vadd.f32 %v2475, 1.0
    %v2604 = vadd.f32 %v2476, 1.0
    %v2605 = vadd.f32 %v2477, 1.0
    %v2606 = vadd.f32 %v2478, 1.0
    %v2607 = vadd.f32 %v2479, 1.0
    %v2608 = vadd.f32 %v2480, 1.0
    %v2609 = vadd.f32 %v2481, 1.0
    %v2610 = vadd.f32 %v2482, 1.0
    %v2611 = vadd.f32 %v2483, 1.0
    %v2612 = vadd.f32 %v2484, 1.0
    %v2613 = vadd.f32 %v2485, 1.0
    %v2614 = vadd.f32 %v2486, 1.0
    %v2615 = vadd.f32 %v2487, 1.0
    %v2616 = vadd.f32 %v2488, 1.0
    %v2617 = vadd.f32 %v2489, 1.0
    %v2618 = vadd.f32 %v2490, 1.0
    %v2619 = vadd.f32 %v2491, 1.0
    %v2620 = vadd.f32 %v2492, 1.0
    %v2621 = vadd.f32 %v2493, 1.0
    %v2622 = vadd.f32 %v2494, 1.0
    %v2623 = vadd.f32 %v2495, 1.0
    %v2624 = vadd.f32 %v2496, 1.0
    %v2625 = vadd.f32 %v2497, 1.0
    %v2626 = vadd.f32 %v2498, 1.0
    %v2627 = vmul.f32 %v2115, %v2499
    %v2628 = vmul.f32 %v2116, %v2500
    %v2629 = vmul.f32 %v2117, %v2501
    %v2630 = vmul.f32 %v2118, %v2502
    %v2631 = vmul.f32 %v2119, %v2503
    %v2632 = vmul.f32 %v2120, %v2504
    %v2633 = vmul.f32 %v2121, %v2505
    %v2634 = vmul.f32 %v2122, %v2506
    %v2635 = vmul.f32 %v2123, %v2507
    %v2636 = vmul.f32 %v2124, %v2508
    %v2637 = vmul.f32 %v2125, %v2509
    %v2638 = vmul.f32 %v2126, %v2510
    %v2639 = vmul.f32 %v2127, %v2511
    %v2640 = vmul.f32 %v2128, %v2512
    %v2641 = vmul.f32 %v2129, %v2513
    %v2642 = vmul.f32 %v2130, %v2514
    %v2643 = vmul.f32 %v2131, %v2515
    %v2644 = vmul.f32 %v2132, %v2516
    %v2645 = vmul.f32 %v2133, %v2517
    %v2646 = vmul.f32 %v2134, %v2518
    %v2647 = vmul.f32 %v2135, %v2519
    %v2648 = vmul.f32 %v2136, %v2520
    %v2649 = vmul.f32 %v2137, %v2521
    %v2650 = vmul.f32 %v2138, %v2522
    %v2651 = vmul.f32 %v2139, %v2523
    %v2652 = vmul.f32 %v2140, %v2524
    %v2653 = vmul.f32 %v2141, %v2525
    %v2654 = vmul.f32 %v2142, %v2526
    %v2655 = vmul.f32 %v2143, %v2527
    %v2656 = vmul.f32 %v2144, %v2528
    %v2657 = vmul.f32 %v2145, %v2529
    %v2658 = vmul.f32 %v2146, %v2530
    %v2659 = vmul.f32 %v2147, %v2531
    %v2660 = vmul.f32 %v2148, %v2532
    %v2661 = vmul.f32 %v2149, %v2533
    %v2662 = vmul.f32 %v2150, %v2534
    %v2663 = vmul.f32 %v2151, %v2535
    %v2664 = vmul.f32 %v2152, %v2536
    %v2665 = vmul.f32 %v2153, %v2537
    %v2666 = vmul.f32 %v2154, %v2538
    %v2667 = vmul.f32 %v2155, %v2539
    %v2668 = vmul.f32 %v2156, %v2540
    %v2669 = vmul.f32 %v2157, %v2541
    %v2670 = vmul.f32 %v2158, %v2542
    %v2671 = vmul.f32 %v2159, %v2543
    %v2672 = vmul.f32 %v2160, %v2544
    %v2673 = vmul.f32 %v2161, %v2545
    %v2674 = vmul.f32 %v2162, %v2546
    %v2675 = vmul.f32 %v2163, %v2547
    %v2676 = vmul.f32 %v2164, %v2548
    %v2677 = vmul.f32 %v2165, %v2549
    %v2678 = vmul.f32 %v2166, %v2550
    %v2679 = vmul.f32 %v2167, %v2551
    %v2680 = vmul.f32 %v2168, %v2552
    %v2681 = vmul.f32 %v2169, %v2553
    %v2682 = vmul.f32 %v2170, %v2554
    %v2683 = vmul.f32 %v2171, %v2555
    %v2684 = vmul.f32 %v2172, %v2556
    %v2685 = vmul.f32 %v2173, %v2557
    %v2686 = vmul.f32 %v2174, %v2558
    %v2687 = vmul.f32 %v2175, %v2559
    %v2688 = vmul.f32 %v2176, %v2560
    %v2689 = vmul.f32 %v2177, %v2561
    %v2690 = vmul.f32 %v2178, %v2562
    %v2691 = vmul.f32 %v2179, %v2563
    %v2692 = vmul.f32 %v2180, %v2564
    %v2693 = vmul.f32 %v2181, %v2565
    %v2694 = vmul.f32 %v2182, %v2566
    %v2695 = vmul.f32 %v2183, %v2567
    %v2696 = vmul.f32 %v2184, %v2568
    %v2697 = vmul.f32 %v2185, %v2569
    %v2698 = vmul.f32 %v2186, %v2570
    %v2699 = vmul.f32 %v2187, %v2571
    %v2700 = vmul.f32 %v2188, %v2572
    %v2701 = vmul.f32 %v2189, %v2573
    %v2702 = vmul.f32 %v2190, %v2574
    %v2703 = vmul.f32 %v2191, %v2575
    %v2704 = vmul.f32 %v2192, %v2576
    %v2705 = vmul.f32 %v2193, %v2577
    %v2706 = vmul.f32 %v2194, %v2578
    %v2707 = vmul.f32 %v2195, %v2579
    %v2708 = vmul.f32 %v2196, %v2580
    %v2709 = vmul.f32 %v2197, %v2581
    %v2710 = vmul.f32 %v2198, %v2582
    %v2711 = vmul.f32 %v2199, %v2583
    %v2712 = vmul.f32 %v2200, %v2584
    %v2713 = vmul.f32 %v2201, %v2585
    %v2714 = vmul.f32 %v2202, %v2586
    %v2715 = vmul.f32 %v2203, %v2587
    %v2716 = vmul.f32 %v2204, %v2588
    %v2717 = vmul.f32 %v2205, %v2589
    %v2718 = vmul.f32 %v2206, %v2590
    %v2719 = vmul.f32 %v2207, %v2591
    %v2720 = vmul.f32 %v2208, %v2592
    %v2721 = vmul.f32 %v2209, %v2593
    %v2722 = vmul.f32 %v2210, %v2594
    %v2723 = vmul.f32 %v2211, %v2595
    %v2724 = vmul.f32 %v2212, %v2596
    %v2725 = vmul.f32 %v2213, %v2597
    %v2726 = vmul.f32 %v2214, %v2598
    %v2727 = vmul.f32 %v2215, %v2599
    %v2728 = vmul.f32 %v2216, %v2600
    %v2729 = vmul.f32 %v2217, %v2601
    %v2730 = vmul.f32 %v2218, %v2602
    %v2731 = vmul.f32 %v2219, %v2603
    %v2732 = vmul.f32 %v2220, %v2604
    %v2733 = vmul.f32 %v2221, %v2605
    %v2734 = vmul.f32 %v2222, %v2606
    %v2735 = vmul.f32 %v2223, %v2607
    %v2736 = vmul.f32 %v2224, %v2608
    %v2737 = vmul.f32 %v2225, %v2609
    %v2738 = vmul.f32 %v2226, %v2610
    %v2739 = vmul.f32 %v2227, %v2611
    %v2740 = vmul.f32 %v2228, %v2612
    %v2741 = vmul.f32 %v2229, %v2613
    %v2742 = vmul.f32 %v2230, %v2614
    %v2743 = vmul.f32 %v2231, %v2615
    %v2744 = vmul.f32 %v2232, %v2616
    %v2745 = vmul.f32 %v2233, %v2617
    %v2746 = vmul.f32 %v2234, %v2618
    %v2747 = vmul.f32 %v2235, %v2619
    %v2748 = vmul.f32 %v2236, %v2620
    %v2749 = vmul.f32 %v2237, %v2621
    %v2750 = vmul.f32 %v2238, %v2622
    %v2751 = vmul.f32 %v2239, %v2623
    %v2752 = vmul.f32 %v2240, %v2624
    %v2753 = vmul.f32 %v2241, %v2625
    %v2754 = vmul.f32 %v2242, %v2626
    %v2755 = vld [vmem:[%s1] sm:$0xff]
    %v2756 = vld [vmem:[%s1 + $0x8] sm:$0xff]
    %v2757 = vld [vmem:[%s1 + $0x10] sm:$0xff]
    %v2758 = vld [vmem:[%s1 + $0x18] sm:$0xff]
    %v2759 = vld [vmem:[%s1 + $0x20] sm:$0xff]
    %v2760 = vld [vmem:[%s1 + $0x28] sm:$0xff]
    %v2761 = vld [vmem:[%s1 + $0x30] sm:$0xff]
    %v2762 = vld [vmem:[%s1 + $0x38] sm:$0xff]
    %v2763 = vld [vmem:[%s1 + $0x40] sm:$0xff]
    %v2764 = vld [vmem:[%s1 + $0x48] sm:$0xff]
    %v2765 = vld [vmem:[%s1 + $0x50] sm:$0xff]
    %v2766 = vld [vmem:[%s1 + $0x58] sm:$0xff]
    %v2767 = vld [vmem:[%s1 + $0x60] sm:$0xff]
    %v2768 = vld [vmem:[%s1 + $0x68] sm:$0xff]
    %v2769 = vld [vmem:[%s1 + $0x70] sm:$0xff]
    %v2770 = vld [vmem:[%s1 + $0x78] sm:$0xff]
    %v2771 = vld [vmem:[%s1 + $0x80] sm:$0xff]
    %v2772 = vld [vmem:[%s1 + $0x88] sm:$0xff]
    %v2773 = vld [vmem:[%s1 + $0x90] sm:$0xff]
    %v2774 = vld [vmem:[%s1 + $0x98] sm:$0xff]
    %v2775 = vld [vmem:[%s1 + $0xa0] sm:$0xff]
    %v2776 = vld [vmem:[%s1 + $0xa8] sm:$0xff]
    %v2777 = vld [vmem:[%s1 + $0xb0] sm:$0xff]
    %v2778 = vld [vmem:[%s1 + $0xb8] sm:$0xff]
    %v2779 = vld [vmem:[%s1 + $0xc0] sm:$0xff]
    %v2780 = vld [vmem:[%s1 + $0xc8] sm:$0xff]
    %v2781 = vld [vmem:[%s1 + $0xd0] sm:$0xff]
    %v2782 = vld [vmem:[%s1 + $0xd8] sm:$0xff]
    %v2783 = vld [vmem:[%s1 + $0xe0] sm:$0xff]
    %v2784 = vld [vmem:[%s1 + $0xe8] sm:$0xff]
    %v2785 = vld [vmem:[%s1 + $0xf0] sm:$0xff]
    %v2786 = vld [vmem:[%s1 + $0xf8] sm:$0xff]
    %v2787 = vld [vmem:[%s1 + $0x100] sm:$0xff]
    %v2788 = vld [vmem:[%s1 + $0x108] sm:$0xff]
    %v2789 = vld [vmem:[%s1 + $0x110] sm:$0xff]
    %v2790 = vld [vmem:[%s1 + $0x118] sm:$0xff]
    %v2791 = vld [vmem:[%s1 + $0x120] sm:$0xff]
    %v2792 = vld [vmem:[%s1 + $0x128] sm:$0xff]
    %v2793 = vld [vmem:[%s1 + $0x130] sm:$0xff]
    %v2794 = vld [vmem:[%s1 + $0x138] sm:$0xff]
    %v2795 = vld [vmem:[%s1 + $0x140] sm:$0xff]
    %v2796 = vld [vmem:[%s1 + $0x148] sm:$0xff]
    %v2797 = vld [vmem:[%s1 + $0x150] sm:$0xff]
    %v2798 = vld [vmem:[%s1 + $0x158] sm:$0xff]
    %v2799 = vld [vmem:[%s1 + $0x160] sm:$0xff]
    %v2800 = vld [vmem:[%s1 + $0x168] sm:$0xff]
    %v2801 = vld [vmem:[%s1 + $0x170] sm:$0xff]
    %v2802 = vld [vmem:[%s1 + $0x178] sm:$0xff]
    %v2803 = vld [vmem:[%s1 + $0x180] sm:$0xff]
    %v2804 = vld [vmem:[%s1 + $0x188] sm:$0xff]
    %v2805 = vld [vmem:[%s1 + $0x190] sm:$0xff]
    %v2806 = vld [vmem:[%s1 + $0x198] sm:$0xff]
    %v2807 = vld [vmem:[%s1 + $0x1a0] sm:$0xff]
    %v2808 = vld [vmem:[%s1 + $0x1a8] sm:$0xff]
    %v2809 = vld [vmem:[%s1 + $0x1b0] sm:$0xff]
    %v2810 = vld [vmem:[%s1 + $0x1b8] sm:$0xff]
    %v2811 = vld [vmem:[%s1 + $0x1c0] sm:$0xff]
    %v2812 = vld [vmem:[%s1 + $0x1c8] sm:$0xff]
    %v2813 = vld [vmem:[%s1 + $0x1d0] sm:$0xff]
    %v2814 = vld [vmem:[%s1 + $0x1d8] sm:$0xff]
    %v2815 = vld [vmem:[%s1 + $0x1e0] sm:$0xff]
    %v2816 = vld [vmem:[%s1 + $0x1e8] sm:$0xff]
    %v2817 = vld [vmem:[%s1 + $0x1f0] sm:$0xff]
    %v2818 = vld [vmem:[%s1 + $0x1f8] sm:$0xff]
    %v2819 = vld [vmem:[%s1 + $0x200] sm:$0xff]
    %v2820 = vld [vmem:[%s1 + $0x208] sm:$0xff]
    %v2821 = vld [vmem:[%s1 + $0x210] sm:$0xff]
    %v2822 = vld [vmem:[%s1 + $0x218] sm:$0xff]
    %v2823 = vld [vmem:[%s1 + $0x220] sm:$0xff]
    %v2824 = vld [vmem:[%s1 + $0x228] sm:$0xff]
    %v2825 = vld [vmem:[%s1 + $0x230] sm:$0xff]
    %v2826 = vld [vmem:[%s1 + $0x238] sm:$0xff]
    %v2827 = vld [vmem:[%s1 + $0x240] sm:$0xff]
    %v2828 = vld [vmem:[%s1 + $0x248] sm:$0xff]
    %v2829 = vld [vmem:[%s1 + $0x250] sm:$0xff]
    %v2830 = vld [vmem:[%s1 + $0x258] sm:$0xff]
    %v2831 = vld [vmem:[%s1 + $0x260] sm:$0xff]
    %v2832 = vld [vmem:[%s1 + $0x268] sm:$0xff]
    %v2833 = vld [vmem:[%s1 + $0x270] sm:$0xff]
    %v2834 = vld [vmem:[%s1 + $0x278] sm:$0xff]
    %v2835 = vld [vmem:[%s1 + $0x280] sm:$0xff]
    %v2836 = vld [vmem:[%s1 + $0x288] sm:$0xff]
    %v2837 = vld [vmem:[%s1 + $0x290] sm:$0xff]
    %v2838 = vld [vmem:[%s1 + $0x298] sm:$0xff]
    %v2839 = vld [vmem:[%s1 + $0x2a0] sm:$0xff]
    %v2840 = vld [vmem:[%s1 + $0x2a8] sm:$0xff]
    %v2841 = vld [vmem:[%s1 + $0x2b0] sm:$0xff]
    %v2842 = vld [vmem:[%s1 + $0x2b8] sm:$0xff]
    %v2843 = vld [vmem:[%s1 + $0x2c0] sm:$0xff]
    %v2844 = vld [vmem:[%s1 + $0x2c8] sm:$0xff]
    %v2845 = vld [vmem:[%s1 + $0x2d0] sm:$0xff]
    %v2846 = vld [vmem:[%s1 + $0x2d8] sm:$0xff]
    %v2847 = vld [vmem:[%s1 + $0x2e0] sm:$0xff]
    %v2848 = vld [vmem:[%s1 + $0x2e8] sm:$0xff]
    %v2849 = vld [vmem:[%s1 + $0x2f0] sm:$0xff]
    %v2850 = vld [vmem:[%s1 + $0x2f8] sm:$0xff]
    %v2851 = vld [vmem:[%s1 + $0x300] sm:$0xff]
    %v2852 = vld [vmem:[%s1 + $0x308] sm:$0xff]
    %v2853 = vld [vmem:[%s1 + $0x310] sm:$0xff]
    %v2854 = vld [vmem:[%s1 + $0x318] sm:$0xff]
    %v2855 = vld [vmem:[%s1 + $0x320] sm:$0xff]
    %v2856 = vld [vmem:[%s1 + $0x328] sm:$0xff]
    %v2857 = vld [vmem:[%s1 + $0x330] sm:$0xff]
    %v2858 = vld [vmem:[%s1 + $0x338] sm:$0xff]
    %v2859 = vld [vmem:[%s1 + $0x340] sm:$0xff]
    %v2860 = vld [vmem:[%s1 + $0x348] sm:$0xff]
    %v2861 = vld [vmem:[%s1 + $0x350] sm:$0xff]
    %v2862 = vld [vmem:[%s1 + $0x358] sm:$0xff]
    %v2863 = vld [vmem:[%s1 + $0x360] sm:$0xff]
    %v2864 = vld [vmem:[%s1 + $0x368] sm:$0xff]
    %v2865 = vld [vmem:[%s1 + $0x370] sm:$0xff]
    %v2866 = vld [vmem:[%s1 + $0x378] sm:$0xff]
    %v2867 = vld [vmem:[%s1 + $0x380] sm:$0xff]
    %v2868 = vld [vmem:[%s1 + $0x388] sm:$0xff]
    %v2869 = vld [vmem:[%s1 + $0x390] sm:$0xff]
    %v2870 = vld [vmem:[%s1 + $0x398] sm:$0xff]
    %v2871 = vld [vmem:[%s1 + $0x3a0] sm:$0xff]
    %v2872 = vld [vmem:[%s1 + $0x3a8] sm:$0xff]
    %v2873 = vld [vmem:[%s1 + $0x3b0] sm:$0xff]
    %v2874 = vld [vmem:[%s1 + $0x3b8] sm:$0xff]
    %v2875 = vld [vmem:[%s1 + $0x3c0] sm:$0xff]
    %v2876 = vld [vmem:[%s1 + $0x3c8] sm:$0xff]
    %v2877 = vld [vmem:[%s1 + $0x3d0] sm:$0xff]
    %v2878 = vld [vmem:[%s1 + $0x3d8] sm:$0xff]
    %v2879 = vld [vmem:[%s1 + $0x3e0] sm:$0xff]
    %v2880 = vld [vmem:[%s1 + $0x3e8] sm:$0xff]
    %v2881 = vld [vmem:[%s1 + $0x3f0] sm:$0xff]
    %v2882 = vld [vmem:[%s1 + $0x3f8] sm:$0xff]
    %v2883 = vsel %vm69, %v2755, 0.0
    %2884 = vadd.xlane.f32.xlu0 %v2883
    %v2885 = vpop.xlane.xlu0 %2884
    %v2886 = vsel %vm69, %v2756, 0.0
    %2887 = vadd.xlane.f32.xlu0 %v2886
    %v2888 = vpop.xlane.xlu0 %2887
    %v2889 = vsel %vm69, %v2757, 0.0
    %2890 = vadd.xlane.f32.xlu0 %v2889
    %v2891 = vpop.xlane.xlu0 %2890
    %v2892 = vsel %vm69, %v2758, 0.0
    %2893 = vadd.xlane.f32.xlu0 %v2892
    %v2894 = vpop.xlane.xlu0 %2893
    %v2895 = vsel %vm69, %v2759, 0.0
    %2896 = vadd.xlane.f32.xlu0 %v2895
    %v2897 = vpop.xlane.xlu0 %2896
    %v2898 = vsel %vm69, %v2760, 0.0
    %2899 = vadd.xlane.f32.xlu0 %v2898
    %v2900 = vpop.xlane.xlu0 %2899
    %v2901 = vsel %vm69, %v2761, 0.0
    %2902 = vadd.xlane.f32.xlu0 %v2901
    %v2903 = vpop.xlane.xlu0 %2902
    %v2904 = vsel %vm69, %v2762, 0.0
    %2905 = vadd.xlane.f32.xlu0 %v2904
    %v2906 = vpop.xlane.xlu0 %2905
    %v2907 = vsel %vm69, %v2763, 0.0
    %2908 = vadd.xlane.f32.xlu0 %v2907
    %v2909 = vpop.xlane.xlu0 %2908
    %v2910 = vsel %vm69, %v2764, 0.0
    %2911 = vadd.xlane.f32.xlu0 %v2910
    %v2912 = vpop.xlane.xlu0 %2911
    %v2913 = vsel %vm69, %v2765, 0.0
    %2914 = vadd.xlane.f32.xlu0 %v2913
    %v2915 = vpop.xlane.xlu0 %2914
    %v2916 = vsel %vm69, %v2766, 0.0
    %2917 = vadd.xlane.f32.xlu0 %v2916
    %v2918 = vpop.xlane.xlu0 %2917
    %v2919 = vsel %vm69, %v2767, 0.0
    %2920 = vadd.xlane.f32.xlu0 %v2919
    %v2921 = vpop.xlane.xlu0 %2920
    %v2922 = vsel %vm69, %v2768, 0.0
    %2923 = vadd.xlane.f32.xlu0 %v2922
    %v2924 = vpop.xlane.xlu0 %2923
    %v2925 = vsel %vm69, %v2769, 0.0
    %2926 = vadd.xlane.f32.xlu0 %v2925
    %v2927 = vpop.xlane.xlu0 %2926
    %v2928 = vsel %vm69, %v2770, 0.0
    %2929 = vadd.xlane.f32.xlu0 %v2928
    %v2930 = vpop.xlane.xlu0 %2929
    %v2931 = vsel %vm69, %v2771, 0.0
    %2932 = vadd.xlane.f32.xlu0 %v2931
    %v2933 = vpop.xlane.xlu0 %2932
    %v2934 = vsel %vm69, %v2772, 0.0
    %2935 = vadd.xlane.f32.xlu0 %v2934
    %v2936 = vpop.xlane.xlu0 %2935
    %v2937 = vsel %vm69, %v2773, 0.0
    %2938 = vadd.xlane.f32.xlu0 %v2937
    %v2939 = vpop.xlane.xlu0 %2938
    %v2940 = vsel %vm69, %v2774, 0.0
    %2941 = vadd.xlane.f32.xlu0 %v2940
    %v2942 = vpop.xlane.xlu0 %2941
    %v2943 = vsel %vm69, %v2775, 0.0
    %2944 = vadd.xlane.f32.xlu0 %v2943
    %v2945 = vpop.xlane.xlu0 %2944
    %v2946 = vsel %vm69, %v2776, 0.0
    %2947 = vadd.xlane.f32.xlu0 %v2946
    %v2948 = vpop.xlane.xlu0 %2947
    %v2949 = vsel %vm69, %v2777, 0.0
    %2950 = vadd.xlane.f32.xlu0 %v2949
    %v2951 = vpop.xlane.xlu0 %2950
    %v2952 = vsel %vm69, %v2778, 0.0
    %2953 = vadd.xlane.f32.xlu0 %v2952
    %v2954 = vpop.xlane.xlu0 %2953
    %v2955 = vsel %vm69, %v2779, 0.0
    %2956 = vadd.xlane.f32.xlu0 %v2955
    %v2957 = vpop.xlane.xlu0 %2956
    %v2958 = vsel %vm69, %v2780, 0.0
    %2959 = vadd.xlane.f32.xlu0 %v2958
    %v2960 = vpop.xlane.xlu0 %2959
    %v2961 = vsel %vm69, %v2781, 0.0
    %2962 = vadd.xlane.f32.xlu0 %v2961
    %v2963 = vpop.xlane.xlu0 %2962
    %v2964 = vsel %vm69, %v2782, 0.0
    %2965 = vadd.xlane.f32.xlu0 %v2964
    %v2966 = vpop.xlane.xlu0 %2965
    %v2967 = vsel %vm69, %v2783, 0.0
    %2968 = vadd.xlane.f32.xlu0 %v2967
    %v2969 = vpop.xlane.xlu0 %2968
    %v2970 = vsel %vm69, %v2784, 0.0
    %2971 = vadd.xlane.f32.xlu0 %v2970
    %v2972 = vpop.xlane.xlu0 %2971
    %v2973 = vsel %vm69, %v2785, 0.0
    %2974 = vadd.xlane.f32.xlu0 %v2973
    %v2975 = vpop.xlane.xlu0 %2974
    %v2976 = vsel %vm69, %v2786, 0.0
    %2977 = vadd.xlane.f32.xlu0 %v2976
    %v2978 = vpop.xlane.xlu0 %2977
    %v2979 = vsel %vm69, %v2787, 0.0
    %2980 = vadd.xlane.f32.xlu0 %v2979
    %v2981 = vpop.xlane.xlu0 %2980
    %v2982 = vsel %vm69, %v2788, 0.0
    %2983 = vadd.xlane.f32.xlu0 %v2982
    %v2984 = vpop.xlane.xlu0 %2983
    %v2985 = vsel %vm69, %v2789, 0.0
    %2986 = vadd.xlane.f32.xlu0 %v2985
    %v2987 = vpop.xlane.xlu0 %2986
    %v2988 = vsel %vm69, %v2790, 0.0
    %2989 = vadd.xlane.f32.xlu0 %v2988
    %v2990 = vpop.xlane.xlu0 %2989
    %v2991 = vsel %vm69, %v2791, 0.0
    %2992 = vadd.xlane.f32.xlu0 %v2991
    %v2993 = vpop.xlane.xlu0 %2992
    %v2994 = vsel %vm69, %v2792, 0.0
    %2995 = vadd.xlane.f32.xlu0 %v2994
    %v2996 = vpop.xlane.xlu0 %2995
    %v2997 = vsel %vm69, %v2793, 0.0
    %2998 = vadd.xlane.f32.xlu0 %v2997
    %v2999 = vpop.xlane.xlu0 %2998
    %v3000 = vsel %vm69, %v2794, 0.0
    %3001 = vadd.xlane.f32.xlu0 %v3000
    %v3002 = vpop.xlane.xlu0 %3001
    %v3003 = vsel %vm69, %v2795, 0.0
    %3004 = vadd.xlane.f32.xlu0 %v3003
    %v3005 = vpop.xlane.xlu0 %3004
    %v3006 = vsel %vm69, %v2796, 0.0
    %3007 = vadd.xlane.f32.xlu0 %v3006
    %v3008 = vpop.xlane.xlu0 %3007
    %v3009 = vsel %vm69, %v2797, 0.0
    %3010 = vadd.xlane.f32.xlu0 %v3009
    %v3011 = vpop.xlane.xlu0 %3010
    %v3012 = vsel %vm69, %v2798, 0.0
    %3013 = vadd.xlane.f32.xlu0 %v3012
    %v3014 = vpop.xlane.xlu0 %3013
    %v3015 = vsel %vm69, %v2799, 0.0
    %3016 = vadd.xlane.f32.xlu0 %v3015
    %v3017 = vpop.xlane.xlu0 %3016
    %v3018 = vsel %vm69, %v2800, 0.0
    %3019 = vadd.xlane.f32.xlu0 %v3018
    %v3020 = vpop.xlane.xlu0 %3019
    %v3021 = vsel %vm69, %v2801, 0.0
    %3022 = vadd.xlane.f32.xlu0 %v3021
    %v3023 = vpop.xlane.xlu0 %3022
    %v3024 = vsel %vm69, %v2802, 0.0
    %3025 = vadd.xlane.f32.xlu0 %v3024
    %v3026 = vpop.xlane.xlu0 %3025
    %v3027 = vsel %vm69, %v2803, 0.0
    %3028 = vadd.xlane.f32.xlu0 %v3027
    %v3029 = vpop.xlane.xlu0 %3028
    %v3030 = vsel %vm69, %v2804, 0.0
    %3031 = vadd.xlane.f32.xlu0 %v3030
    %v3032 = vpop.xlane.xlu0 %3031
    %v3033 = vsel %vm69, %v2805, 0.0
    %3034 = vadd.xlane.f32.xlu0 %v3033
    %v3035 = vpop.xlane.xlu0 %3034
    %v3036 = vsel %vm69, %v2806, 0.0
    %3037 = vadd.xlane.f32.xlu0 %v3036
    %v3038 = vpop.xlane.xlu0 %3037
    %v3039 = vsel %vm69, %v2807, 0.0
    %3040 = vadd.xlane.f32.xlu0 %v3039
    %v3041 = vpop.xlane.xlu0 %3040
    %v3042 = vsel %vm69, %v2808, 0.0
    %3043 = vadd.xlane.f32.xlu0 %v3042
    %v3044 = vpop.xlane.xlu0 %3043
    %v3045 = vsel %vm69, %v2809, 0.0
    %3046 = vadd.xlane.f32.xlu0 %v3045
    %v3047 = vpop.xlane.xlu0 %3046
    %v3048 = vsel %vm69, %v2810, 0.0
    %3049 = vadd.xlane.f32.xlu0 %v3048
    %v3050 = vpop.xlane.xlu0 %3049
    %v3051 = vsel %vm69, %v2811, 0.0
    %3052 = vadd.xlane.f32.xlu0 %v3051
    %v3053 = vpop.xlane.xlu0 %3052
    %v3054 = vsel %vm69, %v2812, 0.0
    %3055 = vadd.xlane.f32.xlu0 %v3054
    %v3056 = vpop.xlane.xlu0 %3055
    %v3057 = vsel %vm69, %v2813, 0.0
    %3058 = vadd.xlane.f32.xlu0 %v3057
    %v3059 = vpop.xlane.xlu0 %3058
    %v3060 = vsel %vm69, %v2814, 0.0
    %3061 = vadd.xlane.f32.xlu0 %v3060
    %v3062 = vpop.xlane.xlu0 %3061
    %v3063 = vsel %vm69, %v2815, 0.0
    %3064 = vadd.xlane.f32.xlu0 %v3063
    %v3065 = vpop.xlane.xlu0 %3064
    %v3066 = vsel %vm69, %v2816, 0.0
    %3067 = vadd.xlane.f32.xlu0 %v3066
    %v3068 = vpop.xlane.xlu0 %3067
    %v3069 = vsel %vm69, %v2817, 0.0
    %3070 = vadd.xlane.f32.xlu0 %v3069
    %v3071 = vpop.xlane.xlu0 %3070
    %v3072 = vsel %vm69, %v2818, 0.0
    %3073 = vadd.xlane.f32.xlu0 %v3072
    %v3074 = vpop.xlane.xlu0 %3073
    %v3075 = vsel %vm69, %v2819, 0.0
    %3076 = vadd.xlane.f32.xlu0 %v3075
    %v3077 = vpop.xlane.xlu0 %3076
    %v3078 = vsel %vm69, %v2820, 0.0
    %3079 = vadd.xlane.f32.xlu0 %v3078
    %v3080 = vpop.xlane.xlu0 %3079
    %v3081 = vsel %vm69, %v2821, 0.0
    %3082 = vadd.xlane.f32.xlu0 %v3081
    %v3083 = vpop.xlane.xlu0 %3082
    %v3084 = vsel %vm69, %v2822, 0.0
    %3085 = vadd.xlane.f32.xlu0 %v3084
    %v3086 = vpop.xlane.xlu0 %3085
    %v3087 = vsel %vm69, %v2823, 0.0
    %3088 = vadd.xlane.f32.xlu0 %v3087
    %v3089 = vpop.xlane.xlu0 %3088
    %v3090 = vsel %vm69, %v2824, 0.0
    %3091 = vadd.xlane.f32.xlu0 %v3090
    %v3092 = vpop.xlane.xlu0 %3091
    %v3093 = vsel %vm69, %v2825, 0.0
    %3094 = vadd.xlane.f32.xlu0 %v3093
    %v3095 = vpop.xlane.xlu0 %3094
    %v3096 = vsel %vm69, %v2826, 0.0
    %3097 = vadd.xlane.f32.xlu0 %v3096
    %v3098 = vpop.xlane.xlu0 %3097
    %v3099 = vsel %vm69, %v2827, 0.0
    %3100 = vadd.xlane.f32.xlu0 %v3099
    %v3101 = vpop.xlane.xlu0 %3100
    %v3102 = vsel %vm69, %v2828, 0.0
    %3103 = vadd.xlane.f32.xlu0 %v3102
    %v3104 = vpop.xlane.xlu0 %3103
    %v3105 = vsel %vm69, %v2829, 0.0
    %3106 = vadd.xlane.f32.xlu0 %v3105
    %v3107 = vpop.xlane.xlu0 %3106
    %v3108 = vsel %vm69, %v2830, 0.0
    %3109 = vadd.xlane.f32.xlu0 %v3108
    %v3110 = vpop.xlane.xlu0 %3109
    %v3111 = vsel %vm69, %v2831, 0.0
    %3112 = vadd.xlane.f32.xlu0 %v3111
    %v3113 = vpop.xlane.xlu0 %3112
    %v3114 = vsel %vm69, %v2832, 0.0
    %3115 = vadd.xlane.f32.xlu0 %v3114
    %v3116 = vpop.xlane.xlu0 %3115
    %v3117 = vsel %vm69, %v2833, 0.0
    %3118 = vadd.xlane.f32.xlu0 %v3117
    %v3119 = vpop.xlane.xlu0 %3118
    %v3120 = vsel %vm69, %v2834, 0.0
    %3121 = vadd.xlane.f32.xlu0 %v3120
    %v3122 = vpop.xlane.xlu0 %3121
    %v3123 = vsel %vm69, %v2835, 0.0
    %3124 = vadd.xlane.f32.xlu0 %v3123
    %v3125 = vpop.xlane.xlu0 %3124
    %v3126 = vsel %vm69, %v2836, 0.0
    %3127 = vadd.xlane.f32.xlu0 %v3126
    %v3128 = vpop.xlane.xlu0 %3127
    %v3129 = vsel %vm69, %v2837, 0.0
    %3130 = vadd.xlane.f32.xlu0 %v3129
    %v3131 = vpop.xlane.xlu0 %3130
    %v3132 = vsel %vm69, %v2838, 0.0
    %3133 = vadd.xlane.f32.xlu0 %v3132
    %v3134 = vpop.xlane.xlu0 %3133
    %v3135 = vsel %vm69, %v2839, 0.0
    %3136 = vadd.xlane.f32.xlu0 %v3135
    %v3137 = vpop.xlane.xlu0 %3136
    %v3138 = vsel %vm69, %v2840, 0.0
    %3139 = vadd.xlane.f32.xlu0 %v3138
    %v3140 = vpop.xlane.xlu0 %3139
    %v3141 = vsel %vm69, %v2841, 0.0
    %3142 = vadd.xlane.f32.xlu0 %v3141
    %v3143 = vpop.xlane.xlu0 %3142
    %v3144 = vsel %vm69, %v2842, 0.0
    %3145 = vadd.xlane.f32.xlu0 %v3144
    %v3146 = vpop.xlane.xlu0 %3145
    %v3147 = vsel %vm69, %v2843, 0.0
    %3148 = vadd.xlane.f32.xlu0 %v3147
    %v3149 = vpop.xlane.xlu0 %3148
    %v3150 = vsel %vm69, %v2844, 0.0
    %3151 = vadd.xlane.f32.xlu0 %v3150
    %v3152 = vpop.xlane.xlu0 %3151
    %v3153 = vsel %vm69, %v2845, 0.0
    %3154 = vadd.xlane.f32.xlu0 %v3153
    %v3155 = vpop.xlane.xlu0 %3154
    %v3156 = vsel %vm69, %v2846, 0.0
    %3157 = vadd.xlane.f32.xlu0 %v3156
    %v3158 = vpop.xlane.xlu0 %3157
    %v3159 = vsel %vm69, %v2847, 0.0
    %3160 = vadd.xlane.f32.xlu0 %v3159
    %v3161 = vpop.xlane.xlu0 %3160
    %v3162 = vsel %vm69, %v2848, 0.0
    %3163 = vadd.xlane.f32.xlu0 %v3162
    %v3164 = vpop.xlane.xlu0 %3163
    %v3165 = vsel %vm69, %v2849, 0.0
    %3166 = vadd.xlane.f32.xlu0 %v3165
    %v3167 = vpop.xlane.xlu0 %3166
    %v3168 = vsel %vm69, %v2850, 0.0
    %3169 = vadd.xlane.f32.xlu0 %v3168
    %v3170 = vpop.xlane.xlu0 %3169
    %v3171 = vsel %vm69, %v2851, 0.0
    %3172 = vadd.xlane.f32.xlu0 %v3171
    %v3173 = vpop.xlane.xlu0 %3172
    %v3174 = vsel %vm69, %v2852, 0.0
    %3175 = vadd.xlane.f32.xlu0 %v3174
    %v3176 = vpop.xlane.xlu0 %3175
    %v3177 = vsel %vm69, %v2853, 0.0
    %3178 = vadd.xlane.f32.xlu0 %v3177
    %v3179 = vpop.xlane.xlu0 %3178
    %v3180 = vsel %vm69, %v2854, 0.0
    %3181 = vadd.xlane.f32.xlu0 %v3180
    %v3182 = vpop.xlane.xlu0 %3181
    %v3183 = vsel %vm69, %v2855, 0.0
    %3184 = vadd.xlane.f32.xlu0 %v3183
    %v3185 = vpop.xlane.xlu0 %3184
    %v3186 = vsel %vm69, %v2856, 0.0
    %3187 = vadd.xlane.f32.xlu0 %v3186
    %v3188 = vpop.xlane.xlu0 %3187
    %v3189 = vsel %vm69, %v2857, 0.0
    %3190 = vadd.xlane.f32.xlu0 %v3189
    %v3191 = vpop.xlane.xlu0 %3190
    %v3192 = vsel %vm69, %v2858, 0.0
    %3193 = vadd.xlane.f32.xlu0 %v3192
    %v3194 = vpop.xlane.xlu0 %3193
    %v3195 = vsel %vm69, %v2859, 0.0
    %3196 = vadd.xlane.f32.xlu0 %v3195
    %v3197 = vpop.xlane.xlu0 %3196
    %v3198 = vsel %vm69, %v2860, 0.0
    %3199 = vadd.xlane.f32.xlu0 %v3198
    %v3200 = vpop.xlane.xlu0 %3199
    %v3201 = vsel %vm69, %v2861, 0.0
    %3202 = vadd.xlane.f32.xlu0 %v3201
    %v3203 = vpop.xlane.xlu0 %3202
    %v3204 = vsel %vm69, %v2862, 0.0
    %3205 = vadd.xlane.f32.xlu0 %v3204
    %v3206 = vpop.xlane.xlu0 %3205
    %v3207 = vsel %vm69, %v2863, 0.0
    %3208 = vadd.xlane.f32.xlu0 %v3207
    %v3209 = vpop.xlane.xlu0 %3208
    %v3210 = vsel %vm69, %v2864, 0.0
    %3211 = vadd.xlane.f32.xlu0 %v3210
    %v3212 = vpop.xlane.xlu0 %3211
    %v3213 = vsel %vm69, %v2865, 0.0
    %3214 = vadd.xlane.f32.xlu0 %v3213
    %v3215 = vpop.xlane.xlu0 %3214
    %v3216 = vsel %vm69, %v2866, 0.0
    %3217 = vadd.xlane.f32.xlu0 %v3216
    %v3218 = vpop.xlane.xlu0 %3217
    %v3219 = vsel %vm69, %v2867, 0.0
    %3220 = vadd.xlane.f32.xlu0 %v3219
    %v3221 = vpop.xlane.xlu0 %3220
    %v3222 = vsel %vm69, %v2868, 0.0
    %3223 = vadd.xlane.f32.xlu0 %v3222
    %v3224 = vpop.xlane.xlu0 %3223
    %v3225 = vsel %vm69, %v2869, 0.0
    %3226 = vadd.xlane.f32.xlu0 %v3225
    %v3227 = vpop.xlane.xlu0 %3226
    %v3228 = vsel %vm69, %v2870, 0.0
    %3229 = vadd.xlane.f32.xlu0 %v3228
    %v3230 = vpop.xlane.xlu0 %3229
    %v3231 = vsel %vm69, %v2871, 0.0
    %3232 = vadd.xlane.f32.xlu0 %v3231
    %v3233 = vpop.xlane.xlu0 %3232
    %v3234 = vsel %vm69, %v2872, 0.0
    %3235 = vadd.xlane.f32.xlu0 %v3234
    %v3236 = vpop.xlane.xlu0 %3235
    %v3237 = vsel %vm69, %v2873, 0.0
    %3238 = vadd.xlane.f32.xlu0 %v3237
    %v3239 = vpop.xlane.xlu0 %3238
    %v3240 = vsel %vm69, %v2874, 0.0
    %3241 = vadd.xlane.f32.xlu0 %v3240
    %v3242 = vpop.xlane.xlu0 %3241
    %v3243 = vsel %vm69, %v2875, 0.0
    %3244 = vadd.xlane.f32.xlu0 %v3243
    %v3245 = vpop.xlane.xlu0 %3244
    %v3246 = vsel %vm69, %v2876, 0.0
    %3247 = vadd.xlane.f32.xlu0 %v3246
    %v3248 = vpop.xlane.xlu0 %3247
    %v3249 = vsel %vm69, %v2877, 0.0
    %3250 = vadd.xlane.f32.xlu0 %v3249
    %v3251 = vpop.xlane.xlu0 %3250
    %v3252 = vsel %vm69, %v2878, 0.0
    %3253 = vadd.xlane.f32.xlu0 %v3252
    %v3254 = vpop.xlane.xlu0 %3253
    %v3255 = vsel %vm69, %v2879, 0.0
    %3256 = vadd.xlane.f32.xlu0 %v3255
    %v3257 = vpop.xlane.xlu0 %3256
    %v3258 = vsel %vm69, %v2880, 0.0
    %3259 = vadd.xlane.f32.xlu0 %v3258
    %v3260 = vpop.xlane.xlu0 %3259
    %v3261 = vsel %vm69, %v2881, 0.0
    %3262 = vadd.xlane.f32.xlu0 %v3261
    %v3263 = vpop.xlane.xlu0 %3262
    %v3264 = vsel %vm69, %v2882, 0.0
    %3265 = vadd.xlane.f32.xlu0 %v3264
    %v3266 = vpop.xlane.xlu0 %3265
    %v3267 = vrcp.pop 32.0
    %v3268 = vmul.f32 %v2885, %v3267
    %v3269 = vmul.f32 %v2888, %v3267
    %v3270 = vmul.f32 %v2891, %v3267
    %v3271 = vmul.f32 %v2894, %v3267
    %v3272 = vmul.f32 %v2897, %v3267
    %v3273 = vmul.f32 %v2900, %v3267
    %v3274 = vmul.f32 %v2903, %v3267
    %v3275 = vmul.f32 %v2906, %v3267
    %v3276 = vmul.f32 %v2909, %v3267
    %v3277 = vmul.f32 %v2912, %v3267
    %v3278 = vmul.f32 %v2915, %v3267
    %v3279 = vmul.f32 %v2918, %v3267
    %v3280 = vmul.f32 %v2921, %v3267
    %v3281 = vmul.f32 %v2924, %v3267
    %v3282 = vmul.f32 %v2927, %v3267
    %v3283 = vmul.f32 %v2930, %v3267
    %v3284 = vmul.f32 %v2933, %v3267
    %v3285 = vmul.f32 %v2936, %v3267
    %v3286 = vmul.f32 %v2939, %v3267
    %v3287 = vmul.f32 %v2942, %v3267
    %v3288 = vmul.f32 %v2945, %v3267
    %v3289 = vmul.f32 %v2948, %v3267
    %v3290 = vmul.f32 %v2951, %v3267
    %v3291 = vmul.f32 %v2954, %v3267
    %v3292 = vmul.f32 %v2957, %v3267
    %v3293 = vmul.f32 %v2960, %v3267
    %v3294 = vmul.f32 %v2963, %v3267
    %v3295 = vmul.f32 %v2966, %v3267
    %v3296 = vmul.f32 %v2969, %v3267
    %v3297 = vmul.f32 %v2972, %v3267
    %v3298 = vmul.f32 %v2975, %v3267
    %v3299 = vmul.f32 %v2978, %v3267
    %v3300 = vmul.f32 %v2981, %v3267
    %v3301 = vmul.f32 %v2984, %v3267
    %v3302 = vmul.f32 %v2987, %v3267
    %v3303 = vmul.f32 %v2990, %v3267
    %v3304 = vmul.f32 %v2993, %v3267
    %v3305 = vmul.f32 %v2996, %v3267
    %v3306 = vmul.f32 %v2999, %v3267
    %v3307 = vmul.f32 %v3002, %v3267
    %v3308 = vmul.f32 %v3005, %v3267
    %v3309 = vmul.f32 %v3008, %v3267
    %v3310 = vmul.f32 %v3011, %v3267
    %v3311 = vmul.f32 %v3014, %v3267
    %v3312 = vmul.f32 %v3017, %v3267
    %v3313 = vmul.f32 %v3020, %v3267
    %v3314 = vmul.f32 %v3023, %v3267
    %v3315 = vmul.f32 %v3026, %v3267
    %v3316 = vmul.f32 %v3029, %v3267
    %v3317 = vmul.f32 %v3032, %v3267
    %v3318 = vmul.f32 %v3035, %v3267
    %v3319 = vmul.f32 %v3038, %v3267
    %v3320 = vmul.f32 %v3041, %v3267
    %v3321 = vmul.f32 %v3044, %v3267
    %v3322 = vmul.f32 %v3047, %v3267
    %v3323 = vmul.f32 %v3050, %v3267
    %v3324 = vmul.f32 %v3053, %v3267
    %v3325 = vmul.f32 %v3056, %v3267
    %v3326 = vmul.f32 %v3059, %v3267
    %v3327 = vmul.f32 %v3062, %v3267
    %v3328 = vmul.f32 %v3065, %v3267
    %v3329 = vmul.f32 %v3068, %v3267
    %v3330 = vmul.f32 %v3071, %v3267
    %v3331 = vmul.f32 %v3074, %v3267
    %v3332 = vmul.f32 %v3077, %v3267
    %v3333 = vmul.f32 %v3080, %v3267
    %v3334 = vmul.f32 %v3083, %v3267
    %v3335 = vmul.f32 %v3086, %v3267
    %v3336 = vmul.f32 %v3089, %v3267
    %v3337 = vmul.f32 %v3092, %v3267
    %v3338 = vmul.f32 %v3095, %v3267
    %v3339 = vmul.f32 %v3098, %v3267
    %v3340 = vmul.f32 %v3101, %v3267
    %v3341 = vmul.f32 %v3104, %v3267
    %v3342 = vmul.f32 %v3107, %v3267
    %v3343 = vmul.f32 %v3110, %v3267
    %v3344 = vmul.f32 %v3113, %v3267
    %v3345 = vmul.f32 %v3116, %v3267
    %v3346 = vmul.f32 %v3119, %v3267
    %v3347 = vmul.f32 %v3122, %v3267
    %v3348 = vmul.f32 %v3125, %v3267
    %v3349 = vmul.f32 %v3128, %v3267
    %v3350 = vmul.f32 %v3131, %v3267
    %v3351 = vmul.f32 %v3134, %v3267
    %v3352 = vmul.f32 %v3137, %v3267
    %v3353 = vmul.f32 %v3140, %v3267
    %v3354 = vmul.f32 %v3143, %v3267
    %v3355 = vmul.f32 %v3146, %v3267
    %v3356 = vmul.f32 %v3149, %v3267
    %v3357 = vmul.f32 %v3152, %v3267
    %v3358 = vmul.f32 %v3155, %v3267
    %v3359 = vmul.f32 %v3158, %v3267
    %v3360 = vmul.f32 %v3161, %v3267
    %v3361 = vmul.f32 %v3164, %v3267
    %v3362 = vmul.f32 %v3167, %v3267
    %v3363 = vmul.f32 %v3170, %v3267
    %v3364 = vmul.f32 %v3173, %v3267
    %v3365 = vmul.f32 %v3176, %v3267
    %v3366 = vmul.f32 %v3179, %v3267
    %v3367 = vmul.f32 %v3182, %v3267
    %v3368 = vmul.f32 %v3185, %v3267
    %v3369 = vmul.f32 %v3188, %v3267
    %v3370 = vmul.f32 %v3191, %v3267
    %v3371 = vmul.f32 %v3194, %v3267
    %v3372 = vmul.f32 %v3197, %v3267
    %v3373 = vmul.f32 %v3200, %v3267
    %v3374 = vmul.f32 %v3203, %v3267
    %v3375 = vmul.f32 %v3206, %v3267
    %v3376 = vmul.f32 %v3209, %v3267
    %v3377 = vmul.f32 %v3212, %v3267
    %v3378 = vmul.f32 %v3215, %v3267
    %v3379 = vmul.f32 %v3218, %v3267
    %v3380 = vmul.f32 %v3221, %v3267
    %v3381 = vmul.f32 %v3224, %v3267
    %v3382 = vmul.f32 %v3227, %v3267
    %v3383 = vmul.f32 %v3230, %v3267
    %v3384 = vmul.f32 %v3233, %v3267
    %v3385 = vmul.f32 %v3236, %v3267
    %v3386 = vmul.f32 %v3239, %v3267
    %v3387 = vmul.f32 %v3242, %v3267
    %v3388 = vmul.f32 %v3245, %v3267
    %v3389 = vmul.f32 %v3248, %v3267
    %v3390 = vmul.f32 %v3251, %v3267
    %v3391 = vmul.f32 %v3254, %v3267
    %v3392 = vmul.f32 %v3257, %v3267
    %v3393 = vmul.f32 %v3260, %v3267
    %v3394 = vmul.f32 %v3263, %v3267
    %v3395 = vmul.f32 %v3266, %v3267
    %v3396 = vsub.f32 %v2755, %v3268
    %v3397 = vsub.f32 %v2756, %v3269
    %v3398 = vsub.f32 %v2757, %v3270
    %v3399 = vsub.f32 %v2758, %v3271
    %v3400 = vsub.f32 %v2759, %v3272
    %v3401 = vsub.f32 %v2760, %v3273
    %v3402 = vsub.f32 %v2761, %v3274
    %v3403 = vsub.f32 %v2762, %v3275
    %v3404 = vsub.f32 %v2763, %v3276
    %v3405 = vsub.f32 %v2764, %v3277
    %v3406 = vsub.f32 %v2765, %v3278
    %v3407 = vsub.f32 %v2766, %v3279
    %v3408 = vsub.f32 %v2767, %v3280
    %v3409 = vsub.f32 %v2768, %v3281
    %v3410 = vsub.f32 %v2769, %v3282
    %v3411 = vsub.f32 %v2770, %v3283
    %v3412 = vsub.f32 %v2771, %v3284
    %v3413 = vsub.f32 %v2772, %v3285
    %v3414 = vsub.f32 %v2773, %v3286
    %v3415 = vsub.f32 %v2774, %v3287
    %v3416 = vsub.f32 %v2775, %v3288
    %v3417 = vsub.f32 %v2776, %v3289
    %v3418 = vsub.f32 %v2777, %v3290
    %v3419 = vsub.f32 %v2778, %v3291
    %v3420 = vsub.f32 %v2779, %v3292
    %v3421 = vsub.f32 %v2780, %v3293
    %v3422 = vsub.f32 %v2781, %v3294
    %v3423 = vsub.f32 %v2782, %v3295
    %v3424 = vsub.f32 %v2783, %v3296
    %v3425 = vsub.f32 %v2784, %v3297
    %v3426 = vsub.f32 %v2785, %v3298
    %v3427 = vsub.f32 %v2786, %v3299
    %v3428 = vsub.f32 %v2787, %v3300
    %v3429 = vsub.f32 %v2788, %v3301
    %v3430 = vsub.f32 %v2789, %v3302
    %v3431 = vsub.f32 %v2790, %v3303
    %v3432 = vsub.f32 %v2791, %v3304
    %v3433 = vsub.f32 %v2792, %v3305
    %v3434 = vsub.f32 %v2793, %v3306
    %v3435 = vsub.f32 %v2794, %v3307
    %v3436 = vsub.f32 %v2795, %v3308
    %v3437 = vsub.f32 %v2796, %v3309
    %v3438 = vsub.f32 %v2797, %v3310
    %v3439 = vsub.f32 %v2798, %v3311
    %v3440 = vsub.f32 %v2799, %v3312
    %v3441 = vsub.f32 %v2800, %v3313
    %v3442 = vsub.f32 %v2801, %v3314
    %v3443 = vsub.f32 %v2802, %v3315
    %v3444 = vsub.f32 %v2803, %v3316
    %v3445 = vsub.f32 %v2804, %v3317
    %v3446 = vsub.f32 %v2805, %v3318
    %v3447 = vsub.f32 %v2806, %v3319
    %v3448 = vsub.f32 %v2807, %v3320
    %v3449 = vsub.f32 %v2808, %v3321
    %v3450 = vsub.f32 %v2809, %v3322
    %v3451 = vsub.f32 %v2810, %v3323
    %v3452 = vsub.f32 %v2811, %v3324
    %v3453 = vsub.f32 %v2812, %v3325
    %v3454 = vsub.f32 %v2813, %v3326
    %v3455 = vsub.f32 %v2814, %v3327
    %v3456 = vsub.f32 %v2815, %v3328
    %v3457 = vsub.f32 %v2816, %v3329
    %v3458 = vsub.f32 %v2817, %v3330
    %v3459 = vsub.f32 %v2818, %v3331
    %v3460 = vsub.f32 %v2819, %v3332
    %v3461 = vsub.f32 %v2820, %v3333
    %v3462 = vsub.f32 %v2821, %v3334
    %v3463 = vsub.f32 %v2822, %v3335
    %v3464 = vsub.f32 %v2823, %v3336
    %v3465 = vsub.f32 %v2824, %v3337
    %v3466 = vsub.f32 %v2825, %v3338
    %v3467 = vsub.f32 %v2826, %v3339
    %v3468 = vsub.f32 %v2827, %v3340
    %v3469 = vsub.f32 %v2828, %v3341
    %v3470 = vsub.f32 %v2829, %v3342
    %v3471 = vsub.f32 %v2830, %v3343
    %v3472 = vsub.f32 %v2831, %v3344
    %v3473 = vsub.f32 %v2832, %v3345
    %v3474 = vsub.f32 %v2833, %v3346
    %v3475 = vsub.f32 %v2834, %v3347
    %v3476 = vsub.f32 %v2835, %v3348
    %v3477 = vsub.f32 %v2836, %v3349
    %v3478 = vsub.f32 %v2837, %v3350
    %v3479 = vsub.f32 %v2838, %v3351
    %v3480 = vsub.f32 %v2839, %v3352
    %v3481 = vsub.f32 %v2840, %v3353
    %v3482 = vsub.f32 %v2841, %v3354
    %v3483 = vsub.f32 %v2842, %v3355
    %v3484 = vsub.f32 %v2843, %v3356
    %v3485 = vsub.f32 %v2844, %v3357
    %v3486 = vsub.f32 %v2845, %v3358
    %v3487 = vsub.f32 %v2846, %v3359
    %v3488 = vsub.f32 %v2847, %v3360
    %v3489 = vsub.f32 %v2848, %v3361
    %v3490 = vsub.f32 %v2849, %v3362
    %v3491 = vsub.f32 %v2850, %v3363
    %v3492 = vsub.f32 %v2851, %v3364
    %v3493 = vsub.f32 %v2852, %v3365
    %v3494 = vsub.f32 %v2853, %v3366
    %v3495 = vsub.f32 %v2854, %v3367
    %v3496 = vsub.f32 %v2855, %v3368
    %v3497 = vsub.f32 %v2856, %v3369
    %v3498 = vsub.f32 %v2857, %v3370
    %v3499 = vsub.f32 %v2858, %v3371
    %v3500 = vsub.f32 %v2859, %v3372
    %v3501 = vsub.f32 %v2860, %v3373
    %v3502 = vsub.f32 %v2861, %v3374
    %v3503 = vsub.f32 %v2862, %v3375
    %v3504 = vsub.f32 %v2863, %v3376
    %v3505 = vsub.f32 %v2864, %v3377
    %v3506 = vsub.f32 %v2865, %v3378
    %v3507 = vsub.f32 %v2866, %v3379
    %v3508 = vsub.f32 %v2867, %v3380
    %v3509 = vsub.f32 %v2868, %v3381
    %v3510 = vsub.f32 %v2869, %v3382
    %v3511 = vsub.f32 %v2870, %v3383
    %v3512 = vsub.f32 %v2871, %v3384
    %v3513 = vsub.f32 %v2872, %v3385
    %v3514 = vsub.f32 %v2873, %v3386
    %v3515 = vsub.f32 %v2874, %v3387
    %v3516 = vsub.f32 %v2875, %v3388
    %v3517 = vsub.f32 %v2876, %v3389
    %v3518 = vsub.f32 %v2877, %v3390
    %v3519 = vsub.f32 %v2878, %v3391
    %v3520 = vsub.f32 %v2879, %v3392
    %v3521 = vsub.f32 %v2880, %v3393
    %v3522 = vsub.f32 %v2881, %v3394
    %v3523 = vsub.f32 %v2882, %v3395
    %v3524 = vmul.f32 %v3396, %v3396
    %v3525 = vmul.f32 %v3397, %v3397
    %v3526 = vmul.f32 %v3398, %v3398
    %v3527 = vmul.f32 %v3399, %v3399
    %v3528 = vmul.f32 %v3400, %v3400
    %v3529 = vmul.f32 %v3401, %v3401
    %v3530 = vmul.f32 %v3402, %v3402
    %v3531 = vmul.f32 %v3403, %v3403
    %v3532 = vmul.f32 %v3404, %v3404
    %v3533 = vmul.f32 %v3405, %v3405
    %v3534 = vmul.f32 %v3406, %v3406
    %v3535 = vmul.f32 %v3407, %v3407
    %v3536 = vmul.f32 %v3408, %v3408
    %v3537 = vmul.f32 %v3409, %v3409
    %v3538 = vmul.f32 %v3410, %v3410
    %v3539 = vmul.f32 %v3411, %v3411
    %v3540 = vmul.f32 %v3412, %v3412
    %v3541 = vmul.f32 %v3413, %v3413
    %v3542 = vmul.f32 %v3414, %v3414
    %v3543 = vmul.f32 %v3415, %v3415
    %v3544 = vmul.f32 %v3416, %v3416
    %v3545 = vmul.f32 %v3417, %v3417
    %v3546 = vmul.f32 %v3418, %v3418
    %v3547 = vmul.f32 %v3419, %v3419
    %v3548 = vmul.f32 %v3420, %v3420
    %v3549 = vmul.f32 %v3421, %v3421
    %v3550 = vmul.f32 %v3422, %v3422
    %v3551 = vmul.f32 %v3423, %v3423
    %v3552 = vmul.f32 %v3424, %v3424
    %v3553 = vmul.f32 %v3425, %v3425
    %v3554 = vmul.f32 %v3426, %v3426
    %v3555 = vmul.f32 %v3427, %v3427
    %v3556 = vmul.f32 %v3428, %v3428
    %v3557 = vmul.f32 %v3429, %v3429
    %v3558 = vmul.f32 %v3430, %v3430
    %v3559 = vmul.f32 %v3431, %v3431
    %v3560 = vmul.f32 %v3432, %v3432
    %v3561 = vmul.f32 %v3433, %v3433
    %v3562 = vmul.f32 %v3434, %v3434
    %v3563 = vmul.f32 %v3435, %v3435
    %v3564 = vmul.f32 %v3436, %v3436
    %v3565 = vmul.f32 %v3437, %v3437
    %v3566 = vmul.f32 %v3438, %v3438
    %v3567 = vmul.f32 %v3439, %v3439
    %v3568 = vmul.f32 %v3440, %v3440
    %v3569 = vmul.f32 %v3441, %v3441
    %v3570 = vmul.f32 %v3442, %v3442
    %v3571 = vmul.f32 %v3443, %v3443
    %v3572 = vmul.f32 %v3444, %v3444
    %v3573 = vmul.f32 %v3445, %v3445
    %v3574 = vmul.f32 %v3446, %v3446
    %v3575 = vmul.f32 %v3447, %v3447
    %v3576 = vmul.f32 %v3448, %v3448
    %v3577 = vmul.f32 %v3449, %v3449
    %v3578 = vmul.f32 %v3450, %v3450
    %v3579 = vmul.f32 %v3451, %v3451
    %v3580 = vmul.f32 %v3452, %v3452
    %v3581 = vmul.f32 %v3453, %v3453
    %v3582 = vmul.f32 %v3454, %v3454
    %v3583 = vmul.f32 %v3455, %v3455
    %v3584 = vmul.f32 %v3456, %v3456
    %v3585 = vmul.f32 %v3457, %v3457
    %v3586 = vmul.f32 %v3458, %v3458
    %v3587 = vmul.f32 %v3459, %v3459
    %v3588 = vmul.f32 %v3460, %v3460
    %v3589 = vmul.f32 %v3461, %v3461
    %v3590 = vmul.f32 %v3462, %v3462
    %v3591 = vmul.f32 %v3463, %v3463
    %v3592 = vmul.f32 %v3464, %v3464
    %v3593 = vmul.f32 %v3465, %v3465
    %v3594 = vmul.f32 %v3466, %v3466
    %v3595 = vmul.f32 %v3467, %v3467
    %v3596 = vmul.f32 %v3468, %v3468
    %v3597 = vmul.f32 %v3469, %v3469
    %v3598 = vmul.f32 %v3470, %v3470
    %v3599 = vmul.f32 %v3471, %v3471
    %v3600 = vmul.f32 %v3472, %v3472
    %v3601 = vmul.f32 %v3473, %v3473
    %v3602 = vmul.f32 %v3474, %v3474
    %v3603 = vmul.f32 %v3475, %v3475
    %v3604 = vmul.f32 %v3476, %v3476
    %v3605 = vmul.f32 %v3477, %v3477
    %v3606 = vmul.f32 %v3478, %v3478
    %v3607 = vmul.f32 %v3479, %v3479
    %v3608 = vmul.f32 %v3480, %v3480
    %v3609 = vmul.f32 %v3481, %v3481
    %v3610 = vmul.f32 %v3482, %v3482
    %v3611 = vmul.f32 %v3483, %v3483
    %v3612 = vmul.f32 %v3484, %v3484
    %v3613 = vmul.f32 %v3485, %v3485
    %v3614 = vmul.f32 %v3486, %v3486
    %v3615 = vmul.f32 %v3487, %v3487
    %v3616 = vmul.f32 %v3488, %v3488
    %v3617 = vmul.f32 %v3489, %v3489
    %v3618 = vmul.f32 %v3490, %v3490
    %v3619 = vmul.f32 %v3491, %v3491
    %v3620 = vmul.f32 %v3492, %v3492
    %v3621 = vmul.f32 %v3493, %v3493
    %v3622 = vmul.f32 %v3494, %v3494
    %v3623 = vmul.f32 %v3495, %v3495
    %v3624 = vmul.f32 %v3496, %v3496
    %v3625 = vmul.f32 %v3497, %v3497
    %v3626 = vmul.f32 %v3498, %v3498
    %v3627 = vmul.f32 %v3499, %v3499
    %v3628 = vmul.f32 %v3500, %v3500
    %v3629 = vmul.f32 %v3501, %v3501
    %v3630 = vmul.f32 %v3502, %v3502
    %v3631 = vmul.f32 %v3503, %v3503
    %v3632 = vmul.f32 %v3504, %v3504
    %v3633 = vmul.f32 %v3505, %v3505
    %v3634 = vmul.f32 %v3506, %v3506
    %v3635 = vmul.f32 %v3507, %v3507
    %v3636 = vmul.f32 %v3508, %v3508
    %v3637 = vmul.f32 %v3509, %v3509
    %v3638 = vmul.f32 %v3510, %v3510
    %v3639 = vmul.f32 %v3511, %v3511
    %v3640 = vmul.f32 %v3512, %v3512
    %v3641 = vmul.f32 %v3513, %v3513
    %v3642 = vmul.f32 %v3514, %v3514
    %v3643 = vmul.f32 %v3515, %v3515
    %v3644 = vmul.f32 %v3516, %v3516
    %v3645 = vmul.f32 %v3517, %v3517
    %v3646 = vmul.f32 %v3518, %v3518
    %v3647 = vmul.f32 %v3519, %v3519
    %v3648 = vmul.f32 %v3520, %v3520
    %v3649 = vmul.f32 %v3521, %v3521
    %v3650 = vmul.f32 %v3522, %v3522
    %v3651 = vmul.f32 %v3523, %v3523
    %v3652 = vsel %vm69, %v3524, 0.0
    %3653 = vadd.xlane.f32.xlu0 %v3652
    %v3654 = vpop.xlane.xlu0 %3653
    %v3655 = vsel %vm69, %v3525, 0.0
    %3656 = vadd.xlane.f32.xlu0 %v3655
    %v3657 = vpop.xlane.xlu0 %3656
    %v3658 = vsel %vm69, %v3526, 0.0
    %3659 = vadd.xlane.f32.xlu0 %v3658
    %v3660 = vpop.xlane.xlu0 %3659
    %v3661 = vsel %vm69, %v3527, 0.0
    %3662 = vadd.xlane.f32.xlu0 %v3661
    %v3663 = vpop.xlane.xlu0 %3662
    %v3664 = vsel %vm69, %v3528, 0.0
    %3665 = vadd.xlane.f32.xlu0 %v3664
    %v3666 = vpop.xlane.xlu0 %3665
    %v3667 = vsel %vm69, %v3529, 0.0
    %3668 = vadd.xlane.f32.xlu0 %v3667
    %v3669 = vpop.xlane.xlu0 %3668
    %v3670 = vsel %vm69, %v3530, 0.0
    %3671 = vadd.xlane.f32.xlu0 %v3670
    %v3672 = vpop.xlane.xlu0 %3671
    %v3673 = vsel %vm69, %v3531, 0.0
    %3674 = vadd.xlane.f32.xlu0 %v3673
    %v3675 = vpop.xlane.xlu0 %3674
    %v3676 = vsel %vm69, %v3532, 0.0
    %3677 = vadd.xlane.f32.xlu0 %v3676
    %v3678 = vpop.xlane.xlu0 %3677
    %v3679 = vsel %vm69, %v3533, 0.0
    %3680 = vadd.xlane.f32.xlu0 %v3679
    %v3681 = vpop.xlane.xlu0 %3680
    %v3682 = vsel %vm69, %v3534, 0.0
    %3683 = vadd.xlane.f32.xlu0 %v3682
    %v3684 = vpop.xlane.xlu0 %3683
    %v3685 = vsel %vm69, %v3535, 0.0
    %3686 = vadd.xlane.f32.xlu0 %v3685
    %v3687 = vpop.xlane.xlu0 %3686
    %v3688 = vsel %vm69, %v3536, 0.0
    %3689 = vadd.xlane.f32.xlu0 %v3688
    %v3690 = vpop.xlane.xlu0 %3689
    %v3691 = vsel %vm69, %v3537, 0.0
    %3692 = vadd.xlane.f32.xlu0 %v3691
    %v3693 = vpop.xlane.xlu0 %3692
    %v3694 = vsel %vm69, %v3538, 0.0
    %3695 = vadd.xlane.f32.xlu0 %v3694
    %v3696 = vpop.xlane.xlu0 %3695
    %v3697 = vsel %vm69, %v3539, 0.0
    %3698 = vadd.xlane.f32.xlu0 %v3697
    %v3699 = vpop.xlane.xlu0 %3698
    %v3700 = vsel %vm69, %v3540, 0.0
    %3701 = vadd.xlane.f32.xlu0 %v3700
    %v3702 = vpop.xlane.xlu0 %3701
    %v3703 = vsel %vm69, %v3541, 0.0
    %3704 = vadd.xlane.f32.xlu0 %v3703
    %v3705 = vpop.xlane.xlu0 %3704
    %v3706 = vsel %vm69, %v3542, 0.0
    %3707 = vadd.xlane.f32.xlu0 %v3706
    %v3708 = vpop.xlane.xlu0 %3707
    %v3709 = vsel %vm69, %v3543, 0.0
    %3710 = vadd.xlane.f32.xlu0 %v3709
    %v3711 = vpop.xlane.xlu0 %3710
    %v3712 = vsel %vm69, %v3544, 0.0
    %3713 = vadd.xlane.f32.xlu0 %v3712
    %v3714 = vpop.xlane.xlu0 %3713
    %v3715 = vsel %vm69, %v3545, 0.0
    %3716 = vadd.xlane.f32.xlu0 %v3715
    %v3717 = vpop.xlane.xlu0 %3716
    %v3718 = vsel %vm69, %v3546, 0.0
    %3719 = vadd.xlane.f32.xlu0 %v3718
    %v3720 = vpop.xlane.xlu0 %3719
    %v3721 = vsel %vm69, %v3547, 0.0
    %3722 = vadd.xlane.f32.xlu0 %v3721
    %v3723 = vpop.xlane.xlu0 %3722
    %v3724 = vsel %vm69, %v3548, 0.0
    %3725 = vadd.xlane.f32.xlu0 %v3724
    %v3726 = vpop.xlane.xlu0 %3725
    %v3727 = vsel %vm69, %v3549, 0.0
    %3728 = vadd.xlane.f32.xlu0 %v3727
    %v3729 = vpop.xlane.xlu0 %3728
    %v3730 = vsel %vm69, %v3550, 0.0
    %3731 = vadd.xlane.f32.xlu0 %v3730
    %v3732 = vpop.xlane.xlu0 %3731
    %v3733 = vsel %vm69, %v3551, 0.0
    %3734 = vadd.xlane.f32.xlu0 %v3733
    %v3735 = vpop.xlane.xlu0 %3734
    %v3736 = vsel %vm69, %v3552, 0.0
    %3737 = vadd.xlane.f32.xlu0 %v3736
    %v3738 = vpop.xlane.xlu0 %3737
    %v3739 = vsel %vm69, %v3553, 0.0
    %3740 = vadd.xlane.f32.xlu0 %v3739
    %v3741 = vpop.xlane.xlu0 %3740
    %v3742 = vsel %vm69, %v3554, 0.0
    %3743 = vadd.xlane.f32.xlu0 %v3742
    %v3744 = vpop.xlane.xlu0 %3743
    %v3745 = vsel %vm69, %v3555, 0.0
    %3746 = vadd.xlane.f32.xlu0 %v3745
    %v3747 = vpop.xlane.xlu0 %3746
    %v3748 = vsel %vm69, %v3556, 0.0
    %3749 = vadd.xlane.f32.xlu0 %v3748
    %v3750 = vpop.xlane.xlu0 %3749
    %v3751 = vsel %vm69, %v3557, 0.0
    %3752 = vadd.xlane.f32.xlu0 %v3751
    %v3753 = vpop.xlane.xlu0 %3752
    %v3754 = vsel %vm69, %v3558, 0.0
    %3755 = vadd.xlane.f32.xlu0 %v3754
    %v3756 = vpop.xlane.xlu0 %3755
    %v3757 = vsel %vm69, %v3559, 0.0
    %3758 = vadd.xlane.f32.xlu0 %v3757
    %v3759 = vpop.xlane.xlu0 %3758
    %v3760 = vsel %vm69, %v3560, 0.0
    %3761 = vadd.xlane.f32.xlu0 %v3760
    %v3762 = vpop.xlane.xlu0 %3761
    %v3763 = vsel %vm69, %v3561, 0.0
    %3764 = vadd.xlane.f32.xlu0 %v3763
    %v3765 = vpop.xlane.xlu0 %3764
    %v3766 = vsel %vm69, %v3562, 0.0
    %3767 = vadd.xlane.f32.xlu0 %v3766
    %v3768 = vpop.xlane.xlu0 %3767
    %v3769 = vsel %vm69, %v3563, 0.0
    %3770 = vadd.xlane.f32.xlu0 %v3769
    %v3771 = vpop.xlane.xlu0 %3770
    %v3772 = vsel %vm69, %v3564, 0.0
    %3773 = vadd.xlane.f32.xlu0 %v3772
    %v3774 = vpop.xlane.xlu0 %3773
    %v3775 = vsel %vm69, %v3565, 0.0
    %3776 = vadd.xlane.f32.xlu0 %v3775
    %v3777 = vpop.xlane.xlu0 %3776
    %v3778 = vsel %vm69, %v3566, 0.0
    %3779 = vadd.xlane.f32.xlu0 %v3778
    %v3780 = vpop.xlane.xlu0 %3779
    %v3781 = vsel %vm69, %v3567, 0.0
    %3782 = vadd.xlane.f32.xlu0 %v3781
    %v3783 = vpop.xlane.xlu0 %3782
    %v3784 = vsel %vm69, %v3568, 0.0
    %3785 = vadd.xlane.f32.xlu0 %v3784
    %v3786 = vpop.xlane.xlu0 %3785
    %v3787 = vsel %vm69, %v3569, 0.0
    %3788 = vadd.xlane.f32.xlu0 %v3787
    %v3789 = vpop.xlane.xlu0 %3788
    %v3790 = vsel %vm69, %v3570, 0.0
    %3791 = vadd.xlane.f32.xlu0 %v3790
    %v3792 = vpop.xlane.xlu0 %3791
    %v3793 = vsel %vm69, %v3571, 0.0
    %3794 = vadd.xlane.f32.xlu0 %v3793
    %v3795 = vpop.xlane.xlu0 %3794
    %v3796 = vsel %vm69, %v3572, 0.0
    %3797 = vadd.xlane.f32.xlu0 %v3796
    %v3798 = vpop.xlane.xlu0 %3797
    %v3799 = vsel %vm69, %v3573, 0.0
    %3800 = vadd.xlane.f32.xlu0 %v3799
    %v3801 = vpop.xlane.xlu0 %3800
    %v3802 = vsel %vm69, %v3574, 0.0
    %3803 = vadd.xlane.f32.xlu0 %v3802
    %v3804 = vpop.xlane.xlu0 %3803
    %v3805 = vsel %vm69, %v3575, 0.0
    %3806 = vadd.xlane.f32.xlu0 %v3805
    %v3807 = vpop.xlane.xlu0 %3806
    %v3808 = vsel %vm69, %v3576, 0.0
    %3809 = vadd.xlane.f32.xlu0 %v3808
    %v3810 = vpop.xlane.xlu0 %3809
    %v3811 = vsel %vm69, %v3577, 0.0
    %3812 = vadd.xlane.f32.xlu0 %v3811
    %v3813 = vpop.xlane.xlu0 %3812
    %v3814 = vsel %vm69, %v3578, 0.0
    %3815 = vadd.xlane.f32.xlu0 %v3814
    %v3816 = vpop.xlane.xlu0 %3815
    %v3817 = vsel %vm69, %v3579, 0.0
    %3818 = vadd.xlane.f32.xlu0 %v3817
    %v3819 = vpop.xlane.xlu0 %3818
    %v3820 = vsel %vm69, %v3580, 0.0
    %3821 = vadd.xlane.f32.xlu0 %v3820
    %v3822 = vpop.xlane.xlu0 %3821
    %v3823 = vsel %vm69, %v3581, 0.0
    %3824 = vadd.xlane.f32.xlu0 %v3823
    %v3825 = vpop.xlane.xlu0 %3824
    %v3826 = vsel %vm69, %v3582, 0.0
    %3827 = vadd.xlane.f32.xlu0 %v3826
    %v3828 = vpop.xlane.xlu0 %3827
    %v3829 = vsel %vm69, %v3583, 0.0
    %3830 = vadd.xlane.f32.xlu0 %v3829
    %v3831 = vpop.xlane.xlu0 %3830
    %v3832 = vsel %vm69, %v3584, 0.0
    %3833 = vadd.xlane.f32.xlu0 %v3832
    %v3834 = vpop.xlane.xlu0 %3833
    %v3835 = vsel %vm69, %v3585, 0.0
    %3836 = vadd.xlane.f32.xlu0 %v3835
    %v3837 = vpop.xlane.xlu0 %3836
    %v3838 = vsel %vm69, %v3586, 0.0
    %3839 = vadd.xlane.f32.xlu0 %v3838
    %v3840 = vpop.xlane.xlu0 %3839
    %v3841 = vsel %vm69, %v3587, 0.0
    %3842 = vadd.xlane.f32.xlu0 %v3841
    %v3843 = vpop.xlane.xlu0 %3842
    %v3844 = vsel %vm69, %v3588, 0.0
    %3845 = vadd.xlane.f32.xlu0 %v3844
    %v3846 = vpop.xlane.xlu0 %3845
    %v3847 = vsel %vm69, %v3589, 0.0
    %3848 = vadd.xlane.f32.xlu0 %v3847
    %v3849 = vpop.xlane.xlu0 %3848
    %v3850 = vsel %vm69, %v3590, 0.0
    %3851 = vadd.xlane.f32.xlu0 %v3850
    %v3852 = vpop.xlane.xlu0 %3851
    %v3853 = vsel %vm69, %v3591, 0.0
    %3854 = vadd.xlane.f32.xlu0 %v3853
    %v3855 = vpop.xlane.xlu0 %3854
    %v3856 = vsel %vm69, %v3592, 0.0
    %3857 = vadd.xlane.f32.xlu0 %v3856
    %v3858 = vpop.xlane.xlu0 %3857
    %v3859 = vsel %vm69, %v3593, 0.0
    %3860 = vadd.xlane.f32.xlu0 %v3859
    %v3861 = vpop.xlane.xlu0 %3860
    %v3862 = vsel %vm69, %v3594, 0.0
    %3863 = vadd.xlane.f32.xlu0 %v3862
    %v3864 = vpop.xlane.xlu0 %3863
    %v3865 = vsel %vm69, %v3595, 0.0
    %3866 = vadd.xlane.f32.xlu0 %v3865
    %v3867 = vpop.xlane.xlu0 %3866
    %v3868 = vsel %vm69, %v3596, 0.0
    %3869 = vadd.xlane.f32.xlu0 %v3868
    %v3870 = vpop.xlane.xlu0 %3869
    %v3871 = vsel %vm69, %v3597, 0.0
    %3872 = vadd.xlane.f32.xlu0 %v3871
    %v3873 = vpop.xlane.xlu0 %3872
    %v3874 = vsel %vm69, %v3598, 0.0
    %3875 = vadd.xlane.f32.xlu0 %v3874
    %v3876 = vpop.xlane.xlu0 %3875
    %v3877 = vsel %vm69, %v3599, 0.0
    %3878 = vadd.xlane.f32.xlu0 %v3877
    %v3879 = vpop.xlane.xlu0 %3878
    %v3880 = vsel %vm69, %v3600, 0.0
    %3881 = vadd.xlane.f32.xlu0 %v3880
    %v3882 = vpop.xlane.xlu0 %3881
    %v3883 = vsel %vm69, %v3601, 0.0
    %3884 = vadd.xlane.f32.xlu0 %v3883
    %v3885 = vpop.xlane.xlu0 %3884
    %v3886 = vsel %vm69, %v3602, 0.0
    %3887 = vadd.xlane.f32.xlu0 %v3886
    %v3888 = vpop.xlane.xlu0 %3887
    %v3889 = vsel %vm69, %v3603, 0.0
    %3890 = vadd.xlane.f32.xlu0 %v3889
    %v3891 = vpop.xlane.xlu0 %3890
    %v3892 = vsel %vm69, %v3604, 0.0
    %3893 = vadd.xlane.f32.xlu0 %v3892
    %v3894 = vpop.xlane.xlu0 %3893
    %v3895 = vsel %vm69, %v3605, 0.0
    %3896 = vadd.xlane.f32.xlu0 %v3895
    %v3897 = vpop.xlane.xlu0 %3896
    %v3898 = vsel %vm69, %v3606, 0.0
    %3899 = vadd.xlane.f32.xlu0 %v3898
    %v3900 = vpop.xlane.xlu0 %3899
    %v3901 = vsel %vm69, %v3607, 0.0
    %3902 = vadd.xlane.f32.xlu0 %v3901
    %v3903 = vpop.xlane.xlu0 %3902
    %v3904 = vsel %vm69, %v3608, 0.0
    %3905 = vadd.xlane.f32.xlu0 %v3904
    %v3906 = vpop.xlane.xlu0 %3905
    %v3907 = vsel %vm69, %v3609, 0.0
    %3908 = vadd.xlane.f32.xlu0 %v3907
    %v3909 = vpop.xlane.xlu0 %3908
    %v3910 = vsel %vm69, %v3610, 0.0
    %3911 = vadd.xlane.f32.xlu0 %v3910
    %v3912 = vpop.xlane.xlu0 %3911
    %v3913 = vsel %vm69, %v3611, 0.0
    %3914 = vadd.xlane.f32.xlu0 %v3913
    %v3915 = vpop.xlane.xlu0 %3914
    %v3916 = vsel %vm69, %v3612, 0.0
    %3917 = vadd.xlane.f32.xlu0 %v3916
    %v3918 = vpop.xlane.xlu0 %3917
    %v3919 = vsel %vm69, %v3613, 0.0
    %3920 = vadd.xlane.f32.xlu0 %v3919
    %v3921 = vpop.xlane.xlu0 %3920
    %v3922 = vsel %vm69, %v3614, 0.0
    %3923 = vadd.xlane.f32.xlu0 %v3922
    %v3924 = vpop.xlane.xlu0 %3923
    %v3925 = vsel %vm69, %v3615, 0.0
    %3926 = vadd.xlane.f32.xlu0 %v3925
    %v3927 = vpop.xlane.xlu0 %3926
    %v3928 = vsel %vm69, %v3616, 0.0
    %3929 = vadd.xlane.f32.xlu0 %v3928
    %v3930 = vpop.xlane.xlu0 %3929
    %v3931 = vsel %vm69, %v3617, 0.0
    %3932 = vadd.xlane.f32.xlu0 %v3931
    %v3933 = vpop.xlane.xlu0 %3932
    %v3934 = vsel %vm69, %v3618, 0.0
    %3935 = vadd.xlane.f32.xlu0 %v3934
    %v3936 = vpop.xlane.xlu0 %3935
    %v3937 = vsel %vm69, %v3619, 0.0
    %3938 = vadd.xlane.f32.xlu0 %v3937
    %v3939 = vpop.xlane.xlu0 %3938
    %v3940 = vsel %vm69, %v3620, 0.0
    %3941 = vadd.xlane.f32.xlu0 %v3940
    %v3942 = vpop.xlane.xlu0 %3941
    %v3943 = vsel %vm69, %v3621, 0.0
    %3944 = vadd.xlane.f32.xlu0 %v3943
    %v3945 = vpop.xlane.xlu0 %3944
    %v3946 = vsel %vm69, %v3622, 0.0
    %3947 = vadd.xlane.f32.xlu0 %v3946
    %v3948 = vpop.xlane.xlu0 %3947
    %v3949 = vsel %vm69, %v3623, 0.0
    %3950 = vadd.xlane.f32.xlu0 %v3949
    %v3951 = vpop.xlane.xlu0 %3950
    %v3952 = vsel %vm69, %v3624, 0.0
    %3953 = vadd.xlane.f32.xlu0 %v3952
    %v3954 = vpop.xlane.xlu0 %3953
    %v3955 = vsel %vm69, %v3625, 0.0
    %3956 = vadd.xlane.f32.xlu0 %v3955
    %v3957 = vpop.xlane.xlu0 %3956
    %v3958 = vsel %vm69, %v3626, 0.0
    %3959 = vadd.xlane.f32.xlu0 %v3958
    %v3960 = vpop.xlane.xlu0 %3959
    %v3961 = vsel %vm69, %v3627, 0.0
    %3962 = vadd.xlane.f32.xlu0 %v3961
    %v3963 = vpop.xlane.xlu0 %3962
    %v3964 = vsel %vm69, %v3628, 0.0
    %3965 = vadd.xlane.f32.xlu0 %v3964
    %v3966 = vpop.xlane.xlu0 %3965
    %v3967 = vsel %vm69, %v3629, 0.0
    %3968 = vadd.xlane.f32.xlu0 %v3967
    %v3969 = vpop.xlane.xlu0 %3968
    %v3970 = vsel %vm69, %v3630, 0.0
    %3971 = vadd.xlane.f32.xlu0 %v3970
    %v3972 = vpop.xlane.xlu0 %3971
    %v3973 = vsel %vm69, %v3631, 0.0
    %3974 = vadd.xlane.f32.xlu0 %v3973
    %v3975 = vpop.xlane.xlu0 %3974
    %v3976 = vsel %vm69, %v3632, 0.0
    %3977 = vadd.xlane.f32.xlu0 %v3976
    %v3978 = vpop.xlane.xlu0 %3977
    %v3979 = vsel %vm69, %v3633, 0.0
    %3980 = vadd.xlane.f32.xlu0 %v3979
    %v3981 = vpop.xlane.xlu0 %3980
    %v3982 = vsel %vm69, %v3634, 0.0
    %3983 = vadd.xlane.f32.xlu0 %v3982
    %v3984 = vpop.xlane.xlu0 %3983
    %v3985 = vsel %vm69, %v3635, 0.0
    %3986 = vadd.xlane.f32.xlu0 %v3985
    %v3987 = vpop.xlane.xlu0 %3986
    %v3988 = vsel %vm69, %v3636, 0.0
    %3989 = vadd.xlane.f32.xlu0 %v3988
    %v3990 = vpop.xlane.xlu0 %3989
    %v3991 = vsel %vm69, %v3637, 0.0
    %3992 = vadd.xlane.f32.xlu0 %v3991
    %v3993 = vpop.xlane.xlu0 %3992
    %v3994 = vsel %vm69, %v3638, 0.0
    %3995 = vadd.xlane.f32.xlu0 %v3994
    %v3996 = vpop.xlane.xlu0 %3995
    %v3997 = vsel %vm69, %v3639, 0.0
    %3998 = vadd.xlane.f32.xlu0 %v3997
    %v3999 = vpop.xlane.xlu0 %3998
    %v4000 = vsel %vm69, %v3640, 0.0
    %4001 = vadd.xlane.f32.xlu0 %v4000
    %v4002 = vpop.xlane.xlu0 %4001
    %v4003 = vsel %vm69, %v3641, 0.0
    %4004 = vadd.xlane.f32.xlu0 %v4003
    %v4005 = vpop.xlane.xlu0 %4004
    %v4006 = vsel %vm69, %v3642, 0.0
    %4007 = vadd.xlane.f32.xlu0 %v4006
    %v4008 = vpop.xlane.xlu0 %4007
    %v4009 = vsel %vm69, %v3643, 0.0
    %4010 = vadd.xlane.f32.xlu0 %v4009
    %v4011 = vpop.xlane.xlu0 %4010
    %v4012 = vsel %vm69, %v3644, 0.0
    %4013 = vadd.xlane.f32.xlu0 %v4012
    %v4014 = vpop.xlane.xlu0 %4013
    %v4015 = vsel %vm69, %v3645, 0.0
    %4016 = vadd.xlane.f32.xlu0 %v4015
    %v4017 = vpop.xlane.xlu0 %4016
    %v4018 = vsel %vm69, %v3646, 0.0
    %4019 = vadd.xlane.f32.xlu0 %v4018
    %v4020 = vpop.xlane.xlu0 %4019
    %v4021 = vsel %vm69, %v3647, 0.0
    %4022 = vadd.xlane.f32.xlu0 %v4021
    %v4023 = vpop.xlane.xlu0 %4022
    %v4024 = vsel %vm69, %v3648, 0.0
    %4025 = vadd.xlane.f32.xlu0 %v4024
    %v4026 = vpop.xlane.xlu0 %4025
    %v4027 = vsel %vm69, %v3649, 0.0
    %4028 = vadd.xlane.f32.xlu0 %v4027
    %v4029 = vpop.xlane.xlu0 %4028
    %v4030 = vsel %vm69, %v3650, 0.0
    %4031 = vadd.xlane.f32.xlu0 %v4030
    %v4032 = vpop.xlane.xlu0 %4031
    %v4033 = vsel %vm69, %v3651, 0.0
    %4034 = vadd.xlane.f32.xlu0 %v4033
    %v4035 = vpop.xlane.xlu0 %4034
    %v4036 = vmul.f32 %v3654, %v3267
    %v4037 = vmul.f32 %v3657, %v3267
    %v4038 = vmul.f32 %v3660, %v3267
    %v4039 = vmul.f32 %v3663, %v3267
    %v4040 = vmul.f32 %v3666, %v3267
    %v4041 = vmul.f32 %v3669, %v3267
    %v4042 = vmul.f32 %v3672, %v3267
    %v4043 = vmul.f32 %v3675, %v3267
    %v4044 = vmul.f32 %v3678, %v3267
    %v4045 = vmul.f32 %v3681, %v3267
    %v4046 = vmul.f32 %v3684, %v3267
    %v4047 = vmul.f32 %v3687, %v3267
    %v4048 = vmul.f32 %v3690, %v3267
    %v4049 = vmul.f32 %v3693, %v3267
    %v4050 = vmul.f32 %v3696, %v3267
    %v4051 = vmul.f32 %v3699, %v3267
    %v4052 = vmul.f32 %v3702, %v3267
    %v4053 = vmul.f32 %v3705, %v3267
    %v4054 = vmul.f32 %v3708, %v3267
    %v4055 = vmul.f32 %v3711, %v3267
    %v4056 = vmul.f32 %v3714, %v3267
    %v4057 = vmul.f32 %v3717, %v3267
    %v4058 = vmul.f32 %v3720, %v3267
    %v4059 = vmul.f32 %v3723, %v3267
    %v4060 = vmul.f32 %v3726, %v3267
    %v4061 = vmul.f32 %v3729, %v3267
    %v4062 = vmul.f32 %v3732, %v3267
    %v4063 = vmul.f32 %v3735, %v3267
    %v4064 = vmul.f32 %v3738, %v3267
    %v4065 = vmul.f32 %v3741, %v3267
    %v4066 = vmul.f32 %v3744, %v3267
    %v4067 = vmul.f32 %v3747, %v3267
    %v4068 = vmul.f32 %v3750, %v3267
    %v4069 = vmul.f32 %v3753, %v3267
    %v4070 = vmul.f32 %v3756, %v3267
    %v4071 = vmul.f32 %v3759, %v3267
    %v4072 = vmul.f32 %v3762, %v3267
    %v4073 = vmul.f32 %v3765, %v3267
    %v4074 = vmul.f32 %v3768, %v3267
    %v4075 = vmul.f32 %v3771, %v3267
    %v4076 = vmul.f32 %v3774, %v3267
    %v4077 = vmul.f32 %v3777, %v3267
    %v4078 = vmul.f32 %v3780, %v3267
    %v4079 = vmul.f32 %v3783, %v3267
    %v4080 = vmul.f32 %v3786, %v3267
    %v4081 = vmul.f32 %v3789, %v3267
    %v4082 = vmul.f32 %v3792, %v3267
    %v4083 = vmul.f32 %v3795, %v3267
    %v4084 = vmul.f32 %v3798, %v3267
    %v4085 = vmul.f32 %v3801, %v3267
    %v4086 = vmul.f32 %v3804, %v3267
    %v4087 = vmul.f32 %v3807, %v3267
    %v4088 = vmul.f32 %v3810, %v3267
    %v4089 = vmul.f32 %v3813, %v3267
    %v4090 = vmul.f32 %v3816, %v3267
    %v4091 = vmul.f32 %v3819, %v3267
    %v4092 = vmul.f32 %v3822, %v3267
    %v4093 = vmul.f32 %v3825, %v3267
    %v4094 = vmul.f32 %v3828, %v3267
    %v4095 = vmul.f32 %v3831, %v3267
    %v4096 = vmul.f32 %v3834, %v3267
    %v4097 = vmul.f32 %v3837, %v3267
    %v4098 = vmul.f32 %v3840, %v3267
    %v4099 = vmul.f32 %v3843, %v3267
    %v4100 = vmul.f32 %v3846, %v3267
    %v4101 = vmul.f32 %v3849, %v3267
    %v4102 = vmul.f32 %v3852, %v3267
    %v4103 = vmul.f32 %v3855, %v3267
    %v4104 = vmul.f32 %v3858, %v3267
    %v4105 = vmul.f32 %v3861, %v3267
    %v4106 = vmul.f32 %v3864, %v3267
    %v4107 = vmul.f32 %v3867, %v3267
    %v4108 = vmul.f32 %v3870, %v3267
    %v4109 = vmul.f32 %v3873, %v3267
    %v4110 = vmul.f32 %v3876, %v3267
    %v4111 = vmul.f32 %v3879, %v3267
    %v4112 = vmul.f32 %v3882, %v3267
    %v4113 = vmul.f32 %v3885, %v3267
    %v4114 = vmul.f32 %v3888, %v3267
    %v4115 = vmul.f32 %v3891, %v3267
    %v4116 = vmul.f32 %v3894, %v3267
    %v4117 = vmul.f32 %v3897, %v3267
    %v4118 = vmul.f32 %v3900, %v3267
    %v4119 = vmul.f32 %v3903, %v3267
    %v4120 = vmul.f32 %v3906, %v3267
    %v4121 = vmul.f32 %v3909, %v3267
    %v4122 = vmul.f32 %v3912, %v3267
    %v4123 = vmul.f32 %v3915, %v3267
    %v4124 = vmul.f32 %v3918, %v3267
    %v4125 = vmul.f32 %v3921, %v3267
    %v4126 = vmul.f32 %v3924, %v3267
    %v4127 = vmul.f32 %v3927, %v3267
    %v4128 = vmul.f32 %v3930, %v3267
    %v4129 = vmul.f32 %v3933, %v3267
    %v4130 = vmul.f32 %v3936, %v3267
    %v4131 = vmul.f32 %v3939, %v3267
    %v4132 = vmul.f32 %v3942, %v3267
    %v4133 = vmul.f32 %v3945, %v3267
    %v4134 = vmul.f32 %v3948, %v3267
    %v4135 = vmul.f32 %v3951, %v3267
    %v4136 = vmul.f32 %v3954, %v3267
    %v4137 = vmul.f32 %v3957, %v3267
    %v4138 = vmul.f32 %v3960, %v3267
    %v4139 = vmul.f32 %v3963, %v3267
    %v4140 = vmul.f32 %v3966, %v3267
    %v4141 = vmul.f32 %v3969, %v3267
    %v4142 = vmul.f32 %v3972, %v3267
    %v4143 = vmul.f32 %v3975, %v3267
    %v4144 = vmul.f32 %v3978, %v3267
    %v4145 = vmul.f32 %v3981, %v3267
    %v4146 = vmul.f32 %v3984, %v3267
    %v4147 = vmul.f32 %v3987, %v3267
    %v4148 = vmul.f32 %v3990, %v3267
    %v4149 = vmul.f32 %v3993, %v3267
    %v4150 = vmul.f32 %v3996, %v3267
    %v4151 = vmul.f32 %v3999, %v3267
    %v4152 = vmul.f32 %v4002, %v3267
    %v4153 = vmul.f32 %v4005, %v3267
    %v4154 = vmul.f32 %v4008, %v3267
    %v4155 = vmul.f32 %v4011, %v3267
    %v4156 = vmul.f32 %v4014, %v3267
    %v4157 = vmul.f32 %v4017, %v3267
    %v4158 = vmul.f32 %v4020, %v3267
    %v4159 = vmul.f32 %v4023, %v3267
    %v4160 = vmul.f32 %v4026, %v3267
    %v4161 = vmul.f32 %v4029, %v3267
    %v4162 = vmul.f32 %v4032, %v3267
    %v4163 = vmul.f32 %v4035, %v3267
    %v4164 = vadd.f32 %v4036, 1e-05
    %v4165 = vadd.f32 %v4037, 1e-05
    %v4166 = vadd.f32 %v4038, 1e-05
    %v4167 = vadd.f32 %v4039, 1e-05
    %v4168 = vadd.f32 %v4040, 1e-05
    %v4169 = vadd.f32 %v4041, 1e-05
    %v4170 = vadd.f32 %v4042, 1e-05
    %v4171 = vadd.f32 %v4043, 1e-05
    %v4172 = vadd.f32 %v4044, 1e-05
    %v4173 = vadd.f32 %v4045, 1e-05
    %v4174 = vadd.f32 %v4046, 1e-05
    %v4175 = vadd.f32 %v4047, 1e-05
    %v4176 = vadd.f32 %v4048, 1e-05
    %v4177 = vadd.f32 %v4049, 1e-05
    %v4178 = vadd.f32 %v4050, 1e-05
    %v4179 = vadd.f32 %v4051, 1e-05
    %v4180 = vadd.f32 %v4052, 1e-05
    %v4181 = vadd.f32 %v4053, 1e-05
    %v4182 = vadd.f32 %v4054, 1e-05
    %v4183 = vadd.f32 %v4055, 1e-05
    %v4184 = vadd.f32 %v4056, 1e-05
    %v4185 = vadd.f32 %v4057, 1e-05
    %v4186 = vadd.f32 %v4058, 1e-05
    %v4187 = vadd.f32 %v4059, 1e-05
    %v4188 = vadd.f32 %v4060, 1e-05
    %v4189 = vadd.f32 %v4061, 1e-05
    %v4190 = vadd.f32 %v4062, 1e-05
    %v4191 = vadd.f32 %v4063, 1e-05
    %v4192 = vadd.f32 %v4064, 1e-05
    %v4193 = vadd.f32 %v4065, 1e-05
    %v4194 = vadd.f32 %v4066, 1e-05
    %v4195 = vadd.f32 %v4067, 1e-05
    %v4196 = vadd.f32 %v4068, 1e-05
    %v4197 = vadd.f32 %v4069, 1e-05
    %v4198 = vadd.f32 %v4070, 1e-05
    %v4199 = vadd.f32 %v4071, 1e-05
    %v4200 = vadd.f32 %v4072, 1e-05
    %v4201 = vadd.f32 %v4073, 1e-05
    %v4202 = vadd.f32 %v4074, 1e-05
    %v4203 = vadd.f32 %v4075, 1e-05
    %v4204 = vadd.f32 %v4076, 1e-05
    %v4205 = vadd.f32 %v4077, 1e-05
    %v4206 = vadd.f32 %v4078, 1e-05
    %v4207 = vadd.f32 %v4079, 1e-05
    %v4208 = vadd.f32 %v4080, 1e-05
    %v4209 = vadd.f32 %v4081, 1e-05
    %v4210 = vadd.f32 %v4082, 1e-05
    %v4211 = vadd.f32 %v4083, 1e-05
    %v4212 = vadd.f32 %v4084, 1e-05
    %v4213 = vadd.f32 %v4085, 1e-05
    %v4214 = vadd.f32 %v4086, 1e-05
    %v4215 = vadd.f32 %v4087, 1e-05
    %v4216 = vadd.f32 %v4088, 1e-05
    %v4217 = vadd.f32 %v4089, 1e-05
    %v4218 = vadd.f32 %v4090, 1e-05
    %v4219 = vadd.f32 %v4091, 1e-05
    %v4220 = vadd.f32 %v4092, 1e-05
    %v4221 = vadd.f32 %v4093, 1e-05
    %v4222 = vadd.f32 %v4094, 1e-05
    %v4223 = vadd.f32 %v4095, 1e-05
    %v4224 = vadd.f32 %v4096, 1e-05
    %v4225 = vadd.f32 %v4097, 1e-05
    %v4226 = vadd.f32 %v4098, 1e-05
    %v4227 = vadd.f32 %v4099, 1e-05
    %v4228 = vadd.f32 %v4100, 1e-05
    %v4229 = vadd.f32 %v4101, 1e-05
    %v4230 = vadd.f32 %v4102, 1e-05
    %v4231 = vadd.f32 %v4103, 1e-05
    %v4232 = vadd.f32 %v4104, 1e-05
    %v4233 = vadd.f32 %v4105, 1e-05
    %v4234 = vadd.f32 %v4106, 1e-05
    %v4235 = vadd.f32 %v4107, 1e-05
    %v4236 = vadd.f32 %v4108, 1e-05
    %v4237 = vadd.f32 %v4109, 1e-05
    %v4238 = vadd.f32 %v4110, 1e-05
    %v4239 = vadd.f32 %v4111, 1e-05
    %v4240 = vadd.f32 %v4112, 1e-05
    %v4241 = vadd.f32 %v4113, 1e-05
    %v4242 = vadd.f32 %v4114, 1e-05
    %v4243 = vadd.f32 %v4115, 1e-05
    %v4244 = vadd.f32 %v4116, 1e-05
    %v4245 = vadd.f32 %v4117, 1e-05
    %v4246 = vadd.f32 %v4118, 1e-05
    %v4247 = vadd.f32 %v4119, 1e-05
    %v4248 = vadd.f32 %v4120, 1e-05
    %v4249 = vadd.f32 %v4121, 1e-05
    %v4250 = vadd.f32 %v4122, 1e-05
    %v4251 = vadd.f32 %v4123, 1e-05
    %v4252 = vadd.f32 %v4124, 1e-05
    %v4253 = vadd.f32 %v4125, 1e-05
    %v4254 = vadd.f32 %v4126, 1e-05
    %v4255 = vadd.f32 %v4127, 1e-05
    %v4256 = vadd.f32 %v4128, 1e-05
    %v4257 = vadd.f32 %v4129, 1e-05
    %v4258 = vadd.f32 %v4130, 1e-05
    %v4259 = vadd.f32 %v4131, 1e-05
    %v4260 = vadd.f32 %v4132, 1e-05
    %v4261 = vadd.f32 %v4133, 1e-05
    %v4262 = vadd.f32 %v4134, 1e-05
    %v4263 = vadd.f32 %v4135, 1e-05
    %v4264 = vadd.f32 %v4136, 1e-05
    %v4265 = vadd.f32 %v4137, 1e-05
    %v4266 = vadd.f32 %v4138, 1e-05
    %v4267 = vadd.f32 %v4139, 1e-05
    %v4268 = vadd.f32 %v4140, 1e-05
    %v4269 = vadd.f32 %v4141, 1e-05
    %v4270 = vadd.f32 %v4142, 1e-05
    %v4271 = vadd.f32 %v4143, 1e-05
    %v4272 = vadd.f32 %v4144, 1e-05
    %v4273 = vadd.f32 %v4145, 1e-05
    %v4274 = vadd.f32 %v4146, 1e-05
    %v4275 = vadd.f32 %v4147, 1e-05
    %v4276 = vadd.f32 %v4148, 1e-05
    %v4277 = vadd.f32 %v4149, 1e-05
    %v4278 = vadd.f32 %v4150, 1e-05
    %v4279 = vadd.f32 %v4151, 1e-05
    %v4280 = vadd.f32 %v4152, 1e-05
    %v4281 = vadd.f32 %v4153, 1e-05
    %v4282 = vadd.f32 %v4154, 1e-05
    %v4283 = vadd.f32 %v4155, 1e-05
    %v4284 = vadd.f32 %v4156, 1e-05
    %v4285 = vadd.f32 %v4157, 1e-05
    %v4286 = vadd.f32 %v4158, 1e-05
    %v4287 = vadd.f32 %v4159, 1e-05
    %v4288 = vadd.f32 %v4160, 1e-05
    %v4289 = vadd.f32 %v4161, 1e-05
    %v4290 = vadd.f32 %v4162, 1e-05
    %v4291 = vadd.f32 %v4163, 1e-05
    %v4292 = vrsqrt.pop %v4164
    %v4293 = vrsqrt.pop %v4165
    %v4294 = vrsqrt.pop %v4166
    %v4295 = vrsqrt.pop %v4167
    %v4296 = vrsqrt.pop %v4168
    %v4297 = vrsqrt.pop %v4169
    %v4298 = vrsqrt.pop %v4170
    %v4299 = vrsqrt.pop %v4171
    %v4300 = vrsqrt.pop %v4172
    %v4301 = vrsqrt.pop %v4173
    %v4302 = vrsqrt.pop %v4174
    %v4303 = vrsqrt.pop %v4175
    %v4304 = vrsqrt.pop %v4176
    %v4305 = vrsqrt.pop %v4177
    %v4306 = vrsqrt.pop %v4178
    %v4307 = vrsqrt.pop %v4179
    %v4308 = vrsqrt.pop %v4180
    %v4309 = vrsqrt.pop %v4181
    %v4310 = vrsqrt.pop %v4182
    %v4311 = vrsqrt.pop %v4183
    %v4312 = vrsqrt.pop %v4184
    %v4313 = vrsqrt.pop %v4185
    %v4314 = vrsqrt.pop %v4186
    %v4315 = vrsqrt.pop %v4187
    %v4316 = vrsqrt.pop %v4188
    %v4317 = vrsqrt.pop %v4189
    %v4318 = vrsqrt.pop %v4190
    %v4319 = vrsqrt.pop %v4191
    %v4320 = vrsqrt.pop %v4192
    %v4321 = vrsqrt.pop %v4193
    %v4322 = vrsqrt.pop %v4194
    %v4323 = vrsqrt.pop %v4195
    %v4324 = vrsqrt.pop %v4196
    %v4325 = vrsqrt.pop %v4197
    %v4326 = vrsqrt.pop %v4198
    %v4327 = vrsqrt.pop %v4199
    %v4328 = vrsqrt.pop %v4200
    %v4329 = vrsqrt.pop %v4201
    %v4330 = vrsqrt.pop %v4202
    %v4331 = vrsqrt.pop %v4203
    %v4332 = vrsqrt.pop %v4204
    %v4333 = vrsqrt.pop %v4205
    %v4334 = vrsqrt.pop %v4206
    %v4335 = vrsqrt.pop %v4207
    %v4336 = vrsqrt.pop %v4208
    %v4337 = vrsqrt.pop %v4209
    %v4338 = vrsqrt.pop %v4210
    %v4339 = vrsqrt.pop %v4211
    %v4340 = vrsqrt.pop %v4212
    %v4341 = vrsqrt.pop %v4213
    %v4342 = vrsqrt.pop %v4214
    %v4343 = vrsqrt.pop %v4215
    %v4344 = vrsqrt.pop %v4216
    %v4345 = vrsqrt.pop %v4217
    %v4346 = vrsqrt.pop %v4218
    %v4347 = vrsqrt.pop %v4219
    %v4348 = vrsqrt.pop %v4220
    %v4349 = vrsqrt.pop %v4221
    %v4350 = vrsqrt.pop %v4222
    %v4351 = vrsqrt.pop %v4223
    %v4352 = vrsqrt.pop %v4224
    %v4353 = vrsqrt.pop %v4225
    %v4354 = vrsqrt.pop %v4226
    %v4355 = vrsqrt.pop %v4227
    %v4356 = vrsqrt.pop %v4228
    %v4357 = vrsqrt.pop %v4229
    %v4358 = vrsqrt.pop %v4230
    %v4359 = vrsqrt.pop %v4231
    %v4360 = vrsqrt.pop %v4232
    %v4361 = vrsqrt.pop %v4233
    %v4362 = vrsqrt.pop %v4234
    %v4363 = vrsqrt.pop %v4235
    %v4364 = vrsqrt.pop %v4236
    %v4365 = vrsqrt.pop %v4237
    %v4366 = vrsqrt.pop %v4238
    %v4367 = vrsqrt.pop %v4239
    %v4368 = vrsqrt.pop %v4240
    %v4369 = vrsqrt.pop %v4241
    %v4370 = vrsqrt.pop %v4242
    %v4371 = vrsqrt.pop %v4243
    %v4372 = vrsqrt.pop %v4244
    %v4373 = vrsqrt.pop %v4245
    %v4374 = vrsqrt.pop %v4246
    %v4375 = vrsqrt.pop %v4247
    %v4376 = vrsqrt.pop %v4248
    %v4377 = vrsqrt.pop %v4249
    %v4378 = vrsqrt.pop %v4250
    %v4379 = vrsqrt.pop %v4251
    %v4380 = vrsqrt.pop %v4252
    %v4381 = vrsqrt.pop %v4253
    %v4382 = vrsqrt.pop %v4254
    %v4383 = vrsqrt.pop %v4255
    %v4384 = vrsqrt.pop %v4256
    %v4385 = vrsqrt.pop %v4257
    %v4386 = vrsqrt.pop %v4258
    %v4387 = vrsqrt.pop %v4259
    %v4388 = vrsqrt.pop %v4260
    %v4389 = vrsqrt.pop %v4261
    %v4390 = vrsqrt.pop %v4262
    %v4391 = vrsqrt.pop %v4263
    %v4392 = vrsqrt.pop %v4264
    %v4393 = vrsqrt.pop %v4265
    %v4394 = vrsqrt.pop %v4266
    %v4395 = vrsqrt.pop %v4267
    %v4396 = vrsqrt.pop %v4268
    %v4397 = vrsqrt.pop %v4269
    %v4398 = vrsqrt.pop %v4270
    %v4399 = vrsqrt.pop %v4271
    %v4400 = vrsqrt.pop %v4272
    %v4401 = vrsqrt.pop %v4273
    %v4402 = vrsqrt.pop %v4274
    %v4403 = vrsqrt.pop %v4275
    %v4404 = vrsqrt.pop %v4276
    %v4405 = vrsqrt.pop %v4277
    %v4406 = vrsqrt.pop %v4278
    %v4407 = vrsqrt.pop %v4279
    %v4408 = vrsqrt.pop %v4280
    %v4409 = vrsqrt.pop %v4281
    %v4410 = vrsqrt.pop %v4282
    %v4411 = vrsqrt.pop %v4283
    %v4412 = vrsqrt.pop %v4284
    %v4413 = vrsqrt.pop %v4285
    %v4414 = vrsqrt.pop %v4286
    %v4415 = vrsqrt.pop %v4287
    %v4416 = vrsqrt.pop %v4288
    %v4417 = vrsqrt.pop %v4289
    %v4418 = vrsqrt.pop %v4290
    %v4419 = vrsqrt.pop %v4291
    %v4420 = vmul.f32 %v3396, %v4292
    %v4421 = vmul.f32 %v3397, %v4293
    %v4422 = vmul.f32 %v3398, %v4294
    %v4423 = vmul.f32 %v3399, %v4295
    %v4424 = vmul.f32 %v3400, %v4296
    %v4425 = vmul.f32 %v3401, %v4297
    %v4426 = vmul.f32 %v3402, %v4298
    %v4427 = vmul.f32 %v3403, %v4299
    %v4428 = vmul.f32 %v3404, %v4300
    %v4429 = vmul.f32 %v3405, %v4301
    %v4430 = vmul.f32 %v3406, %v4302
    %v4431 = vmul.f32 %v3407, %v4303
    %v4432 = vmul.f32 %v3408, %v4304
    %v4433 = vmul.f32 %v3409, %v4305
    %v4434 = vmul.f32 %v3410, %v4306
    %v4435 = vmul.f32 %v3411, %v4307
    %v4436 = vmul.f32 %v3412, %v4308
    %v4437 = vmul.f32 %v3413, %v4309
    %v4438 = vmul.f32 %v3414, %v4310
    %v4439 = vmul.f32 %v3415, %v4311
    %v4440 = vmul.f32 %v3416, %v4312
    %v4441 = vmul.f32 %v3417, %v4313
    %v4442 = vmul.f32 %v3418, %v4314
    %v4443 = vmul.f32 %v3419, %v4315
    %v4444 = vmul.f32 %v3420, %v4316
    %v4445 = vmul.f32 %v3421, %v4317
    %v4446 = vmul.f32 %v3422, %v4318
    %v4447 = vmul.f32 %v3423, %v4319
    %v4448 = vmul.f32 %v3424, %v4320
    %v4449 = vmul.f32 %v3425, %v4321
    %v4450 = vmul.f32 %v3426, %v4322
    %v4451 = vmul.f32 %v3427, %v4323
    %v4452 = vmul.f32 %v3428, %v4324
    %v4453 = vmul.f32 %v3429, %v4325
    %v4454 = vmul.f32 %v3430, %v4326
    %v4455 = vmul.f32 %v3431, %v4327
    %v4456 = vmul.f32 %v3432, %v4328
    %v4457 = vmul.f32 %v3433, %v4329
    %v4458 = vmul.f32 %v3434, %v4330
    %v4459 = vmul.f32 %v3435, %v4331
    %v4460 = vmul.f32 %v3436, %v4332
    %v4461 = vmul.f32 %v3437, %v4333
    %v4462 = vmul.f32 %v3438, %v4334
    %v4463 = vmul.f32 %v3439, %v4335
    %v4464 = vmul.f32 %v3440, %v4336
    %v4465 = vmul.f32 %v3441, %v4337
    %v4466 = vmul.f32 %v3442, %v4338
    %v4467 = vmul.f32 %v3443, %v4339
    %v4468 = vmul.f32 %v3444, %v4340
    %v4469 = vmul.f32 %v3445, %v4341
    %v4470 = vmul.f32 %v3446, %v4342
    %v4471 = vmul.f32 %v3447, %v4343
    %v4472 = vmul.f32 %v3448, %v4344
    %v4473 = vmul.f32 %v3449, %v4345
    %v4474 = vmul.f32 %v3450, %v4346
    %v4475 = vmul.f32 %v3451, %v4347
    %v4476 = vmul.f32 %v3452, %v4348
    %v4477 = vmul.f32 %v3453, %v4349
    %v4478 = vmul.f32 %v3454, %v4350
    %v4479 = vmul.f32 %v3455, %v4351
    %v4480 = vmul.f32 %v3456, %v4352
    %v4481 = vmul.f32 %v3457, %v4353
    %v4482 = vmul.f32 %v3458, %v4354
    %v4483 = vmul.f32 %v3459, %v4355
    %v4484 = vmul.f32 %v3460, %v4356
    %v4485 = vmul.f32 %v3461, %v4357
    %v4486 = vmul.f32 %v3462, %v4358
    %v4487 = vmul.f32 %v3463, %v4359
    %v4488 = vmul.f32 %v3464, %v4360
    %v4489 = vmul.f32 %v3465, %v4361
    %v4490 = vmul.f32 %v3466, %v4362
    %v4491 = vmul.f32 %v3467, %v4363
    %v4492 = vmul.f32 %v3468, %v4364
    %v4493 = vmul.f32 %v3469, %v4365
    %v4494 = vmul.f32 %v3470, %v4366
    %v4495 = vmul.f32 %v3471, %v4367
    %v4496 = vmul.f32 %v3472, %v4368
    %v4497 = vmul.f32 %v3473, %v4369
    %v4498 = vmul.f32 %v3474, %v4370
    %v4499 = vmul.f32 %v3475, %v4371
    %v4500 = vmul.f32 %v3476, %v4372
    %v4501 = vmul.f32 %v3477, %v4373
    %v4502 = vmul.f32 %v3478, %v4374
    %v4503 = vmul.f32 %v3479, %v4375
    %v4504 = vmul.f32 %v3480, %v4376
    %v4505 = vmul.f32 %v3481, %v4377
    %v4506 = vmul.f32 %v3482, %v4378
    %v4507 = vmul.f32 %v3483, %v4379
    %v4508 = vmul.f32 %v3484, %v4380
    %v4509 = vmul.f32 %v3485, %v4381
    %v4510 = vmul.f32 %v3486, %v4382
    %v4511 = vmul.f32 %v3487, %v4383
    %v4512 = vmul.f32 %v3488, %v4384
    %v4513 = vmul.f32 %v3489, %v4385
    %v4514 = vmul.f32 %v3490, %v4386
    %v4515 = vmul.f32 %v3491, %v4387
    %v4516 = vmul.f32 %v3492, %v4388
    %v4517 = vmul.f32 %v3493, %v4389
    %v4518 = vmul.f32 %v3494, %v4390
    %v4519 = vmul.f32 %v3495, %v4391
    %v4520 = vmul.f32 %v3496, %v4392
    %v4521 = vmul.f32 %v3497, %v4393
    %v4522 = vmul.f32 %v3498, %v4394
    %v4523 = vmul.f32 %v3499, %v4395
    %v4524 = vmul.f32 %v3500, %v4396
    %v4525 = vmul.f32 %v3501, %v4397
    %v4526 = vmul.f32 %v3502, %v4398
    %v4527 = vmul.f32 %v3503, %v4399
    %v4528 = vmul.f32 %v3504, %v4400
    %v4529 = vmul.f32 %v3505, %v4401
    %v4530 = vmul.f32 %v3506, %v4402
    %v4531 = vmul.f32 %v3507, %v4403
    %v4532 = vmul.f32 %v3508, %v4404
    %v4533 = vmul.f32 %v3509, %v4405
    %v4534 = vmul.f32 %v3510, %v4406
    %v4535 = vmul.f32 %v3511, %v4407
    %v4536 = vmul.f32 %v3512, %v4408
    %v4537 = vmul.f32 %v3513, %v4409
    %v4538 = vmul.f32 %v3514, %v4410
    %v4539 = vmul.f32 %v3515, %v4411
    %v4540 = vmul.f32 %v3516, %v4412
    %v4541 = vmul.f32 %v3517, %v4413
    %v4542 = vmul.f32 %v3518, %v4414
    %v4543 = vmul.f32 %v3519, %v4415
    %v4544 = vmul.f32 %v3520, %v4416
    %v4545 = vmul.f32 %v3521, %v4417
    %v4546 = vmul.f32 %v3522, %v4418
    %v4547 = vmul.f32 %v3523, %v4419
    %v4548 = vld [vmem:[%s5] sm:$0xff]
    %v4549 = vld [vmem:[%s5 + $0x8] sm:$0xff]
    %v4550 = vld [vmem:[%s5 + $0x10] sm:$0xff]
    %v4551 = vld [vmem:[%s5 + $0x18] sm:$0xff]
    %v4552 = vld [vmem:[%s6] sm:$0x1]
    %v4554 = vlaneseq
    %v4555 = vshrl.u32 %v4554, 7
    %v4556 = vsub.s32 0, %v4555
    %v4557 = vrot.slane %v4552, %v4556
    %v4560 = vsel %vm69, %v4420, 0
    %v4563 = vsel %vm69, %v4421, 0
    %v4566 = vsel %vm69, %v4422, 0
    %v4569 = vsel %vm69, %v4423, 0
    %v4572 = vsel %vm69, %v4424, 0
    %v4575 = vsel %vm69, %v4425, 0
    %v4578 = vsel %vm69, %v4426, 0
    %v4581 = vsel %vm69, %v4427, 0
    %v4584 = vsel %vm69, %v4428, 0
    %v4587 = vsel %vm69, %v4429, 0
    %v4590 = vsel %vm69, %v4430, 0
    %v4593 = vsel %vm69, %v4431, 0
    %v4596 = vsel %vm69, %v4432, 0
    %v4599 = vsel %vm69, %v4433, 0
    %v4602 = vsel %vm69, %v4434, 0
    %v4605 = vsel %vm69, %v4435, 0
    %v4608 = vsel %vm69, %v4436, 0
    %v4611 = vsel %vm69, %v4437, 0
    %v4614 = vsel %vm69, %v4438, 0
    %v4617 = vsel %vm69, %v4439, 0
    %v4620 = vsel %vm69, %v4440, 0
    %v4623 = vsel %vm69, %v4441, 0
    %v4626 = vsel %vm69, %v4442, 0
    %v4629 = vsel %vm69, %v4443, 0
    %v4632 = vsel %vm69, %v4444, 0
    %v4635 = vsel %vm69, %v4445, 0
    %v4638 = vsel %vm69, %v4446, 0
    %v4641 = vsel %vm69, %v4447, 0
    %v4644 = vsel %vm69, %v4448, 0
    %v4647 = vsel %vm69, %v4449, 0
    %v4650 = vsel %vm69, %v4450, 0
    %v4653 = vsel %vm69, %v4451, 0
    %v4656 = vsel %vm69, %v4452, 0
    %v4659 = vsel %vm69, %v4453, 0
    %v4662 = vsel %vm69, %v4454, 0
    %v4665 = vsel %vm69, %v4455, 0
    %v4668 = vsel %vm69, %v4456, 0
    %v4671 = vsel %vm69, %v4457, 0
    %v4674 = vsel %vm69, %v4458, 0
    %v4677 = vsel %vm69, %v4459, 0
    %v4680 = vsel %vm69, %v4460, 0
    %v4683 = vsel %vm69, %v4461, 0
    %v4686 = vsel %vm69, %v4462, 0
    %v4689 = vsel %vm69, %v4463, 0
    %v4692 = vsel %vm69, %v4464, 0
    %v4695 = vsel %vm69, %v4465, 0
    %v4698 = vsel %vm69, %v4466, 0
    %v4701 = vsel %vm69, %v4467, 0
    %v4704 = vsel %vm69, %v4468, 0
    %v4707 = vsel %vm69, %v4469, 0
    %v4710 = vsel %vm69, %v4470, 0
    %v4713 = vsel %vm69, %v4471, 0
    %v4716 = vsel %vm69, %v4472, 0
    %v4719 = vsel %vm69, %v4473, 0
    %v4722 = vsel %vm69, %v4474, 0
    %v4725 = vsel %vm69, %v4475, 0
    %v4728 = vsel %vm69, %v4476, 0
    %v4731 = vsel %vm69, %v4477, 0
    %v4734 = vsel %vm69, %v4478, 0
    %v4737 = vsel %vm69, %v4479, 0
    %v4740 = vsel %vm69, %v4480, 0
    %v4743 = vsel %vm69, %v4481, 0
    %v4746 = vsel %vm69, %v4482, 0
    %v4749 = vsel %vm69, %v4483, 0
    %v4752 = vsel %vm69, %v4484, 0
    %v4755 = vsel %vm69, %v4485, 0
    %v4758 = vsel %vm69, %v4486, 0
    %v4761 = vsel %vm69, %v4487, 0
    %v4764 = vsel %vm69, %v4488, 0
    %v4767 = vsel %vm69, %v4489, 0
    %v4770 = vsel %vm69, %v4490, 0
    %v4773 = vsel %vm69, %v4491, 0
    %v4776 = vsel %vm69, %v4492, 0
    %v4779 = vsel %vm69, %v4493, 0
    %v4782 = vsel %vm69, %v4494, 0
    %v4785 = vsel %vm69, %v4495, 0
    %v4788 = vsel %vm69, %v4496, 0
    %v4791 = vsel %vm69, %v4497, 0
    %v4794 = vsel %vm69, %v4498, 0
    %v4797 = vsel %vm69, %v4499, 0
    %v4800 = vsel %vm69, %v4500, 0
    %v4803 = vsel %vm69, %v4501, 0
    %v4806 = vsel %vm69, %v4502, 0
    %v4809 = vsel %vm69, %v4503, 0
    %v4812 = vsel %vm69, %v4504, 0
    %v4815 = vsel %vm69, %v4505, 0
    %v4818 = vsel %vm69, %v4506, 0
    %v4821 = vsel %vm69, %v4507, 0
    %v4824 = vsel %vm69, %v4508, 0
    %v4827 = vsel %vm69, %v4509, 0
    %v4830 = vsel %vm69, %v4510, 0
    %v4833 = vsel %vm69, %v4511, 0
    %v4836 = vsel %vm69, %v4512, 0
    %v4839 = vsel %vm69, %v4513, 0
    %v4842 = vsel %vm69, %v4514, 0
    %v4845 = vsel %vm69, %v4515, 0
    %v4848 = vsel %vm69, %v4516, 0
    %v4851 = vsel %vm69, %v4517, 0
    %v4854 = vsel %vm69, %v4518, 0
    %v4857 = vsel %vm69, %v4519, 0
    %v4860 = vsel %vm69, %v4520, 0
    %v4863 = vsel %vm69, %v4521, 0
    %v4866 = vsel %vm69, %v4522, 0
    %v4869 = vsel %vm69, %v4523, 0
    %v4872 = vsel %vm69, %v4524, 0
    %v4875 = vsel %vm69, %v4525, 0
    %v4878 = vsel %vm69, %v4526, 0
    %v4881 = vsel %vm69, %v4527, 0
    %v4884 = vsel %vm69, %v4528, 0
    %v4887 = vsel %vm69, %v4529, 0
    %v4890 = vsel %vm69, %v4530, 0
    %v4893 = vsel %vm69, %v4531, 0
    %v4896 = vsel %vm69, %v4532, 0
    %v4899 = vsel %vm69, %v4533, 0
    %v4902 = vsel %vm69, %v4534, 0
    %v4905 = vsel %vm69, %v4535, 0
    %v4908 = vsel %vm69, %v4536, 0
    %v4911 = vsel %vm69, %v4537, 0
    %v4914 = vsel %vm69, %v4538, 0
    %v4917 = vsel %vm69, %v4539, 0
    %v4920 = vsel %vm69, %v4540, 0
    %v4923 = vsel %vm69, %v4541, 0
    %v4926 = vsel %vm69, %v4542, 0
    %v4929 = vsel %vm69, %v4543, 0
    %v4932 = vsel %vm69, %v4544, 0
    %v4935 = vsel %vm69, %v4545, 0
    %v4938 = vsel %vm69, %v4546, 0
    %v4941 = vsel %vm69, %v4547, 0
    %4943 = vmatprep.subr.mxu0 0.0
    %4944 = vmatpush1.msra.mxu0 %v4548
    %4945 = vmatprep.subr.mxu0 0.0
    %4946 = vmatpush1.msra.mxu0 %v4549
    %4947 = vmatprep.subr.mxu0 0.0
    %4948 = vmatpush1.msra.mxu0 %v4550
    %4949 = vmatprep.subr.mxu0 0.0
    %4950 = vmatpush1.msra.mxu0 %v4551
    %4951 = vmatprep.subr.mxu0 0.0
    %4952 = vmatpush1.msra.mxu0 0.0
    %4953 = vmatprep.subr.mxu0 0.0
    %4954 = vmatpush1.msra.mxu0 0.0
    %4955 = vmatprep.subr.mxu0 0.0
    %4956 = vmatpush1.msra.mxu0 0.0
    %4957 = vmatprep.subr.mxu0 0.0
    %4958 = vmatpush1.msra.mxu0 0.0
    %4959 = vmatprep.subr.mxu0 0.0
    %4960 = vmatpush1.msra.mxu0 0.0
    %4961 = vmatprep.subr.mxu0 0.0
    %4962 = vmatpush1.msra.mxu0 0.0
    %4963 = vmatprep.subr.mxu0 0.0
    %4964 = vmatpush1.msra.mxu0 0.0
    %4965 = vmatprep.subr.mxu0 0.0
    %4966 = vmatpush1.msra.mxu0 0.0
    %4967 = vmatprep.subr.mxu0 0.0
    %4968 = vmatpush1.msra.mxu0 0.0
    %4969 = vmatprep.subr.mxu0 0.0
    %4970 = vmatpush1.msra.mxu0 0.0
    %4971 = vmatprep.subr.mxu0 0.0
    %4972 = vmatpush1.msra.mxu0 0.0
    %4973 = vmatprep.subr.mxu0 0.0
    %4974 = vmatpush1.msra.mxu0 0.0
    %4975 = vmatprep.subr.mxu0 0.0
    %4976 = vmatpush1.msra.mxu0 0.0
    %4977 = vmatprep.subr.mxu0 0.0
    %4978 = vmatpush1.msra.mxu0 0.0
    %4979 = vmatprep.subr.mxu0 0.0
    %4980 = vmatpush1.msra.mxu0 0.0
    %4981 = vmatprep.subr.mxu0 0.0
    %4982 = vmatpush1.msra.mxu0 0.0
    %4983 = vmatprep.subr.mxu0 0.0
    %4984 = vmatpush1.msra.mxu0 0.0
    %4985 = vmatprep.subr.mxu0 0.0
    %4986 = vmatpush1.msra.mxu0 0.0
    %4987 = vmatprep.subr.mxu0 0.0
    %4988 = vmatpush1.msra.mxu0 0.0
    %4989 = vmatprep.subr.mxu0 0.0
    %4990 = vmatpush1.msra.mxu0 0.0
    %4991 = vmatprep.subr.mxu0 0.0
    %4992 = vmatpush1.msra.mxu0 0.0
    %4993 = vmatprep.subr.mxu0 0.0
    %4994 = vmatpush1.msra.mxu0 0.0
    %4995 = vmatprep.subr.mxu0 0.0
    %4996 = vmatpush1.msra.mxu0 0.0
    %4997 = vmatprep.subr.mxu0 0.0
    %4998 = vmatpush1.msra.mxu0 0.0
    %4999 = vmatprep.subr.mxu0 0.0
    %5000 = vmatpush1.msra.mxu0 0.0
    %5001 = vmatprep.subr.mxu0 0.0
    %5002 = vmatpush1.msra.mxu0 0.0
    %5003 = vmatprep.subr.mxu0 0.0
    %5004 = vmatpush1.msra.mxu0 0.0
    %5005 = vmatprep.subr.mxu0 0.0
    %5006 = vmatpush1.msra.mxu0 0.0
    %5007 = vmatprep.mubr.f32.mxu0 0.0
    %5008 = vmatmul.mubr.f32.gmra.mrb[0].mxu0 %v4560
    %v5009 = vpop.f32.mrb[0].mxu0
    %v5010 = vadd.f32 %v4557, %v5009
    %v5011 = vpop.f32.mrb[0].mxu0
    %5012 = vmatprep.mubr.f32.mxu0 0.0
    %5013 = vmatmul.mubr.f32.gmra.mrb[0].mxu0 %v4563
    %v5014 = vpop.f32.mrb[0].mxu0
    %v5015 = vadd.f32 %v4557, %v5014
    %v5016 = vpop.f32.mrb[0].mxu0
    %5017 = vmatprep.mubr.f32.mxu0 0.0
    %5018 = vmatmul.mubr.f32.gmra.mrb[0].mxu0 %v4566
    %v5019 = vpop.f32.mrb[0].mxu0
    %v5020 = vadd.f32 %v4557, %v5019
    %v5021 = vpop.f32.mrb[0].mxu0
    %5022 = vmatprep.mubr.f32.mxu0 0.0
    %5023 = vmatmul.mubr.f32.gmra.mrb[0].mxu0 %v4569
    %v5024 = vpop.f32.mrb[0].mxu0
    %v5025 = vadd.f32 %v4557, %v5024
    %v5026 = vpop.f32.mrb[0].mxu0
    %5027 = vmatprep.mubr.f32.mxu0 0.0
    %5028 = vmatmul.mubr.f32.gmra.mrb[0].mxu0 %v4572
    %v5029 = vpop.f32.mrb[0].mxu0
    %v5030 = vadd.f32 %v4557, %v5029
    %v5031 = vpop.f32.mrb[0].mxu0
    %5032 = vmatprep.mubr.f32.mxu0 0.0
    %5033 = vmatmul.mubr.f32.gmra.mrb[0].mxu0 %v4575
    %v5034 = vpop.f32.mrb[0].mxu0
    %v5035 = vadd.f32 %v4557, %v5034
    %v5036 = vpop.f32.mrb[0].mxu0
    %5037 = vmatprep.mubr.f32.mxu0 0.0
    %5038 = vmatmul.mubr.f32.gmra.mrb[0].mxu0 %v4578
    %v5039 = vpop.f32.mrb[0].mxu0
    %v5040 = vadd.f32 %v4557, %v5039
    %v5041 = vpop.f32.mrb[0].mxu0
    %5042 = vmatprep.mubr.f32.mxu0 0.0
    %5043 = vmatmul.mubr.f32.gmra.mrb[0].mxu0 %v4581
    %v5044 = vpop.f32.mrb[0].mxu0
    %v5045 = vadd.f32 %v4557, %v5044
    %v5046 = vpop.f32.mrb[0].mxu0
    %5047 = vmatprep.mubr.f32.mxu0 0.0
    %5048 = vmatmul.mubr.f32.gmra.mrb[0].mxu0 %v4584
    %v5049 = vpop.f32.mrb[0].mxu0
    %v5050 = vadd.f32 %v4557, %v5049
    %v5051 = vpop.f32.mrb[0].mxu0
    %5052 = vmatprep.mubr.f32.mxu0 0.0
    %5053 = vmatmul.mubr.f32.gmra.mrb[0].mxu0 %v4587
    %v5054 = vpop.f32.mrb[0].mxu0
    %v5055 = vadd.f32 %v4557, %v5054
    %v5056 = vpop.f32.mrb[0].mxu0
    %5057 = vmatprep.mubr.f32.mxu0 0.0
    %5058 = vmatmul.mubr.f32.gmra.mrb[0].mxu0 %v4590
    %v5059 = vpop.f32.mrb[0].mxu0
    %v5060 = vadd.f32 %v4557, %v5059
    %v5061 = vpop.f32.mrb[0].mxu0
    %5062 = vmatprep.mubr.f32.mxu0 0.0
    %5063 = vmatmul.mubr.f32.gmra.mrb[0].mxu0 %v4593
    %v5064 = vpop.f32.mrb[0].mxu0
    %v5065 = vadd.f32 %v4557, %v5064
    %v5066 = vpop.f32.mrb[0].mxu0
    %5067 = vmatprep.mubr.f32.mxu0 0.0
    %5068 = vmatmul.mubr.f32.gmra.mrb[0].mxu0 %v4596
    %v5069 = vpop.f32.mrb[0].mxu0
    %v5070 = vadd.f32 %v4557, %v5069
    %v5071 = vpop.f32.mrb[0].mxu0
    %5072 = vmatprep.mubr.f32.mxu0 0.0
    %5073 = vmatmul.mubr.f32.gmra.mrb[0].mxu0 %v4599
    %v5074 = vpop.f32.mrb[0].mxu0
    %v5075 = vadd.f32 %v4557, %v5074
    %v5076 = vpop.f32.mrb[0].mxu0
    %5077 = vmatprep.mubr.f32.mxu0 0.0
    %5078 = vmatmul.mubr.f32.gmra.mrb[0].mxu0 %v4602
    %v5079 = vpop.f32.mrb[0].mxu0
    %v5080 = vadd.f32 %v4557, %v5079
    %v5081 = vpop.f32.mrb[0].mxu0
    %5082 = vmatprep.mubr.f32.mxu0 0.0
    %5083 = vmatmul.mubr.f32.gmra.mrb[0].mxu0 %v4605
    %v5084 = vpop.f32.mrb[0].mxu0
    %v5085 = vadd.f32 %v4557, %v5084
    %v5086 = vpop.f32.mrb[0].mxu0
    %5087 = vmatprep.mubr.f32.mxu0 0.0
    %5088 = vmatmul.mubr.f32.gmra.mrb[0].mxu0 %v4608
    %v5089 = vpop.f32.mrb[0].mxu0
    %v5090 = vadd.f32 %v4557, %v5089
    %v5091 = vpop.f32.mrb[0].mxu0
    %5092 = vmatprep.mubr.f32.mxu0 0.0
    %5093 = vmatmul.mubr.f32.gmra.mrb[0].mxu0 %v4611
    %v5094 = vpop.f32.mrb[0].mxu0
    %v5095 = vadd.f32 %v4557, %v5094
    %v5096 = vpop.f32.mrb[0].mxu0
    %5097 = vmatprep.mubr.f32.mxu0 0.0
    %5098 = vmatmul.mubr.f32.gmra.mrb[0].mxu0 %v4614
    %v5099 = vpop.f32.mrb[0].mxu0
    %v5100 = vadd.f32 %v4557, %v5099
    %v5101 = vpop.f32.mrb[0].mxu0
    %5102 = vmatprep.mubr.f32.mxu0 0.0
    %5103 = vmatmul.mubr.f32.gmra.mrb[0].mxu0 %v4617
    %v5104 = vpop.f32.mrb[0].mxu0
    %v5105 = vadd.f32 %v4557, %v5104
    %v5106 = vpop.f32.mrb[0].mxu0
    %5107 = vmatprep.mubr.f32.mxu0 0.0
    %5108 = vmatmul.mubr.f32.gmra.mrb[0].mxu0 %v4620
    %v5109 = vpop.f32.mrb[0].mxu0
    %v5110 = vadd.f32 %v4557, %v5109
    %v5111 = vpop.f32.mrb[0].mxu0
    %5112 = vmatprep.mubr.f32.mxu0 0.0
    %5113 = vmatmul.mubr.f32.gmra.mrb[0].mxu0 %v4623
    %v5114 = vpop.f32.mrb[0].mxu0
    %v5115 = vadd.f32 %v4557, %v5114
    %v5116 = vpop.f32.mrb[0].mxu0
    %5117 = vmatprep.mubr.f32.mxu0 0.0
    %5118 = vmatmul.mubr.f32.gmra.mrb[0].mxu0 %v4626
    %v5119 = vpop.f32.mrb[0].mxu0
    %v5120 = vadd.f32 %v4557, %v5119
    %v5121 = vpop.f32.mrb[0].mxu0
    %5122 = vmatprep.mubr.f32.mxu0 0.0
    %5123 = vmatmul.mubr.f32.gmra.mrb[0].mxu0 %v4629
    %v5124 = vpop.f32.mrb[0].mxu0
    %v5125 = vadd.f32 %v4557, %v5124
    %v5126 = vpop.f32.mrb[0].mxu0
    %5127 = vmatprep.mubr.f32.mxu0 0.0
    %5128 = vmatmul.mubr.f32.gmra.mrb[0].mxu0 %v4632
    %v5129 = vpop.f32.mrb[0].mxu0
    %v5130 = vadd.f32 %v4557, %v5129
    %v5131 = vpop.f32.mrb[0].mxu0
    %5132 = vmatprep.mubr.f32.mxu0 0.0
    %5133 = vmatmul.mubr.f32.gmra.mrb[0].mxu0 %v4635
    %v5134 = vpop.f32.mrb[0].mxu0
    %v5135 = vadd.f32 %v4557, %v5134
    %v5136 = vpop.f32.mrb[0].mxu0
    %5137 = vmatprep.mubr.f32.mxu0 0.0
    %5138 = vmatmul.mubr.f32.gmra.mrb[0].mxu0 %v4638
    %v5139 = vpop.f32.mrb[0].mxu0
    %v5140 = vadd.f32 %v4557, %v5139
    %v5141 = vpop.f32.mrb[0].mxu0
    %5142 = vmatprep.mubr.f32.mxu0 0.0
    %5143 = vmatmul.mubr.f32.gmra.mrb[0].mxu0 %v4641
    %v5144 = vpop.f32.mrb[0].mxu0
    %v5145 = vadd.f32 %v4557, %v5144
    %v5146 = vpop.f32.mrb[0].mxu0
    %5147 = vmatprep.mubr.f32.mxu0 0.0
    %5148 = vmatmul.mubr.f32.gmra.mrb[0].mxu0 %v4644
    %v5149 = vpop.f32.mrb[0].mxu0
    %v5150 = vadd.f32 %v4557, %v5149
    %v5151 = vpop.f32.mrb[0].mxu0
    %5152 = vmatprep.mubr.f32.mxu0 0.0
    %5153 = vmatmul.mubr.f32.gmra.mrb[0].mxu0 %v4647
    %v5154 = vpop.f32.mrb[0].mxu0
    %v5155 = vadd.f32 %v4557, %v5154
    %v5156 = vpop.f32.mrb[0].mxu0
    %5157 = vmatprep.mubr.f32.mxu0 0.0
    %5158 = vmatmul.mubr.f32.gmra.mrb[0].mxu0 %v4650
    %v5159 = vpop.f32.mrb[0].mxu0
    %v5160 = vadd.f32 %v4557, %v5159
    %v5161 = vpop.f32.mrb[0].mxu0
    %5162 = vmatprep.mubr.f32.mxu0 0.0
    %5163 = vmatmul.mubr.f32.gmra.mrb[0].mxu0 %v4653
    %v5164 = vpop.f32.mrb[0].mxu0
    %v5165 = vadd.f32 %v4557, %v5164
    %v5166 = vpop.f32.mrb[0].mxu0
    %5167 = vmatprep.mubr.f32.mxu0 0.0
    %5168 = vmatmul.mubr.f32.gmra.mrb[0].mxu0 %v4656
    %v5169 = vpop.f32.mrb[0].mxu0
    %v5170 = vadd.f32 %v4557, %v5169
    %v5171 = vpop.f32.mrb[0].mxu0
    %5172 = vmatprep.mubr.f32.mxu0 0.0
    %5173 = vmatmul.mubr.f32.gmra.mrb[0].mxu0 %v4659
    %v5174 = vpop.f32.mrb[0].mxu0
    %v5175 = vadd.f32 %v4557, %v5174
    %v5176 = vpop.f32.mrb[0].mxu0
    %5177 = vmatprep.mubr.f32.mxu0 0.0
    %5178 = vmatmul.mubr.f32.gmra.mrb[0].mxu0 %v4662
    %v5179 = vpop.f32.mrb[0].mxu0
    %v5180 = vadd.f32 %v4557, %v5179
    %v5181 = vpop.f32.mrb[0].mxu0
    %5182 = vmatprep.mubr.f32.mxu0 0.0
    %5183 = vmatmul.mubr.f32.gmra.mrb[0].mxu0 %v4665
    %v5184 = vpop.f32.mrb[0].mxu0
    %v5185 = vadd.f32 %v4557, %v5184
    %v5186 = vpop.f32.mrb[0].mxu0
    %5187 = vmatprep.mubr.f32.mxu0 0.0
    %5188 = vmatmul.mubr.f32.gmra.mrb[0].mxu0 %v4668
    %v5189 = vpop.f32.mrb[0].mxu0
    %v5190 = vadd.f32 %v4557, %v5189
    %v5191 = vpop.f32.mrb[0].mxu0
    %5192 = vmatprep.mubr.f32.mxu0 0.0
    %5193 = vmatmul.mubr.f32.gmra.mrb[0].mxu0 %v4671
    %v5194 = vpop.f32.mrb[0].mxu0
    %v5195 = vadd.f32 %v4557, %v5194
    %v5196 = vpop.f32.mrb[0].mxu0
    %5197 = vmatprep.mubr.f32.mxu0 0.0
    %5198 = vmatmul.mubr.f32.gmra.mrb[0].mxu0 %v4674
    %v5199 = vpop.f32.mrb[0].mxu0
    %v5200 = vadd.f32 %v4557, %v5199
    %v5201 = vpop.f32.mrb[0].mxu0
    %5202 = vmatprep.mubr.f32.mxu0 0.0
    %5203 = vmatmul.mubr.f32.gmra.mrb[0].mxu0 %v4677
    %v5204 = vpop.f32.mrb[0].mxu0
    %v5205 = vadd.f32 %v4557, %v5204
    %v5206 = vpop.f32.mrb[0].mxu0
    %5207 = vmatprep.mubr.f32.mxu0 0.0
    %5208 = vmatmul.mubr.f32.gmra.mrb[0].mxu0 %v4680
    %v5209 = vpop.f32.mrb[0].mxu0
    %v5210 = vadd.f32 %v4557, %v5209
    %v5211 = vpop.f32.mrb[0].mxu0
    %5212 = vmatprep.mubr.f32.mxu0 0.0
    %5213 = vmatmul.mubr.f32.gmra.mrb[0].mxu0 %v4683
    %v5214 = vpop.f32.mrb[0].mxu0
    %v5215 = vadd.f32 %v4557, %v5214
    %v5216 = vpop.f32.mrb[0].mxu0
    %5217 = vmatprep.mubr.f32.mxu0 0.0
    %5218 = vmatmul.mubr.f32.gmra.mrb[0].mxu0 %v4686
    %v5219 = vpop.f32.mrb[0].mxu0
    %v5220 = vadd.f32 %v4557, %v5219
    %v5221 = vpop.f32.mrb[0].mxu0
    %5222 = vmatprep.mubr.f32.mxu0 0.0
    %5223 = vmatmul.mubr.f32.gmra.mrb[0].mxu0 %v4689
    %v5224 = vpop.f32.mrb[0].mxu0
    %v5225 = vadd.f32 %v4557, %v5224
    %v5226 = vpop.f32.mrb[0].mxu0
    %5227 = vmatprep.mubr.f32.mxu0 0.0
    %5228 = vmatmul.mubr.f32.gmra.mrb[0].mxu0 %v4692
    %v5229 = vpop.f32.mrb[0].mxu0
    %v5230 = vadd.f32 %v4557, %v5229
    %v5231 = vpop.f32.mrb[0].mxu0
    %5232 = vmatprep.mubr.f32.mxu0 0.0
    %5233 = vmatmul.mubr.f32.gmra.mrb[0].mxu0 %v4695
    %v5234 = vpop.f32.mrb[0].mxu0
    %v5235 = vadd.f32 %v4557, %v5234
    %v5236 = vpop.f32.mrb[0].mxu0
    %5237 = vmatprep.mubr.f32.mxu0 0.0
    %5238 = vmatmul.mubr.f32.gmra.mrb[0].mxu0 %v4698
    %v5239 = vpop.f32.mrb[0].mxu0
    %v5240 = vadd.f32 %v4557, %v5239
    %v5241 = vpop.f32.mrb[0].mxu0
    %5242 = vmatprep.mubr.f32.mxu0 0.0
    %5243 = vmatmul.mubr.f32.gmra.mrb[0].mxu0 %v4701
    %v5244 = vpop.f32.mrb[0].mxu0
    %v5245 = vadd.f32 %v4557, %v5244
    %v5246 = vpop.f32.mrb[0].mxu0
    %5247 = vmatprep.mubr.f32.mxu0 0.0
    %5248 = vmatmul.mubr.f32.gmra.mrb[0].mxu0 %v4704
    %v5249 = vpop.f32.mrb[0].mxu0
    %v5250 = vadd.f32 %v4557, %v5249
    %v5251 = vpop.f32.mrb[0].mxu0
    %5252 = vmatprep.mubr.f32.mxu0 0.0
    %5253 = vmatmul.mubr.f32.gmra.mrb[0].mxu0 %v4707
    %v5254 = vpop.f32.mrb[0].mxu0
    %v5255 = vadd.f32 %v4557, %v5254
    %v5256 = vpop.f32.mrb[0].mxu0
    %5257 = vmatprep.mubr.f32.mxu0 0.0
    %5258 = vmatmul.mubr.f32.gmra.mrb[0].mxu0 %v4710
    %v5259 = vpop.f32.mrb[0].mxu0
    %v5260 = vadd.f32 %v4557, %v5259
    %v5261 = vpop.f32.mrb[0].mxu0
    %5262 = vmatprep.mubr.f32.mxu0 0.0
    %5263 = vmatmul.mubr.f32.gmra.mrb[0].mxu0 %v4713
    %v5264 = vpop.f32.mrb[0].mxu0
    %v5265 = vadd.f32 %v4557, %v5264
    %v5266 = vpop.f32.mrb[0].mxu0
    %5267 = vmatprep.mubr.f32.mxu0 0.0
    %5268 = vmatmul.mubr.f32.gmra.mrb[0].mxu0 %v4716
    %v5269 = vpop.f32.mrb[0].mxu0
    %v5270 = vadd.f32 %v4557, %v5269
    %v5271 = vpop.f32.mrb[0].mxu0
    %5272 = vmatprep.mubr.f32.mxu0 0.0
    %5273 = vmatmul.mubr.f32.gmra.mrb[0].mxu0 %v4719
    %v5274 = vpop.f32.mrb[0].mxu0
    %v5275 = vadd.f32 %v4557, %v5274
    %v5276 = vpop.f32.mrb[0].mxu0
    %5277 = vmatprep.mubr.f32.mxu0 0.0
    %5278 = vmatmul.mubr.f32.gmra.mrb[0].mxu0 %v4722
    %v5279 = vpop.f32.mrb[0].mxu0
    %v5280 = vadd.f32 %v4557, %v5279
    %v5281 = vpop.f32.mrb[0].mxu0
    %5282 = vmatprep.mubr.f32.mxu0 0.0
    %5283 = vmatmul.mubr.f32.gmra.mrb[0].mxu0 %v4725
    %v5284 = vpop.f32.mrb[0].mxu0
    %v5285 = vadd.f32 %v4557, %v5284
    %v5286 = vpop.f32.mrb[0].mxu0
    %5287 = vmatprep.mubr.f32.mxu0 0.0
    %5288 = vmatmul.mubr.f32.gmra.mrb[0].mxu0 %v4728
    %v5289 = vpop.f32.mrb[0].mxu0
    %v5290 = vadd.f32 %v4557, %v5289
    %v5291 = vpop.f32.mrb[0].mxu0
    %5292 = vmatprep.mubr.f32.mxu0 0.0
    %5293 = vmatmul.mubr.f32.gmra.mrb[0].mxu0 %v4731
    %v5294 = vpop.f32.mrb[0].mxu0
    %v5295 = vadd.f32 %v4557, %v5294
    %v5296 = vpop.f32.mrb[0].mxu0
    %5297 = vmatprep.mubr.f32.mxu0 0.0
    %5298 = vmatmul.mubr.f32.gmra.mrb[0].mxu0 %v4734
    %v5299 = vpop.f32.mrb[0].mxu0
    %v5300 = vadd.f32 %v4557, %v5299
    %v5301 = vpop.f32.mrb[0].mxu0
    %5302 = vmatprep.mubr.f32.mxu0 0.0
    %5303 = vmatmul.mubr.f32.gmra.mrb[0].mxu0 %v4737
    %v5304 = vpop.f32.mrb[0].mxu0
    %v5305 = vadd.f32 %v4557, %v5304
    %v5306 = vpop.f32.mrb[0].mxu0
    %5307 = vmatprep.mubr.f32.mxu0 0.0
    %5308 = vmatmul.mubr.f32.gmra.mrb[0].mxu0 %v4740
    %v5309 = vpop.f32.mrb[0].mxu0
    %v5310 = vadd.f32 %v4557, %v5309
    %v5311 = vpop.f32.mrb[0].mxu0
    %5312 = vmatprep.mubr.f32.mxu0 0.0
    %5313 = vmatmul.mubr.f32.gmra.mrb[0].mxu0 %v4743
    %v5314 = vpop.f32.mrb[0].mxu0
    %v5315 = vadd.f32 %v4557, %v5314
    %v5316 = vpop.f32.mrb[0].mxu0
    %5317 = vmatprep.mubr.f32.mxu0 0.0
    %5318 = vmatmul.mubr.f32.gmra.mrb[0].mxu0 %v4746
    %v5319 = vpop.f32.mrb[0].mxu0
    %v5320 = vadd.f32 %v4557, %v5319
    %v5321 = vpop.f32.mrb[0].mxu0
    %5322 = vmatprep.mubr.f32.mxu0 0.0
    %5323 = vmatmul.mubr.f32.gmra.mrb[0].mxu0 %v4749
    %v5324 = vpop.f32.mrb[0].mxu0
    %v5325 = vadd.f32 %v4557, %v5324
    %v5326 = vpop.f32.mrb[0].mxu0
    %5327 = vmatprep.mubr.f32.mxu0 0.0
    %5328 = vmatmul.mubr.f32.gmra.mrb[0].mxu0 %v4752
    %v5329 = vpop.f32.mrb[0].mxu0
    %v5330 = vadd.f32 %v4557, %v5329
    %v5331 = vpop.f32.mrb[0].mxu0
    %5332 = vmatprep.mubr.f32.mxu0 0.0
    %5333 = vmatmul.mubr.f32.gmra.mrb[0].mxu0 %v4755
    %v5334 = vpop.f32.mrb[0].mxu0
    %v5335 = vadd.f32 %v4557, %v5334
    %v5336 = vpop.f32.mrb[0].mxu0
    %5337 = vmatprep.mubr.f32.mxu0 0.0
    %5338 = vmatmul.mubr.f32.gmra.mrb[0].mxu0 %v4758
    %v5339 = vpop.f32.mrb[0].mxu0
    %v5340 = vadd.f32 %v4557, %v5339
    %v5341 = vpop.f32.mrb[0].mxu0
    %5342 = vmatprep.mubr.f32.mxu0 0.0
    %5343 = vmatmul.mubr.f32.gmra.mrb[0].mxu0 %v4761
    %v5344 = vpop.f32.mrb[0].mxu0
    %v5345 = vadd.f32 %v4557, %v5344
    %v5346 = vpop.f32.mrb[0].mxu0
    %5347 = vmatprep.mubr.f32.mxu0 0.0
    %5348 = vmatmul.mubr.f32.gmra.mrb[0].mxu0 %v4764
    %v5349 = vpop.f32.mrb[0].mxu0
    %v5350 = vadd.f32 %v4557, %v5349
    %v5351 = vpop.f32.mrb[0].mxu0
    %5352 = vmatprep.mubr.f32.mxu0 0.0
    %5353 = vmatmul.mubr.f32.gmra.mrb[0].mxu0 %v4767
    %v5354 = vpop.f32.mrb[0].mxu0
    %v5355 = vadd.f32 %v4557, %v5354
    %v5356 = vpop.f32.mrb[0].mxu0
    %5357 = vmatprep.mubr.f32.mxu0 0.0
    %5358 = vmatmul.mubr.f32.gmra.mrb[0].mxu0 %v4770
    %v5359 = vpop.f32.mrb[0].mxu0
    %v5360 = vadd.f32 %v4557, %v5359
    %v5361 = vpop.f32.mrb[0].mxu0
    %5362 = vmatprep.mubr.f32.mxu0 0.0
    %5363 = vmatmul.mubr.f32.gmra.mrb[0].mxu0 %v4773
    %v5364 = vpop.f32.mrb[0].mxu0
    %v5365 = vadd.f32 %v4557, %v5364
    %v5366 = vpop.f32.mrb[0].mxu0
    %5367 = vmatprep.mubr.f32.mxu0 0.0
    %5368 = vmatmul.mubr.f32.gmra.mrb[0].mxu0 %v4776
    %v5369 = vpop.f32.mrb[0].mxu0
    %v5370 = vadd.f32 %v4557, %v5369
    %v5371 = vpop.f32.mrb[0].mxu0
    %5372 = vmatprep.mubr.f32.mxu0 0.0
    %5373 = vmatmul.mubr.f32.gmra.mrb[0].mxu0 %v4779
    %v5374 = vpop.f32.mrb[0].mxu0
    %v5375 = vadd.f32 %v4557, %v5374
    %v5376 = vpop.f32.mrb[0].mxu0
    %5377 = vmatprep.mubr.f32.mxu0 0.0
    %5378 = vmatmul.mubr.f32.gmra.mrb[0].mxu0 %v4782
    %v5379 = vpop.f32.mrb[0].mxu0
    %v5380 = vadd.f32 %v4557, %v5379
    %v5381 = vpop.f32.mrb[0].mxu0
    %5382 = vmatprep.mubr.f32.mxu0 0.0
    %5383 = vmatmul.mubr.f32.gmra.mrb[0].mxu0 %v4785
    %v5384 = vpop.f32.mrb[0].mxu0
    %v5385 = vadd.f32 %v4557, %v5384
    %v5386 = vpop.f32.mrb[0].mxu0
    %5387 = vmatprep.mubr.f32.mxu0 0.0
    %5388 = vmatmul.mubr.f32.gmra.mrb[0].mxu0 %v4788
    %v5389 = vpop.f32.mrb[0].mxu0
    %v5390 = vadd.f32 %v4557, %v5389
    %v5391 = vpop.f32.mrb[0].mxu0
    %5392 = vmatprep.mubr.f32.mxu0 0.0
    %5393 = vmatmul.mubr.f32.gmra.mrb[0].mxu0 %v4791
    %v5394 = vpop.f32.mrb[0].mxu0
    %v5395 = vadd.f32 %v4557, %v5394
    %v5396 = vpop.f32.mrb[0].mxu0
    %5397 = vmatprep.mubr.f32.mxu0 0.0
    %5398 = vmatmul.mubr.f32.gmra.mrb[0].mxu0 %v4794
    %v5399 = vpop.f32.mrb[0].mxu0
    %v5400 = vadd.f32 %v4557, %v5399
    %v5401 = vpop.f32.mrb[0].mxu0
    %5402 = vmatprep.mubr.f32.mxu0 0.0
    %5403 = vmatmul.mubr.f32.gmra.mrb[0].mxu0 %v4797
    %v5404 = vpop.f32.mrb[0].mxu0
    %v5405 = vadd.f32 %v4557, %v5404
    %v5406 = vpop.f32.mrb[0].mxu0
    %5407 = vmatprep.mubr.f32.mxu0 0.0
    %5408 = vmatmul.mubr.f32.gmra.mrb[0].mxu0 %v4800
    %v5409 = vpop.f32.mrb[0].mxu0
    %v5410 = vadd.f32 %v4557, %v5409
    %v5411 = vpop.f32.mrb[0].mxu0
    %5412 = vmatprep.mubr.f32.mxu0 0.0
    %5413 = vmatmul.mubr.f32.gmra.mrb[0].mxu0 %v4803
    %v5414 = vpop.f32.mrb[0].mxu0
    %v5415 = vadd.f32 %v4557, %v5414
    %v5416 = vpop.f32.mrb[0].mxu0
    %5417 = vmatprep.mubr.f32.mxu0 0.0
    %5418 = vmatmul.mubr.f32.gmra.mrb[0].mxu0 %v4806
    %v5419 = vpop.f32.mrb[0].mxu0
    %v5420 = vadd.f32 %v4557, %v5419
    %v5421 = vpop.f32.mrb[0].mxu0
    %5422 = vmatprep.mubr.f32.mxu0 0.0
    %5423 = vmatmul.mubr.f32.gmra.mrb[0].mxu0 %v4809
    %v5424 = vpop.f32.mrb[0].mxu0
    %v5425 = vadd.f32 %v4557, %v5424
    %v5426 = vpop.f32.mrb[0].mxu0
    %5427 = vmatprep.mubr.f32.mxu0 0.0
    %5428 = vmatmul.mubr.f32.gmra.mrb[0].mxu0 %v4812
    %v5429 = vpop.f32.mrb[0].mxu0
    %v5430 = vadd.f32 %v4557, %v5429
    %v5431 = vpop.f32.mrb[0].mxu0
    %5432 = vmatprep.mubr.f32.mxu0 0.0
    %5433 = vmatmul.mubr.f32.gmra.mrb[0].mxu0 %v4815
    %v5434 = vpop.f32.mrb[0].mxu0
    %v5435 = vadd.f32 %v4557, %v5434
    %v5436 = vpop.f32.mrb[0].mxu0
    %5437 = vmatprep.mubr.f32.mxu0 0.0
    %5438 = vmatmul.mubr.f32.gmra.mrb[0].mxu0 %v4818
    %v5439 = vpop.f32.mrb[0].mxu0
    %v5440 = vadd.f32 %v4557, %v5439
    %v5441 = vpop.f32.mrb[0].mxu0
    %5442 = vmatprep.mubr.f32.mxu0 0.0
    %5443 = vmatmul.mubr.f32.gmra.mrb[0].mxu0 %v4821
    %v5444 = vpop.f32.mrb[0].mxu0
    %v5445 = vadd.f32 %v4557, %v5444
    %v5446 = vpop.f32.mrb[0].mxu0
    %5447 = vmatprep.mubr.f32.mxu0 0.0
    %5448 = vmatmul.mubr.f32.gmra.mrb[0].mxu0 %v4824
    %v5449 = vpop.f32.mrb[0].mxu0
    %v5450 = vadd.f32 %v4557, %v5449
    %v5451 = vpop.f32.mrb[0].mxu0
    %5452 = vmatprep.mubr.f32.mxu0 0.0
    %5453 = vmatmul.mubr.f32.gmra.mrb[0].mxu0 %v4827
    %v5454 = vpop.f32.mrb[0].mxu0
    %v5455 = vadd.f32 %v4557, %v5454
    %v5456 = vpop.f32.mrb[0].mxu0
    %5457 = vmatprep.mubr.f32.mxu0 0.0
    %5458 = vmatmul.mubr.f32.gmra.mrb[0].mxu0 %v4830
    %v5459 = vpop.f32.mrb[0].mxu0
    %v5460 = vadd.f32 %v4557, %v5459
    %v5461 = vpop.f32.mrb[0].mxu0
    %5462 = vmatprep.mubr.f32.mxu0 0.0
    %5463 = vmatmul.mubr.f32.gmra.mrb[0].mxu0 %v4833
    %v5464 = vpop.f32.mrb[0].mxu0
    %v5465 = vadd.f32 %v4557, %v5464
    %v5466 = vpop.f32.mrb[0].mxu0
    %5467 = vmatprep.mubr.f32.mxu0 0.0
    %5468 = vmatmul.mubr.f32.gmra.mrb[0].mxu0 %v4836
    %v5469 = vpop.f32.mrb[0].mxu0
    %v5470 = vadd.f32 %v4557, %v5469
    %v5471 = vpop.f32.mrb[0].mxu0
    %5472 = vmatprep.mubr.f32.mxu0 0.0
    %5473 = vmatmul.mubr.f32.gmra.mrb[0].mxu0 %v4839
    %v5474 = vpop.f32.mrb[0].mxu0
    %v5475 = vadd.f32 %v4557, %v5474
    %v5476 = vpop.f32.mrb[0].mxu0
    %5477 = vmatprep.mubr.f32.mxu0 0.0
    %5478 = vmatmul.mubr.f32.gmra.mrb[0].mxu0 %v4842
    %v5479 = vpop.f32.mrb[0].mxu0
    %v5480 = vadd.f32 %v4557, %v5479
    %v5481 = vpop.f32.mrb[0].mxu0
    %5482 = vmatprep.mubr.f32.mxu0 0.0
    %5483 = vmatmul.mubr.f32.gmra.mrb[0].mxu0 %v4845
    %v5484 = vpop.f32.mrb[0].mxu0
    %v5485 = vadd.f32 %v4557, %v5484
    %v5486 = vpop.f32.mrb[0].mxu0
    %5487 = vmatprep.mubr.f32.mxu0 0.0
    %5488 = vmatmul.mubr.f32.gmra.mrb[0].mxu0 %v4848
    %v5489 = vpop.f32.mrb[0].mxu0
    %v5490 = vadd.f32 %v4557, %v5489
    %v5491 = vpop.f32.mrb[0].mxu0
    %5492 = vmatprep.mubr.f32.mxu0 0.0
    %5493 = vmatmul.mubr.f32.gmra.mrb[0].mxu0 %v4851
    %v5494 = vpop.f32.mrb[0].mxu0
    %v5495 = vadd.f32 %v4557, %v5494
    %v5496 = vpop.f32.mrb[0].mxu0
    %5497 = vmatprep.mubr.f32.mxu0 0.0
    %5498 = vmatmul.mubr.f32.gmra.mrb[0].mxu0 %v4854
    %v5499 = vpop.f32.mrb[0].mxu0
    %v5500 = vadd.f32 %v4557, %v5499
    %v5501 = vpop.f32.mrb[0].mxu0
    %5502 = vmatprep.mubr.f32.mxu0 0.0
    %5503 = vmatmul.mubr.f32.gmra.mrb[0].mxu0 %v4857
    %v5504 = vpop.f32.mrb[0].mxu0
    %v5505 = vadd.f32 %v4557, %v5504
    %v5506 = vpop.f32.mrb[0].mxu0
    %5507 = vmatprep.mubr.f32.mxu0 0.0
    %5508 = vmatmul.mubr.f32.gmra.mrb[0].mxu0 %v4860
    %v5509 = vpop.f32.mrb[0].mxu0
    %v5510 = vadd.f32 %v4557, %v5509
    %v5511 = vpop.f32.mrb[0].mxu0
    %5512 = vmatprep.mubr.f32.mxu0 0.0
    %5513 = vmatmul.mubr.f32.gmra.mrb[0].mxu0 %v4863
    %v5514 = vpop.f32.mrb[0].mxu0
    %v5515 = vadd.f32 %v4557, %v5514
    %v5516 = vpop.f32.mrb[0].mxu0
    %5517 = vmatprep.mubr.f32.mxu0 0.0
    %5518 = vmatmul.mubr.f32.gmra.mrb[0].mxu0 %v4866
    %v5519 = vpop.f32.mrb[0].mxu0
    %v5520 = vadd.f32 %v4557, %v5519
    %v5521 = vpop.f32.mrb[0].mxu0
    %5522 = vmatprep.mubr.f32.mxu0 0.0
    %5523 = vmatmul.mubr.f32.gmra.mrb[0].mxu0 %v4869
    %v5524 = vpop.f32.mrb[0].mxu0
    %v5525 = vadd.f32 %v4557, %v5524
    %v5526 = vpop.f32.mrb[0].mxu0
    %5527 = vmatprep.mubr.f32.mxu0 0.0
    %5528 = vmatmul.mubr.f32.gmra.mrb[0].mxu0 %v4872
    %v5529 = vpop.f32.mrb[0].mxu0
    %v5530 = vadd.f32 %v4557, %v5529
    %v5531 = vpop.f32.mrb[0].mxu0
    %5532 = vmatprep.mubr.f32.mxu0 0.0
    %5533 = vmatmul.mubr.f32.gmra.mrb[0].mxu0 %v4875
    %v5534 = vpop.f32.mrb[0].mxu0
    %v5535 = vadd.f32 %v4557, %v5534
    %v5536 = vpop.f32.mrb[0].mxu0
    %5537 = vmatprep.mubr.f32.mxu0 0.0
    %5538 = vmatmul.mubr.f32.gmra.mrb[0].mxu0 %v4878
    %v5539 = vpop.f32.mrb[0].mxu0
    %v5540 = vadd.f32 %v4557, %v5539
    %v5541 = vpop.f32.mrb[0].mxu0
    %5542 = vmatprep.mubr.f32.mxu0 0.0
    %5543 = vmatmul.mubr.f32.gmra.mrb[0].mxu0 %v4881
    %v5544 = vpop.f32.mrb[0].mxu0
    %v5545 = vadd.f32 %v4557, %v5544
    %v5546 = vpop.f32.mrb[0].mxu0
    %5547 = vmatprep.mubr.f32.mxu0 0.0
    %5548 = vmatmul.mubr.f32.gmra.mrb[0].mxu0 %v4884
    %v5549 = vpop.f32.mrb[0].mxu0
    %v5550 = vadd.f32 %v4557, %v5549
    %v5551 = vpop.f32.mrb[0].mxu0
    %5552 = vmatprep.mubr.f32.mxu0 0.0
    %5553 = vmatmul.mubr.f32.gmra.mrb[0].mxu0 %v4887
    %v5554 = vpop.f32.mrb[0].mxu0
    %v5555 = vadd.f32 %v4557, %v5554
    %v5556 = vpop.f32.mrb[0].mxu0
    %5557 = vmatprep.mubr.f32.mxu0 0.0
    %5558 = vmatmul.mubr.f32.gmra.mrb[0].mxu0 %v4890
    %v5559 = vpop.f32.mrb[0].mxu0
    %v5560 = vadd.f32 %v4557, %v5559
    %v5561 = vpop.f32.mrb[0].mxu0
    %5562 = vmatprep.mubr.f32.mxu0 0.0
    %5563 = vmatmul.mubr.f32.gmra.mrb[0].mxu0 %v4893
    %v5564 = vpop.f32.mrb[0].mxu0
    %v5565 = vadd.f32 %v4557, %v5564
    %v5566 = vpop.f32.mrb[0].mxu0
    %5567 = vmatprep.mubr.f32.mxu0 0.0
    %5568 = vmatmul.mubr.f32.gmra.mrb[0].mxu0 %v4896
    %v5569 = vpop.f32.mrb[0].mxu0
    %v5570 = vadd.f32 %v4557, %v5569
    %v5571 = vpop.f32.mrb[0].mxu0
    %5572 = vmatprep.mubr.f32.mxu0 0.0
    %5573 = vmatmul.mubr.f32.gmra.mrb[0].mxu0 %v4899
    %v5574 = vpop.f32.mrb[0].mxu0
    %v5575 = vadd.f32 %v4557, %v5574
    %v5576 = vpop.f32.mrb[0].mxu0
    %5577 = vmatprep.mubr.f32.mxu0 0.0
    %5578 = vmatmul.mubr.f32.gmra.mrb[0].mxu0 %v4902
    %v5579 = vpop.f32.mrb[0].mxu0
    %v5580 = vadd.f32 %v4557, %v5579
    %v5581 = vpop.f32.mrb[0].mxu0
    %5582 = vmatprep.mubr.f32.mxu0 0.0
    %5583 = vmatmul.mubr.f32.gmra.mrb[0].mxu0 %v4905
    %v5584 = vpop.f32.mrb[0].mxu0
    %v5585 = vadd.f32 %v4557, %v5584
    %v5586 = vpop.f32.mrb[0].mxu0
    %5587 = vmatprep.mubr.f32.mxu0 0.0
    %5588 = vmatmul.mubr.f32.gmra.mrb[0].mxu0 %v4908
    %v5589 = vpop.f32.mrb[0].mxu0
    %v5590 = vadd.f32 %v4557, %v5589
    %v5591 = vpop.f32.mrb[0].mxu0
    %5592 = vmatprep.mubr.f32.mxu0 0.0
    %5593 = vmatmul.mubr.f32.gmra.mrb[0].mxu0 %v4911
    %v5594 = vpop.f32.mrb[0].mxu0
    %v5595 = vadd.f32 %v4557, %v5594
    %v5596 = vpop.f32.mrb[0].mxu0
    %5597 = vmatprep.mubr.f32.mxu0 0.0
    %5598 = vmatmul.mubr.f32.gmra.mrb[0].mxu0 %v4914
    %v5599 = vpop.f32.mrb[0].mxu0
    %v5600 = vadd.f32 %v4557, %v5599
    %v5601 = vpop.f32.mrb[0].mxu0
    %5602 = vmatprep.mubr.f32.mxu0 0.0
    %5603 = vmatmul.mubr.f32.gmra.mrb[0].mxu0 %v4917
    %v5604 = vpop.f32.mrb[0].mxu0
    %v5605 = vadd.f32 %v4557, %v5604
    %v5606 = vpop.f32.mrb[0].mxu0
    %5607 = vmatprep.mubr.f32.mxu0 0.0
    %5608 = vmatmul.mubr.f32.gmra.mrb[0].mxu0 %v4920
    %v5609 = vpop.f32.mrb[0].mxu0
    %v5610 = vadd.f32 %v4557, %v5609
    %v5611 = vpop.f32.mrb[0].mxu0
    %5612 = vmatprep.mubr.f32.mxu0 0.0
    %5613 = vmatmul.mubr.f32.gmra.mrb[0].mxu0 %v4923
    %v5614 = vpop.f32.mrb[0].mxu0
    %v5615 = vadd.f32 %v4557, %v5614
    %v5616 = vpop.f32.mrb[0].mxu0
    %5617 = vmatprep.mubr.f32.mxu0 0.0
    %5618 = vmatmul.mubr.f32.gmra.mrb[0].mxu0 %v4926
    %v5619 = vpop.f32.mrb[0].mxu0
    %v5620 = vadd.f32 %v4557, %v5619
    %v5621 = vpop.f32.mrb[0].mxu0
    %5622 = vmatprep.mubr.f32.mxu0 0.0
    %5623 = vmatmul.mubr.f32.gmra.mrb[0].mxu0 %v4929
    %v5624 = vpop.f32.mrb[0].mxu0
    %v5625 = vadd.f32 %v4557, %v5624
    %v5626 = vpop.f32.mrb[0].mxu0
    %5627 = vmatprep.mubr.f32.mxu0 0.0
    %5628 = vmatmul.mubr.f32.gmra.mrb[0].mxu0 %v4932
    %v5629 = vpop.f32.mrb[0].mxu0
    %v5630 = vadd.f32 %v4557, %v5629
    %v5631 = vpop.f32.mrb[0].mxu0
    %5632 = vmatprep.mubr.f32.mxu0 0.0
    %5633 = vmatmul.mubr.f32.gmra.mrb[0].mxu0 %v4935
    %v5634 = vpop.f32.mrb[0].mxu0
    %v5635 = vadd.f32 %v4557, %v5634
    %v5636 = vpop.f32.mrb[0].mxu0
    %5637 = vmatprep.mubr.f32.mxu0 0.0
    %5638 = vmatmul.mubr.f32.gmra.mrb[0].mxu0 %v4938
    %v5639 = vpop.f32.mrb[0].mxu0
    %v5640 = vadd.f32 %v4557, %v5639
    %v5641 = vpop.f32.mrb[0].mxu0
    %5642 = vmatprep.mubr.f32.mxu0 0.0
    %5643 = vmatmul.mubr.f32.gmra.mrb[0].mxu0 %v4941
    %v5644 = vpop.f32.mrb[0].mxu0
    %v5645 = vadd.f32 %v4557, %v5644
    %v5646 = vpop.f32.mrb[0].mxu0
    %5647 = vdwg.mxu0
    %v5648 = vmax.f32 %v5010, 0.0
    %v5649 = vmax.f32 %v5015, 0.0
    %v5650 = vmax.f32 %v5020, 0.0
    %v5651 = vmax.f32 %v5025, 0.0
    %v5652 = vmax.f32 %v5030, 0.0
    %v5653 = vmax.f32 %v5035, 0.0
    %v5654 = vmax.f32 %v5040, 0.0
    %v5655 = vmax.f32 %v5045, 0.0
    %v5656 = vmax.f32 %v5050, 0.0
    %v5657 = vmax.f32 %v5055, 0.0
    %v5658 = vmax.f32 %v5060, 0.0
    %v5659 = vmax.f32 %v5065, 0.0
    %v5660 = vmax.f32 %v5070, 0.0
    %v5661 = vmax.f32 %v5075, 0.0
    %v5662 = vmax.f32 %v5080, 0.0
    %v5663 = vmax.f32 %v5085, 0.0
    %v5664 = vmax.f32 %v5090, 0.0
    %v5665 = vmax.f32 %v5095, 0.0
    %v5666 = vmax.f32 %v5100, 0.0
    %v5667 = vmax.f32 %v5105, 0.0
    %v5668 = vmax.f32 %v5110, 0.0
    %v5669 = vmax.f32 %v5115, 0.0
    %v5670 = vmax.f32 %v5120, 0.0
    %v5671 = vmax.f32 %v5125, 0.0
    %v5672 = vmax.f32 %v5130, 0.0
    %v5673 = vmax.f32 %v5135, 0.0
    %v5674 = vmax.f32 %v5140, 0.0
    %v5675 = vmax.f32 %v5145, 0.0
    %v5676 = vmax.f32 %v5150, 0.0
    %v5677 = vmax.f32 %v5155, 0.0
    %v5678 = vmax.f32 %v5160, 0.0
    %v5679 = vmax.f32 %v5165, 0.0
    %v5680 = vmax.f32 %v5170, 0.0
    %v5681 = vmax.f32 %v5175, 0.0
    %v5682 = vmax.f32 %v5180, 0.0
    %v5683 = vmax.f32 %v5185, 0.0
    %v5684 = vmax.f32 %v5190, 0.0
    %v5685 = vmax.f32 %v5195, 0.0
    %v5686 = vmax.f32 %v5200, 0.0
    %v5687 = vmax.f32 %v5205, 0.0
    %v5688 = vmax.f32 %v5210, 0.0
    %v5689 = vmax.f32 %v5215, 0.0
    %v5690 = vmax.f32 %v5220, 0.0
    %v5691 = vmax.f32 %v5225, 0.0
    %v5692 = vmax.f32 %v5230, 0.0
    %v5693 = vmax.f32 %v5235, 0.0
    %v5694 = vmax.f32 %v5240, 0.0
    %v5695 = vmax.f32 %v5245, 0.0
    %v5696 = vmax.f32 %v5250, 0.0
    %v5697 = vmax.f32 %v5255, 0.0
    %v5698 = vmax.f32 %v5260, 0.0
    %v5699 = vmax.f32 %v5265, 0.0
    %v5700 = vmax.f32 %v5270, 0.0
    %v5701 = vmax.f32 %v5275, 0.0
    %v5702 = vmax.f32 %v5280, 0.0
    %v5703 = vmax.f32 %v5285, 0.0
    %v5704 = vmax.f32 %v5290, 0.0
    %v5705 = vmax.f32 %v5295, 0.0
    %v5706 = vmax.f32 %v5300, 0.0
    %v5707 = vmax.f32 %v5305, 0.0
    %v5708 = vmax.f32 %v5310, 0.0
    %v5709 = vmax.f32 %v5315, 0.0
    %v5710 = vmax.f32 %v5320, 0.0
    %v5711 = vmax.f32 %v5325, 0.0
    %v5712 = vmax.f32 %v5330, 0.0
    %v5713 = vmax.f32 %v5335, 0.0
    %v5714 = vmax.f32 %v5340, 0.0
    %v5715 = vmax.f32 %v5345, 0.0
    %v5716 = vmax.f32 %v5350, 0.0
    %v5717 = vmax.f32 %v5355, 0.0
    %v5718 = vmax.f32 %v5360, 0.0
    %v5719 = vmax.f32 %v5365, 0.0
    %v5720 = vmax.f32 %v5370, 0.0
    %v5721 = vmax.f32 %v5375, 0.0
    %v5722 = vmax.f32 %v5380, 0.0
    %v5723 = vmax.f32 %v5385, 0.0
    %v5724 = vmax.f32 %v5390, 0.0
    %v5725 = vmax.f32 %v5395, 0.0
    %v5726 = vmax.f32 %v5400, 0.0
    %v5727 = vmax.f32 %v5405, 0.0
    %v5728 = vmax.f32 %v5410, 0.0
    %v5729 = vmax.f32 %v5415, 0.0
    %v5730 = vmax.f32 %v5420, 0.0
    %v5731 = vmax.f32 %v5425, 0.0
    %v5732 = vmax.f32 %v5430, 0.0
    %v5733 = vmax.f32 %v5435, 0.0
    %v5734 = vmax.f32 %v5440, 0.0
    %v5735 = vmax.f32 %v5445, 0.0
    %v5736 = vmax.f32 %v5450, 0.0
    %v5737 = vmax.f32 %v5455, 0.0
    %v5738 = vmax.f32 %v5460, 0.0
    %v5739 = vmax.f32 %v5465, 0.0
    %v5740 = vmax.f32 %v5470, 0.0
    %v5741 = vmax.f32 %v5475, 0.0
    %v5742 = vmax.f32 %v5480, 0.0
    %v5743 = vmax.f32 %v5485, 0.0
    %v5744 = vmax.f32 %v5490, 0.0
    %v5745 = vmax.f32 %v5495, 0.0
    %v5746 = vmax.f32 %v5500, 0.0
    %v5747 = vmax.f32 %v5505, 0.0
    %v5748 = vmax.f32 %v5510, 0.0
    %v5749 = vmax.f32 %v5515, 0.0
    %v5750 = vmax.f32 %v5520, 0.0
    %v5751 = vmax.f32 %v5525, 0.0
    %v5752 = vmax.f32 %v5530, 0.0
    %v5753 = vmax.f32 %v5535, 0.0
    %v5754 = vmax.f32 %v5540, 0.0
    %v5755 = vmax.f32 %v5545, 0.0
    %v5756 = vmax.f32 %v5550, 0.0
    %v5757 = vmax.f32 %v5555, 0.0
    %v5758 = vmax.f32 %v5560, 0.0
    %v5759 = vmax.f32 %v5565, 0.0
    %v5760 = vmax.f32 %v5570, 0.0
    %v5761 = vmax.f32 %v5575, 0.0
    %v5762 = vmax.f32 %v5580, 0.0
    %v5763 = vmax.f32 %v5585, 0.0
    %v5764 = vmax.f32 %v5590, 0.0
    %v5765 = vmax.f32 %v5595, 0.0
    %v5766 = vmax.f32 %v5600, 0.0
    %v5767 = vmax.f32 %v5605, 0.0
    %v5768 = vmax.f32 %v5610, 0.0
    %v5769 = vmax.f32 %v5615, 0.0
    %v5770 = vmax.f32 %v5620, 0.0
    %v5771 = vmax.f32 %v5625, 0.0
    %v5772 = vmax.f32 %v5630, 0.0
    %v5773 = vmax.f32 %v5635, 0.0
    %v5774 = vmax.f32 %v5640, 0.0
    %v5775 = vmax.f32 %v5645, 0.0
    %v5776 = vld [vmem:[%s7] sm:$0xff]
    %v5777 = vld [vmem:[%s7 + $0x8] sm:$0xff]
    %v5778 = vld [vmem:[%s8] sm:$0x1]
    %v5780 = vlaneseq
    %v5781 = vshrl.u32 %v5780, 7
    %v5782 = vsub.s32 0, %v5781
    %v5783 = vrot.slane %v5778, %v5782
    %vm5785 = vcmask 130048
    %v5787 = vsel %vm5785, %v5648, 0
    %v5790 = vsel %vm5785, %v5649, 0
    %v5793 = vsel %vm5785, %v5650, 0
    %v5796 = vsel %vm5785, %v5651, 0
    %v5799 = vsel %vm5785, %v5652, 0
    %v5802 = vsel %vm5785, %v5653, 0
    %v5805 = vsel %vm5785, %v5654, 0
    %v5808 = vsel %vm5785, %v5655, 0
    %v5811 = vsel %vm5785, %v5656, 0
    %v5814 = vsel %vm5785, %v5657, 0
    %v5817 = vsel %vm5785, %v5658, 0
    %v5820 = vsel %vm5785, %v5659, 0
    %v5823 = vsel %vm5785, %v5660, 0
    %v5826 = vsel %vm5785, %v5661, 0
    %v5829 = vsel %vm5785, %v5662, 0
    %v5832 = vsel %vm5785, %v5663, 0
    %v5835 = vsel %vm5785, %v5664, 0
    %v5838 = vsel %vm5785, %v5665, 0
    %v5841 = vsel %vm5785, %v5666, 0
    %v5844 = vsel %vm5785, %v5667, 0
    %v5847 = vsel %vm5785, %v5668, 0
    %v5850 = vsel %vm5785, %v5669, 0
    %v5853 = vsel %vm5785, %v5670, 0
    %v5856 = vsel %vm5785, %v5671, 0
    %v5859 = vsel %vm5785, %v5672, 0
    %v5862 = vsel %vm5785, %v5673, 0
    %v5865 = vsel %vm5785, %v5674, 0
    %v5868 = vsel %vm5785, %v5675, 0
    %v5871 = vsel %vm5785, %v5676, 0
    %v5874 = vsel %vm5785, %v5677, 0
    %v5877 = vsel %vm5785, %v5678, 0
    %v5880 = vsel %vm5785, %v5679, 0
    %v5883 = vsel %vm5785, %v5680, 0
    %v5886 = vsel %vm5785, %v5681, 0
    %v5889 = vsel %vm5785, %v5682, 0
    %v5892 = vsel %vm5785, %v5683, 0
    %v5895 = vsel %vm5785, %v5684, 0
    %v5898 = vsel %vm5785, %v5685, 0
    %v5901 = vsel %vm5785, %v5686, 0
    %v5904 = vsel %vm5785, %v5687, 0
    %v5907 = vsel %vm5785, %v5688, 0
    %v5910 = vsel %vm5785, %v5689, 0
    %v5913 = vsel %vm5785, %v5690, 0
    %v5916 = vsel %vm5785, %v5691, 0
    %v5919 = vsel %vm5785, %v5692, 0
    %v5922 = vsel %vm5785, %v5693, 0
    %v5925 = vsel %vm5785, %v5694, 0
    %v5928 = vsel %vm5785, %v5695, 0
    %v5931 = vsel %vm5785, %v5696, 0
    %v5934 = vsel %vm5785, %v5697, 0
    %v5937 = vsel %vm5785, %v5698, 0
    %v5940 = vsel %vm5785, %v5699, 0
    %v5943 = vsel %vm5785, %v5700, 0
    %v5946 = vsel %vm5785, %v5701, 0
    %v5949 = vsel %vm5785, %v5702, 0
    %v5952 = vsel %vm5785, %v5703, 0
    %v5955 = vsel %vm5785, %v5704, 0
    %v5958 = vsel %vm5785, %v5705, 0
    %v5961 = vsel %vm5785, %v5706, 0
    %v5964 = vsel %vm5785, %v5707, 0
    %v5967 = vsel %vm5785, %v5708, 0
    %v5970 = vsel %vm5785, %v5709, 0
    %v5973 = vsel %vm5785, %v5710, 0
    %v5976 = vsel %vm5785, %v5711, 0
    %v5979 = vsel %vm5785, %v5712, 0
    %v5982 = vsel %vm5785, %v5713, 0
    %v5985 = vsel %vm5785, %v5714, 0
    %v5988 = vsel %vm5785, %v5715, 0
    %v5991 = vsel %vm5785, %v5716, 0
    %v5994 = vsel %vm5785, %v5717, 0
    %v5997 = vsel %vm5785, %v5718, 0
    %v6000 = vsel %vm5785, %v5719, 0
    %v6003 = vsel %vm5785, %v5720, 0
    %v6006 = vsel %vm5785, %v5721, 0
    %v6009 = vsel %vm5785, %v5722, 0
    %v6012 = vsel %vm5785, %v5723, 0
    %v6015 = vsel %vm5785, %v5724, 0
    %v6018 = vsel %vm5785, %v5725, 0
    %v6021 = vsel %vm5785, %v5726, 0
    %v6024 = vsel %vm5785, %v5727, 0
    %v6027 = vsel %vm5785, %v5728, 0
    %v6030 = vsel %vm5785, %v5729, 0
    %v6033 = vsel %vm5785, %v5730, 0
    %v6036 = vsel %vm5785, %v5731, 0
    %v6039 = vsel %vm5785, %v5732, 0
    %v6042 = vsel %vm5785, %v5733, 0
    %v6045 = vsel %vm5785, %v5734, 0
    %v6048 = vsel %vm5785, %v5735, 0
    %v6051 = vsel %vm5785, %v5736, 0
    %v6054 = vsel %vm5785, %v5737, 0
    %v6057 = vsel %vm5785, %v5738, 0
    %v6060 = vsel %vm5785, %v5739, 0
    %v6063 = vsel %vm5785, %v5740, 0
    %v6066 = vsel %vm5785, %v5741, 0
    %v6069 = vsel %vm5785, %v5742, 0
    %v6072 = vsel %vm5785, %v5743, 0
    %v6075 = vsel %vm5785, %v5744, 0
    %v6078 = vsel %vm5785, %v5745, 0
    %v6081 = vsel %vm5785, %v5746, 0
    %v6084 = vsel %vm5785, %v5747, 0
    %v6087 = vsel %vm5785, %v5748, 0
    %v6090 = vsel %vm5785, %v5749, 0
    %v6093 = vsel %vm5785, %v5750, 0
    %v6096 = vsel %vm5785, %v5751, 0
    %v6099 = vsel %vm5785, %v5752, 0
    %v6102 = vsel %vm5785, %v5753, 0
    %v6105 = vsel %vm5785, %v5754, 0
    %v6108 = vsel %vm5785, %v5755, 0
    %v6111 = vsel %vm5785, %v5756, 0
    %v6114 = vsel %vm5785, %v5757, 0
    %v6117 = vsel %vm5785, %v5758, 0
    %v6120 = vsel %vm5785, %v5759, 0
    %v6123 = vsel %vm5785, %v5760, 0
    %v6126 = vsel %vm5785, %v5761, 0
    %v6129 = vsel %vm5785, %v5762, 0
    %v6132 = vsel %vm5785, %v5763, 0
    %v6135 = vsel %vm5785, %v5764, 0
    %v6138 = vsel %vm5785, %v5765, 0
    %v6141 = vsel %vm5785, %v5766, 0
    %v6144 = vsel %vm5785, %v5767, 0
    %v6147 = vsel %vm5785, %v5768, 0
    %v6150 = vsel %vm5785, %v5769, 0
    %v6153 = vsel %vm5785, %v5770, 0
    %v6156 = vsel %vm5785, %v5771, 0
    %v6159 = vsel %vm5785, %v5772, 0
    %v6162 = vsel %vm5785, %v5773, 0
    %v6165 = vsel %vm5785, %v5774, 0
    %v6168 = vsel %vm5785, %v5775, 0
    %6170 = vmatprep.subr.mxu0 0.0
    %6171 = vmatpush1.msra.mxu0 %v5776
    %6172 = vmatprep.subr.mxu0 0.0
    %6173 = vmatpush1.msra.mxu0 %v5777
    %6174 = vmatprep.subr.mxu0 0.0
    %6175 = vmatpush1.msra.mxu0 0.0
    %6176 = vmatprep.subr.mxu0 0.0
    %6177 = vmatpush1.msra.mxu0 0.0
    %6178 = vmatprep.subr.mxu0 0.0
    %6179 = vmatpush1.msra.mxu0 0.0
    %6180 = vmatprep.subr.mxu0 0.0
    %6181 = vmatpush1.msra.mxu0 0.0
    %6182 = vmatprep.subr.mxu0 0.0
    %6183 = vmatpush1.msra.mxu0 0.0
    %6184 = vmatprep.subr.mxu0 0.0
    %6185 = vmatpush1.msra.mxu0 0.0
    %6186 = vmatprep.subr.mxu0 0.0
    %6187 = vmatpush1.msra.mxu0 0.0
    %6188 = vmatprep.subr.mxu0 0.0
    %6189 = vmatpush1.msra.mxu0 0.0
    %6190 = vmatprep.subr.mxu0 0.0
    %6191 = vmatpush1.msra.mxu0 0.0
    %6192 = vmatprep.subr.mxu0 0.0
    %6193 = vmatpush1.msra.mxu0 0.0
    %6194 = vmatprep.subr.mxu0 0.0
    %6195 = vmatpush1.msra.mxu0 0.0
    %6196 = vmatprep.subr.mxu0 0.0
    %6197 = vmatpush1.msra.mxu0 0.0
    %6198 = vmatprep.subr.mxu0 0.0
    %6199 = vmatpush1.msra.mxu0 0.0
    %6200 = vmatprep.subr.mxu0 0.0
    %6201 = vmatpush1.msra.mxu0 0.0
    %6202 = vmatprep.subr.mxu0 0.0
    %6203 = vmatpush1.msra.mxu0 0.0
    %6204 = vmatprep.subr.mxu0 0.0
    %6205 = vmatpush1.msra.mxu0 0.0
    %6206 = vmatprep.subr.mxu0 0.0
    %6207 = vmatpush1.msra.mxu0 0.0
    %6208 = vmatprep.subr.mxu0 0.0
    %6209 = vmatpush1.msra.mxu0 0.0
    %6210 = vmatprep.subr.mxu0 0.0
    %6211 = vmatpush1.msra.mxu0 0.0
    %6212 = vmatprep.subr.mxu0 0.0
    %6213 = vmatpush1.msra.mxu0 0.0
    %6214 = vmatprep.subr.mxu0 0.0
    %6215 = vmatpush1.msra.mxu0 0.0
    %6216 = vmatprep.subr.mxu0 0.0
    %6217 = vmatpush1.msra.mxu0 0.0
    %6218 = vmatprep.subr.mxu0 0.0
    %6219 = vmatpush1.msra.mxu0 0.0
    %6220 = vmatprep.subr.mxu0 0.0
    %6221 = vmatpush1.msra.mxu0 0.0
    %6222 = vmatprep.subr.mxu0 0.0
    %6223 = vmatpush1.msra.mxu0 0.0
    %6224 = vmatprep.subr.mxu0 0.0
    %6225 = vmatpush1.msra.mxu0 0.0
    %6226 = vmatprep.subr.mxu0 0.0
    %6227 = vmatpush1.msra.mxu0 0.0
    %6228 = vmatprep.subr.mxu0 0.0
    %6229 = vmatpush1.msra.mxu0 0.0
    %6230 = vmatprep.subr.mxu0 0.0
    %6231 = vmatpush1.msra.mxu0 0.0
    %6232 = vmatprep.subr.mxu0 0.0
    %6233 = vmatpush1.msra.mxu0 0.0
    %6234 = vmatprep.mubr.f32.mxu0 0.0
    %6235 = vmatmul.mubr.f32.gmra.mrb[0].mxu0 %v5787
    %v6236 = vpop.f32.mrb[0].mxu0
    %v6237 = vadd.f32 %v5783, %v6236
    %v6238 = vpop.f32.mrb[0].mxu0
    %6239 = vmatprep.mubr.f32.mxu0 0.0
    %6240 = vmatmul.mubr.f32.gmra.mrb[0].mxu0 %v5790
    %v6241 = vpop.f32.mrb[0].mxu0
    %v6242 = vadd.f32 %v5783, %v6241
    %v6243 = vpop.f32.mrb[0].mxu0
    %6244 = vmatprep.mubr.f32.mxu0 0.0
    %6245 = vmatmul.mubr.f32.gmra.mrb[0].mxu0 %v5793
    %v6246 = vpop.f32.mrb[0].mxu0
    %v6247 = vadd.f32 %v5783, %v6246
    %v6248 = vpop.f32.mrb[0].mxu0
    %6249 = vmatprep.mubr.f32.mxu0 0.0
    %6250 = vmatmul.mubr.f32.gmra.mrb[0].mxu0 %v5796
    %v6251 = vpop.f32.mrb[0].mxu0
    %v6252 = vadd.f32 %v5783, %v6251
    %v6253 = vpop.f32.mrb[0].mxu0
    %6254 = vmatprep.mubr.f32.mxu0 0.0
    %6255 = vmatmul.mubr.f32.gmra.mrb[0].mxu0 %v5799
    %v6256 = vpop.f32.mrb[0].mxu0
    %v6257 = vadd.f32 %v5783, %v6256
    %v6258 = vpop.f32.mrb[0].mxu0
    %6259 = vmatprep.mubr.f32.mxu0 0.0
    %6260 = vmatmul.mubr.f32.gmra.mrb[0].mxu0 %v5802
    %v6261 = vpop.f32.mrb[0].mxu0
    %v6262 = vadd.f32 %v5783, %v6261
    %v6263 = vpop.f32.mrb[0].mxu0
    %6264 = vmatprep.mubr.f32.mxu0 0.0
    %6265 = vmatmul.mubr.f32.gmra.mrb[0].mxu0 %v5805
    %v6266 = vpop.f32.mrb[0].mxu0
    %v6267 = vadd.f32 %v5783, %v6266
    %v6268 = vpop.f32.mrb[0].mxu0
    %6269 = vmatprep.mubr.f32.mxu0 0.0
    %6270 = vmatmul.mubr.f32.gmra.mrb[0].mxu0 %v5808
    %v6271 = vpop.f32.mrb[0].mxu0
    %v6272 = vadd.f32 %v5783, %v6271
    %v6273 = vpop.f32.mrb[0].mxu0
    %6274 = vmatprep.mubr.f32.mxu0 0.0
    %6275 = vmatmul.mubr.f32.gmra.mrb[0].mxu0 %v5811
    %v6276 = vpop.f32.mrb[0].mxu0
    %v6277 = vadd.f32 %v5783, %v6276
    %v6278 = vpop.f32.mrb[0].mxu0
    %6279 = vmatprep.mubr.f32.mxu0 0.0
    %6280 = vmatmul.mubr.f32.gmra.mrb[0].mxu0 %v5814
    %v6281 = vpop.f32.mrb[0].mxu0
    %v6282 = vadd.f32 %v5783, %v6281
    %v6283 = vpop.f32.mrb[0].mxu0
    %6284 = vmatprep.mubr.f32.mxu0 0.0
    %6285 = vmatmul.mubr.f32.gmra.mrb[0].mxu0 %v5817
    %v6286 = vpop.f32.mrb[0].mxu0
    %v6287 = vadd.f32 %v5783, %v6286
    %v6288 = vpop.f32.mrb[0].mxu0
    %6289 = vmatprep.mubr.f32.mxu0 0.0
    %6290 = vmatmul.mubr.f32.gmra.mrb[0].mxu0 %v5820
    %v6291 = vpop.f32.mrb[0].mxu0
    %v6292 = vadd.f32 %v5783, %v6291
    %v6293 = vpop.f32.mrb[0].mxu0
    %6294 = vmatprep.mubr.f32.mxu0 0.0
    %6295 = vmatmul.mubr.f32.gmra.mrb[0].mxu0 %v5823
    %v6296 = vpop.f32.mrb[0].mxu0
    %v6297 = vadd.f32 %v5783, %v6296
    %v6298 = vpop.f32.mrb[0].mxu0
    %6299 = vmatprep.mubr.f32.mxu0 0.0
    %6300 = vmatmul.mubr.f32.gmra.mrb[0].mxu0 %v5826
    %v6301 = vpop.f32.mrb[0].mxu0
    %v6302 = vadd.f32 %v5783, %v6301
    %v6303 = vpop.f32.mrb[0].mxu0
    %6304 = vmatprep.mubr.f32.mxu0 0.0
    %6305 = vmatmul.mubr.f32.gmra.mrb[0].mxu0 %v5829
    %v6306 = vpop.f32.mrb[0].mxu0
    %v6307 = vadd.f32 %v5783, %v6306
    %v6308 = vpop.f32.mrb[0].mxu0
    %6309 = vmatprep.mubr.f32.mxu0 0.0
    %6310 = vmatmul.mubr.f32.gmra.mrb[0].mxu0 %v5832
    %v6311 = vpop.f32.mrb[0].mxu0
    %v6312 = vadd.f32 %v5783, %v6311
    %v6313 = vpop.f32.mrb[0].mxu0
    %6314 = vmatprep.mubr.f32.mxu0 0.0
    %6315 = vmatmul.mubr.f32.gmra.mrb[0].mxu0 %v5835
    %v6316 = vpop.f32.mrb[0].mxu0
    %v6317 = vadd.f32 %v5783, %v6316
    %v6318 = vpop.f32.mrb[0].mxu0
    %6319 = vmatprep.mubr.f32.mxu0 0.0
    %6320 = vmatmul.mubr.f32.gmra.mrb[0].mxu0 %v5838
    %v6321 = vpop.f32.mrb[0].mxu0
    %v6322 = vadd.f32 %v5783, %v6321
    %v6323 = vpop.f32.mrb[0].mxu0
    %6324 = vmatprep.mubr.f32.mxu0 0.0
    %6325 = vmatmul.mubr.f32.gmra.mrb[0].mxu0 %v5841
    %v6326 = vpop.f32.mrb[0].mxu0
    %v6327 = vadd.f32 %v5783, %v6326
    %v6328 = vpop.f32.mrb[0].mxu0
    %6329 = vmatprep.mubr.f32.mxu0 0.0
    %6330 = vmatmul.mubr.f32.gmra.mrb[0].mxu0 %v5844
    %v6331 = vpop.f32.mrb[0].mxu0
    %v6332 = vadd.f32 %v5783, %v6331
    %v6333 = vpop.f32.mrb[0].mxu0
    %6334 = vmatprep.mubr.f32.mxu0 0.0
    %6335 = vmatmul.mubr.f32.gmra.mrb[0].mxu0 %v5847
    %v6336 = vpop.f32.mrb[0].mxu0
    %v6337 = vadd.f32 %v5783, %v6336
    %v6338 = vpop.f32.mrb[0].mxu0
    %6339 = vmatprep.mubr.f32.mxu0 0.0
    %6340 = vmatmul.mubr.f32.gmra.mrb[0].mxu0 %v5850
    %v6341 = vpop.f32.mrb[0].mxu0
    %v6342 = vadd.f32 %v5783, %v6341
    %v6343 = vpop.f32.mrb[0].mxu0
    %6344 = vmatprep.mubr.f32.mxu0 0.0
    %6345 = vmatmul.mubr.f32.gmra.mrb[0].mxu0 %v5853
    %v6346 = vpop.f32.mrb[0].mxu0
    %v6347 = vadd.f32 %v5783, %v6346
    %v6348 = vpop.f32.mrb[0].mxu0
    %6349 = vmatprep.mubr.f32.mxu0 0.0
    %6350 = vmatmul.mubr.f32.gmra.mrb[0].mxu0 %v5856
    %v6351 = vpop.f32.mrb[0].mxu0
    %v6352 = vadd.f32 %v5783, %v6351
    %v6353 = vpop.f32.mrb[0].mxu0
    %6354 = vmatprep.mubr.f32.mxu0 0.0
    %6355 = vmatmul.mubr.f32.gmra.mrb[0].mxu0 %v5859
    %v6356 = vpop.f32.mrb[0].mxu0
    %v6357 = vadd.f32 %v5783, %v6356
    %v6358 = vpop.f32.mrb[0].mxu0
    %6359 = vmatprep.mubr.f32.mxu0 0.0
    %6360 = vmatmul.mubr.f32.gmra.mrb[0].mxu0 %v5862
    %v6361 = vpop.f32.mrb[0].mxu0
    %v6362 = vadd.f32 %v5783, %v6361
    %v6363 = vpop.f32.mrb[0].mxu0
    %6364 = vmatprep.mubr.f32.mxu0 0.0
    %6365 = vmatmul.mubr.f32.gmra.mrb[0].mxu0 %v5865
    %v6366 = vpop.f32.mrb[0].mxu0
    %v6367 = vadd.f32 %v5783, %v6366
    %v6368 = vpop.f32.mrb[0].mxu0
    %6369 = vmatprep.mubr.f32.mxu0 0.0
    %6370 = vmatmul.mubr.f32.gmra.mrb[0].mxu0 %v5868
    %v6371 = vpop.f32.mrb[0].mxu0
    %v6372 = vadd.f32 %v5783, %v6371
    %v6373 = vpop.f32.mrb[0].mxu0
    %6374 = vmatprep.mubr.f32.mxu0 0.0
    %6375 = vmatmul.mubr.f32.gmra.mrb[0].mxu0 %v5871
    %v6376 = vpop.f32.mrb[0].mxu0
    %v6377 = vadd.f32 %v5783, %v6376
    %v6378 = vpop.f32.mrb[0].mxu0
    %6379 = vmatprep.mubr.f32.mxu0 0.0
    %6380 = vmatmul.mubr.f32.gmra.mrb[0].mxu0 %v5874
    %v6381 = vpop.f32.mrb[0].mxu0
    %v6382 = vadd.f32 %v5783, %v6381
    %v6383 = vpop.f32.mrb[0].mxu0
    %6384 = vmatprep.mubr.f32.mxu0 0.0
    %6385 = vmatmul.mubr.f32.gmra.mrb[0].mxu0 %v5877
    %v6386 = vpop.f32.mrb[0].mxu0
    %v6387 = vadd.f32 %v5783, %v6386
    %v6388 = vpop.f32.mrb[0].mxu0
    %6389 = vmatprep.mubr.f32.mxu0 0.0
    %6390 = vmatmul.mubr.f32.gmra.mrb[0].mxu0 %v5880
    %v6391 = vpop.f32.mrb[0].mxu0
    %v6392 = vadd.f32 %v5783, %v6391
    %v6393 = vpop.f32.mrb[0].mxu0
    %6394 = vmatprep.mubr.f32.mxu0 0.0
    %6395 = vmatmul.mubr.f32.gmra.mrb[0].mxu0 %v5883
    %v6396 = vpop.f32.mrb[0].mxu0
    %v6397 = vadd.f32 %v5783, %v6396
    %v6398 = vpop.f32.mrb[0].mxu0
    %6399 = vmatprep.mubr.f32.mxu0 0.0
    %6400 = vmatmul.mubr.f32.gmra.mrb[0].mxu0 %v5886
    %v6401 = vpop.f32.mrb[0].mxu0
    %v6402 = vadd.f32 %v5783, %v6401
    %v6403 = vpop.f32.mrb[0].mxu0
    %6404 = vmatprep.mubr.f32.mxu0 0.0
    %6405 = vmatmul.mubr.f32.gmra.mrb[0].mxu0 %v5889
    %v6406 = vpop.f32.mrb[0].mxu0
    %v6407 = vadd.f32 %v5783, %v6406
    %v6408 = vpop.f32.mrb[0].mxu0
    %6409 = vmatprep.mubr.f32.mxu0 0.0
    %6410 = vmatmul.mubr.f32.gmra.mrb[0].mxu0 %v5892
    %v6411 = vpop.f32.mrb[0].mxu0
    %v6412 = vadd.f32 %v5783, %v6411
    %v6413 = vpop.f32.mrb[0].mxu0
    %6414 = vmatprep.mubr.f32.mxu0 0.0
    %6415 = vmatmul.mubr.f32.gmra.mrb[0].mxu0 %v5895
    %v6416 = vpop.f32.mrb[0].mxu0
    %v6417 = vadd.f32 %v5783, %v6416
    %v6418 = vpop.f32.mrb[0].mxu0
    %6419 = vmatprep.mubr.f32.mxu0 0.0
    %6420 = vmatmul.mubr.f32.gmra.mrb[0].mxu0 %v5898
    %v6421 = vpop.f32.mrb[0].mxu0
    %v6422 = vadd.f32 %v5783, %v6421
    %v6423 = vpop.f32.mrb[0].mxu0
    %6424 = vmatprep.mubr.f32.mxu0 0.0
    %6425 = vmatmul.mubr.f32.gmra.mrb[0].mxu0 %v5901
    %v6426 = vpop.f32.mrb[0].mxu0
    %v6427 = vadd.f32 %v5783, %v6426
    %v6428 = vpop.f32.mrb[0].mxu0
    %6429 = vmatprep.mubr.f32.mxu0 0.0
    %6430 = vmatmul.mubr.f32.gmra.mrb[0].mxu0 %v5904
    %v6431 = vpop.f32.mrb[0].mxu0
    %v6432 = vadd.f32 %v5783, %v6431
    %v6433 = vpop.f32.mrb[0].mxu0
    %6434 = vmatprep.mubr.f32.mxu0 0.0
    %6435 = vmatmul.mubr.f32.gmra.mrb[0].mxu0 %v5907
    %v6436 = vpop.f32.mrb[0].mxu0
    %v6437 = vadd.f32 %v5783, %v6436
    %v6438 = vpop.f32.mrb[0].mxu0
    %6439 = vmatprep.mubr.f32.mxu0 0.0
    %6440 = vmatmul.mubr.f32.gmra.mrb[0].mxu0 %v5910
    %v6441 = vpop.f32.mrb[0].mxu0
    %v6442 = vadd.f32 %v5783, %v6441
    %v6443 = vpop.f32.mrb[0].mxu0
    %6444 = vmatprep.mubr.f32.mxu0 0.0
    %6445 = vmatmul.mubr.f32.gmra.mrb[0].mxu0 %v5913
    %v6446 = vpop.f32.mrb[0].mxu0
    %v6447 = vadd.f32 %v5783, %v6446
    %v6448 = vpop.f32.mrb[0].mxu0
    %6449 = vmatprep.mubr.f32.mxu0 0.0
    %6450 = vmatmul.mubr.f32.gmra.mrb[0].mxu0 %v5916
    %v6451 = vpop.f32.mrb[0].mxu0
    %v6452 = vadd.f32 %v5783, %v6451
    %v6453 = vpop.f32.mrb[0].mxu0
    %6454 = vmatprep.mubr.f32.mxu0 0.0
    %6455 = vmatmul.mubr.f32.gmra.mrb[0].mxu0 %v5919
    %v6456 = vpop.f32.mrb[0].mxu0
    %v6457 = vadd.f32 %v5783, %v6456
    %v6458 = vpop.f32.mrb[0].mxu0
    %6459 = vmatprep.mubr.f32.mxu0 0.0
    %6460 = vmatmul.mubr.f32.gmra.mrb[0].mxu0 %v5922
    %v6461 = vpop.f32.mrb[0].mxu0
    %v6462 = vadd.f32 %v5783, %v6461
    %v6463 = vpop.f32.mrb[0].mxu0
    %6464 = vmatprep.mubr.f32.mxu0 0.0
    %6465 = vmatmul.mubr.f32.gmra.mrb[0].mxu0 %v5925
    %v6466 = vpop.f32.mrb[0].mxu0
    %v6467 = vadd.f32 %v5783, %v6466
    %v6468 = vpop.f32.mrb[0].mxu0
    %6469 = vmatprep.mubr.f32.mxu0 0.0
    %6470 = vmatmul.mubr.f32.gmra.mrb[0].mxu0 %v5928
    %v6471 = vpop.f32.mrb[0].mxu0
    %v6472 = vadd.f32 %v5783, %v6471
    %v6473 = vpop.f32.mrb[0].mxu0
    %6474 = vmatprep.mubr.f32.mxu0 0.0
    %6475 = vmatmul.mubr.f32.gmra.mrb[0].mxu0 %v5931
    %v6476 = vpop.f32.mrb[0].mxu0
    %v6477 = vadd.f32 %v5783, %v6476
    %v6478 = vpop.f32.mrb[0].mxu0
    %6479 = vmatprep.mubr.f32.mxu0 0.0
    %6480 = vmatmul.mubr.f32.gmra.mrb[0].mxu0 %v5934
    %v6481 = vpop.f32.mrb[0].mxu0
    %v6482 = vadd.f32 %v5783, %v6481
    %v6483 = vpop.f32.mrb[0].mxu0
    %6484 = vmatprep.mubr.f32.mxu0 0.0
    %6485 = vmatmul.mubr.f32.gmra.mrb[0].mxu0 %v5937
    %v6486 = vpop.f32.mrb[0].mxu0
    %v6487 = vadd.f32 %v5783, %v6486
    %v6488 = vpop.f32.mrb[0].mxu0
    %6489 = vmatprep.mubr.f32.mxu0 0.0
    %6490 = vmatmul.mubr.f32.gmra.mrb[0].mxu0 %v5940
    %v6491 = vpop.f32.mrb[0].mxu0
    %v6492 = vadd.f32 %v5783, %v6491
    %v6493 = vpop.f32.mrb[0].mxu0
    %6494 = vmatprep.mubr.f32.mxu0 0.0
    %6495 = vmatmul.mubr.f32.gmra.mrb[0].mxu0 %v5943
    %v6496 = vpop.f32.mrb[0].mxu0
    %v6497 = vadd.f32 %v5783, %v6496
    %v6498 = vpop.f32.mrb[0].mxu0
    %6499 = vmatprep.mubr.f32.mxu0 0.0
    %6500 = vmatmul.mubr.f32.gmra.mrb[0].mxu0 %v5946
    %v6501 = vpop.f32.mrb[0].mxu0
    %v6502 = vadd.f32 %v5783, %v6501
    %v6503 = vpop.f32.mrb[0].mxu0
    %6504 = vmatprep.mubr.f32.mxu0 0.0
    %6505 = vmatmul.mubr.f32.gmra.mrb[0].mxu0 %v5949
    %v6506 = vpop.f32.mrb[0].mxu0
    %v6507 = vadd.f32 %v5783, %v6506
    %v6508 = vpop.f32.mrb[0].mxu0
    %6509 = vmatprep.mubr.f32.mxu0 0.0
    %6510 = vmatmul.mubr.f32.gmra.mrb[0].mxu0 %v5952
    %v6511 = vpop.f32.mrb[0].mxu0
    %v6512 = vadd.f32 %v5783, %v6511
    %v6513 = vpop.f32.mrb[0].mxu0
    %6514 = vmatprep.mubr.f32.mxu0 0.0
    %6515 = vmatmul.mubr.f32.gmra.mrb[0].mxu0 %v5955
    %v6516 = vpop.f32.mrb[0].mxu0
    %v6517 = vadd.f32 %v5783, %v6516
    %v6518 = vpop.f32.mrb[0].mxu0
    %6519 = vmatprep.mubr.f32.mxu0 0.0
    %6520 = vmatmul.mubr.f32.gmra.mrb[0].mxu0 %v5958
    %v6521 = vpop.f32.mrb[0].mxu0
    %v6522 = vadd.f32 %v5783, %v6521
    %v6523 = vpop.f32.mrb[0].mxu0
    %6524 = vmatprep.mubr.f32.mxu0 0.0
    %6525 = vmatmul.mubr.f32.gmra.mrb[0].mxu0 %v5961
    %v6526 = vpop.f32.mrb[0].mxu0
    %v6527 = vadd.f32 %v5783, %v6526
    %v6528 = vpop.f32.mrb[0].mxu0
    %6529 = vmatprep.mubr.f32.mxu0 0.0
    %6530 = vmatmul.mubr.f32.gmra.mrb[0].mxu0 %v5964
    %v6531 = vpop.f32.mrb[0].mxu0
    %v6532 = vadd.f32 %v5783, %v6531
    %v6533 = vpop.f32.mrb[0].mxu0
    %6534 = vmatprep.mubr.f32.mxu0 0.0
    %6535 = vmatmul.mubr.f32.gmra.mrb[0].mxu0 %v5967
    %v6536 = vpop.f32.mrb[0].mxu0
    %v6537 = vadd.f32 %v5783, %v6536
    %v6538 = vpop.f32.mrb[0].mxu0
    %6539 = vmatprep.mubr.f32.mxu0 0.0
    %6540 = vmatmul.mubr.f32.gmra.mrb[0].mxu0 %v5970
    %v6541 = vpop.f32.mrb[0].mxu0
    %v6542 = vadd.f32 %v5783, %v6541
    %v6543 = vpop.f32.mrb[0].mxu0
    %6544 = vmatprep.mubr.f32.mxu0 0.0
    %6545 = vmatmul.mubr.f32.gmra.mrb[0].mxu0 %v5973
    %v6546 = vpop.f32.mrb[0].mxu0
    %v6547 = vadd.f32 %v5783, %v6546
    %v6548 = vpop.f32.mrb[0].mxu0
    %6549 = vmatprep.mubr.f32.mxu0 0.0
    %6550 = vmatmul.mubr.f32.gmra.mrb[0].mxu0 %v5976
    %v6551 = vpop.f32.mrb[0].mxu0
    %v6552 = vadd.f32 %v5783, %v6551
    %v6553 = vpop.f32.mrb[0].mxu0
    %6554 = vmatprep.mubr.f32.mxu0 0.0
    %6555 = vmatmul.mubr.f32.gmra.mrb[0].mxu0 %v5979
    %v6556 = vpop.f32.mrb[0].mxu0
    %v6557 = vadd.f32 %v5783, %v6556
    %v6558 = vpop.f32.mrb[0].mxu0
    %6559 = vmatprep.mubr.f32.mxu0 0.0
    %6560 = vmatmul.mubr.f32.gmra.mrb[0].mxu0 %v5982
    %v6561 = vpop.f32.mrb[0].mxu0
    %v6562 = vadd.f32 %v5783, %v6561
    %v6563 = vpop.f32.mrb[0].mxu0
    %6564 = vmatprep.mubr.f32.mxu0 0.0
    %6565 = vmatmul.mubr.f32.gmra.mrb[0].mxu0 %v5985
    %v6566 = vpop.f32.mrb[0].mxu0
    %v6567 = vadd.f32 %v5783, %v6566
    %v6568 = vpop.f32.mrb[0].mxu0
    %6569 = vmatprep.mubr.f32.mxu0 0.0
    %6570 = vmatmul.mubr.f32.gmra.mrb[0].mxu0 %v5988
    %v6571 = vpop.f32.mrb[0].mxu0
    %v6572 = vadd.f32 %v5783, %v6571
    %v6573 = vpop.f32.mrb[0].mxu0
    %6574 = vmatprep.mubr.f32.mxu0 0.0
    %6575 = vmatmul.mubr.f32.gmra.mrb[0].mxu0 %v5991
    %v6576 = vpop.f32.mrb[0].mxu0
    %v6577 = vadd.f32 %v5783, %v6576
    %v6578 = vpop.f32.mrb[0].mxu0
    %6579 = vmatprep.mubr.f32.mxu0 0.0
    %6580 = vmatmul.mubr.f32.gmra.mrb[0].mxu0 %v5994
    %v6581 = vpop.f32.mrb[0].mxu0
    %v6582 = vadd.f32 %v5783, %v6581
    %v6583 = vpop.f32.mrb[0].mxu0
    %6584 = vmatprep.mubr.f32.mxu0 0.0
    %6585 = vmatmul.mubr.f32.gmra.mrb[0].mxu0 %v5997
    %v6586 = vpop.f32.mrb[0].mxu0
    %v6587 = vadd.f32 %v5783, %v6586
    %v6588 = vpop.f32.mrb[0].mxu0
    %6589 = vmatprep.mubr.f32.mxu0 0.0
    %6590 = vmatmul.mubr.f32.gmra.mrb[0].mxu0 %v6000
    %v6591 = vpop.f32.mrb[0].mxu0
    %v6592 = vadd.f32 %v5783, %v6591
    %v6593 = vpop.f32.mrb[0].mxu0
    %6594 = vmatprep.mubr.f32.mxu0 0.0
    %6595 = vmatmul.mubr.f32.gmra.mrb[0].mxu0 %v6003
    %v6596 = vpop.f32.mrb[0].mxu0
    %v6597 = vadd.f32 %v5783, %v6596
    %v6598 = vpop.f32.mrb[0].mxu0
    %6599 = vmatprep.mubr.f32.mxu0 0.0
    %6600 = vmatmul.mubr.f32.gmra.mrb[0].mxu0 %v6006
    %v6601 = vpop.f32.mrb[0].mxu0
    %v6602 = vadd.f32 %v5783, %v6601
    %v6603 = vpop.f32.mrb[0].mxu0
    %6604 = vmatprep.mubr.f32.mxu0 0.0
    %6605 = vmatmul.mubr.f32.gmra.mrb[0].mxu0 %v6009
    %v6606 = vpop.f32.mrb[0].mxu0
    %v6607 = vadd.f32 %v5783, %v6606
    %v6608 = vpop.f32.mrb[0].mxu0
    %6609 = vmatprep.mubr.f32.mxu0 0.0
    %6610 = vmatmul.mubr.f32.gmra.mrb[0].mxu0 %v6012
    %v6611 = vpop.f32.mrb[0].mxu0
    %v6612 = vadd.f32 %v5783, %v6611
    %v6613 = vpop.f32.mrb[0].mxu0
    %6614 = vmatprep.mubr.f32.mxu0 0.0
    %6615 = vmatmul.mubr.f32.gmra.mrb[0].mxu0 %v6015
    %v6616 = vpop.f32.mrb[0].mxu0
    %v6617 = vadd.f32 %v5783, %v6616
    %v6618 = vpop.f32.mrb[0].mxu0
    %6619 = vmatprep.mubr.f32.mxu0 0.0
    %6620 = vmatmul.mubr.f32.gmra.mrb[0].mxu0 %v6018
    %v6621 = vpop.f32.mrb[0].mxu0
    %v6622 = vadd.f32 %v5783, %v6621
    %v6623 = vpop.f32.mrb[0].mxu0
    %6624 = vmatprep.mubr.f32.mxu0 0.0
    %6625 = vmatmul.mubr.f32.gmra.mrb[0].mxu0 %v6021
    %v6626 = vpop.f32.mrb[0].mxu0
    %v6627 = vadd.f32 %v5783, %v6626
    %v6628 = vpop.f32.mrb[0].mxu0
    %6629 = vmatprep.mubr.f32.mxu0 0.0
    %6630 = vmatmul.mubr.f32.gmra.mrb[0].mxu0 %v6024
    %v6631 = vpop.f32.mrb[0].mxu0
    %v6632 = vadd.f32 %v5783, %v6631
    %v6633 = vpop.f32.mrb[0].mxu0
    %6634 = vmatprep.mubr.f32.mxu0 0.0
    %6635 = vmatmul.mubr.f32.gmra.mrb[0].mxu0 %v6027
    %v6636 = vpop.f32.mrb[0].mxu0
    %v6637 = vadd.f32 %v5783, %v6636
    %v6638 = vpop.f32.mrb[0].mxu0
    %6639 = vmatprep.mubr.f32.mxu0 0.0
    %6640 = vmatmul.mubr.f32.gmra.mrb[0].mxu0 %v6030
    %v6641 = vpop.f32.mrb[0].mxu0
    %v6642 = vadd.f32 %v5783, %v6641
    %v6643 = vpop.f32.mrb[0].mxu0
    %6644 = vmatprep.mubr.f32.mxu0 0.0
    %6645 = vmatmul.mubr.f32.gmra.mrb[0].mxu0 %v6033
    %v6646 = vpop.f32.mrb[0].mxu0
    %v6647 = vadd.f32 %v5783, %v6646
    %v6648 = vpop.f32.mrb[0].mxu0
    %6649 = vmatprep.mubr.f32.mxu0 0.0
    %6650 = vmatmul.mubr.f32.gmra.mrb[0].mxu0 %v6036
    %v6651 = vpop.f32.mrb[0].mxu0
    %v6652 = vadd.f32 %v5783, %v6651
    %v6653 = vpop.f32.mrb[0].mxu0
    %6654 = vmatprep.mubr.f32.mxu0 0.0
    %6655 = vmatmul.mubr.f32.gmra.mrb[0].mxu0 %v6039
    %v6656 = vpop.f32.mrb[0].mxu0
    %v6657 = vadd.f32 %v5783, %v6656
    %v6658 = vpop.f32.mrb[0].mxu0
    %6659 = vmatprep.mubr.f32.mxu0 0.0
    %6660 = vmatmul.mubr.f32.gmra.mrb[0].mxu0 %v6042
    %v6661 = vpop.f32.mrb[0].mxu0
    %v6662 = vadd.f32 %v5783, %v6661
    %v6663 = vpop.f32.mrb[0].mxu0
    %6664 = vmatprep.mubr.f32.mxu0 0.0
    %6665 = vmatmul.mubr.f32.gmra.mrb[0].mxu0 %v6045
    %v6666 = vpop.f32.mrb[0].mxu0
    %v6667 = vadd.f32 %v5783, %v6666
    %v6668 = vpop.f32.mrb[0].mxu0
    %6669 = vmatprep.mubr.f32.mxu0 0.0
    %6670 = vmatmul.mubr.f32.gmra.mrb[0].mxu0 %v6048
    %v6671 = vpop.f32.mrb[0].mxu0
    %v6672 = vadd.f32 %v5783, %v6671
    %v6673 = vpop.f32.mrb[0].mxu0
    %6674 = vmatprep.mubr.f32.mxu0 0.0
    %6675 = vmatmul.mubr.f32.gmra.mrb[0].mxu0 %v6051
    %v6676 = vpop.f32.mrb[0].mxu0
    %v6677 = vadd.f32 %v5783, %v6676
    %v6678 = vpop.f32.mrb[0].mxu0
    %6679 = vmatprep.mubr.f32.mxu0 0.0
    %6680 = vmatmul.mubr.f32.gmra.mrb[0].mxu0 %v6054
    %v6681 = vpop.f32.mrb[0].mxu0
    %v6682 = vadd.f32 %v5783, %v6681
    %v6683 = vpop.f32.mrb[0].mxu0
    %6684 = vmatprep.mubr.f32.mxu0 0.0
    %6685 = vmatmul.mubr.f32.gmra.mrb[0].mxu0 %v6057
    %v6686 = vpop.f32.mrb[0].mxu0
    %v6687 = vadd.f32 %v5783, %v6686
    %v6688 = vpop.f32.mrb[0].mxu0
    %6689 = vmatprep.mubr.f32.mxu0 0.0
    %6690 = vmatmul.mubr.f32.gmra.mrb[0].mxu0 %v6060
    %v6691 = vpop.f32.mrb[0].mxu0
    %v6692 = vadd.f32 %v5783, %v6691
    %v6693 = vpop.f32.mrb[0].mxu0
    %6694 = vmatprep.mubr.f32.mxu0 0.0
    %6695 = vmatmul.mubr.f32.gmra.mrb[0].mxu0 %v6063
    %v6696 = vpop.f32.mrb[0].mxu0
    %v6697 = vadd.f32 %v5783, %v6696
    %v6698 = vpop.f32.mrb[0].mxu0
    %6699 = vmatprep.mubr.f32.mxu0 0.0
    %6700 = vmatmul.mubr.f32.gmra.mrb[0].mxu0 %v6066
    %v6701 = vpop.f32.mrb[0].mxu0
    %v6702 = vadd.f32 %v5783, %v6701
    %v6703 = vpop.f32.mrb[0].mxu0
    %6704 = vmatprep.mubr.f32.mxu0 0.0
    %6705 = vmatmul.mubr.f32.gmra.mrb[0].mxu0 %v6069
    %v6706 = vpop.f32.mrb[0].mxu0
    %v6707 = vadd.f32 %v5783, %v6706
    %v6708 = vpop.f32.mrb[0].mxu0
    %6709 = vmatprep.mubr.f32.mxu0 0.0
    %6710 = vmatmul.mubr.f32.gmra.mrb[0].mxu0 %v6072
    %v6711 = vpop.f32.mrb[0].mxu0
    %v6712 = vadd.f32 %v5783, %v6711
    %v6713 = vpop.f32.mrb[0].mxu0
    %6714 = vmatprep.mubr.f32.mxu0 0.0
    %6715 = vmatmul.mubr.f32.gmra.mrb[0].mxu0 %v6075
    %v6716 = vpop.f32.mrb[0].mxu0
    %v6717 = vadd.f32 %v5783, %v6716
    %v6718 = vpop.f32.mrb[0].mxu0
    %6719 = vmatprep.mubr.f32.mxu0 0.0
    %6720 = vmatmul.mubr.f32.gmra.mrb[0].mxu0 %v6078
    %v6721 = vpop.f32.mrb[0].mxu0
    %v6722 = vadd.f32 %v5783, %v6721
    %v6723 = vpop.f32.mrb[0].mxu0
    %6724 = vmatprep.mubr.f32.mxu0 0.0
    %6725 = vmatmul.mubr.f32.gmra.mrb[0].mxu0 %v6081
    %v6726 = vpop.f32.mrb[0].mxu0
    %v6727 = vadd.f32 %v5783, %v6726
    %v6728 = vpop.f32.mrb[0].mxu0
    %6729 = vmatprep.mubr.f32.mxu0 0.0
    %6730 = vmatmul.mubr.f32.gmra.mrb[0].mxu0 %v6084
    %v6731 = vpop.f32.mrb[0].mxu0
    %v6732 = vadd.f32 %v5783, %v6731
    %v6733 = vpop.f32.mrb[0].mxu0
    %6734 = vmatprep.mubr.f32.mxu0 0.0
    %6735 = vmatmul.mubr.f32.gmra.mrb[0].mxu0 %v6087
    %v6736 = vpop.f32.mrb[0].mxu0
    %v6737 = vadd.f32 %v5783, %v6736
    %v6738 = vpop.f32.mrb[0].mxu0
    %6739 = vmatprep.mubr.f32.mxu0 0.0
    %6740 = vmatmul.mubr.f32.gmra.mrb[0].mxu0 %v6090
    %v6741 = vpop.f32.mrb[0].mxu0
    %v6742 = vadd.f32 %v5783, %v6741
    %v6743 = vpop.f32.mrb[0].mxu0
    %6744 = vmatprep.mubr.f32.mxu0 0.0
    %6745 = vmatmul.mubr.f32.gmra.mrb[0].mxu0 %v6093
    %v6746 = vpop.f32.mrb[0].mxu0
    %v6747 = vadd.f32 %v5783, %v6746
    %v6748 = vpop.f32.mrb[0].mxu0
    %6749 = vmatprep.mubr.f32.mxu0 0.0
    %6750 = vmatmul.mubr.f32.gmra.mrb[0].mxu0 %v6096
    %v6751 = vpop.f32.mrb[0].mxu0
    %v6752 = vadd.f32 %v5783, %v6751
    %v6753 = vpop.f32.mrb[0].mxu0
    %6754 = vmatprep.mubr.f32.mxu0 0.0
    %6755 = vmatmul.mubr.f32.gmra.mrb[0].mxu0 %v6099
    %v6756 = vpop.f32.mrb[0].mxu0
    %v6757 = vadd.f32 %v5783, %v6756
    %v6758 = vpop.f32.mrb[0].mxu0
    %6759 = vmatprep.mubr.f32.mxu0 0.0
    %6760 = vmatmul.mubr.f32.gmra.mrb[0].mxu0 %v6102
    %v6761 = vpop.f32.mrb[0].mxu0
    %v6762 = vadd.f32 %v5783, %v6761
    %v6763 = vpop.f32.mrb[0].mxu0
    %6764 = vmatprep.mubr.f32.mxu0 0.0
    %6765 = vmatmul.mubr.f32.gmra.mrb[0].mxu0 %v6105
    %v6766 = vpop.f32.mrb[0].mxu0
    %v6767 = vadd.f32 %v5783, %v6766
    %v6768 = vpop.f32.mrb[0].mxu0
    %6769 = vmatprep.mubr.f32.mxu0 0.0
    %6770 = vmatmul.mubr.f32.gmra.mrb[0].mxu0 %v6108
    %v6771 = vpop.f32.mrb[0].mxu0
    %v6772 = vadd.f32 %v5783, %v6771
    %v6773 = vpop.f32.mrb[0].mxu0
    %6774 = vmatprep.mubr.f32.mxu0 0.0
    %6775 = vmatmul.mubr.f32.gmra.mrb[0].mxu0 %v6111
    %v6776 = vpop.f32.mrb[0].mxu0
    %v6777 = vadd.f32 %v5783, %v6776
    %v6778 = vpop.f32.mrb[0].mxu0
    %6779 = vmatprep.mubr.f32.mxu0 0.0
    %6780 = vmatmul.mubr.f32.gmra.mrb[0].mxu0 %v6114
    %v6781 = vpop.f32.mrb[0].mxu0
    %v6782 = vadd.f32 %v5783, %v6781
    %v6783 = vpop.f32.mrb[0].mxu0
    %6784 = vmatprep.mubr.f32.mxu0 0.0
    %6785 = vmatmul.mubr.f32.gmra.mrb[0].mxu0 %v6117
    %v6786 = vpop.f32.mrb[0].mxu0
    %v6787 = vadd.f32 %v5783, %v6786
    %v6788 = vpop.f32.mrb[0].mxu0
    %6789 = vmatprep.mubr.f32.mxu0 0.0
    %6790 = vmatmul.mubr.f32.gmra.mrb[0].mxu0 %v6120
    %v6791 = vpop.f32.mrb[0].mxu0
    %v6792 = vadd.f32 %v5783, %v6791
    %v6793 = vpop.f32.mrb[0].mxu0
    %6794 = vmatprep.mubr.f32.mxu0 0.0
    %6795 = vmatmul.mubr.f32.gmra.mrb[0].mxu0 %v6123
    %v6796 = vpop.f32.mrb[0].mxu0
    %v6797 = vadd.f32 %v5783, %v6796
    %v6798 = vpop.f32.mrb[0].mxu0
    %6799 = vmatprep.mubr.f32.mxu0 0.0
    %6800 = vmatmul.mubr.f32.gmra.mrb[0].mxu0 %v6126
    %v6801 = vpop.f32.mrb[0].mxu0
    %v6802 = vadd.f32 %v5783, %v6801
    %v6803 = vpop.f32.mrb[0].mxu0
    %6804 = vmatprep.mubr.f32.mxu0 0.0
    %6805 = vmatmul.mubr.f32.gmra.mrb[0].mxu0 %v6129
    %v6806 = vpop.f32.mrb[0].mxu0
    %v6807 = vadd.f32 %v5783, %v6806
    %v6808 = vpop.f32.mrb[0].mxu0
    %6809 = vmatprep.mubr.f32.mxu0 0.0
    %6810 = vmatmul.mubr.f32.gmra.mrb[0].mxu0 %v6132
    %v6811 = vpop.f32.mrb[0].mxu0
    %v6812 = vadd.f32 %v5783, %v6811
    %v6813 = vpop.f32.mrb[0].mxu0
    %6814 = vmatprep.mubr.f32.mxu0 0.0
    %6815 = vmatmul.mubr.f32.gmra.mrb[0].mxu0 %v6135
    %v6816 = vpop.f32.mrb[0].mxu0
    %v6817 = vadd.f32 %v5783, %v6816
    %v6818 = vpop.f32.mrb[0].mxu0
    %6819 = vmatprep.mubr.f32.mxu0 0.0
    %6820 = vmatmul.mubr.f32.gmra.mrb[0].mxu0 %v6138
    %v6821 = vpop.f32.mrb[0].mxu0
    %v6822 = vadd.f32 %v5783, %v6821
    %v6823 = vpop.f32.mrb[0].mxu0
    %6824 = vmatprep.mubr.f32.mxu0 0.0
    %6825 = vmatmul.mubr.f32.gmra.mrb[0].mxu0 %v6141
    %v6826 = vpop.f32.mrb[0].mxu0
    %v6827 = vadd.f32 %v5783, %v6826
    %v6828 = vpop.f32.mrb[0].mxu0
    %6829 = vmatprep.mubr.f32.mxu0 0.0
    %6830 = vmatmul.mubr.f32.gmra.mrb[0].mxu0 %v6144
    %v6831 = vpop.f32.mrb[0].mxu0
    %v6832 = vadd.f32 %v5783, %v6831
    %v6833 = vpop.f32.mrb[0].mxu0
    %6834 = vmatprep.mubr.f32.mxu0 0.0
    %6835 = vmatmul.mubr.f32.gmra.mrb[0].mxu0 %v6147
    %v6836 = vpop.f32.mrb[0].mxu0
    %v6837 = vadd.f32 %v5783, %v6836
    %v6838 = vpop.f32.mrb[0].mxu0
    %6839 = vmatprep.mubr.f32.mxu0 0.0
    %6840 = vmatmul.mubr.f32.gmra.mrb[0].mxu0 %v6150
    %v6841 = vpop.f32.mrb[0].mxu0
    %v6842 = vadd.f32 %v5783, %v6841
    %v6843 = vpop.f32.mrb[0].mxu0
    %6844 = vmatprep.mubr.f32.mxu0 0.0
    %6845 = vmatmul.mubr.f32.gmra.mrb[0].mxu0 %v6153
    %v6846 = vpop.f32.mrb[0].mxu0
    %v6847 = vadd.f32 %v5783, %v6846
    %v6848 = vpop.f32.mrb[0].mxu0
    %6849 = vmatprep.mubr.f32.mxu0 0.0
    %6850 = vmatmul.mubr.f32.gmra.mrb[0].mxu0 %v6156
    %v6851 = vpop.f32.mrb[0].mxu0
    %v6852 = vadd.f32 %v5783, %v6851
    %v6853 = vpop.f32.mrb[0].mxu0
    %6854 = vmatprep.mubr.f32.mxu0 0.0
    %6855 = vmatmul.mubr.f32.gmra.mrb[0].mxu0 %v6159
    %v6856 = vpop.f32.mrb[0].mxu0
    %v6857 = vadd.f32 %v5783, %v6856
    %v6858 = vpop.f32.mrb[0].mxu0
    %6859 = vmatprep.mubr.f32.mxu0 0.0
    %6860 = vmatmul.mubr.f32.gmra.mrb[0].mxu0 %v6162
    %v6861 = vpop.f32.mrb[0].mxu0
    %v6862 = vadd.f32 %v5783, %v6861
    %v6863 = vpop.f32.mrb[0].mxu0
    %6864 = vmatprep.mubr.f32.mxu0 0.0
    %6865 = vmatmul.mubr.f32.gmra.mrb[0].mxu0 %v6165
    %v6866 = vpop.f32.mrb[0].mxu0
    %v6867 = vadd.f32 %v5783, %v6866
    %v6868 = vpop.f32.mrb[0].mxu0
    %6869 = vmatprep.mubr.f32.mxu0 0.0
    %6870 = vmatmul.mubr.f32.gmra.mrb[0].mxu0 %v6168
    %v6871 = vpop.f32.mrb[0].mxu0
    %v6872 = vadd.f32 %v5783, %v6871
    %v6873 = vpop.f32.mrb[0].mxu0
    %6874 = vdwg.mxu0
    %v6875 = vadd.f32 %v2627, %v6237
    %v6876 = vadd.f32 %v2628, %v6242
    %v6877 = vadd.f32 %v2629, %v6247
    %v6878 = vadd.f32 %v2630, %v6252
    %v6879 = vadd.f32 %v2631, %v6257
    %v6880 = vadd.f32 %v2632, %v6262
    %v6881 = vadd.f32 %v2633, %v6267
    %v6882 = vadd.f32 %v2634, %v6272
    %v6883 = vadd.f32 %v2635, %v6277
    %v6884 = vadd.f32 %v2636, %v6282
    %v6885 = vadd.f32 %v2637, %v6287
    %v6886 = vadd.f32 %v2638, %v6292
    %v6887 = vadd.f32 %v2639, %v6297
    %v6888 = vadd.f32 %v2640, %v6302
    %v6889 = vadd.f32 %v2641, %v6307
    %v6890 = vadd.f32 %v2642, %v6312
    %v6891 = vadd.f32 %v2643, %v6317
    %v6892 = vadd.f32 %v2644, %v6322
    %v6893 = vadd.f32 %v2645, %v6327
    %v6894 = vadd.f32 %v2646, %v6332
    %v6895 = vadd.f32 %v2647, %v6337
    %v6896 = vadd.f32 %v2648, %v6342
    %v6897 = vadd.f32 %v2649, %v6347
    %v6898 = vadd.f32 %v2650, %v6352
    %v6899 = vadd.f32 %v2651, %v6357
    %v6900 = vadd.f32 %v2652, %v6362
    %v6901 = vadd.f32 %v2653, %v6367
    %v6902 = vadd.f32 %v2654, %v6372
    %v6903 = vadd.f32 %v2655, %v6377
    %v6904 = vadd.f32 %v2656, %v6382
    %v6905 = vadd.f32 %v2657, %v6387
    %v6906 = vadd.f32 %v2658, %v6392
    %v6907 = vadd.f32 %v2659, %v6397
    %v6908 = vadd.f32 %v2660, %v6402
    %v6909 = vadd.f32 %v2661, %v6407
    %v6910 = vadd.f32 %v2662, %v6412
    %v6911 = vadd.f32 %v2663, %v6417
    %v6912 = vadd.f32 %v2664, %v6422
    %v6913 = vadd.f32 %v2665, %v6427
    %v6914 = vadd.f32 %v2666, %v6432
    %v6915 = vadd.f32 %v2667, %v6437
    %v6916 = vadd.f32 %v2668, %v6442
    %v6917 = vadd.f32 %v2669, %v6447
    %v6918 = vadd.f32 %v2670, %v6452
    %v6919 = vadd.f32 %v2671, %v6457
    %v6920 = vadd.f32 %v2672, %v6462
    %v6921 = vadd.f32 %v2673, %v6467
    %v6922 = vadd.f32 %v2674, %v6472
    %v6923 = vadd.f32 %v2675, %v6477
    %v6924 = vadd.f32 %v2676, %v6482
    %v6925 = vadd.f32 %v2677, %v6487
    %v6926 = vadd.f32 %v2678, %v6492
    %v6927 = vadd.f32 %v2679, %v6497
    %v6928 = vadd.f32 %v2680, %v6502
    %v6929 = vadd.f32 %v2681, %v6507
    %v6930 = vadd.f32 %v2682, %v6512
    %v6931 = vadd.f32 %v2683, %v6517
    %v6932 = vadd.f32 %v2684, %v6522
    %v6933 = vadd.f32 %v2685, %v6527
    %v6934 = vadd.f32 %v2686, %v6532
    %v6935 = vadd.f32 %v2687, %v6537
    %v6936 = vadd.f32 %v2688, %v6542
    %v6937 = vadd.f32 %v2689, %v6547
    %v6938 = vadd.f32 %v2690, %v6552
    %v6939 = vadd.f32 %v2691, %v6557
    %v6940 = vadd.f32 %v2692, %v6562
    %v6941 = vadd.f32 %v2693, %v6567
    %v6942 = vadd.f32 %v2694, %v6572
    %v6943 = vadd.f32 %v2695, %v6577
    %v6944 = vadd.f32 %v2696, %v6582
    %v6945 = vadd.f32 %v2697, %v6587
    %v6946 = vadd.f32 %v2698, %v6592
    %v6947 = vadd.f32 %v2699, %v6597
    %v6948 = vadd.f32 %v2700, %v6602
    %v6949 = vadd.f32 %v2701, %v6607
    %v6950 = vadd.f32 %v2702, %v6612
    %v6951 = vadd.f32 %v2703, %v6617
    %v6952 = vadd.f32 %v2704, %v6622
    %v6953 = vadd.f32 %v2705, %v6627
    %v6954 = vadd.f32 %v2706, %v6632
    %v6955 = vadd.f32 %v2707, %v6637
    %v6956 = vadd.f32 %v2708, %v6642
    %v6957 = vadd.f32 %v2709, %v6647
    %v6958 = vadd.f32 %v2710, %v6652
    %v6959 = vadd.f32 %v2711, %v6657
    %v6960 = vadd.f32 %v2712, %v6662
    %v6961 = vadd.f32 %v2713, %v6667
    %v6962 = vadd.f32 %v2714, %v6672
    %v6963 = vadd.f32 %v2715, %v6677
    %v6964 = vadd.f32 %v2716, %v6682
    %v6965 = vadd.f32 %v2717, %v6687
    %v6966 = vadd.f32 %v2718, %v6692
    %v6967 = vadd.f32 %v2719, %v6697
    %v6968 = vadd.f32 %v2720, %v6702
    %v6969 = vadd.f32 %v2721, %v6707
    %v6970 = vadd.f32 %v2722, %v6712
    %v6971 = vadd.f32 %v2723, %v6717
    %v6972 = vadd.f32 %v2724, %v6722
    %v6973 = vadd.f32 %v2725, %v6727
    %v6974 = vadd.f32 %v2726, %v6732
    %v6975 = vadd.f32 %v2727, %v6737
    %v6976 = vadd.f32 %v2728, %v6742
    %v6977 = vadd.f32 %v2729, %v6747
    %v6978 = vadd.f32 %v2730, %v6752
    %v6979 = vadd.f32 %v2731, %v6757
    %v6980 = vadd.f32 %v2732, %v6762
    %v6981 = vadd.f32 %v2733, %v6767
    %v6982 = vadd.f32 %v2734, %v6772
    %v6983 = vadd.f32 %v2735, %v6777
    %v6984 = vadd.f32 %v2736, %v6782
    %v6985 = vadd.f32 %v2737, %v6787
    %v6986 = vadd.f32 %v2738, %v6792
    %v6987 = vadd.f32 %v2739, %v6797
    %v6988 = vadd.f32 %v2740, %v6802
    %v6989 = vadd.f32 %v2741, %v6807
    %v6990 = vadd.f32 %v2742, %v6812
    %v6991 = vadd.f32 %v2743, %v6817
    %v6992 = vadd.f32 %v2744, %v6822
    %v6993 = vadd.f32 %v2745, %v6827
    %v6994 = vadd.f32 %v2746, %v6832
    %v6995 = vadd.f32 %v2747, %v6837
    %v6996 = vadd.f32 %v2748, %v6842
    %v6997 = vadd.f32 %v2749, %v6847
    %v6998 = vadd.f32 %v2750, %v6852
    %v6999 = vadd.f32 %v2751, %v6857
    %v7000 = vadd.f32 %v2752, %v6862
    %v7001 = vadd.f32 %v2753, %v6867
    %v7002 = vadd.f32 %v2754, %v6872
    %7003 = vst.msk [vmem:[%s13] sm:$0xff] %vm69, %v6875
    %7004 = vst.msk [vmem:[%s13 + $0x8] sm:$0xff] %vm69, %v6876
    %7005 = vst.msk [vmem:[%s13 + $0x10] sm:$0xff] %vm69, %v6877
    %7006 = vst.msk [vmem:[%s13 + $0x18] sm:$0xff] %vm69, %v6878
    %7007 = vst.msk [vmem:[%s13 + $0x20] sm:$0xff] %vm69, %v6879
    %7008 = vst.msk [vmem:[%s13 + $0x28] sm:$0xff] %vm69, %v6880
    %7009 = vst.msk [vmem:[%s13 + $0x30] sm:$0xff] %vm69, %v6881
    %7010 = vst.msk [vmem:[%s13 + $0x38] sm:$0xff] %vm69, %v6882
    %7011 = vst.msk [vmem:[%s13 + $0x40] sm:$0xff] %vm69, %v6883
    %7012 = vst.msk [vmem:[%s13 + $0x48] sm:$0xff] %vm69, %v6884
    %7013 = vst.msk [vmem:[%s13 + $0x50] sm:$0xff] %vm69, %v6885
    %7014 = vst.msk [vmem:[%s13 + $0x58] sm:$0xff] %vm69, %v6886
    %7015 = vst.msk [vmem:[%s13 + $0x60] sm:$0xff] %vm69, %v6887
    %7016 = vst.msk [vmem:[%s13 + $0x68] sm:$0xff] %vm69, %v6888
    %7017 = vst.msk [vmem:[%s13 + $0x70] sm:$0xff] %vm69, %v6889
    %7018 = vst.msk [vmem:[%s13 + $0x78] sm:$0xff] %vm69, %v6890
    %7019 = vst.msk [vmem:[%s13 + $0x80] sm:$0xff] %vm69, %v6891
    %7020 = vst.msk [vmem:[%s13 + $0x88] sm:$0xff] %vm69, %v6892
    %7021 = vst.msk [vmem:[%s13 + $0x90] sm:$0xff] %vm69, %v6893
    %7022 = vst.msk [vmem:[%s13 + $0x98] sm:$0xff] %vm69, %v6894
    %7023 = vst.msk [vmem:[%s13 + $0xa0] sm:$0xff] %vm69, %v6895
    %7024 = vst.msk [vmem:[%s13 + $0xa8] sm:$0xff] %vm69, %v6896
    %7025 = vst.msk [vmem:[%s13 + $0xb0] sm:$0xff] %vm69, %v6897
    %7026 = vst.msk [vmem:[%s13 + $0xb8] sm:$0xff] %vm69, %v6898
    %7027 = vst.msk [vmem:[%s13 + $0xc0] sm:$0xff] %vm69, %v6899
    %7028 = vst.msk [vmem:[%s13 + $0xc8] sm:$0xff] %vm69, %v6900
    %7029 = vst.msk [vmem:[%s13 + $0xd0] sm:$0xff] %vm69, %v6901
    %7030 = vst.msk [vmem:[%s13 + $0xd8] sm:$0xff] %vm69, %v6902
    %7031 = vst.msk [vmem:[%s13 + $0xe0] sm:$0xff] %vm69, %v6903
    %7032 = vst.msk [vmem:[%s13 + $0xe8] sm:$0xff] %vm69, %v6904
    %7033 = vst.msk [vmem:[%s13 + $0xf0] sm:$0xff] %vm69, %v6905
    %7034 = vst.msk [vmem:[%s13 + $0xf8] sm:$0xff] %vm69, %v6906
    %7035 = vst.msk [vmem:[%s13 + $0x100] sm:$0xff] %vm69, %v6907
    %7036 = vst.msk [vmem:[%s13 + $0x108] sm:$0xff] %vm69, %v6908
    %7037 = vst.msk [vmem:[%s13 + $0x110] sm:$0xff] %vm69, %v6909
    %7038 = vst.msk [vmem:[%s13 + $0x118] sm:$0xff] %vm69, %v6910
    %7039 = vst.msk [vmem:[%s13 + $0x120] sm:$0xff] %vm69, %v6911
    %7040 = vst.msk [vmem:[%s13 + $0x128] sm:$0xff] %vm69, %v6912
    %7041 = vst.msk [vmem:[%s13 + $0x130] sm:$0xff] %vm69, %v6913
    %7042 = vst.msk [vmem:[%s13 + $0x138] sm:$0xff] %vm69, %v6914
    %7043 = vst.msk [vmem:[%s13 + $0x140] sm:$0xff] %vm69, %v6915
    %7044 = vst.msk [vmem:[%s13 + $0x148] sm:$0xff] %vm69, %v6916
    %7045 = vst.msk [vmem:[%s13 + $0x150] sm:$0xff] %vm69, %v6917
    %7046 = vst.msk [vmem:[%s13 + $0x158] sm:$0xff] %vm69, %v6918
    %7047 = vst.msk [vmem:[%s13 + $0x160] sm:$0xff] %vm69, %v6919
    %7048 = vst.msk [vmem:[%s13 + $0x168] sm:$0xff] %vm69, %v6920
    %7049 = vst.msk [vmem:[%s13 + $0x170] sm:$0xff] %vm69, %v6921
    %7050 = vst.msk [vmem:[%s13 + $0x178] sm:$0xff] %vm69, %v6922
    %7051 = vst.msk [vmem:[%s13 + $0x180] sm:$0xff] %vm69, %v6923
    %7052 = vst.msk [vmem:[%s13 + $0x188] sm:$0xff] %vm69, %v6924
    %7053 = vst.msk [vmem:[%s13 + $0x190] sm:$0xff] %vm69, %v6925
    %7054 = vst.msk [vmem:[%s13 + $0x198] sm:$0xff] %vm69, %v6926
    %7055 = vst.msk [vmem:[%s13 + $0x1a0] sm:$0xff] %vm69, %v6927
    %7056 = vst.msk [vmem:[%s13 + $0x1a8] sm:$0xff] %vm69, %v6928
    %7057 = vst.msk [vmem:[%s13 + $0x1b0] sm:$0xff] %vm69, %v6929
    %7058 = vst.msk [vmem:[%s13 + $0x1b8] sm:$0xff] %vm69, %v6930
    %7059 = vst.msk [vmem:[%s13 + $0x1c0] sm:$0xff] %vm69, %v6931
    %7060 = vst.msk [vmem:[%s13 + $0x1c8] sm:$0xff] %vm69, %v6932
    %7061 = vst.msk [vmem:[%s13 + $0x1d0] sm:$0xff] %vm69, %v6933
    %7062 = vst.msk [vmem:[%s13 + $0x1d8] sm:$0xff] %vm69, %v6934
    %7063 = vst.msk [vmem:[%s13 + $0x1e0] sm:$0xff] %vm69, %v6935
    %7064 = vst.msk [vmem:[%s13 + $0x1e8] sm:$0xff] %vm69, %v6936
    %7065 = vst.msk [vmem:[%s13 + $0x1f0] sm:$0xff] %vm69, %v6937
    %7066 = vst.msk [vmem:[%s13 + $0x1f8] sm:$0xff] %vm69, %v6938
    %7067 = vst.msk [vmem:[%s13 + $0x200] sm:$0xff] %vm69, %v6939
    %7068 = vst.msk [vmem:[%s13 + $0x208] sm:$0xff] %vm69, %v6940
    %7069 = vst.msk [vmem:[%s13 + $0x210] sm:$0xff] %vm69, %v6941
    %7070 = vst.msk [vmem:[%s13 + $0x218] sm:$0xff] %vm69, %v6942
    %7071 = vst.msk [vmem:[%s13 + $0x220] sm:$0xff] %vm69, %v6943
    %7072 = vst.msk [vmem:[%s13 + $0x228] sm:$0xff] %vm69, %v6944
    %7073 = vst.msk [vmem:[%s13 + $0x230] sm:$0xff] %vm69, %v6945
    %7074 = vst.msk [vmem:[%s13 + $0x238] sm:$0xff] %vm69, %v6946
    %7075 = vst.msk [vmem:[%s13 + $0x240] sm:$0xff] %vm69, %v6947
    %7076 = vst.msk [vmem:[%s13 + $0x248] sm:$0xff] %vm69, %v6948
    %7077 = vst.msk [vmem:[%s13 + $0x250] sm:$0xff] %vm69, %v6949
    %7078 = vst.msk [vmem:[%s13 + $0x258] sm:$0xff] %vm69, %v6950
    %7079 = vst.msk [vmem:[%s13 + $0x260] sm:$0xff] %vm69, %v6951
    %7080 = vst.msk [vmem:[%s13 + $0x268] sm:$0xff] %vm69, %v6952
    %7081 = vst.msk [vmem:[%s13 + $0x270] sm:$0xff] %vm69, %v6953
    %7082 = vst.msk [vmem:[%s13 + $0x278] sm:$0xff] %vm69, %v6954
    %7083 = vst.msk [vmem:[%s13 + $0x280] sm:$0xff] %vm69, %v6955
    %7084 = vst.msk [vmem:[%s13 + $0x288] sm:$0xff] %vm69, %v6956
    %7085 = vst.msk [vmem:[%s13 + $0x290] sm:$0xff] %vm69, %v6957
    %7086 = vst.msk [vmem:[%s13 + $0x298] sm:$0xff] %vm69, %v6958
    %7087 = vst.msk [vmem:[%s13 + $0x2a0] sm:$0xff] %vm69, %v6959
    %7088 = vst.msk [vmem:[%s13 + $0x2a8] sm:$0xff] %vm69, %v6960
    %7089 = vst.msk [vmem:[%s13 + $0x2b0] sm:$0xff] %vm69, %v6961
    %7090 = vst.msk [vmem:[%s13 + $0x2b8] sm:$0xff] %vm69, %v6962
    %7091 = vst.msk [vmem:[%s13 + $0x2c0] sm:$0xff] %vm69, %v6963
    %7092 = vst.msk [vmem:[%s13 + $0x2c8] sm:$0xff] %vm69, %v6964
    %7093 = vst.msk [vmem:[%s13 + $0x2d0] sm:$0xff] %vm69, %v6965
    %7094 = vst.msk [vmem:[%s13 + $0x2d8] sm:$0xff] %vm69, %v6966
    %7095 = vst.msk [vmem:[%s13 + $0x2e0] sm:$0xff] %vm69, %v6967
    %7096 = vst.msk [vmem:[%s13 + $0x2e8] sm:$0xff] %vm69, %v6968
    %7097 = vst.msk [vmem:[%s13 + $0x2f0] sm:$0xff] %vm69, %v6969
    %7098 = vst.msk [vmem:[%s13 + $0x2f8] sm:$0xff] %vm69, %v6970
    %7099 = vst.msk [vmem:[%s13 + $0x300] sm:$0xff] %vm69, %v6971
    %7100 = vst.msk [vmem:[%s13 + $0x308] sm:$0xff] %vm69, %v6972
    %7101 = vst.msk [vmem:[%s13 + $0x310] sm:$0xff] %vm69, %v6973
    %7102 = vst.msk [vmem:[%s13 + $0x318] sm:$0xff] %vm69, %v6974
    %7103 = vst.msk [vmem:[%s13 + $0x320] sm:$0xff] %vm69, %v6975
    %7104 = vst.msk [vmem:[%s13 + $0x328] sm:$0xff] %vm69, %v6976
    %7105 = vst.msk [vmem:[%s13 + $0x330] sm:$0xff] %vm69, %v6977
    %7106 = vst.msk [vmem:[%s13 + $0x338] sm:$0xff] %vm69, %v6978
    %7107 = vst.msk [vmem:[%s13 + $0x340] sm:$0xff] %vm69, %v6979
    %7108 = vst.msk [vmem:[%s13 + $0x348] sm:$0xff] %vm69, %v6980
    %7109 = vst.msk [vmem:[%s13 + $0x350] sm:$0xff] %vm69, %v6981
    %7110 = vst.msk [vmem:[%s13 + $0x358] sm:$0xff] %vm69, %v6982
    %7111 = vst.msk [vmem:[%s13 + $0x360] sm:$0xff] %vm69, %v6983
    %7112 = vst.msk [vmem:[%s13 + $0x368] sm:$0xff] %vm69, %v6984
    %7113 = vst.msk [vmem:[%s13 + $0x370] sm:$0xff] %vm69, %v6985
    %7114 = vst.msk [vmem:[%s13 + $0x378] sm:$0xff] %vm69, %v6986
    %7115 = vst.msk [vmem:[%s13 + $0x380] sm:$0xff] %vm69, %v6987
    %7116 = vst.msk [vmem:[%s13 + $0x388] sm:$0xff] %vm69, %v6988
    %7117 = vst.msk [vmem:[%s13 + $0x390] sm:$0xff] %vm69, %v6989
    %7118 = vst.msk [vmem:[%s13 + $0x398] sm:$0xff] %vm69, %v6990
    %7119 = vst.msk [vmem:[%s13 + $0x3a0] sm:$0xff] %vm69, %v6991
    %7120 = vst.msk [vmem:[%s13 + $0x3a8] sm:$0xff] %vm69, %v6992
    %7121 = vst.msk [vmem:[%s13 + $0x3b0] sm:$0xff] %vm69, %v6993
    %7122 = vst.msk [vmem:[%s13 + $0x3b8] sm:$0xff] %vm69, %v6994
    %7123 = vst.msk [vmem:[%s13 + $0x3c0] sm:$0xff] %vm69, %v6995
    %7124 = vst.msk [vmem:[%s13 + $0x3c8] sm:$0xff] %vm69, %v6996
    %7125 = vst.msk [vmem:[%s13 + $0x3d0] sm:$0xff] %vm69, %v6997
    %7126 = vst.msk [vmem:[%s13 + $0x3d8] sm:$0xff] %vm69, %v6998
    %7127 = vst.msk [vmem:[%s13 + $0x3e0] sm:$0xff] %vm69, %v6999
    %7128 = vst.msk [vmem:[%s13 + $0x3e8] sm:$0xff] %vm69, %v7000
    %7129 = vst.msk [vmem:[%s13 + $0x3f0] sm:$0xff] %vm69, %v7001
    %7130 = vst.msk [vmem:[%s13 + $0x3f8] sm:$0xff] %vm69, %v7002
    %v7131 = vld [vmem:[%s9] sm:$0xff]
    %v7132 = vld [vmem:[%s9 + $0x8] sm:$0xff]
    %v7133 = vld [vmem:[%s9 + $0x10] sm:$0xff]
    %v7134 = vld [vmem:[%s9 + $0x18] sm:$0xff]
    %v7135 = vld [vmem:[%s10] sm:$0x1]
    %v7137 = vlaneseq
    %v7138 = vshrl.u32 %v7137, 7
    %v7139 = vsub.s32 0, %v7138
    %v7140 = vrot.slane %v7135, %v7139
    %v7143 = vsel %vm69, %v6875, 0
    %v7146 = vsel %vm69, %v6876, 0
    %v7149 = vsel %vm69, %v6877, 0
    %v7152 = vsel %vm69, %v6878, 0
    %v7155 = vsel %vm69, %v6879, 0
    %v7158 = vsel %vm69, %v6880, 0
    %v7161 = vsel %vm69, %v6881, 0
    %v7164 = vsel %vm69, %v6882, 0
    %v7167 = vsel %vm69, %v6883, 0
    %v7170 = vsel %vm69, %v6884, 0
    %v7173 = vsel %vm69, %v6885, 0
    %v7176 = vsel %vm69, %v6886, 0
    %v7179 = vsel %vm69, %v6887, 0
    %v7182 = vsel %vm69, %v6888, 0
    %v7185 = vsel %vm69, %v6889, 0
    %v7188 = vsel %vm69, %v6890, 0
    %v7191 = vsel %vm69, %v6891, 0
    %v7194 = vsel %vm69, %v6892, 0
    %v7197 = vsel %vm69, %v6893, 0
    %v7200 = vsel %vm69, %v6894, 0
    %v7203 = vsel %vm69, %v6895, 0
    %v7206 = vsel %vm69, %v6896, 0
    %v7209 = vsel %vm69, %v6897, 0
    %v7212 = vsel %vm69, %v6898, 0
    %v7215 = vsel %vm69, %v6899, 0
    %v7218 = vsel %vm69, %v6900, 0
    %v7221 = vsel %vm69, %v6901, 0
    %v7224 = vsel %vm69, %v6902, 0
    %v7227 = vsel %vm69, %v6903, 0
    %v7230 = vsel %vm69, %v6904, 0
    %v7233 = vsel %vm69, %v6905, 0
    %v7236 = vsel %vm69, %v6906, 0
    %v7239 = vsel %vm69, %v6907, 0
    %v7242 = vsel %vm69, %v6908, 0
    %v7245 = vsel %vm69, %v6909, 0
    %v7248 = vsel %vm69, %v6910, 0
    %v7251 = vsel %vm69, %v6911, 0
    %v7254 = vsel %vm69, %v6912, 0
    %v7257 = vsel %vm69, %v6913, 0
    %v7260 = vsel %vm69, %v6914, 0
    %v7263 = vsel %vm69, %v6915, 0
    %v7266 = vsel %vm69, %v6916, 0
    %v7269 = vsel %vm69, %v6917, 0
    %v7272 = vsel %vm69, %v6918, 0
    %v7275 = vsel %vm69, %v6919, 0
    %v7278 = vsel %vm69, %v6920, 0
    %v7281 = vsel %vm69, %v6921, 0
    %v7284 = vsel %vm69, %v6922, 0
    %v7287 = vsel %vm69, %v6923, 0
    %v7290 = vsel %vm69, %v6924, 0
    %v7293 = vsel %vm69, %v6925, 0
    %v7296 = vsel %vm69, %v6926, 0
    %v7299 = vsel %vm69, %v6927, 0
    %v7302 = vsel %vm69, %v6928, 0
    %v7305 = vsel %vm69, %v6929, 0
    %v7308 = vsel %vm69, %v6930, 0
    %v7311 = vsel %vm69, %v6931, 0
    %v7314 = vsel %vm69, %v6932, 0
    %v7317 = vsel %vm69, %v6933, 0
    %v7320 = vsel %vm69, %v6934, 0
    %v7323 = vsel %vm69, %v6935, 0
    %v7326 = vsel %vm69, %v6936, 0
    %v7329 = vsel %vm69, %v6937, 0
    %v7332 = vsel %vm69, %v6938, 0
    %v7335 = vsel %vm69, %v6939, 0
    %v7338 = vsel %vm69, %v6940, 0
    %v7341 = vsel %vm69, %v6941, 0
    %v7344 = vsel %vm69, %v6942, 0
    %v7347 = vsel %vm69, %v6943, 0
    %v7350 = vsel %vm69, %v6944, 0
    %v7353 = vsel %vm69, %v6945, 0
    %v7356 = vsel %vm69, %v6946, 0
    %v7359 = vsel %vm69, %v6947, 0
    %v7362 = vsel %vm69, %v6948, 0
    %v7365 = vsel %vm69, %v6949, 0
    %v7368 = vsel %vm69, %v6950, 0
    %v7371 = vsel %vm69, %v6951, 0
    %v7374 = vsel %vm69, %v6952, 0
    %v7377 = vsel %vm69, %v6953, 0
    %v7380 = vsel %vm69, %v6954, 0
    %v7383 = vsel %vm69, %v6955, 0
    %v7386 = vsel %vm69, %v6956, 0
    %v7389 = vsel %vm69, %v6957, 0
    %v7392 = vsel %vm69, %v6958, 0
    %v7395 = vsel %vm69, %v6959, 0
    %v7398 = vsel %vm69, %v6960, 0
    %v7401 = vsel %vm69, %v6961, 0
    %v7404 = vsel %vm69, %v6962, 0
    %v7407 = vsel %vm69, %v6963, 0
    %v7410 = vsel %vm69, %v6964, 0
    %v7413 = vsel %vm69, %v6965, 0
    %v7416 = vsel %vm69, %v6966, 0
    %v7419 = vsel %vm69, %v6967, 0
    %v7422 = vsel %vm69, %v6968, 0
    %v7425 = vsel %vm69, %v6969, 0
    %v7428 = vsel %vm69, %v6970, 0
    %v7431 = vsel %vm69, %v6971, 0
    %v7434 = vsel %vm69, %v6972, 0
    %v7437 = vsel %vm69, %v6973, 0
    %v7440 = vsel %vm69, %v6974, 0
    %v7443 = vsel %vm69, %v6975, 0
    %v7446 = vsel %vm69, %v6976, 0
    %v7449 = vsel %vm69, %v6977, 0
    %v7452 = vsel %vm69, %v6978, 0
    %v7455 = vsel %vm69, %v6979, 0
    %v7458 = vsel %vm69, %v6980, 0
    %v7461 = vsel %vm69, %v6981, 0
    %v7464 = vsel %vm69, %v6982, 0
    %v7467 = vsel %vm69, %v6983, 0
    %v7470 = vsel %vm69, %v6984, 0
    %v7473 = vsel %vm69, %v6985, 0
    %v7476 = vsel %vm69, %v6986, 0
    %v7479 = vsel %vm69, %v6987, 0
    %v7482 = vsel %vm69, %v6988, 0
    %v7485 = vsel %vm69, %v6989, 0
    %v7488 = vsel %vm69, %v6990, 0
    %v7491 = vsel %vm69, %v6991, 0
    %v7494 = vsel %vm69, %v6992, 0
    %v7497 = vsel %vm69, %v6993, 0
    %v7500 = vsel %vm69, %v6994, 0
    %v7503 = vsel %vm69, %v6995, 0
    %v7506 = vsel %vm69, %v6996, 0
    %v7509 = vsel %vm69, %v6997, 0
    %v7512 = vsel %vm69, %v6998, 0
    %v7515 = vsel %vm69, %v6999, 0
    %v7518 = vsel %vm69, %v7000, 0
    %v7521 = vsel %vm69, %v7001, 0
    %v7524 = vsel %vm69, %v7002, 0
    %7526 = vmatprep.subr.mxu0 0.0
    %7527 = vmatpush1.msra.mxu0 %v7131
    %7528 = vmatprep.subr.mxu0 0.0
    %7529 = vmatpush1.msra.mxu0 %v7132
    %7530 = vmatprep.subr.mxu0 0.0
    %7531 = vmatpush1.msra.mxu0 %v7133
    %7532 = vmatprep.subr.mxu0 0.0
    %7533 = vmatpush1.msra.mxu0 %v7134
    %7534 = vmatprep.subr.mxu0 0.0
    %7535 = vmatpush1.msra.mxu0 0.0
    %7536 = vmatprep.subr.mxu0 0.0
    %7537 = vmatpush1.msra.mxu0 0.0
    %7538 = vmatprep.subr.mxu0 0.0
    %7539 = vmatpush1.msra.mxu0 0.0
    %7540 = vmatprep.subr.mxu0 0.0
    %7541 = vmatpush1.msra.mxu0 0.0
    %7542 = vmatprep.subr.mxu0 0.0
    %7543 = vmatpush1.msra.mxu0 0.0
    %7544 = vmatprep.subr.mxu0 0.0
    %7545 = vmatpush1.msra.mxu0 0.0
    %7546 = vmatprep.subr.mxu0 0.0
    %7547 = vmatpush1.msra.mxu0 0.0
    %7548 = vmatprep.subr.mxu0 0.0
    %7549 = vmatpush1.msra.mxu0 0.0
    %7550 = vmatprep.subr.mxu0 0.0
    %7551 = vmatpush1.msra.mxu0 0.0
    %7552 = vmatprep.subr.mxu0 0.0
    %7553 = vmatpush1.msra.mxu0 0.0
    %7554 = vmatprep.subr.mxu0 0.0
    %7555 = vmatpush1.msra.mxu0 0.0
    %7556 = vmatprep.subr.mxu0 0.0
    %7557 = vmatpush1.msra.mxu0 0.0
    %7558 = vmatprep.subr.mxu0 0.0
    %7559 = vmatpush1.msra.mxu0 0.0
    %7560 = vmatprep.subr.mxu0 0.0
    %7561 = vmatpush1.msra.mxu0 0.0
    %7562 = vmatprep.subr.mxu0 0.0
    %7563 = vmatpush1.msra.mxu0 0.0
    %7564 = vmatprep.subr.mxu0 0.0
    %7565 = vmatpush1.msra.mxu0 0.0
    %7566 = vmatprep.subr.mxu0 0.0
    %7567 = vmatpush1.msra.mxu0 0.0
    %7568 = vmatprep.subr.mxu0 0.0
    %7569 = vmatpush1.msra.mxu0 0.0
    %7570 = vmatprep.subr.mxu0 0.0
    %7571 = vmatpush1.msra.mxu0 0.0
    %7572 = vmatprep.subr.mxu0 0.0
    %7573 = vmatpush1.msra.mxu0 0.0
    %7574 = vmatprep.subr.mxu0 0.0
    %7575 = vmatpush1.msra.mxu0 0.0
    %7576 = vmatprep.subr.mxu0 0.0
    %7577 = vmatpush1.msra.mxu0 0.0
    %7578 = vmatprep.subr.mxu0 0.0
    %7579 = vmatpush1.msra.mxu0 0.0
    %7580 = vmatprep.subr.mxu0 0.0
    %7581 = vmatpush1.msra.mxu0 0.0
    %7582 = vmatprep.subr.mxu0 0.0
    %7583 = vmatpush1.msra.mxu0 0.0
    %7584 = vmatprep.subr.mxu0 0.0
    %7585 = vmatpush1.msra.mxu0 0.0
    %7586 = vmatprep.subr.mxu0 0.0
    %7587 = vmatpush1.msra.mxu0 0.0
    %7588 = vmatprep.subr.mxu0 0.0
    %7589 = vmatpush1.msra.mxu0 0.0
    %7590 = vmatprep.mubr.f32.mxu0 0.0
    %7591 = vmatmul.mubr.f32.gmra.mrb[0].mxu0 %v7143
    %v7592 = vpop.f32.mrb[0].mxu0
    %v7593 = vadd.f32 %v7140, %v7592
    %v7594 = vpop.f32.mrb[0].mxu0
    %7595 = vmatprep.mubr.f32.mxu0 0.0
    %7596 = vmatmul.mubr.f32.gmra.mrb[0].mxu0 %v7146
    %v7597 = vpop.f32.mrb[0].mxu0
    %v7598 = vadd.f32 %v7140, %v7597
    %v7599 = vpop.f32.mrb[0].mxu0
    %7600 = vmatprep.mubr.f32.mxu0 0.0
    %7601 = vmatmul.mubr.f32.gmra.mrb[0].mxu0 %v7149
    %v7602 = vpop.f32.mrb[0].mxu0
    %v7603 = vadd.f32 %v7140, %v7602
    %v7604 = vpop.f32.mrb[0].mxu0
    %7605 = vmatprep.mubr.f32.mxu0 0.0
    %7606 = vmatmul.mubr.f32.gmra.mrb[0].mxu0 %v7152
    %v7607 = vpop.f32.mrb[0].mxu0
    %v7608 = vadd.f32 %v7140, %v7607
    %v7609 = vpop.f32.mrb[0].mxu0
    %7610 = vmatprep.mubr.f32.mxu0 0.0
    %7611 = vmatmul.mubr.f32.gmra.mrb[0].mxu0 %v7155
    %v7612 = vpop.f32.mrb[0].mxu0
    %v7613 = vadd.f32 %v7140, %v7612
    %v7614 = vpop.f32.mrb[0].mxu0
    %7615 = vmatprep.mubr.f32.mxu0 0.0
    %7616 = vmatmul.mubr.f32.gmra.mrb[0].mxu0 %v7158
    %v7617 = vpop.f32.mrb[0].mxu0
    %v7618 = vadd.f32 %v7140, %v7617
    %v7619 = vpop.f32.mrb[0].mxu0
    %7620 = vmatprep.mubr.f32.mxu0 0.0
    %7621 = vmatmul.mubr.f32.gmra.mrb[0].mxu0 %v7161
    %v7622 = vpop.f32.mrb[0].mxu0
    %v7623 = vadd.f32 %v7140, %v7622
    %v7624 = vpop.f32.mrb[0].mxu0
    %7625 = vmatprep.mubr.f32.mxu0 0.0
    %7626 = vmatmul.mubr.f32.gmra.mrb[0].mxu0 %v7164
    %v7627 = vpop.f32.mrb[0].mxu0
    %v7628 = vadd.f32 %v7140, %v7627
    %v7629 = vpop.f32.mrb[0].mxu0
    %7630 = vmatprep.mubr.f32.mxu0 0.0
    %7631 = vmatmul.mubr.f32.gmra.mrb[0].mxu0 %v7167
    %v7632 = vpop.f32.mrb[0].mxu0
    %v7633 = vadd.f32 %v7140, %v7632
    %v7634 = vpop.f32.mrb[0].mxu0
    %7635 = vmatprep.mubr.f32.mxu0 0.0
    %7636 = vmatmul.mubr.f32.gmra.mrb[0].mxu0 %v7170
    %v7637 = vpop.f32.mrb[0].mxu0
    %v7638 = vadd.f32 %v7140, %v7637
    %v7639 = vpop.f32.mrb[0].mxu0
    %7640 = vmatprep.mubr.f32.mxu0 0.0
    %7641 = vmatmul.mubr.f32.gmra.mrb[0].mxu0 %v7173
    %v7642 = vpop.f32.mrb[0].mxu0
    %v7643 = vadd.f32 %v7140, %v7642
    %v7644 = vpop.f32.mrb[0].mxu0
    %7645 = vmatprep.mubr.f32.mxu0 0.0
    %7646 = vmatmul.mubr.f32.gmra.mrb[0].mxu0 %v7176
    %v7647 = vpop.f32.mrb[0].mxu0
    %v7648 = vadd.f32 %v7140, %v7647
    %v7649 = vpop.f32.mrb[0].mxu0
    %7650 = vmatprep.mubr.f32.mxu0 0.0
    %7651 = vmatmul.mubr.f32.gmra.mrb[0].mxu0 %v7179
    %v7652 = vpop.f32.mrb[0].mxu0
    %v7653 = vadd.f32 %v7140, %v7652
    %v7654 = vpop.f32.mrb[0].mxu0
    %7655 = vmatprep.mubr.f32.mxu0 0.0
    %7656 = vmatmul.mubr.f32.gmra.mrb[0].mxu0 %v7182
    %v7657 = vpop.f32.mrb[0].mxu0
    %v7658 = vadd.f32 %v7140, %v7657
    %v7659 = vpop.f32.mrb[0].mxu0
    %7660 = vmatprep.mubr.f32.mxu0 0.0
    %7661 = vmatmul.mubr.f32.gmra.mrb[0].mxu0 %v7185
    %v7662 = vpop.f32.mrb[0].mxu0
    %v7663 = vadd.f32 %v7140, %v7662
    %v7664 = vpop.f32.mrb[0].mxu0
    %7665 = vmatprep.mubr.f32.mxu0 0.0
    %7666 = vmatmul.mubr.f32.gmra.mrb[0].mxu0 %v7188
    %v7667 = vpop.f32.mrb[0].mxu0
    %v7668 = vadd.f32 %v7140, %v7667
    %v7669 = vpop.f32.mrb[0].mxu0
    %7670 = vmatprep.mubr.f32.mxu0 0.0
    %7671 = vmatmul.mubr.f32.gmra.mrb[0].mxu0 %v7191
    %v7672 = vpop.f32.mrb[0].mxu0
    %v7673 = vadd.f32 %v7140, %v7672
    %v7674 = vpop.f32.mrb[0].mxu0
    %7675 = vmatprep.mubr.f32.mxu0 0.0
    %7676 = vmatmul.mubr.f32.gmra.mrb[0].mxu0 %v7194
    %v7677 = vpop.f32.mrb[0].mxu0
    %v7678 = vadd.f32 %v7140, %v7677
    %v7679 = vpop.f32.mrb[0].mxu0
    %7680 = vmatprep.mubr.f32.mxu0 0.0
    %7681 = vmatmul.mubr.f32.gmra.mrb[0].mxu0 %v7197
    %v7682 = vpop.f32.mrb[0].mxu0
    %v7683 = vadd.f32 %v7140, %v7682
    %v7684 = vpop.f32.mrb[0].mxu0
    %7685 = vmatprep.mubr.f32.mxu0 0.0
    %7686 = vmatmul.mubr.f32.gmra.mrb[0].mxu0 %v7200
    %v7687 = vpop.f32.mrb[0].mxu0
    %v7688 = vadd.f32 %v7140, %v7687
    %v7689 = vpop.f32.mrb[0].mxu0
    %7690 = vmatprep.mubr.f32.mxu0 0.0
    %7691 = vmatmul.mubr.f32.gmra.mrb[0].mxu0 %v7203
    %v7692 = vpop.f32.mrb[0].mxu0
    %v7693 = vadd.f32 %v7140, %v7692
    %v7694 = vpop.f32.mrb[0].mxu0
    %7695 = vmatprep.mubr.f32.mxu0 0.0
    %7696 = vmatmul.mubr.f32.gmra.mrb[0].mxu0 %v7206
    %v7697 = vpop.f32.mrb[0].mxu0
    %v7698 = vadd.f32 %v7140, %v7697
    %v7699 = vpop.f32.mrb[0].mxu0
    %7700 = vmatprep.mubr.f32.mxu0 0.0
    %7701 = vmatmul.mubr.f32.gmra.mrb[0].mxu0 %v7209
    %v7702 = vpop.f32.mrb[0].mxu0
    %v7703 = vadd.f32 %v7140, %v7702
    %v7704 = vpop.f32.mrb[0].mxu0
    %7705 = vmatprep.mubr.f32.mxu0 0.0
    %7706 = vmatmul.mubr.f32.gmra.mrb[0].mxu0 %v7212
    %v7707 = vpop.f32.mrb[0].mxu0
    %v7708 = vadd.f32 %v7140, %v7707
    %v7709 = vpop.f32.mrb[0].mxu0
    %7710 = vmatprep.mubr.f32.mxu0 0.0
    %7711 = vmatmul.mubr.f32.gmra.mrb[0].mxu0 %v7215
    %v7712 = vpop.f32.mrb[0].mxu0
    %v7713 = vadd.f32 %v7140, %v7712
    %v7714 = vpop.f32.mrb[0].mxu0
    %7715 = vmatprep.mubr.f32.mxu0 0.0
    %7716 = vmatmul.mubr.f32.gmra.mrb[0].mxu0 %v7218
    %v7717 = vpop.f32.mrb[0].mxu0
    %v7718 = vadd.f32 %v7140, %v7717
    %v7719 = vpop.f32.mrb[0].mxu0
    %7720 = vmatprep.mubr.f32.mxu0 0.0
    %7721 = vmatmul.mubr.f32.gmra.mrb[0].mxu0 %v7221
    %v7722 = vpop.f32.mrb[0].mxu0
    %v7723 = vadd.f32 %v7140, %v7722
    %v7724 = vpop.f32.mrb[0].mxu0
    %7725 = vmatprep.mubr.f32.mxu0 0.0
    %7726 = vmatmul.mubr.f32.gmra.mrb[0].mxu0 %v7224
    %v7727 = vpop.f32.mrb[0].mxu0
    %v7728 = vadd.f32 %v7140, %v7727
    %v7729 = vpop.f32.mrb[0].mxu0
    %7730 = vmatprep.mubr.f32.mxu0 0.0
    %7731 = vmatmul.mubr.f32.gmra.mrb[0].mxu0 %v7227
    %v7732 = vpop.f32.mrb[0].mxu0
    %v7733 = vadd.f32 %v7140, %v7732
    %v7734 = vpop.f32.mrb[0].mxu0
    %7735 = vmatprep.mubr.f32.mxu0 0.0
    %7736 = vmatmul.mubr.f32.gmra.mrb[0].mxu0 %v7230
    %v7737 = vpop.f32.mrb[0].mxu0
    %v7738 = vadd.f32 %v7140, %v7737
    %v7739 = vpop.f32.mrb[0].mxu0
    %7740 = vmatprep.mubr.f32.mxu0 0.0
    %7741 = vmatmul.mubr.f32.gmra.mrb[0].mxu0 %v7233
    %v7742 = vpop.f32.mrb[0].mxu0
    %v7743 = vadd.f32 %v7140, %v7742
    %v7744 = vpop.f32.mrb[0].mxu0
    %7745 = vmatprep.mubr.f32.mxu0 0.0
    %7746 = vmatmul.mubr.f32.gmra.mrb[0].mxu0 %v7236
    %v7747 = vpop.f32.mrb[0].mxu0
    %v7748 = vadd.f32 %v7140, %v7747
    %v7749 = vpop.f32.mrb[0].mxu0
    %7750 = vmatprep.mubr.f32.mxu0 0.0
    %7751 = vmatmul.mubr.f32.gmra.mrb[0].mxu0 %v7239
    %v7752 = vpop.f32.mrb[0].mxu0
    %v7753 = vadd.f32 %v7140, %v7752
    %v7754 = vpop.f32.mrb[0].mxu0
    %7755 = vmatprep.mubr.f32.mxu0 0.0
    %7756 = vmatmul.mubr.f32.gmra.mrb[0].mxu0 %v7242
    %v7757 = vpop.f32.mrb[0].mxu0
    %v7758 = vadd.f32 %v7140, %v7757
    %v7759 = vpop.f32.mrb[0].mxu0
    %7760 = vmatprep.mubr.f32.mxu0 0.0
    %7761 = vmatmul.mubr.f32.gmra.mrb[0].mxu0 %v7245
    %v7762 = vpop.f32.mrb[0].mxu0
    %v7763 = vadd.f32 %v7140, %v7762
    %v7764 = vpop.f32.mrb[0].mxu0
    %7765 = vmatprep.mubr.f32.mxu0 0.0
    %7766 = vmatmul.mubr.f32.gmra.mrb[0].mxu0 %v7248
    %v7767 = vpop.f32.mrb[0].mxu0
    %v7768 = vadd.f32 %v7140, %v7767
    %v7769 = vpop.f32.mrb[0].mxu0
    %7770 = vmatprep.mubr.f32.mxu0 0.0
    %7771 = vmatmul.mubr.f32.gmra.mrb[0].mxu0 %v7251
    %v7772 = vpop.f32.mrb[0].mxu0
    %v7773 = vadd.f32 %v7140, %v7772
    %v7774 = vpop.f32.mrb[0].mxu0
    %7775 = vmatprep.mubr.f32.mxu0 0.0
    %7776 = vmatmul.mubr.f32.gmra.mrb[0].mxu0 %v7254
    %v7777 = vpop.f32.mrb[0].mxu0
    %v7778 = vadd.f32 %v7140, %v7777
    %v7779 = vpop.f32.mrb[0].mxu0
    %7780 = vmatprep.mubr.f32.mxu0 0.0
    %7781 = vmatmul.mubr.f32.gmra.mrb[0].mxu0 %v7257
    %v7782 = vpop.f32.mrb[0].mxu0
    %v7783 = vadd.f32 %v7140, %v7782
    %v7784 = vpop.f32.mrb[0].mxu0
    %7785 = vmatprep.mubr.f32.mxu0 0.0
    %7786 = vmatmul.mubr.f32.gmra.mrb[0].mxu0 %v7260
    %v7787 = vpop.f32.mrb[0].mxu0
    %v7788 = vadd.f32 %v7140, %v7787
    %v7789 = vpop.f32.mrb[0].mxu0
    %7790 = vmatprep.mubr.f32.mxu0 0.0
    %7791 = vmatmul.mubr.f32.gmra.mrb[0].mxu0 %v7263
    %v7792 = vpop.f32.mrb[0].mxu0
    %v7793 = vadd.f32 %v7140, %v7792
    %v7794 = vpop.f32.mrb[0].mxu0
    %7795 = vmatprep.mubr.f32.mxu0 0.0
    %7796 = vmatmul.mubr.f32.gmra.mrb[0].mxu0 %v7266
    %v7797 = vpop.f32.mrb[0].mxu0
    %v7798 = vadd.f32 %v7140, %v7797
    %v7799 = vpop.f32.mrb[0].mxu0
    %7800 = vmatprep.mubr.f32.mxu0 0.0
    %7801 = vmatmul.mubr.f32.gmra.mrb[0].mxu0 %v7269
    %v7802 = vpop.f32.mrb[0].mxu0
    %v7803 = vadd.f32 %v7140, %v7802
    %v7804 = vpop.f32.mrb[0].mxu0
    %7805 = vmatprep.mubr.f32.mxu0 0.0
    %7806 = vmatmul.mubr.f32.gmra.mrb[0].mxu0 %v7272
    %v7807 = vpop.f32.mrb[0].mxu0
    %v7808 = vadd.f32 %v7140, %v7807
    %v7809 = vpop.f32.mrb[0].mxu0
    %7810 = vmatprep.mubr.f32.mxu0 0.0
    %7811 = vmatmul.mubr.f32.gmra.mrb[0].mxu0 %v7275
    %v7812 = vpop.f32.mrb[0].mxu0
    %v7813 = vadd.f32 %v7140, %v7812
    %v7814 = vpop.f32.mrb[0].mxu0
    %7815 = vmatprep.mubr.f32.mxu0 0.0
    %7816 = vmatmul.mubr.f32.gmra.mrb[0].mxu0 %v7278
    %v7817 = vpop.f32.mrb[0].mxu0
    %v7818 = vadd.f32 %v7140, %v7817
    %v7819 = vpop.f32.mrb[0].mxu0
    %7820 = vmatprep.mubr.f32.mxu0 0.0
    %7821 = vmatmul.mubr.f32.gmra.mrb[0].mxu0 %v7281
    %v7822 = vpop.f32.mrb[0].mxu0
    %v7823 = vadd.f32 %v7140, %v7822
    %v7824 = vpop.f32.mrb[0].mxu0
    %7825 = vmatprep.mubr.f32.mxu0 0.0
    %7826 = vmatmul.mubr.f32.gmra.mrb[0].mxu0 %v7284
    %v7827 = vpop.f32.mrb[0].mxu0
    %v7828 = vadd.f32 %v7140, %v7827
    %v7829 = vpop.f32.mrb[0].mxu0
    %7830 = vmatprep.mubr.f32.mxu0 0.0
    %7831 = vmatmul.mubr.f32.gmra.mrb[0].mxu0 %v7287
    %v7832 = vpop.f32.mrb[0].mxu0
    %v7833 = vadd.f32 %v7140, %v7832
    %v7834 = vpop.f32.mrb[0].mxu0
    %7835 = vmatprep.mubr.f32.mxu0 0.0
    %7836 = vmatmul.mubr.f32.gmra.mrb[0].mxu0 %v7290
    %v7837 = vpop.f32.mrb[0].mxu0
    %v7838 = vadd.f32 %v7140, %v7837
    %v7839 = vpop.f32.mrb[0].mxu0
    %7840 = vmatprep.mubr.f32.mxu0 0.0
    %7841 = vmatmul.mubr.f32.gmra.mrb[0].mxu0 %v7293
    %v7842 = vpop.f32.mrb[0].mxu0
    %v7843 = vadd.f32 %v7140, %v7842
    %v7844 = vpop.f32.mrb[0].mxu0
    %7845 = vmatprep.mubr.f32.mxu0 0.0
    %7846 = vmatmul.mubr.f32.gmra.mrb[0].mxu0 %v7296
    %v7847 = vpop.f32.mrb[0].mxu0
    %v7848 = vadd.f32 %v7140, %v7847
    %v7849 = vpop.f32.mrb[0].mxu0
    %7850 = vmatprep.mubr.f32.mxu0 0.0
    %7851 = vmatmul.mubr.f32.gmra.mrb[0].mxu0 %v7299
    %v7852 = vpop.f32.mrb[0].mxu0
    %v7853 = vadd.f32 %v7140, %v7852
    %v7854 = vpop.f32.mrb[0].mxu0
    %7855 = vmatprep.mubr.f32.mxu0 0.0
    %7856 = vmatmul.mubr.f32.gmra.mrb[0].mxu0 %v7302
    %v7857 = vpop.f32.mrb[0].mxu0
    %v7858 = vadd.f32 %v7140, %v7857
    %v7859 = vpop.f32.mrb[0].mxu0
    %7860 = vmatprep.mubr.f32.mxu0 0.0
    %7861 = vmatmul.mubr.f32.gmra.mrb[0].mxu0 %v7305
    %v7862 = vpop.f32.mrb[0].mxu0
    %v7863 = vadd.f32 %v7140, %v7862
    %v7864 = vpop.f32.mrb[0].mxu0
    %7865 = vmatprep.mubr.f32.mxu0 0.0
    %7866 = vmatmul.mubr.f32.gmra.mrb[0].mxu0 %v7308
    %v7867 = vpop.f32.mrb[0].mxu0
    %v7868 = vadd.f32 %v7140, %v7867
    %v7869 = vpop.f32.mrb[0].mxu0
    %7870 = vmatprep.mubr.f32.mxu0 0.0
    %7871 = vmatmul.mubr.f32.gmra.mrb[0].mxu0 %v7311
    %v7872 = vpop.f32.mrb[0].mxu0
    %v7873 = vadd.f32 %v7140, %v7872
    %v7874 = vpop.f32.mrb[0].mxu0
    %7875 = vmatprep.mubr.f32.mxu0 0.0
    %7876 = vmatmul.mubr.f32.gmra.mrb[0].mxu0 %v7314
    %v7877 = vpop.f32.mrb[0].mxu0
    %v7878 = vadd.f32 %v7140, %v7877
    %v7879 = vpop.f32.mrb[0].mxu0
    %7880 = vmatprep.mubr.f32.mxu0 0.0
    %7881 = vmatmul.mubr.f32.gmra.mrb[0].mxu0 %v7317
    %v7882 = vpop.f32.mrb[0].mxu0
    %v7883 = vadd.f32 %v7140, %v7882
    %v7884 = vpop.f32.mrb[0].mxu0
    %7885 = vmatprep.mubr.f32.mxu0 0.0
    %7886 = vmatmul.mubr.f32.gmra.mrb[0].mxu0 %v7320
    %v7887 = vpop.f32.mrb[0].mxu0
    %v7888 = vadd.f32 %v7140, %v7887
    %v7889 = vpop.f32.mrb[0].mxu0
    %7890 = vmatprep.mubr.f32.mxu0 0.0
    %7891 = vmatmul.mubr.f32.gmra.mrb[0].mxu0 %v7323
    %v7892 = vpop.f32.mrb[0].mxu0
    %v7893 = vadd.f32 %v7140, %v7892
    %v7894 = vpop.f32.mrb[0].mxu0
    %7895 = vmatprep.mubr.f32.mxu0 0.0
    %7896 = vmatmul.mubr.f32.gmra.mrb[0].mxu0 %v7326
    %v7897 = vpop.f32.mrb[0].mxu0
    %v7898 = vadd.f32 %v7140, %v7897
    %v7899 = vpop.f32.mrb[0].mxu0
    %7900 = vmatprep.mubr.f32.mxu0 0.0
    %7901 = vmatmul.mubr.f32.gmra.mrb[0].mxu0 %v7329
    %v7902 = vpop.f32.mrb[0].mxu0
    %v7903 = vadd.f32 %v7140, %v7902
    %v7904 = vpop.f32.mrb[0].mxu0
    %7905 = vmatprep.mubr.f32.mxu0 0.0
    %7906 = vmatmul.mubr.f32.gmra.mrb[0].mxu0 %v7332
    %v7907 = vpop.f32.mrb[0].mxu0
    %v7908 = vadd.f32 %v7140, %v7907
    %v7909 = vpop.f32.mrb[0].mxu0
    %7910 = vmatprep.mubr.f32.mxu0 0.0
    %7911 = vmatmul.mubr.f32.gmra.mrb[0].mxu0 %v7335
    %v7912 = vpop.f32.mrb[0].mxu0
    %v7913 = vadd.f32 %v7140, %v7912
    %v7914 = vpop.f32.mrb[0].mxu0
    %7915 = vmatprep.mubr.f32.mxu0 0.0
    %7916 = vmatmul.mubr.f32.gmra.mrb[0].mxu0 %v7338
    %v7917 = vpop.f32.mrb[0].mxu0
    %v7918 = vadd.f32 %v7140, %v7917
    %v7919 = vpop.f32.mrb[0].mxu0
    %7920 = vmatprep.mubr.f32.mxu0 0.0
    %7921 = vmatmul.mubr.f32.gmra.mrb[0].mxu0 %v7341
    %v7922 = vpop.f32.mrb[0].mxu0
    %v7923 = vadd.f32 %v7140, %v7922
    %v7924 = vpop.f32.mrb[0].mxu0
    %7925 = vmatprep.mubr.f32.mxu0 0.0
    %7926 = vmatmul.mubr.f32.gmra.mrb[0].mxu0 %v7344
    %v7927 = vpop.f32.mrb[0].mxu0
    %v7928 = vadd.f32 %v7140, %v7927
    %v7929 = vpop.f32.mrb[0].mxu0
    %7930 = vmatprep.mubr.f32.mxu0 0.0
    %7931 = vmatmul.mubr.f32.gmra.mrb[0].mxu0 %v7347
    %v7932 = vpop.f32.mrb[0].mxu0
    %v7933 = vadd.f32 %v7140, %v7932
    %v7934 = vpop.f32.mrb[0].mxu0
    %7935 = vmatprep.mubr.f32.mxu0 0.0
    %7936 = vmatmul.mubr.f32.gmra.mrb[0].mxu0 %v7350
    %v7937 = vpop.f32.mrb[0].mxu0
    %v7938 = vadd.f32 %v7140, %v7937
    %v7939 = vpop.f32.mrb[0].mxu0
    %7940 = vmatprep.mubr.f32.mxu0 0.0
    %7941 = vmatmul.mubr.f32.gmra.mrb[0].mxu0 %v7353
    %v7942 = vpop.f32.mrb[0].mxu0
    %v7943 = vadd.f32 %v7140, %v7942
    %v7944 = vpop.f32.mrb[0].mxu0
    %7945 = vmatprep.mubr.f32.mxu0 0.0
    %7946 = vmatmul.mubr.f32.gmra.mrb[0].mxu0 %v7356
    %v7947 = vpop.f32.mrb[0].mxu0
    %v7948 = vadd.f32 %v7140, %v7947
    %v7949 = vpop.f32.mrb[0].mxu0
    %7950 = vmatprep.mubr.f32.mxu0 0.0
    %7951 = vmatmul.mubr.f32.gmra.mrb[0].mxu0 %v7359
    %v7952 = vpop.f32.mrb[0].mxu0
    %v7953 = vadd.f32 %v7140, %v7952
    %v7954 = vpop.f32.mrb[0].mxu0
    %7955 = vmatprep.mubr.f32.mxu0 0.0
    %7956 = vmatmul.mubr.f32.gmra.mrb[0].mxu0 %v7362
    %v7957 = vpop.f32.mrb[0].mxu0
    %v7958 = vadd.f32 %v7140, %v7957
    %v7959 = vpop.f32.mrb[0].mxu0
    %7960 = vmatprep.mubr.f32.mxu0 0.0
    %7961 = vmatmul.mubr.f32.gmra.mrb[0].mxu0 %v7365
    %v7962 = vpop.f32.mrb[0].mxu0
    %v7963 = vadd.f32 %v7140, %v7962
    %v7964 = vpop.f32.mrb[0].mxu0
    %7965 = vmatprep.mubr.f32.mxu0 0.0
    %7966 = vmatmul.mubr.f32.gmra.mrb[0].mxu0 %v7368
    %v7967 = vpop.f32.mrb[0].mxu0
    %v7968 = vadd.f32 %v7140, %v7967
    %v7969 = vpop.f32.mrb[0].mxu0
    %7970 = vmatprep.mubr.f32.mxu0 0.0
    %7971 = vmatmul.mubr.f32.gmra.mrb[0].mxu0 %v7371
    %v7972 = vpop.f32.mrb[0].mxu0
    %v7973 = vadd.f32 %v7140, %v7972
    %v7974 = vpop.f32.mrb[0].mxu0
    %7975 = vmatprep.mubr.f32.mxu0 0.0
    %7976 = vmatmul.mubr.f32.gmra.mrb[0].mxu0 %v7374
    %v7977 = vpop.f32.mrb[0].mxu0
    %v7978 = vadd.f32 %v7140, %v7977
    %v7979 = vpop.f32.mrb[0].mxu0
    %7980 = vmatprep.mubr.f32.mxu0 0.0
    %7981 = vmatmul.mubr.f32.gmra.mrb[0].mxu0 %v7377
    %v7982 = vpop.f32.mrb[0].mxu0
    %v7983 = vadd.f32 %v7140, %v7982
    %v7984 = vpop.f32.mrb[0].mxu0
    %7985 = vmatprep.mubr.f32.mxu0 0.0
    %7986 = vmatmul.mubr.f32.gmra.mrb[0].mxu0 %v7380
    %v7987 = vpop.f32.mrb[0].mxu0
    %v7988 = vadd.f32 %v7140, %v7987
    %v7989 = vpop.f32.mrb[0].mxu0
    %7990 = vmatprep.mubr.f32.mxu0 0.0
    %7991 = vmatmul.mubr.f32.gmra.mrb[0].mxu0 %v7383
    %v7992 = vpop.f32.mrb[0].mxu0
    %v7993 = vadd.f32 %v7140, %v7992
    %v7994 = vpop.f32.mrb[0].mxu0
    %7995 = vmatprep.mubr.f32.mxu0 0.0
    %7996 = vmatmul.mubr.f32.gmra.mrb[0].mxu0 %v7386
    %v7997 = vpop.f32.mrb[0].mxu0
    %v7998 = vadd.f32 %v7140, %v7997
    %v7999 = vpop.f32.mrb[0].mxu0
    %8000 = vmatprep.mubr.f32.mxu0 0.0
    %8001 = vmatmul.mubr.f32.gmra.mrb[0].mxu0 %v7389
    %v8002 = vpop.f32.mrb[0].mxu0
    %v8003 = vadd.f32 %v7140, %v8002
    %v8004 = vpop.f32.mrb[0].mxu0
    %8005 = vmatprep.mubr.f32.mxu0 0.0
    %8006 = vmatmul.mubr.f32.gmra.mrb[0].mxu0 %v7392
    %v8007 = vpop.f32.mrb[0].mxu0
    %v8008 = vadd.f32 %v7140, %v8007
    %v8009 = vpop.f32.mrb[0].mxu0
    %8010 = vmatprep.mubr.f32.mxu0 0.0
    %8011 = vmatmul.mubr.f32.gmra.mrb[0].mxu0 %v7395
    %v8012 = vpop.f32.mrb[0].mxu0
    %v8013 = vadd.f32 %v7140, %v8012
    %v8014 = vpop.f32.mrb[0].mxu0
    %8015 = vmatprep.mubr.f32.mxu0 0.0
    %8016 = vmatmul.mubr.f32.gmra.mrb[0].mxu0 %v7398
    %v8017 = vpop.f32.mrb[0].mxu0
    %v8018 = vadd.f32 %v7140, %v8017
    %v8019 = vpop.f32.mrb[0].mxu0
    %8020 = vmatprep.mubr.f32.mxu0 0.0
    %8021 = vmatmul.mubr.f32.gmra.mrb[0].mxu0 %v7401
    %v8022 = vpop.f32.mrb[0].mxu0
    %v8023 = vadd.f32 %v7140, %v8022
    %v8024 = vpop.f32.mrb[0].mxu0
    %8025 = vmatprep.mubr.f32.mxu0 0.0
    %8026 = vmatmul.mubr.f32.gmra.mrb[0].mxu0 %v7404
    %v8027 = vpop.f32.mrb[0].mxu0
    %v8028 = vadd.f32 %v7140, %v8027
    %v8029 = vpop.f32.mrb[0].mxu0
    %8030 = vmatprep.mubr.f32.mxu0 0.0
    %8031 = vmatmul.mubr.f32.gmra.mrb[0].mxu0 %v7407
    %v8032 = vpop.f32.mrb[0].mxu0
    %v8033 = vadd.f32 %v7140, %v8032
    %v8034 = vpop.f32.mrb[0].mxu0
    %8035 = vmatprep.mubr.f32.mxu0 0.0
    %8036 = vmatmul.mubr.f32.gmra.mrb[0].mxu0 %v7410
    %v8037 = vpop.f32.mrb[0].mxu0
    %v8038 = vadd.f32 %v7140, %v8037
    %v8039 = vpop.f32.mrb[0].mxu0
    %8040 = vmatprep.mubr.f32.mxu0 0.0
    %8041 = vmatmul.mubr.f32.gmra.mrb[0].mxu0 %v7413
    %v8042 = vpop.f32.mrb[0].mxu0
    %v8043 = vadd.f32 %v7140, %v8042
    %v8044 = vpop.f32.mrb[0].mxu0
    %8045 = vmatprep.mubr.f32.mxu0 0.0
    %8046 = vmatmul.mubr.f32.gmra.mrb[0].mxu0 %v7416
    %v8047 = vpop.f32.mrb[0].mxu0
    %v8048 = vadd.f32 %v7140, %v8047
    %v8049 = vpop.f32.mrb[0].mxu0
    %8050 = vmatprep.mubr.f32.mxu0 0.0
    %8051 = vmatmul.mubr.f32.gmra.mrb[0].mxu0 %v7419
    %v8052 = vpop.f32.mrb[0].mxu0
    %v8053 = vadd.f32 %v7140, %v8052
    %v8054 = vpop.f32.mrb[0].mxu0
    %8055 = vmatprep.mubr.f32.mxu0 0.0
    %8056 = vmatmul.mubr.f32.gmra.mrb[0].mxu0 %v7422
    %v8057 = vpop.f32.mrb[0].mxu0
    %v8058 = vadd.f32 %v7140, %v8057
    %v8059 = vpop.f32.mrb[0].mxu0
    %8060 = vmatprep.mubr.f32.mxu0 0.0
    %8061 = vmatmul.mubr.f32.gmra.mrb[0].mxu0 %v7425
    %v8062 = vpop.f32.mrb[0].mxu0
    %v8063 = vadd.f32 %v7140, %v8062
    %v8064 = vpop.f32.mrb[0].mxu0
    %8065 = vmatprep.mubr.f32.mxu0 0.0
    %8066 = vmatmul.mubr.f32.gmra.mrb[0].mxu0 %v7428
    %v8067 = vpop.f32.mrb[0].mxu0
    %v8068 = vadd.f32 %v7140, %v8067
    %v8069 = vpop.f32.mrb[0].mxu0
    %8070 = vmatprep.mubr.f32.mxu0 0.0
    %8071 = vmatmul.mubr.f32.gmra.mrb[0].mxu0 %v7431
    %v8072 = vpop.f32.mrb[0].mxu0
    %v8073 = vadd.f32 %v7140, %v8072
    %v8074 = vpop.f32.mrb[0].mxu0
    %8075 = vmatprep.mubr.f32.mxu0 0.0
    %8076 = vmatmul.mubr.f32.gmra.mrb[0].mxu0 %v7434
    %v8077 = vpop.f32.mrb[0].mxu0
    %v8078 = vadd.f32 %v7140, %v8077
    %v8079 = vpop.f32.mrb[0].mxu0
    %8080 = vmatprep.mubr.f32.mxu0 0.0
    %8081 = vmatmul.mubr.f32.gmra.mrb[0].mxu0 %v7437
    %v8082 = vpop.f32.mrb[0].mxu0
    %v8083 = vadd.f32 %v7140, %v8082
    %v8084 = vpop.f32.mrb[0].mxu0
    %8085 = vmatprep.mubr.f32.mxu0 0.0
    %8086 = vmatmul.mubr.f32.gmra.mrb[0].mxu0 %v7440
    %v8087 = vpop.f32.mrb[0].mxu0
    %v8088 = vadd.f32 %v7140, %v8087
    %v8089 = vpop.f32.mrb[0].mxu0
    %8090 = vmatprep.mubr.f32.mxu0 0.0
    %8091 = vmatmul.mubr.f32.gmra.mrb[0].mxu0 %v7443
    %v8092 = vpop.f32.mrb[0].mxu0
    %v8093 = vadd.f32 %v7140, %v8092
    %v8094 = vpop.f32.mrb[0].mxu0
    %8095 = vmatprep.mubr.f32.mxu0 0.0
    %8096 = vmatmul.mubr.f32.gmra.mrb[0].mxu0 %v7446
    %v8097 = vpop.f32.mrb[0].mxu0
    %v8098 = vadd.f32 %v7140, %v8097
    %v8099 = vpop.f32.mrb[0].mxu0
    %8100 = vmatprep.mubr.f32.mxu0 0.0
    %8101 = vmatmul.mubr.f32.gmra.mrb[0].mxu0 %v7449
    %v8102 = vpop.f32.mrb[0].mxu0
    %v8103 = vadd.f32 %v7140, %v8102
    %v8104 = vpop.f32.mrb[0].mxu0
    %8105 = vmatprep.mubr.f32.mxu0 0.0
    %8106 = vmatmul.mubr.f32.gmra.mrb[0].mxu0 %v7452
    %v8107 = vpop.f32.mrb[0].mxu0
    %v8108 = vadd.f32 %v7140, %v8107
    %v8109 = vpop.f32.mrb[0].mxu0
    %8110 = vmatprep.mubr.f32.mxu0 0.0
    %8111 = vmatmul.mubr.f32.gmra.mrb[0].mxu0 %v7455
    %v8112 = vpop.f32.mrb[0].mxu0
    %v8113 = vadd.f32 %v7140, %v8112
    %v8114 = vpop.f32.mrb[0].mxu0
    %8115 = vmatprep.mubr.f32.mxu0 0.0
    %8116 = vmatmul.mubr.f32.gmra.mrb[0].mxu0 %v7458
    %v8117 = vpop.f32.mrb[0].mxu0
    %v8118 = vadd.f32 %v7140, %v8117
    %v8119 = vpop.f32.mrb[0].mxu0
    %8120 = vmatprep.mubr.f32.mxu0 0.0
    %8121 = vmatmul.mubr.f32.gmra.mrb[0].mxu0 %v7461
    %v8122 = vpop.f32.mrb[0].mxu0
    %v8123 = vadd.f32 %v7140, %v8122
    %v8124 = vpop.f32.mrb[0].mxu0
    %8125 = vmatprep.mubr.f32.mxu0 0.0
    %8126 = vmatmul.mubr.f32.gmra.mrb[0].mxu0 %v7464
    %v8127 = vpop.f32.mrb[0].mxu0
    %v8128 = vadd.f32 %v7140, %v8127
    %v8129 = vpop.f32.mrb[0].mxu0
    %8130 = vmatprep.mubr.f32.mxu0 0.0
    %8131 = vmatmul.mubr.f32.gmra.mrb[0].mxu0 %v7467
    %v8132 = vpop.f32.mrb[0].mxu0
    %v8133 = vadd.f32 %v7140, %v8132
    %v8134 = vpop.f32.mrb[0].mxu0
    %8135 = vmatprep.mubr.f32.mxu0 0.0
    %8136 = vmatmul.mubr.f32.gmra.mrb[0].mxu0 %v7470
    %v8137 = vpop.f32.mrb[0].mxu0
    %v8138 = vadd.f32 %v7140, %v8137
    %v8139 = vpop.f32.mrb[0].mxu0
    %8140 = vmatprep.mubr.f32.mxu0 0.0
    %8141 = vmatmul.mubr.f32.gmra.mrb[0].mxu0 %v7473
    %v8142 = vpop.f32.mrb[0].mxu0
    %v8143 = vadd.f32 %v7140, %v8142
    %v8144 = vpop.f32.mrb[0].mxu0
    %8145 = vmatprep.mubr.f32.mxu0 0.0
    %8146 = vmatmul.mubr.f32.gmra.mrb[0].mxu0 %v7476
    %v8147 = vpop.f32.mrb[0].mxu0
    %v8148 = vadd.f32 %v7140, %v8147
    %v8149 = vpop.f32.mrb[0].mxu0
    %8150 = vmatprep.mubr.f32.mxu0 0.0
    %8151 = vmatmul.mubr.f32.gmra.mrb[0].mxu0 %v7479
    %v8152 = vpop.f32.mrb[0].mxu0
    %v8153 = vadd.f32 %v7140, %v8152
    %v8154 = vpop.f32.mrb[0].mxu0
    %8155 = vmatprep.mubr.f32.mxu0 0.0
    %8156 = vmatmul.mubr.f32.gmra.mrb[0].mxu0 %v7482
    %v8157 = vpop.f32.mrb[0].mxu0
    %v8158 = vadd.f32 %v7140, %v8157
    %v8159 = vpop.f32.mrb[0].mxu0
    %8160 = vmatprep.mubr.f32.mxu0 0.0
    %8161 = vmatmul.mubr.f32.gmra.mrb[0].mxu0 %v7485
    %v8162 = vpop.f32.mrb[0].mxu0
    %v8163 = vadd.f32 %v7140, %v8162
    %v8164 = vpop.f32.mrb[0].mxu0
    %8165 = vmatprep.mubr.f32.mxu0 0.0
    %8166 = vmatmul.mubr.f32.gmra.mrb[0].mxu0 %v7488
    %v8167 = vpop.f32.mrb[0].mxu0
    %v8168 = vadd.f32 %v7140, %v8167
    %v8169 = vpop.f32.mrb[0].mxu0
    %8170 = vmatprep.mubr.f32.mxu0 0.0
    %8171 = vmatmul.mubr.f32.gmra.mrb[0].mxu0 %v7491
    %v8172 = vpop.f32.mrb[0].mxu0
    %v8173 = vadd.f32 %v7140, %v8172
    %v8174 = vpop.f32.mrb[0].mxu0
    %8175 = vmatprep.mubr.f32.mxu0 0.0
    %8176 = vmatmul.mubr.f32.gmra.mrb[0].mxu0 %v7494
    %v8177 = vpop.f32.mrb[0].mxu0
    %v8178 = vadd.f32 %v7140, %v8177
    %v8179 = vpop.f32.mrb[0].mxu0
    %8180 = vmatprep.mubr.f32.mxu0 0.0
    %8181 = vmatmul.mubr.f32.gmra.mrb[0].mxu0 %v7497
    %v8182 = vpop.f32.mrb[0].mxu0
    %v8183 = vadd.f32 %v7140, %v8182
    %v8184 = vpop.f32.mrb[0].mxu0
    %8185 = vmatprep.mubr.f32.mxu0 0.0
    %8186 = vmatmul.mubr.f32.gmra.mrb[0].mxu0 %v7500
    %v8187 = vpop.f32.mrb[0].mxu0
    %v8188 = vadd.f32 %v7140, %v8187
    %v8189 = vpop.f32.mrb[0].mxu0
    %8190 = vmatprep.mubr.f32.mxu0 0.0
    %8191 = vmatmul.mubr.f32.gmra.mrb[0].mxu0 %v7503
    %v8192 = vpop.f32.mrb[0].mxu0
    %v8193 = vadd.f32 %v7140, %v8192
    %v8194 = vpop.f32.mrb[0].mxu0
    %8195 = vmatprep.mubr.f32.mxu0 0.0
    %8196 = vmatmul.mubr.f32.gmra.mrb[0].mxu0 %v7506
    %v8197 = vpop.f32.mrb[0].mxu0
    %v8198 = vadd.f32 %v7140, %v8197
    %v8199 = vpop.f32.mrb[0].mxu0
    %8200 = vmatprep.mubr.f32.mxu0 0.0
    %8201 = vmatmul.mubr.f32.gmra.mrb[0].mxu0 %v7509
    %v8202 = vpop.f32.mrb[0].mxu0
    %v8203 = vadd.f32 %v7140, %v8202
    %v8204 = vpop.f32.mrb[0].mxu0
    %8205 = vmatprep.mubr.f32.mxu0 0.0
    %8206 = vmatmul.mubr.f32.gmra.mrb[0].mxu0 %v7512
    %v8207 = vpop.f32.mrb[0].mxu0
    %v8208 = vadd.f32 %v7140, %v8207
    %v8209 = vpop.f32.mrb[0].mxu0
    %8210 = vmatprep.mubr.f32.mxu0 0.0
    %8211 = vmatmul.mubr.f32.gmra.mrb[0].mxu0 %v7515
    %v8212 = vpop.f32.mrb[0].mxu0
    %v8213 = vadd.f32 %v7140, %v8212
    %v8214 = vpop.f32.mrb[0].mxu0
    %8215 = vmatprep.mubr.f32.mxu0 0.0
    %8216 = vmatmul.mubr.f32.gmra.mrb[0].mxu0 %v7518
    %v8217 = vpop.f32.mrb[0].mxu0
    %v8218 = vadd.f32 %v7140, %v8217
    %v8219 = vpop.f32.mrb[0].mxu0
    %8220 = vmatprep.mubr.f32.mxu0 0.0
    %8221 = vmatmul.mubr.f32.gmra.mrb[0].mxu0 %v7521
    %v8222 = vpop.f32.mrb[0].mxu0
    %v8223 = vadd.f32 %v7140, %v8222
    %v8224 = vpop.f32.mrb[0].mxu0
    %8225 = vmatprep.mubr.f32.mxu0 0.0
    %8226 = vmatmul.mubr.f32.gmra.mrb[0].mxu0 %v7524
    %v8227 = vpop.f32.mrb[0].mxu0
    %v8228 = vadd.f32 %v7140, %v8227
    %v8229 = vpop.f32.mrb[0].mxu0
    %8230 = vdwg.mxu0
    %v8231 = vmax.f32 %v7593, 0.0
    %v8232 = vmax.f32 %v7598, 0.0
    %v8233 = vmax.f32 %v7603, 0.0
    %v8234 = vmax.f32 %v7608, 0.0
    %v8235 = vmax.f32 %v7613, 0.0
    %v8236 = vmax.f32 %v7618, 0.0
    %v8237 = vmax.f32 %v7623, 0.0
    %v8238 = vmax.f32 %v7628, 0.0
    %v8239 = vmax.f32 %v7633, 0.0
    %v8240 = vmax.f32 %v7638, 0.0
    %v8241 = vmax.f32 %v7643, 0.0
    %v8242 = vmax.f32 %v7648, 0.0
    %v8243 = vmax.f32 %v7653, 0.0
    %v8244 = vmax.f32 %v7658, 0.0
    %v8245 = vmax.f32 %v7663, 0.0
    %v8246 = vmax.f32 %v7668, 0.0
    %v8247 = vmax.f32 %v7673, 0.0
    %v8248 = vmax.f32 %v7678, 0.0
    %v8249 = vmax.f32 %v7683, 0.0
    %v8250 = vmax.f32 %v7688, 0.0
    %v8251 = vmax.f32 %v7693, 0.0
    %v8252 = vmax.f32 %v7698, 0.0
    %v8253 = vmax.f32 %v7703, 0.0
    %v8254 = vmax.f32 %v7708, 0.0
    %v8255 = vmax.f32 %v7713, 0.0
    %v8256 = vmax.f32 %v7718, 0.0
    %v8257 = vmax.f32 %v7723, 0.0
    %v8258 = vmax.f32 %v7728, 0.0
    %v8259 = vmax.f32 %v7733, 0.0
    %v8260 = vmax.f32 %v7738, 0.0
    %v8261 = vmax.f32 %v7743, 0.0
    %v8262 = vmax.f32 %v7748, 0.0
    %v8263 = vmax.f32 %v7753, 0.0
    %v8264 = vmax.f32 %v7758, 0.0
    %v8265 = vmax.f32 %v7763, 0.0
    %v8266 = vmax.f32 %v7768, 0.0
    %v8267 = vmax.f32 %v7773, 0.0
    %v8268 = vmax.f32 %v7778, 0.0
    %v8269 = vmax.f32 %v7783, 0.0
    %v8270 = vmax.f32 %v7788, 0.0
    %v8271 = vmax.f32 %v7793, 0.0
    %v8272 = vmax.f32 %v7798, 0.0
    %v8273 = vmax.f32 %v7803, 0.0
    %v8274 = vmax.f32 %v7808, 0.0
    %v8275 = vmax.f32 %v7813, 0.0
    %v8276 = vmax.f32 %v7818, 0.0
    %v8277 = vmax.f32 %v7823, 0.0
    %v8278 = vmax.f32 %v7828, 0.0
    %v8279 = vmax.f32 %v7833, 0.0
    %v8280 = vmax.f32 %v7838, 0.0
    %v8281 = vmax.f32 %v7843, 0.0
    %v8282 = vmax.f32 %v7848, 0.0
    %v8283 = vmax.f32 %v7853, 0.0
    %v8284 = vmax.f32 %v7858, 0.0
    %v8285 = vmax.f32 %v7863, 0.0
    %v8286 = vmax.f32 %v7868, 0.0
    %v8287 = vmax.f32 %v7873, 0.0
    %v8288 = vmax.f32 %v7878, 0.0
    %v8289 = vmax.f32 %v7883, 0.0
    %v8290 = vmax.f32 %v7888, 0.0
    %v8291 = vmax.f32 %v7893, 0.0
    %v8292 = vmax.f32 %v7898, 0.0
    %v8293 = vmax.f32 %v7903, 0.0
    %v8294 = vmax.f32 %v7908, 0.0
    %v8295 = vmax.f32 %v7913, 0.0
    %v8296 = vmax.f32 %v7918, 0.0
    %v8297 = vmax.f32 %v7923, 0.0
    %v8298 = vmax.f32 %v7928, 0.0
    %v8299 = vmax.f32 %v7933, 0.0
    %v8300 = vmax.f32 %v7938, 0.0
    %v8301 = vmax.f32 %v7943, 0.0
    %v8302 = vmax.f32 %v7948, 0.0
    %v8303 = vmax.f32 %v7953, 0.0
    %v8304 = vmax.f32 %v7958, 0.0
    %v8305 = vmax.f32 %v7963, 0.0
    %v8306 = vmax.f32 %v7968, 0.0
    %v8307 = vmax.f32 %v7973, 0.0
    %v8308 = vmax.f32 %v7978, 0.0
    %v8309 = vmax.f32 %v7983, 0.0
    %v8310 = vmax.f32 %v7988, 0.0
    %v8311 = vmax.f32 %v7993, 0.0
    %v8312 = vmax.f32 %v7998, 0.0
    %v8313 = vmax.f32 %v8003, 0.0
    %v8314 = vmax.f32 %v8008, 0.0
    %v8315 = vmax.f32 %v8013, 0.0
    %v8316 = vmax.f32 %v8018, 0.0
    %v8317 = vmax.f32 %v8023, 0.0
    %v8318 = vmax.f32 %v8028, 0.0
    %v8319 = vmax.f32 %v8033, 0.0
    %v8320 = vmax.f32 %v8038, 0.0
    %v8321 = vmax.f32 %v8043, 0.0
    %v8322 = vmax.f32 %v8048, 0.0
    %v8323 = vmax.f32 %v8053, 0.0
    %v8324 = vmax.f32 %v8058, 0.0
    %v8325 = vmax.f32 %v8063, 0.0
    %v8326 = vmax.f32 %v8068, 0.0
    %v8327 = vmax.f32 %v8073, 0.0
    %v8328 = vmax.f32 %v8078, 0.0
    %v8329 = vmax.f32 %v8083, 0.0
    %v8330 = vmax.f32 %v8088, 0.0
    %v8331 = vmax.f32 %v8093, 0.0
    %v8332 = vmax.f32 %v8098, 0.0
    %v8333 = vmax.f32 %v8103, 0.0
    %v8334 = vmax.f32 %v8108, 0.0
    %v8335 = vmax.f32 %v8113, 0.0
    %v8336 = vmax.f32 %v8118, 0.0
    %v8337 = vmax.f32 %v8123, 0.0
    %v8338 = vmax.f32 %v8128, 0.0
    %v8339 = vmax.f32 %v8133, 0.0
    %v8340 = vmax.f32 %v8138, 0.0
    %v8341 = vmax.f32 %v8143, 0.0
    %v8342 = vmax.f32 %v8148, 0.0
    %v8343 = vmax.f32 %v8153, 0.0
    %v8344 = vmax.f32 %v8158, 0.0
    %v8345 = vmax.f32 %v8163, 0.0
    %v8346 = vmax.f32 %v8168, 0.0
    %v8347 = vmax.f32 %v8173, 0.0
    %v8348 = vmax.f32 %v8178, 0.0
    %v8349 = vmax.f32 %v8183, 0.0
    %v8350 = vmax.f32 %v8188, 0.0
    %v8351 = vmax.f32 %v8193, 0.0
    %v8352 = vmax.f32 %v8198, 0.0
    %v8353 = vmax.f32 %v8203, 0.0
    %v8354 = vmax.f32 %v8208, 0.0
    %v8355 = vmax.f32 %v8213, 0.0
    %v8356 = vmax.f32 %v8218, 0.0
    %v8357 = vmax.f32 %v8223, 0.0
    %v8358 = vmax.f32 %v8228, 0.0
    %v8359 = vld [vmem:[%s11] sm:$0x1]
    %v8361 = vlaneseq
    %v8362 = vshrl.u32 %v8361, 7
    %v8363 = vsub.s32 0, %v8362
    %v8364 = vrot.slane %v8359, %v8363
    %v8366 = vmul.f32 %v8231, %v8364
    %v8367 = vmul.f32 %v8232, %v8364
    %v8368 = vmul.f32 %v8233, %v8364
    %v8369 = vmul.f32 %v8234, %v8364
    %v8370 = vmul.f32 %v8235, %v8364
    %v8371 = vmul.f32 %v8236, %v8364
    %v8372 = vmul.f32 %v8237, %v8364
    %v8373 = vmul.f32 %v8238, %v8364
    %v8374 = vmul.f32 %v8239, %v8364
    %v8375 = vmul.f32 %v8240, %v8364
    %v8376 = vmul.f32 %v8241, %v8364
    %v8377 = vmul.f32 %v8242, %v8364
    %v8378 = vmul.f32 %v8243, %v8364
    %v8379 = vmul.f32 %v8244, %v8364
    %v8380 = vmul.f32 %v8245, %v8364
    %v8381 = vmul.f32 %v8246, %v8364
    %v8382 = vmul.f32 %v8247, %v8364
    %v8383 = vmul.f32 %v8248, %v8364
    %v8384 = vmul.f32 %v8249, %v8364
    %v8385 = vmul.f32 %v8250, %v8364
    %v8386 = vmul.f32 %v8251, %v8364
    %v8387 = vmul.f32 %v8252, %v8364
    %v8388 = vmul.f32 %v8253, %v8364
    %v8389 = vmul.f32 %v8254, %v8364
    %v8390 = vmul.f32 %v8255, %v8364
    %v8391 = vmul.f32 %v8256, %v8364
    %v8392 = vmul.f32 %v8257, %v8364
    %v8393 = vmul.f32 %v8258, %v8364
    %v8394 = vmul.f32 %v8259, %v8364
    %v8395 = vmul.f32 %v8260, %v8364
    %v8396 = vmul.f32 %v8261, %v8364
    %v8397 = vmul.f32 %v8262, %v8364
    %v8398 = vmul.f32 %v8263, %v8364
    %v8399 = vmul.f32 %v8264, %v8364
    %v8400 = vmul.f32 %v8265, %v8364
    %v8401 = vmul.f32 %v8266, %v8364
    %v8402 = vmul.f32 %v8267, %v8364
    %v8403 = vmul.f32 %v8268, %v8364
    %v8404 = vmul.f32 %v8269, %v8364
    %v8405 = vmul.f32 %v8270, %v8364
    %v8406 = vmul.f32 %v8271, %v8364
    %v8407 = vmul.f32 %v8272, %v8364
    %v8408 = vmul.f32 %v8273, %v8364
    %v8409 = vmul.f32 %v8274, %v8364
    %v8410 = vmul.f32 %v8275, %v8364
    %v8411 = vmul.f32 %v8276, %v8364
    %v8412 = vmul.f32 %v8277, %v8364
    %v8413 = vmul.f32 %v8278, %v8364
    %v8414 = vmul.f32 %v8279, %v8364
    %v8415 = vmul.f32 %v8280, %v8364
    %v8416 = vmul.f32 %v8281, %v8364
    %v8417 = vmul.f32 %v8282, %v8364
    %v8418 = vmul.f32 %v8283, %v8364
    %v8419 = vmul.f32 %v8284, %v8364
    %v8420 = vmul.f32 %v8285, %v8364
    %v8421 = vmul.f32 %v8286, %v8364
    %v8422 = vmul.f32 %v8287, %v8364
    %v8423 = vmul.f32 %v8288, %v8364
    %v8424 = vmul.f32 %v8289, %v8364
    %v8425 = vmul.f32 %v8290, %v8364
    %v8426 = vmul.f32 %v8291, %v8364
    %v8427 = vmul.f32 %v8292, %v8364
    %v8428 = vmul.f32 %v8293, %v8364
    %v8429 = vmul.f32 %v8294, %v8364
    %v8430 = vmul.f32 %v8295, %v8364
    %v8431 = vmul.f32 %v8296, %v8364
    %v8432 = vmul.f32 %v8297, %v8364
    %v8433 = vmul.f32 %v8298, %v8364
    %v8434 = vmul.f32 %v8299, %v8364
    %v8435 = vmul.f32 %v8300, %v8364
    %v8436 = vmul.f32 %v8301, %v8364
    %v8437 = vmul.f32 %v8302, %v8364
    %v8438 = vmul.f32 %v8303, %v8364
    %v8439 = vmul.f32 %v8304, %v8364
    %v8440 = vmul.f32 %v8305, %v8364
    %v8441 = vmul.f32 %v8306, %v8364
    %v8442 = vmul.f32 %v8307, %v8364
    %v8443 = vmul.f32 %v8308, %v8364
    %v8444 = vmul.f32 %v8309, %v8364
    %v8445 = vmul.f32 %v8310, %v8364
    %v8446 = vmul.f32 %v8311, %v8364
    %v8447 = vmul.f32 %v8312, %v8364
    %v8448 = vmul.f32 %v8313, %v8364
    %v8449 = vmul.f32 %v8314, %v8364
    %v8450 = vmul.f32 %v8315, %v8364
    %v8451 = vmul.f32 %v8316, %v8364
    %v8452 = vmul.f32 %v8317, %v8364
    %v8453 = vmul.f32 %v8318, %v8364
    %v8454 = vmul.f32 %v8319, %v8364
    %v8455 = vmul.f32 %v8320, %v8364
    %v8456 = vmul.f32 %v8321, %v8364
    %v8457 = vmul.f32 %v8322, %v8364
    %v8458 = vmul.f32 %v8323, %v8364
    %v8459 = vmul.f32 %v8324, %v8364
    %v8460 = vmul.f32 %v8325, %v8364
    %v8461 = vmul.f32 %v8326, %v8364
    %v8462 = vmul.f32 %v8327, %v8364
    %v8463 = vmul.f32 %v8328, %v8364
    %v8464 = vmul.f32 %v8329, %v8364
    %v8465 = vmul.f32 %v8330, %v8364
    %v8466 = vmul.f32 %v8331, %v8364
    %v8467 = vmul.f32 %v8332, %v8364
    %v8468 = vmul.f32 %v8333, %v8364
    %v8469 = vmul.f32 %v8334, %v8364
    %v8470 = vmul.f32 %v8335, %v8364
    %v8471 = vmul.f32 %v8336, %v8364
    %v8472 = vmul.f32 %v8337, %v8364
    %v8473 = vmul.f32 %v8338, %v8364
    %v8474 = vmul.f32 %v8339, %v8364
    %v8475 = vmul.f32 %v8340, %v8364
    %v8476 = vmul.f32 %v8341, %v8364
    %v8477 = vmul.f32 %v8342, %v8364
    %v8478 = vmul.f32 %v8343, %v8364
    %v8479 = vmul.f32 %v8344, %v8364
    %v8480 = vmul.f32 %v8345, %v8364
    %v8481 = vmul.f32 %v8346, %v8364
    %v8482 = vmul.f32 %v8347, %v8364
    %v8483 = vmul.f32 %v8348, %v8364
    %v8484 = vmul.f32 %v8349, %v8364
    %v8485 = vmul.f32 %v8350, %v8364
    %v8486 = vmul.f32 %v8351, %v8364
    %v8487 = vmul.f32 %v8352, %v8364
    %v8488 = vmul.f32 %v8353, %v8364
    %v8489 = vmul.f32 %v8354, %v8364
    %v8490 = vmul.f32 %v8355, %v8364
    %v8491 = vmul.f32 %v8356, %v8364
    %v8492 = vmul.f32 %v8357, %v8364
    %v8493 = vmul.f32 %v8358, %v8364
    %v8494 = vsel %vm5785, %v8366, 0.0
    %8495 = vadd.xlane.f32.xlu0 %v8494
    %v8496 = vpop.xlane.xlu0 %8495
    %v8497 = vsel %vm5785, %v8367, 0.0
    %8498 = vadd.xlane.f32.xlu0 %v8497
    %v8499 = vpop.xlane.xlu0 %8498
    %v8500 = vsel %vm5785, %v8368, 0.0
    %8501 = vadd.xlane.f32.xlu0 %v8500
    %v8502 = vpop.xlane.xlu0 %8501
    %v8503 = vsel %vm5785, %v8369, 0.0
    %8504 = vadd.xlane.f32.xlu0 %v8503
    %v8505 = vpop.xlane.xlu0 %8504
    %v8506 = vsel %vm5785, %v8370, 0.0
    %8507 = vadd.xlane.f32.xlu0 %v8506
    %v8508 = vpop.xlane.xlu0 %8507
    %v8509 = vsel %vm5785, %v8371, 0.0
    %8510 = vadd.xlane.f32.xlu0 %v8509
    %v8511 = vpop.xlane.xlu0 %8510
    %v8512 = vsel %vm5785, %v8372, 0.0
    %8513 = vadd.xlane.f32.xlu0 %v8512
    %v8514 = vpop.xlane.xlu0 %8513
    %v8515 = vsel %vm5785, %v8373, 0.0
    %8516 = vadd.xlane.f32.xlu0 %v8515
    %v8517 = vpop.xlane.xlu0 %8516
    %v8518 = vsel %vm5785, %v8374, 0.0
    %8519 = vadd.xlane.f32.xlu0 %v8518
    %v8520 = vpop.xlane.xlu0 %8519
    %v8521 = vsel %vm5785, %v8375, 0.0
    %8522 = vadd.xlane.f32.xlu0 %v8521
    %v8523 = vpop.xlane.xlu0 %8522
    %v8524 = vsel %vm5785, %v8376, 0.0
    %8525 = vadd.xlane.f32.xlu0 %v8524
    %v8526 = vpop.xlane.xlu0 %8525
    %v8527 = vsel %vm5785, %v8377, 0.0
    %8528 = vadd.xlane.f32.xlu0 %v8527
    %v8529 = vpop.xlane.xlu0 %8528
    %v8530 = vsel %vm5785, %v8378, 0.0
    %8531 = vadd.xlane.f32.xlu0 %v8530
    %v8532 = vpop.xlane.xlu0 %8531
    %v8533 = vsel %vm5785, %v8379, 0.0
    %8534 = vadd.xlane.f32.xlu0 %v8533
    %v8535 = vpop.xlane.xlu0 %8534
    %v8536 = vsel %vm5785, %v8380, 0.0
    %8537 = vadd.xlane.f32.xlu0 %v8536
    %v8538 = vpop.xlane.xlu0 %8537
    %v8539 = vsel %vm5785, %v8381, 0.0
    %8540 = vadd.xlane.f32.xlu0 %v8539
    %v8541 = vpop.xlane.xlu0 %8540
    %v8542 = vsel %vm5785, %v8382, 0.0
    %8543 = vadd.xlane.f32.xlu0 %v8542
    %v8544 = vpop.xlane.xlu0 %8543
    %v8545 = vsel %vm5785, %v8383, 0.0
    %8546 = vadd.xlane.f32.xlu0 %v8545
    %v8547 = vpop.xlane.xlu0 %8546
    %v8548 = vsel %vm5785, %v8384, 0.0
    %8549 = vadd.xlane.f32.xlu0 %v8548
    %v8550 = vpop.xlane.xlu0 %8549
    %v8551 = vsel %vm5785, %v8385, 0.0
    %8552 = vadd.xlane.f32.xlu0 %v8551
    %v8553 = vpop.xlane.xlu0 %8552
    %v8554 = vsel %vm5785, %v8386, 0.0
    %8555 = vadd.xlane.f32.xlu0 %v8554
    %v8556 = vpop.xlane.xlu0 %8555
    %v8557 = vsel %vm5785, %v8387, 0.0
    %8558 = vadd.xlane.f32.xlu0 %v8557
    %v8559 = vpop.xlane.xlu0 %8558
    %v8560 = vsel %vm5785, %v8388, 0.0
    %8561 = vadd.xlane.f32.xlu0 %v8560
    %v8562 = vpop.xlane.xlu0 %8561
    %v8563 = vsel %vm5785, %v8389, 0.0
    %8564 = vadd.xlane.f32.xlu0 %v8563
    %v8565 = vpop.xlane.xlu0 %8564
    %v8566 = vsel %vm5785, %v8390, 0.0
    %8567 = vadd.xlane.f32.xlu0 %v8566
    %v8568 = vpop.xlane.xlu0 %8567
    %v8569 = vsel %vm5785, %v8391, 0.0
    %8570 = vadd.xlane.f32.xlu0 %v8569
    %v8571 = vpop.xlane.xlu0 %8570
    %v8572 = vsel %vm5785, %v8392, 0.0
    %8573 = vadd.xlane.f32.xlu0 %v8572
    %v8574 = vpop.xlane.xlu0 %8573
    %v8575 = vsel %vm5785, %v8393, 0.0
    %8576 = vadd.xlane.f32.xlu0 %v8575
    %v8577 = vpop.xlane.xlu0 %8576
    %v8578 = vsel %vm5785, %v8394, 0.0
    %8579 = vadd.xlane.f32.xlu0 %v8578
    %v8580 = vpop.xlane.xlu0 %8579
    %v8581 = vsel %vm5785, %v8395, 0.0
    %8582 = vadd.xlane.f32.xlu0 %v8581
    %v8583 = vpop.xlane.xlu0 %8582
    %v8584 = vsel %vm5785, %v8396, 0.0
    %8585 = vadd.xlane.f32.xlu0 %v8584
    %v8586 = vpop.xlane.xlu0 %8585
    %v8587 = vsel %vm5785, %v8397, 0.0
    %8588 = vadd.xlane.f32.xlu0 %v8587
    %v8589 = vpop.xlane.xlu0 %8588
    %v8590 = vsel %vm5785, %v8398, 0.0
    %8591 = vadd.xlane.f32.xlu0 %v8590
    %v8592 = vpop.xlane.xlu0 %8591
    %v8593 = vsel %vm5785, %v8399, 0.0
    %8594 = vadd.xlane.f32.xlu0 %v8593
    %v8595 = vpop.xlane.xlu0 %8594
    %v8596 = vsel %vm5785, %v8400, 0.0
    %8597 = vadd.xlane.f32.xlu0 %v8596
    %v8598 = vpop.xlane.xlu0 %8597
    %v8599 = vsel %vm5785, %v8401, 0.0
    %8600 = vadd.xlane.f32.xlu0 %v8599
    %v8601 = vpop.xlane.xlu0 %8600
    %v8602 = vsel %vm5785, %v8402, 0.0
    %8603 = vadd.xlane.f32.xlu0 %v8602
    %v8604 = vpop.xlane.xlu0 %8603
    %v8605 = vsel %vm5785, %v8403, 0.0
    %8606 = vadd.xlane.f32.xlu0 %v8605
    %v8607 = vpop.xlane.xlu0 %8606
    %v8608 = vsel %vm5785, %v8404, 0.0
    %8609 = vadd.xlane.f32.xlu0 %v8608
    %v8610 = vpop.xlane.xlu0 %8609
    %v8611 = vsel %vm5785, %v8405, 0.0
    %8612 = vadd.xlane.f32.xlu0 %v8611
    %v8613 = vpop.xlane.xlu0 %8612
    %v8614 = vsel %vm5785, %v8406, 0.0
    %8615 = vadd.xlane.f32.xlu0 %v8614
    %v8616 = vpop.xlane.xlu0 %8615
    %v8617 = vsel %vm5785, %v8407, 0.0
    %8618 = vadd.xlane.f32.xlu0 %v8617
    %v8619 = vpop.xlane.xlu0 %8618
    %v8620 = vsel %vm5785, %v8408, 0.0
    %8621 = vadd.xlane.f32.xlu0 %v8620
    %v8622 = vpop.xlane.xlu0 %8621
    %v8623 = vsel %vm5785, %v8409, 0.0
    %8624 = vadd.xlane.f32.xlu0 %v8623
    %v8625 = vpop.xlane.xlu0 %8624
    %v8626 = vsel %vm5785, %v8410, 0.0
    %8627 = vadd.xlane.f32.xlu0 %v8626
    %v8628 = vpop.xlane.xlu0 %8627
    %v8629 = vsel %vm5785, %v8411, 0.0
    %8630 = vadd.xlane.f32.xlu0 %v8629
    %v8631 = vpop.xlane.xlu0 %8630
    %v8632 = vsel %vm5785, %v8412, 0.0
    %8633 = vadd.xlane.f32.xlu0 %v8632
    %v8634 = vpop.xlane.xlu0 %8633
    %v8635 = vsel %vm5785, %v8413, 0.0
    %8636 = vadd.xlane.f32.xlu0 %v8635
    %v8637 = vpop.xlane.xlu0 %8636
    %v8638 = vsel %vm5785, %v8414, 0.0
    %8639 = vadd.xlane.f32.xlu0 %v8638
    %v8640 = vpop.xlane.xlu0 %8639
    %v8641 = vsel %vm5785, %v8415, 0.0
    %8642 = vadd.xlane.f32.xlu0 %v8641
    %v8643 = vpop.xlane.xlu0 %8642
    %v8644 = vsel %vm5785, %v8416, 0.0
    %8645 = vadd.xlane.f32.xlu0 %v8644
    %v8646 = vpop.xlane.xlu0 %8645
    %v8647 = vsel %vm5785, %v8417, 0.0
    %8648 = vadd.xlane.f32.xlu0 %v8647
    %v8649 = vpop.xlane.xlu0 %8648
    %v8650 = vsel %vm5785, %v8418, 0.0
    %8651 = vadd.xlane.f32.xlu0 %v8650
    %v8652 = vpop.xlane.xlu0 %8651
    %v8653 = vsel %vm5785, %v8419, 0.0
    %8654 = vadd.xlane.f32.xlu0 %v8653
    %v8655 = vpop.xlane.xlu0 %8654
    %v8656 = vsel %vm5785, %v8420, 0.0
    %8657 = vadd.xlane.f32.xlu0 %v8656
    %v8658 = vpop.xlane.xlu0 %8657
    %v8659 = vsel %vm5785, %v8421, 0.0
    %8660 = vadd.xlane.f32.xlu0 %v8659
    %v8661 = vpop.xlane.xlu0 %8660
    %v8662 = vsel %vm5785, %v8422, 0.0
    %8663 = vadd.xlane.f32.xlu0 %v8662
    %v8664 = vpop.xlane.xlu0 %8663
    %v8665 = vsel %vm5785, %v8423, 0.0
    %8666 = vadd.xlane.f32.xlu0 %v8665
    %v8667 = vpop.xlane.xlu0 %8666
    %v8668 = vsel %vm5785, %v8424, 0.0
    %8669 = vadd.xlane.f32.xlu0 %v8668
    %v8670 = vpop.xlane.xlu0 %8669
    %v8671 = vsel %vm5785, %v8425, 0.0
    %8672 = vadd.xlane.f32.xlu0 %v8671
    %v8673 = vpop.xlane.xlu0 %8672
    %v8674 = vsel %vm5785, %v8426, 0.0
    %8675 = vadd.xlane.f32.xlu0 %v8674
    %v8676 = vpop.xlane.xlu0 %8675
    %v8677 = vsel %vm5785, %v8427, 0.0
    %8678 = vadd.xlane.f32.xlu0 %v8677
    %v8679 = vpop.xlane.xlu0 %8678
    %v8680 = vsel %vm5785, %v8428, 0.0
    %8681 = vadd.xlane.f32.xlu0 %v8680
    %v8682 = vpop.xlane.xlu0 %8681
    %v8683 = vsel %vm5785, %v8429, 0.0
    %8684 = vadd.xlane.f32.xlu0 %v8683
    %v8685 = vpop.xlane.xlu0 %8684
    %v8686 = vsel %vm5785, %v8430, 0.0
    %8687 = vadd.xlane.f32.xlu0 %v8686
    %v8688 = vpop.xlane.xlu0 %8687
    %v8689 = vsel %vm5785, %v8431, 0.0
    %8690 = vadd.xlane.f32.xlu0 %v8689
    %v8691 = vpop.xlane.xlu0 %8690
    %v8692 = vsel %vm5785, %v8432, 0.0
    %8693 = vadd.xlane.f32.xlu0 %v8692
    %v8694 = vpop.xlane.xlu0 %8693
    %v8695 = vsel %vm5785, %v8433, 0.0
    %8696 = vadd.xlane.f32.xlu0 %v8695
    %v8697 = vpop.xlane.xlu0 %8696
    %v8698 = vsel %vm5785, %v8434, 0.0
    %8699 = vadd.xlane.f32.xlu0 %v8698
    %v8700 = vpop.xlane.xlu0 %8699
    %v8701 = vsel %vm5785, %v8435, 0.0
    %8702 = vadd.xlane.f32.xlu0 %v8701
    %v8703 = vpop.xlane.xlu0 %8702
    %v8704 = vsel %vm5785, %v8436, 0.0
    %8705 = vadd.xlane.f32.xlu0 %v8704
    %v8706 = vpop.xlane.xlu0 %8705
    %v8707 = vsel %vm5785, %v8437, 0.0
    %8708 = vadd.xlane.f32.xlu0 %v8707
    %v8709 = vpop.xlane.xlu0 %8708
    %v8710 = vsel %vm5785, %v8438, 0.0
    %8711 = vadd.xlane.f32.xlu0 %v8710
    %v8712 = vpop.xlane.xlu0 %8711
    %v8713 = vsel %vm5785, %v8439, 0.0
    %8714 = vadd.xlane.f32.xlu0 %v8713
    %v8715 = vpop.xlane.xlu0 %8714
    %v8716 = vsel %vm5785, %v8440, 0.0
    %8717 = vadd.xlane.f32.xlu0 %v8716
    %v8718 = vpop.xlane.xlu0 %8717
    %v8719 = vsel %vm5785, %v8441, 0.0
    %8720 = vadd.xlane.f32.xlu0 %v8719
    %v8721 = vpop.xlane.xlu0 %8720
    %v8722 = vsel %vm5785, %v8442, 0.0
    %8723 = vadd.xlane.f32.xlu0 %v8722
    %v8724 = vpop.xlane.xlu0 %8723
    %v8725 = vsel %vm5785, %v8443, 0.0
    %8726 = vadd.xlane.f32.xlu0 %v8725
    %v8727 = vpop.xlane.xlu0 %8726
    %v8728 = vsel %vm5785, %v8444, 0.0
    %8729 = vadd.xlane.f32.xlu0 %v8728
    %v8730 = vpop.xlane.xlu0 %8729
    %v8731 = vsel %vm5785, %v8445, 0.0
    %8732 = vadd.xlane.f32.xlu0 %v8731
    %v8733 = vpop.xlane.xlu0 %8732
    %v8734 = vsel %vm5785, %v8446, 0.0
    %8735 = vadd.xlane.f32.xlu0 %v8734
    %v8736 = vpop.xlane.xlu0 %8735
    %v8737 = vsel %vm5785, %v8447, 0.0
    %8738 = vadd.xlane.f32.xlu0 %v8737
    %v8739 = vpop.xlane.xlu0 %8738
    %v8740 = vsel %vm5785, %v8448, 0.0
    %8741 = vadd.xlane.f32.xlu0 %v8740
    %v8742 = vpop.xlane.xlu0 %8741
    %v8743 = vsel %vm5785, %v8449, 0.0
    %8744 = vadd.xlane.f32.xlu0 %v8743
    %v8745 = vpop.xlane.xlu0 %8744
    %v8746 = vsel %vm5785, %v8450, 0.0
    %8747 = vadd.xlane.f32.xlu0 %v8746
    %v8748 = vpop.xlane.xlu0 %8747
    %v8749 = vsel %vm5785, %v8451, 0.0
    %8750 = vadd.xlane.f32.xlu0 %v8749
    %v8751 = vpop.xlane.xlu0 %8750
    %v8752 = vsel %vm5785, %v8452, 0.0
    %8753 = vadd.xlane.f32.xlu0 %v8752
    %v8754 = vpop.xlane.xlu0 %8753
    %v8755 = vsel %vm5785, %v8453, 0.0
    %8756 = vadd.xlane.f32.xlu0 %v8755
    %v8757 = vpop.xlane.xlu0 %8756
    %v8758 = vsel %vm5785, %v8454, 0.0
    %8759 = vadd.xlane.f32.xlu0 %v8758
    %v8760 = vpop.xlane.xlu0 %8759
    %v8761 = vsel %vm5785, %v8455, 0.0
    %8762 = vadd.xlane.f32.xlu0 %v8761
    %v8763 = vpop.xlane.xlu0 %8762
    %v8764 = vsel %vm5785, %v8456, 0.0
    %8765 = vadd.xlane.f32.xlu0 %v8764
    %v8766 = vpop.xlane.xlu0 %8765
    %v8767 = vsel %vm5785, %v8457, 0.0
    %8768 = vadd.xlane.f32.xlu0 %v8767
    %v8769 = vpop.xlane.xlu0 %8768
    %v8770 = vsel %vm5785, %v8458, 0.0
    %8771 = vadd.xlane.f32.xlu0 %v8770
    %v8772 = vpop.xlane.xlu0 %8771
    %v8773 = vsel %vm5785, %v8459, 0.0
    %8774 = vadd.xlane.f32.xlu0 %v8773
    %v8775 = vpop.xlane.xlu0 %8774
    %v8776 = vsel %vm5785, %v8460, 0.0
    %8777 = vadd.xlane.f32.xlu0 %v8776
    %v8778 = vpop.xlane.xlu0 %8777
    %v8779 = vsel %vm5785, %v8461, 0.0
    %8780 = vadd.xlane.f32.xlu0 %v8779
    %v8781 = vpop.xlane.xlu0 %8780
    %v8782 = vsel %vm5785, %v8462, 0.0
    %8783 = vadd.xlane.f32.xlu0 %v8782
    %v8784 = vpop.xlane.xlu0 %8783
    %v8785 = vsel %vm5785, %v8463, 0.0
    %8786 = vadd.xlane.f32.xlu0 %v8785
    %v8787 = vpop.xlane.xlu0 %8786
    %v8788 = vsel %vm5785, %v8464, 0.0
    %8789 = vadd.xlane.f32.xlu0 %v8788
    %v8790 = vpop.xlane.xlu0 %8789
    %v8791 = vsel %vm5785, %v8465, 0.0
    %8792 = vadd.xlane.f32.xlu0 %v8791
    %v8793 = vpop.xlane.xlu0 %8792
    %v8794 = vsel %vm5785, %v8466, 0.0
    %8795 = vadd.xlane.f32.xlu0 %v8794
    %v8796 = vpop.xlane.xlu0 %8795
    %v8797 = vsel %vm5785, %v8467, 0.0
    %8798 = vadd.xlane.f32.xlu0 %v8797
    %v8799 = vpop.xlane.xlu0 %8798
    %v8800 = vsel %vm5785, %v8468, 0.0
    %8801 = vadd.xlane.f32.xlu0 %v8800
    %v8802 = vpop.xlane.xlu0 %8801
    %v8803 = vsel %vm5785, %v8469, 0.0
    %8804 = vadd.xlane.f32.xlu0 %v8803
    %v8805 = vpop.xlane.xlu0 %8804
    %v8806 = vsel %vm5785, %v8470, 0.0
    %8807 = vadd.xlane.f32.xlu0 %v8806
    %v8808 = vpop.xlane.xlu0 %8807
    %v8809 = vsel %vm5785, %v8471, 0.0
    %8810 = vadd.xlane.f32.xlu0 %v8809
    %v8811 = vpop.xlane.xlu0 %8810
    %v8812 = vsel %vm5785, %v8472, 0.0
    %8813 = vadd.xlane.f32.xlu0 %v8812
    %v8814 = vpop.xlane.xlu0 %8813
    %v8815 = vsel %vm5785, %v8473, 0.0
    %8816 = vadd.xlane.f32.xlu0 %v8815
    %v8817 = vpop.xlane.xlu0 %8816
    %v8818 = vsel %vm5785, %v8474, 0.0
    %8819 = vadd.xlane.f32.xlu0 %v8818
    %v8820 = vpop.xlane.xlu0 %8819
    %v8821 = vsel %vm5785, %v8475, 0.0
    %8822 = vadd.xlane.f32.xlu0 %v8821
    %v8823 = vpop.xlane.xlu0 %8822
    %v8824 = vsel %vm5785, %v8476, 0.0
    %8825 = vadd.xlane.f32.xlu0 %v8824
    %v8826 = vpop.xlane.xlu0 %8825
    %v8827 = vsel %vm5785, %v8477, 0.0
    %8828 = vadd.xlane.f32.xlu0 %v8827
    %v8829 = vpop.xlane.xlu0 %8828
    %v8830 = vsel %vm5785, %v8478, 0.0
    %8831 = vadd.xlane.f32.xlu0 %v8830
    %v8832 = vpop.xlane.xlu0 %8831
    %v8833 = vsel %vm5785, %v8479, 0.0
    %8834 = vadd.xlane.f32.xlu0 %v8833
    %v8835 = vpop.xlane.xlu0 %8834
    %v8836 = vsel %vm5785, %v8480, 0.0
    %8837 = vadd.xlane.f32.xlu0 %v8836
    %v8838 = vpop.xlane.xlu0 %8837
    %v8839 = vsel %vm5785, %v8481, 0.0
    %8840 = vadd.xlane.f32.xlu0 %v8839
    %v8841 = vpop.xlane.xlu0 %8840
    %v8842 = vsel %vm5785, %v8482, 0.0
    %8843 = vadd.xlane.f32.xlu0 %v8842
    %v8844 = vpop.xlane.xlu0 %8843
    %v8845 = vsel %vm5785, %v8483, 0.0
    %8846 = vadd.xlane.f32.xlu0 %v8845
    %v8847 = vpop.xlane.xlu0 %8846
    %v8848 = vsel %vm5785, %v8484, 0.0
    %8849 = vadd.xlane.f32.xlu0 %v8848
    %v8850 = vpop.xlane.xlu0 %8849
    %v8851 = vsel %vm5785, %v8485, 0.0
    %8852 = vadd.xlane.f32.xlu0 %v8851
    %v8853 = vpop.xlane.xlu0 %8852
    %v8854 = vsel %vm5785, %v8486, 0.0
    %8855 = vadd.xlane.f32.xlu0 %v8854
    %v8856 = vpop.xlane.xlu0 %8855
    %v8857 = vsel %vm5785, %v8487, 0.0
    %8858 = vadd.xlane.f32.xlu0 %v8857
    %v8859 = vpop.xlane.xlu0 %8858
    %v8860 = vsel %vm5785, %v8488, 0.0
    %8861 = vadd.xlane.f32.xlu0 %v8860
    %v8862 = vpop.xlane.xlu0 %8861
    %v8863 = vsel %vm5785, %v8489, 0.0
    %8864 = vadd.xlane.f32.xlu0 %v8863
    %v8865 = vpop.xlane.xlu0 %8864
    %v8866 = vsel %vm5785, %v8490, 0.0
    %8867 = vadd.xlane.f32.xlu0 %v8866
    %v8868 = vpop.xlane.xlu0 %8867
    %v8869 = vsel %vm5785, %v8491, 0.0
    %8870 = vadd.xlane.f32.xlu0 %v8869
    %v8871 = vpop.xlane.xlu0 %8870
    %v8872 = vsel %vm5785, %v8492, 0.0
    %8873 = vadd.xlane.f32.xlu0 %v8872
    %v8874 = vpop.xlane.xlu0 %8873
    %v8875 = vsel %vm5785, %v8493, 0.0
    %8876 = vadd.xlane.f32.xlu0 %v8875
    %v8877 = vpop.xlane.xlu0 %8876
    %v8878 = vld [vmem:[#allocation2] sm:$0x1]
    %v8880 = vlaneseq
    %v8881 = vshrl.u32 %v8880, 7
    %v8882 = vsub.s32 0, %v8881
    %v8883 = vrot.slane %v8878, %v8882
    %8884 = vset.pattern.permute.xlu0 0
    %8885 = vperm.xlu0 %8884, %v8883
    %v8886 = vpop.permute.xlu0 %8885
    %v8888 = vadd.f32 %v8496, %v8886
    %v8889 = vadd.f32 %v8499, %v8886
    %v8890 = vadd.f32 %v8502, %v8886
    %v8891 = vadd.f32 %v8505, %v8886
    %v8892 = vadd.f32 %v8508, %v8886
    %v8893 = vadd.f32 %v8511, %v8886
    %v8894 = vadd.f32 %v8514, %v8886
    %v8895 = vadd.f32 %v8517, %v8886
    %v8896 = vadd.f32 %v8520, %v8886
    %v8897 = vadd.f32 %v8523, %v8886
    %v8898 = vadd.f32 %v8526, %v8886
    %v8899 = vadd.f32 %v8529, %v8886
    %v8900 = vadd.f32 %v8532, %v8886
    %v8901 = vadd.f32 %v8535, %v8886
    %v8902 = vadd.f32 %v8538, %v8886
    %v8903 = vadd.f32 %v8541, %v8886
    %v8904 = vadd.f32 %v8544, %v8886
    %v8905 = vadd.f32 %v8547, %v8886
    %v8906 = vadd.f32 %v8550, %v8886
    %v8907 = vadd.f32 %v8553, %v8886
    %v8908 = vadd.f32 %v8556, %v8886
    %v8909 = vadd.f32 %v8559, %v8886
    %v8910 = vadd.f32 %v8562, %v8886
    %v8911 = vadd.f32 %v8565, %v8886
    %v8912 = vadd.f32 %v8568, %v8886
    %v8913 = vadd.f32 %v8571, %v8886
    %v8914 = vadd.f32 %v8574, %v8886
    %v8915 = vadd.f32 %v8577, %v8886
    %v8916 = vadd.f32 %v8580, %v8886
    %v8917 = vadd.f32 %v8583, %v8886
    %v8918 = vadd.f32 %v8586, %v8886
    %v8919 = vadd.f32 %v8589, %v8886
    %v8920 = vadd.f32 %v8592, %v8886
    %v8921 = vadd.f32 %v8595, %v8886
    %v8922 = vadd.f32 %v8598, %v8886
    %v8923 = vadd.f32 %v8601, %v8886
    %v8924 = vadd.f32 %v8604, %v8886
    %v8925 = vadd.f32 %v8607, %v8886
    %v8926 = vadd.f32 %v8610, %v8886
    %v8927 = vadd.f32 %v8613, %v8886
    %v8928 = vadd.f32 %v8616, %v8886
    %v8929 = vadd.f32 %v8619, %v8886
    %v8930 = vadd.f32 %v8622, %v8886
    %v8931 = vadd.f32 %v8625, %v8886
    %v8932 = vadd.f32 %v8628, %v8886
    %v8933 = vadd.f32 %v8631, %v8886
    %v8934 = vadd.f32 %v8634, %v8886
    %v8935 = vadd.f32 %v8637, %v8886
    %v8936 = vadd.f32 %v8640, %v8886
    %v8937 = vadd.f32 %v8643, %v8886
    %v8938 = vadd.f32 %v8646, %v8886
    %v8939 = vadd.f32 %v8649, %v8886
    %v8940 = vadd.f32 %v8652, %v8886
    %v8941 = vadd.f32 %v8655, %v8886
    %v8942 = vadd.f32 %v8658, %v8886
    %v8943 = vadd.f32 %v8661, %v8886
    %v8944 = vadd.f32 %v8664, %v8886
    %v8945 = vadd.f32 %v8667, %v8886
    %v8946 = vadd.f32 %v8670, %v8886
    %v8947 = vadd.f32 %v8673, %v8886
    %v8948 = vadd.f32 %v8676, %v8886
    %v8949 = vadd.f32 %v8679, %v8886
    %v8950 = vadd.f32 %v8682, %v8886
    %v8951 = vadd.f32 %v8685, %v8886
    %v8952 = vadd.f32 %v8688, %v8886
    %v8953 = vadd.f32 %v8691, %v8886
    %v8954 = vadd.f32 %v8694, %v8886
    %v8955 = vadd.f32 %v8697, %v8886
    %v8956 = vadd.f32 %v8700, %v8886
    %v8957 = vadd.f32 %v8703, %v8886
    %v8958 = vadd.f32 %v8706, %v8886
    %v8959 = vadd.f32 %v8709, %v8886
    %v8960 = vadd.f32 %v8712, %v8886
    %v8961 = vadd.f32 %v8715, %v8886
    %v8962 = vadd.f32 %v8718, %v8886
    %v8963 = vadd.f32 %v8721, %v8886
    %v8964 = vadd.f32 %v8724, %v8886
    %v8965 = vadd.f32 %v8727, %v8886
    %v8966 = vadd.f32 %v8730, %v8886
    %v8967 = vadd.f32 %v8733, %v8886
    %v8968 = vadd.f32 %v8736, %v8886
    %v8969 = vadd.f32 %v8739, %v8886
    %v8970 = vadd.f32 %v8742, %v8886
    %v8971 = vadd.f32 %v8745, %v8886
    %v8972 = vadd.f32 %v8748, %v8886
    %v8973 = vadd.f32 %v8751, %v8886
    %v8974 = vadd.f32 %v8754, %v8886
    %v8975 = vadd.f32 %v8757, %v8886
    %v8976 = vadd.f32 %v8760, %v8886
    %v8977 = vadd.f32 %v8763, %v8886
    %v8978 = vadd.f32 %v8766, %v8886
    %v8979 = vadd.f32 %v8769, %v8886
    %v8980 = vadd.f32 %v8772, %v8886
    %v8981 = vadd.f32 %v8775, %v8886
    %v8982 = vadd.f32 %v8778, %v8886
    %v8983 = vadd.f32 %v8781, %v8886
    %v8984 = vadd.f32 %v8784, %v8886
    %v8985 = vadd.f32 %v8787, %v8886
    %v8986 = vadd.f32 %v8790, %v8886
    %v8987 = vadd.f32 %v8793, %v8886
    %v8988 = vadd.f32 %v8796, %v8886
    %v8989 = vadd.f32 %v8799, %v8886
    %v8990 = vadd.f32 %v8802, %v8886
    %v8991 = vadd.f32 %v8805, %v8886
    %v8992 = vadd.f32 %v8808, %v8886
    %v8993 = vadd.f32 %v8811, %v8886
    %v8994 = vadd.f32 %v8814, %v8886
    %v8995 = vadd.f32 %v8817, %v8886
    %v8996 = vadd.f32 %v8820, %v8886
    %v8997 = vadd.f32 %v8823, %v8886
    %v8998 = vadd.f32 %v8826, %v8886
    %v8999 = vadd.f32 %v8829, %v8886
    %v9000 = vadd.f32 %v8832, %v8886
    %v9001 = vadd.f32 %v8835, %v8886
    %v9002 = vadd.f32 %v8838, %v8886
    %v9003 = vadd.f32 %v8841, %v8886
    %v9004 = vadd.f32 %v8844, %v8886
    %v9005 = vadd.f32 %v8847, %v8886
    %v9006 = vadd.f32 %v8850, %v8886
    %v9007 = vadd.f32 %v8853, %v8886
    %v9008 = vadd.f32 %v8856, %v8886
    %v9009 = vadd.f32 %v8859, %v8886
    %v9010 = vadd.f32 %v8862, %v8886
    %v9011 = vadd.f32 %v8865, %v8886
    %v9012 = vadd.f32 %v8868, %v8886
    %v9013 = vadd.f32 %v8871, %v8886
    %v9014 = vadd.f32 %v8874, %v8886
    %v9015 = vadd.f32 %v8877, %v8886
    %v9016 = vmax.f32 %v8888, 0.0
    %v9017 = vmax.f32 %v8889, 0.0
    %v9018 = vmax.f32 %v8890, 0.0
    %v9019 = vmax.f32 %v8891, 0.0
    %v9020 = vmax.f32 %v8892, 0.0
    %v9021 = vmax.f32 %v8893, 0.0
    %v9022 = vmax.f32 %v8894, 0.0
    %v9023 = vmax.f32 %v8895, 0.0
    %v9024 = vmax.f32 %v8896, 0.0
    %v9025 = vmax.f32 %v8897, 0.0
    %v9026 = vmax.f32 %v8898, 0.0
    %v9027 = vmax.f32 %v8899, 0.0
    %v9028 = vmax.f32 %v8900, 0.0
    %v9029 = vmax.f32 %v8901, 0.0
    %v9030 = vmax.f32 %v8902, 0.0
    %v9031 = vmax.f32 %v8903, 0.0
    %v9032 = vmax.f32 %v8904, 0.0
    %v9033 = vmax.f32 %v8905, 0.0
    %v9034 = vmax.f32 %v8906, 0.0
    %v9035 = vmax.f32 %v8907, 0.0
    %v9036 = vmax.f32 %v8908, 0.0
    %v9037 = vmax.f32 %v8909, 0.0
    %v9038 = vmax.f32 %v8910, 0.0
    %v9039 = vmax.f32 %v8911, 0.0
    %v9040 = vmax.f32 %v8912, 0.0
    %v9041 = vmax.f32 %v8913, 0.0
    %v9042 = vmax.f32 %v8914, 0.0
    %v9043 = vmax.f32 %v8915, 0.0
    %v9044 = vmax.f32 %v8916, 0.0
    %v9045 = vmax.f32 %v8917, 0.0
    %v9046 = vmax.f32 %v8918, 0.0
    %v9047 = vmax.f32 %v8919, 0.0
    %v9048 = vmax.f32 %v8920, 0.0
    %v9049 = vmax.f32 %v8921, 0.0
    %v9050 = vmax.f32 %v8922, 0.0
    %v9051 = vmax.f32 %v8923, 0.0
    %v9052 = vmax.f32 %v8924, 0.0
    %v9053 = vmax.f32 %v8925, 0.0
    %v9054 = vmax.f32 %v8926, 0.0
    %v9055 = vmax.f32 %v8927, 0.0
    %v9056 = vmax.f32 %v8928, 0.0
    %v9057 = vmax.f32 %v8929, 0.0
    %v9058 = vmax.f32 %v8930, 0.0
    %v9059 = vmax.f32 %v8931, 0.0
    %v9060 = vmax.f32 %v8932, 0.0
    %v9061 = vmax.f32 %v8933, 0.0
    %v9062 = vmax.f32 %v8934, 0.0
    %v9063 = vmax.f32 %v8935, 0.0
    %v9064 = vmax.f32 %v8936, 0.0
    %v9065 = vmax.f32 %v8937, 0.0
    %v9066 = vmax.f32 %v8938, 0.0
    %v9067 = vmax.f32 %v8939, 0.0
    %v9068 = vmax.f32 %v8940, 0.0
    %v9069 = vmax.f32 %v8941, 0.0
    %v9070 = vmax.f32 %v8942, 0.0
    %v9071 = vmax.f32 %v8943, 0.0
    %v9072 = vmax.f32 %v8944, 0.0
    %v9073 = vmax.f32 %v8945, 0.0
    %v9074 = vmax.f32 %v8946, 0.0
    %v9075 = vmax.f32 %v8947, 0.0
    %v9076 = vmax.f32 %v8948, 0.0
    %v9077 = vmax.f32 %v8949, 0.0
    %v9078 = vmax.f32 %v8950, 0.0
    %v9079 = vmax.f32 %v8951, 0.0
    %v9080 = vmax.f32 %v8952, 0.0
    %v9081 = vmax.f32 %v8953, 0.0
    %v9082 = vmax.f32 %v8954, 0.0
    %v9083 = vmax.f32 %v8955, 0.0
    %v9084 = vmax.f32 %v8956, 0.0
    %v9085 = vmax.f32 %v8957, 0.0
    %v9086 = vmax.f32 %v8958, 0.0
    %v9087 = vmax.f32 %v8959, 0.0
    %v9088 = vmax.f32 %v8960, 0.0
    %v9089 = vmax.f32 %v8961, 0.0
    %v9090 = vmax.f32 %v8962, 0.0
    %v9091 = vmax.f32 %v8963, 0.0
    %v9092 = vmax.f32 %v8964, 0.0
    %v9093 = vmax.f32 %v8965, 0.0
    %v9094 = vmax.f32 %v8966, 0.0
    %v9095 = vmax.f32 %v8967, 0.0
    %v9096 = vmax.f32 %v8968, 0.0
    %v9097 = vmax.f32 %v8969, 0.0
    %v9098 = vmax.f32 %v8970, 0.0
    %v9099 = vmax.f32 %v8971, 0.0
    %v9100 = vmax.f32 %v8972, 0.0
    %v9101 = vmax.f32 %v8973, 0.0
    %v9102 = vmax.f32 %v8974, 0.0
    %v9103 = vmax.f32 %v8975, 0.0
    %v9104 = vmax.f32 %v8976, 0.0
    %v9105 = vmax.f32 %v8977, 0.0
    %v9106 = vmax.f32 %v8978, 0.0
    %v9107 = vmax.f32 %v8979, 0.0
    %v9108 = vmax.f32 %v8980, 0.0
    %v9109 = vmax.f32 %v8981, 0.0
    %v9110 = vmax.f32 %v8982, 0.0
    %v9111 = vmax.f32 %v8983, 0.0
    %v9112 = vmax.f32 %v8984, 0.0
    %v9113 = vmax.f32 %v8985, 0.0
    %v9114 = vmax.f32 %v8986, 0.0
    %v9115 = vmax.f32 %v8987, 0.0
    %v9116 = vmax.f32 %v8988, 0.0
    %v9117 = vmax.f32 %v8989, 0.0
    %v9118 = vmax.f32 %v8990, 0.0
    %v9119 = vmax.f32 %v8991, 0.0
    %v9120 = vmax.f32 %v8992, 0.0
    %v9121 = vmax.f32 %v8993, 0.0
    %v9122 = vmax.f32 %v8994, 0.0
    %v9123 = vmax.f32 %v8995, 0.0
    %v9124 = vmax.f32 %v8996, 0.0
    %v9125 = vmax.f32 %v8997, 0.0
    %v9126 = vmax.f32 %v8998, 0.0
    %v9127 = vmax.f32 %v8999, 0.0
    %v9128 = vmax.f32 %v9000, 0.0
    %v9129 = vmax.f32 %v9001, 0.0
    %v9130 = vmax.f32 %v9002, 0.0
    %v9131 = vmax.f32 %v9003, 0.0
    %v9132 = vmax.f32 %v9004, 0.0
    %v9133 = vmax.f32 %v9005, 0.0
    %v9134 = vmax.f32 %v9006, 0.0
    %v9135 = vmax.f32 %v9007, 0.0
    %v9136 = vmax.f32 %v9008, 0.0
    %v9137 = vmax.f32 %v9009, 0.0
    %v9138 = vmax.f32 %v9010, 0.0
    %v9139 = vmax.f32 %v9011, 0.0
    %v9140 = vmax.f32 %v9012, 0.0
    %v9141 = vmax.f32 %v9013, 0.0
    %v9142 = vmax.f32 %v9014, 0.0
    %v9143 = vmax.f32 %v9015, 0.0
    %v9272 = vlaneseq
    %v9273 = vand.u32 %v9272, 127
    %v9274 = vlaneseq
    %v9275 = vshrl.u32 %v9274, 7
    %v9276 = vsub.s32 %v9273, %v9275
    %v9277 = vrot.slane %v9016, %v9276
    %v9278 = vadd.s32 %v9273, 4294967288
    %v9279 = vlaneseq
    %v9280 = vshrl.u32 %v9279, 7
    %v9281 = vsub.s32 %v9278, %v9280
    %v9282 = vrot.slane %v9017, %v9281
    %vm9283 = vcmask 130112
    %v9284 = vsel %vm9283, %v9282, %v9277
    %v9285 = vadd.s32 %v9273, 4294967280
    %v9286 = vlaneseq
    %v9287 = vshrl.u32 %v9286, 7
    %v9288 = vsub.s32 %v9285, %v9287
    %v9289 = vrot.slane %v9018, %v9288
    %vm9290 = vcmask 195712
    %v9291 = vsel %vm9290, %v9289, %v9284
    %v9292 = vadd.s32 %v9273, 4294967272
    %v9293 = vlaneseq
    %v9294 = vshrl.u32 %v9293, 7
    %v9295 = vsub.s32 %v9292, %v9294
    %v9296 = vrot.slane %v9019, %v9295
    %vm9297 = vcmask 261312
    %v9298 = vsel %vm9297, %v9296, %v9291
    %v9299 = vadd.s32 %v9273, 4294967264
    %v9300 = vlaneseq
    %v9301 = vshrl.u32 %v9300, 7
    %v9302 = vsub.s32 %v9299, %v9301
    %v9303 = vrot.slane %v9020, %v9302
    %vm9304 = vcmask 326912
    %v9305 = vsel %vm9304, %v9303, %v9298
    %v9306 = vadd.s32 %v9273, 4294967256
    %v9307 = vlaneseq
    %v9308 = vshrl.u32 %v9307, 7
    %v9309 = vsub.s32 %v9306, %v9308
    %v9310 = vrot.slane %v9021, %v9309
    %vm9311 = vcmask 392512
    %v9312 = vsel %vm9311, %v9310, %v9305
    %v9313 = vadd.s32 %v9273, 4294967248
    %v9314 = vlaneseq
    %v9315 = vshrl.u32 %v9314, 7
    %v9316 = vsub.s32 %v9313, %v9315
    %v9317 = vrot.slane %v9022, %v9316
    %vm9318 = vcmask 458112
    %v9319 = vsel %vm9318, %v9317, %v9312
    %v9320 = vadd.s32 %v9273, 4294967240
    %v9321 = vlaneseq
    %v9322 = vshrl.u32 %v9321, 7
    %v9323 = vsub.s32 %v9320, %v9322
    %v9324 = vrot.slane %v9023, %v9323
    %vm9325 = vcmask 523712
    %v9326 = vsel %vm9325, %v9324, %v9319
    %v9327 = vlaneseq
    %v9328 = vshrl.u32 %v9327, 7
    %v9329 = vsub.s32 %v9273, %v9328
    %v9330 = vrot.slane %v9024, %v9329
    %v9331 = vlaneseq
    %v9332 = vshrl.u32 %v9331, 7
    %v9333 = vsub.s32 %v9278, %v9332
    %v9334 = vrot.slane %v9025, %v9333
    %v9335 = vsel %vm9283, %v9334, %v9330
    %v9336 = vlaneseq
    %v9337 = vshrl.u32 %v9336, 7
    %v9338 = vsub.s32 %v9285, %v9337
    %v9339 = vrot.slane %v9026, %v9338
    %v9340 = vsel %vm9290, %v9339, %v9335
    %v9341 = vlaneseq
    %v9342 = vshrl.u32 %v9341, 7
    %v9343 = vsub.s32 %v9292, %v9342
    %v9344 = vrot.slane %v9027, %v9343
    %v9345 = vsel %vm9297, %v9344, %v9340
    %v9346 = vlaneseq
    %v9347 = vshrl.u32 %v9346, 7
    %v9348 = vsub.s32 %v9299, %v9347
    %v9349 = vrot.slane %v9028, %v9348
    %v9350 = vsel %vm9304, %v9349, %v9345
    %v9351 = vlaneseq
    %v9352 = vshrl.u32 %v9351, 7
    %v9353 = vsub.s32 %v9306, %v9352
    %v9354 = vrot.slane %v9029, %v9353
    %v9355 = vsel %vm9311, %v9354, %v9350
    %v9356 = vlaneseq
    %v9357 = vshrl.u32 %v9356, 7
    %v9358 = vsub.s32 %v9313, %v9357
    %v9359 = vrot.slane %v9030, %v9358
    %v9360 = vsel %vm9318, %v9359, %v9355
    %v9361 = vlaneseq
    %v9362 = vshrl.u32 %v9361, 7
    %v9363 = vsub.s32 %v9320, %v9362
    %v9364 = vrot.slane %v9031, %v9363
    %v9365 = vsel %vm9325, %v9364, %v9360
    %v9366 = vlaneseq
    %v9367 = vshrl.u32 %v9366, 7
    %v9368 = vsub.s32 %v9273, %v9367
    %v9369 = vrot.slane %v9032, %v9368
    %v9370 = vlaneseq
    %v9371 = vshrl.u32 %v9370, 7
    %v9372 = vsub.s32 %v9278, %v9371
    %v9373 = vrot.slane %v9033, %v9372
    %v9374 = vsel %vm9283, %v9373, %v9369
    %v9375 = vlaneseq
    %v9376 = vshrl.u32 %v9375, 7
    %v9377 = vsub.s32 %v9285, %v9376
    %v9378 = vrot.slane %v9034, %v9377
    %v9379 = vsel %vm9290, %v9378, %v9374
    %v9380 = vlaneseq
    %v9381 = vshrl.u32 %v9380, 7
    %v9382 = vsub.s32 %v9292, %v9381
    %v9383 = vrot.slane %v9035, %v9382
    %v9384 = vsel %vm9297, %v9383, %v9379
    %v9385 = vlaneseq
    %v9386 = vshrl.u32 %v9385, 7
    %v9387 = vsub.s32 %v9299, %v9386
    %v9388 = vrot.slane %v9036, %v9387
    %v9389 = vsel %vm9304, %v9388, %v9384
    %v9390 = vlaneseq
    %v9391 = vshrl.u32 %v9390, 7
    %v9392 = vsub.s32 %v9306, %v9391
    %v9393 = vrot.slane %v9037, %v9392
    %v9394 = vsel %vm9311, %v9393, %v9389
    %v9395 = vlaneseq
    %v9396 = vshrl.u32 %v9395, 7
    %v9397 = vsub.s32 %v9313, %v9396
    %v9398 = vrot.slane %v9038, %v9397
    %v9399 = vsel %vm9318, %v9398, %v9394
    %v9400 = vlaneseq
    %v9401 = vshrl.u32 %v9400, 7
    %v9402 = vsub.s32 %v9320, %v9401
    %v9403 = vrot.slane %v9039, %v9402
    %v9404 = vsel %vm9325, %v9403, %v9399
    %v9405 = vlaneseq
    %v9406 = vshrl.u32 %v9405, 7
    %v9407 = vsub.s32 %v9273, %v9406
    %v9408 = vrot.slane %v9040, %v9407
    %v9409 = vlaneseq
    %v9410 = vshrl.u32 %v9409, 7
    %v9411 = vsub.s32 %v9278, %v9410
    %v9412 = vrot.slane %v9041, %v9411
    %v9413 = vsel %vm9283, %v9412, %v9408
    %v9414 = vlaneseq
    %v9415 = vshrl.u32 %v9414, 7
    %v9416 = vsub.s32 %v9285, %v9415
    %v9417 = vrot.slane %v9042, %v9416
    %v9418 = vsel %vm9290, %v9417, %v9413
    %v9419 = vlaneseq
    %v9420 = vshrl.u32 %v9419, 7
    %v9421 = vsub.s32 %v9292, %v9420
    %v9422 = vrot.slane %v9043, %v9421
    %v9423 = vsel %vm9297, %v9422, %v9418
    %v9424 = vlaneseq
    %v9425 = vshrl.u32 %v9424, 7
    %v9426 = vsub.s32 %v9299, %v9425
    %v9427 = vrot.slane %v9044, %v9426
    %v9428 = vsel %vm9304, %v9427, %v9423
    %v9429 = vlaneseq
    %v9430 = vshrl.u32 %v9429, 7
    %v9431 = vsub.s32 %v9306, %v9430
    %v9432 = vrot.slane %v9045, %v9431
    %v9433 = vsel %vm9311, %v9432, %v9428
    %v9434 = vlaneseq
    %v9435 = vshrl.u32 %v9434, 7
    %v9436 = vsub.s32 %v9313, %v9435
    %v9437 = vrot.slane %v9046, %v9436
    %v9438 = vsel %vm9318, %v9437, %v9433
    %v9439 = vlaneseq
    %v9440 = vshrl.u32 %v9439, 7
    %v9441 = vsub.s32 %v9320, %v9440
    %v9442 = vrot.slane %v9047, %v9441
    %v9443 = vsel %vm9325, %v9442, %v9438
    %v9444 = vlaneseq
    %v9445 = vshrl.u32 %v9444, 7
    %v9446 = vsub.s32 %v9273, %v9445
    %v9447 = vrot.slane %v9048, %v9446
    %v9448 = vlaneseq
    %v9449 = vshrl.u32 %v9448, 7
    %v9450 = vsub.s32 %v9278, %v9449
    %v9451 = vrot.slane %v9049, %v9450
    %v9452 = vsel %vm9283, %v9451, %v9447
    %v9453 = vlaneseq
    %v9454 = vshrl.u32 %v9453, 7
    %v9455 = vsub.s32 %v9285, %v9454
    %v9456 = vrot.slane %v9050, %v9455
    %v9457 = vsel %vm9290, %v9456, %v9452
    %v9458 = vlaneseq
    %v9459 = vshrl.u32 %v9458, 7
    %v9460 = vsub.s32 %v9292, %v9459
    %v9461 = vrot.slane %v9051, %v9460
    %v9462 = vsel %vm9297, %v9461, %v9457
    %v9463 = vlaneseq
    %v9464 = vshrl.u32 %v9463, 7
    %v9465 = vsub.s32 %v9299, %v9464
    %v9466 = vrot.slane %v9052, %v9465
    %v9467 = vsel %vm9304, %v9466, %v9462
    %v9468 = vlaneseq
    %v9469 = vshrl.u32 %v9468, 7
    %v9470 = vsub.s32 %v9306, %v9469
    %v9471 = vrot.slane %v9053, %v9470
    %v9472 = vsel %vm9311, %v9471, %v9467
    %v9473 = vlaneseq
    %v9474 = vshrl.u32 %v9473, 7
    %v9475 = vsub.s32 %v9313, %v9474
    %v9476 = vrot.slane %v9054, %v9475
    %v9477 = vsel %vm9318, %v9476, %v9472
    %v9478 = vlaneseq
    %v9479 = vshrl.u32 %v9478, 7
    %v9480 = vsub.s32 %v9320, %v9479
    %v9481 = vrot.slane %v9055, %v9480
    %v9482 = vsel %vm9325, %v9481, %v9477
    %v9483 = vlaneseq
    %v9484 = vshrl.u32 %v9483, 7
    %v9485 = vsub.s32 %v9273, %v9484
    %v9486 = vrot.slane %v9056, %v9485
    %v9487 = vlaneseq
    %v9488 = vshrl.u32 %v9487, 7
    %v9489 = vsub.s32 %v9278, %v9488
    %v9490 = vrot.slane %v9057, %v9489
    %v9491 = vsel %vm9283, %v9490, %v9486
    %v9492 = vlaneseq
    %v9493 = vshrl.u32 %v9492, 7
    %v9494 = vsub.s32 %v9285, %v9493
    %v9495 = vrot.slane %v9058, %v9494
    %v9496 = vsel %vm9290, %v9495, %v9491
    %v9497 = vlaneseq
    %v9498 = vshrl.u32 %v9497, 7
    %v9499 = vsub.s32 %v9292, %v9498
    %v9500 = vrot.slane %v9059, %v9499
    %v9501 = vsel %vm9297, %v9500, %v9496
    %v9502 = vlaneseq
    %v9503 = vshrl.u32 %v9502, 7
    %v9504 = vsub.s32 %v9299, %v9503
    %v9505 = vrot.slane %v9060, %v9504
    %v9506 = vsel %vm9304, %v9505, %v9501
    %v9507 = vlaneseq
    %v9508 = vshrl.u32 %v9507, 7
    %v9509 = vsub.s32 %v9306, %v9508
    %v9510 = vrot.slane %v9061, %v9509
    %v9511 = vsel %vm9311, %v9510, %v9506
    %v9512 = vlaneseq
    %v9513 = vshrl.u32 %v9512, 7
    %v9514 = vsub.s32 %v9313, %v9513
    %v9515 = vrot.slane %v9062, %v9514
    %v9516 = vsel %vm9318, %v9515, %v9511
    %v9517 = vlaneseq
    %v9518 = vshrl.u32 %v9517, 7
    %v9519 = vsub.s32 %v9320, %v9518
    %v9520 = vrot.slane %v9063, %v9519
    %v9521 = vsel %vm9325, %v9520, %v9516
    %v9522 = vlaneseq
    %v9523 = vshrl.u32 %v9522, 7
    %v9524 = vsub.s32 %v9273, %v9523
    %v9525 = vrot.slane %v9064, %v9524
    %v9526 = vlaneseq
    %v9527 = vshrl.u32 %v9526, 7
    %v9528 = vsub.s32 %v9278, %v9527
    %v9529 = vrot.slane %v9065, %v9528
    %v9530 = vsel %vm9283, %v9529, %v9525
    %v9531 = vlaneseq
    %v9532 = vshrl.u32 %v9531, 7
    %v9533 = vsub.s32 %v9285, %v9532
    %v9534 = vrot.slane %v9066, %v9533
    %v9535 = vsel %vm9290, %v9534, %v9530
    %v9536 = vlaneseq
    %v9537 = vshrl.u32 %v9536, 7
    %v9538 = vsub.s32 %v9292, %v9537
    %v9539 = vrot.slane %v9067, %v9538
    %v9540 = vsel %vm9297, %v9539, %v9535
    %v9541 = vlaneseq
    %v9542 = vshrl.u32 %v9541, 7
    %v9543 = vsub.s32 %v9299, %v9542
    %v9544 = vrot.slane %v9068, %v9543
    %v9545 = vsel %vm9304, %v9544, %v9540
    %v9546 = vlaneseq
    %v9547 = vshrl.u32 %v9546, 7
    %v9548 = vsub.s32 %v9306, %v9547
    %v9549 = vrot.slane %v9069, %v9548
    %v9550 = vsel %vm9311, %v9549, %v9545
    %v9551 = vlaneseq
    %v9552 = vshrl.u32 %v9551, 7
    %v9553 = vsub.s32 %v9313, %v9552
    %v9554 = vrot.slane %v9070, %v9553
    %v9555 = vsel %vm9318, %v9554, %v9550
    %v9556 = vlaneseq
    %v9557 = vshrl.u32 %v9556, 7
    %v9558 = vsub.s32 %v9320, %v9557
    %v9559 = vrot.slane %v9071, %v9558
    %v9560 = vsel %vm9325, %v9559, %v9555
    %v9561 = vlaneseq
    %v9562 = vshrl.u32 %v9561, 7
    %v9563 = vsub.s32 %v9273, %v9562
    %v9564 = vrot.slane %v9072, %v9563
    %v9565 = vlaneseq
    %v9566 = vshrl.u32 %v9565, 7
    %v9567 = vsub.s32 %v9278, %v9566
    %v9568 = vrot.slane %v9073, %v9567
    %v9569 = vsel %vm9283, %v9568, %v9564
    %v9570 = vlaneseq
    %v9571 = vshrl.u32 %v9570, 7
    %v9572 = vsub.s32 %v9285, %v9571
    %v9573 = vrot.slane %v9074, %v9572
    %v9574 = vsel %vm9290, %v9573, %v9569
    %v9575 = vlaneseq
    %v9576 = vshrl.u32 %v9575, 7
    %v9577 = vsub.s32 %v9292, %v9576
    %v9578 = vrot.slane %v9075, %v9577
    %v9579 = vsel %vm9297, %v9578, %v9574
    %v9580 = vlaneseq
    %v9581 = vshrl.u32 %v9580, 7
    %v9582 = vsub.s32 %v9299, %v9581
    %v9583 = vrot.slane %v9076, %v9582
    %v9584 = vsel %vm9304, %v9583, %v9579
    %v9585 = vlaneseq
    %v9586 = vshrl.u32 %v9585, 7
    %v9587 = vsub.s32 %v9306, %v9586
    %v9588 = vrot.slane %v9077, %v9587
    %v9589 = vsel %vm9311, %v9588, %v9584
    %v9590 = vlaneseq
    %v9591 = vshrl.u32 %v9590, 7
    %v9592 = vsub.s32 %v9313, %v9591
    %v9593 = vrot.slane %v9078, %v9592
    %v9594 = vsel %vm9318, %v9593, %v9589
    %v9595 = vlaneseq
    %v9596 = vshrl.u32 %v9595, 7
    %v9597 = vsub.s32 %v9320, %v9596
    %v9598 = vrot.slane %v9079, %v9597
    %v9599 = vsel %vm9325, %v9598, %v9594
    %v9600 = vlaneseq
    %v9601 = vshrl.u32 %v9600, 7
    %v9602 = vsub.s32 %v9273, %v9601
    %v9603 = vrot.slane %v9080, %v9602
    %v9604 = vlaneseq
    %v9605 = vshrl.u32 %v9604, 7
    %v9606 = vsub.s32 %v9278, %v9605
    %v9607 = vrot.slane %v9081, %v9606
    %v9608 = vsel %vm9283, %v9607, %v9603
    %v9609 = vlaneseq
    %v9610 = vshrl.u32 %v9609, 7
    %v9611 = vsub.s32 %v9285, %v9610
    %v9612 = vrot.slane %v9082, %v9611
    %v9613 = vsel %vm9290, %v9612, %v9608
    %v9614 = vlaneseq
    %v9615 = vshrl.u32 %v9614, 7
    %v9616 = vsub.s32 %v9292, %v9615
    %v9617 = vrot.slane %v9083, %v9616
    %v9618 = vsel %vm9297, %v9617, %v9613
    %v9619 = vlaneseq
    %v9620 = vshrl.u32 %v9619, 7
    %v9621 = vsub.s32 %v9299, %v9620
    %v9622 = vrot.slane %v9084, %v9621
    %v9623 = vsel %vm9304, %v9622, %v9618
    %v9624 = vlaneseq
    %v9625 = vshrl.u32 %v9624, 7
    %v9626 = vsub.s32 %v9306, %v9625
    %v9627 = vrot.slane %v9085, %v9626
    %v9628 = vsel %vm9311, %v9627, %v9623
    %v9629 = vlaneseq
    %v9630 = vshrl.u32 %v9629, 7
    %v9631 = vsub.s32 %v9313, %v9630
    %v9632 = vrot.slane %v9086, %v9631
    %v9633 = vsel %vm9318, %v9632, %v9628
    %v9634 = vlaneseq
    %v9635 = vshrl.u32 %v9634, 7
    %v9636 = vsub.s32 %v9320, %v9635
    %v9637 = vrot.slane %v9087, %v9636
    %v9638 = vsel %vm9325, %v9637, %v9633
    %v9639 = vlaneseq
    %v9640 = vshrl.u32 %v9639, 7
    %v9641 = vsub.s32 %v9273, %v9640
    %v9642 = vrot.slane %v9088, %v9641
    %v9643 = vlaneseq
    %v9644 = vshrl.u32 %v9643, 7
    %v9645 = vsub.s32 %v9278, %v9644
    %v9646 = vrot.slane %v9089, %v9645
    %v9647 = vsel %vm9283, %v9646, %v9642
    %v9648 = vlaneseq
    %v9649 = vshrl.u32 %v9648, 7
    %v9650 = vsub.s32 %v9285, %v9649
    %v9651 = vrot.slane %v9090, %v9650
    %v9652 = vsel %vm9290, %v9651, %v9647
    %v9653 = vlaneseq
    %v9654 = vshrl.u32 %v9653, 7
    %v9655 = vsub.s32 %v9292, %v9654
    %v9656 = vrot.slane %v9091, %v9655
    %v9657 = vsel %vm9297, %v9656, %v9652
    %v9658 = vlaneseq
    %v9659 = vshrl.u32 %v9658, 7
    %v9660 = vsub.s32 %v9299, %v9659
    %v9661 = vrot.slane %v9092, %v9660
    %v9662 = vsel %vm9304, %v9661, %v9657
    %v9663 = vlaneseq
    %v9664 = vshrl.u32 %v9663, 7
    %v9665 = vsub.s32 %v9306, %v9664
    %v9666 = vrot.slane %v9093, %v9665
    %v9667 = vsel %vm9311, %v9666, %v9662
    %v9668 = vlaneseq
    %v9669 = vshrl.u32 %v9668, 7
    %v9670 = vsub.s32 %v9313, %v9669
    %v9671 = vrot.slane %v9094, %v9670
    %v9672 = vsel %vm9318, %v9671, %v9667
    %v9673 = vlaneseq
    %v9674 = vshrl.u32 %v9673, 7
    %v9675 = vsub.s32 %v9320, %v9674
    %v9676 = vrot.slane %v9095, %v9675
    %v9677 = vsel %vm9325, %v9676, %v9672
    %v9678 = vlaneseq
    %v9679 = vshrl.u32 %v9678, 7
    %v9680 = vsub.s32 %v9273, %v9679
    %v9681 = vrot.slane %v9096, %v9680
    %v9682 = vlaneseq
    %v9683 = vshrl.u32 %v9682, 7
    %v9684 = vsub.s32 %v9278, %v9683
    %v9685 = vrot.slane %v9097, %v9684
    %v9686 = vsel %vm9283, %v9685, %v9681
    %v9687 = vlaneseq
    %v9688 = vshrl.u32 %v9687, 7
    %v9689 = vsub.s32 %v9285, %v9688
    %v9690 = vrot.slane %v9098, %v9689
    %v9691 = vsel %vm9290, %v9690, %v9686
    %v9692 = vlaneseq
    %v9693 = vshrl.u32 %v9692, 7
    %v9694 = vsub.s32 %v9292, %v9693
    %v9695 = vrot.slane %v9099, %v9694
    %v9696 = vsel %vm9297, %v9695, %v9691
    %v9697 = vlaneseq
    %v9698 = vshrl.u32 %v9697, 7
    %v9699 = vsub.s32 %v9299, %v9698
    %v9700 = vrot.slane %v9100, %v9699
    %v9701 = vsel %vm9304, %v9700, %v9696
    %v9702 = vlaneseq
    %v9703 = vshrl.u32 %v9702, 7
    %v9704 = vsub.s32 %v9306, %v9703
    %v9705 = vrot.slane %v9101, %v9704
    %v9706 = vsel %vm9311, %v9705, %v9701
    %v9707 = vlaneseq
    %v9708 = vshrl.u32 %v9707, 7
    %v9709 = vsub.s32 %v9313, %v9708
    %v9710 = vrot.slane %v9102, %v9709
    %v9711 = vsel %vm9318, %v9710, %v9706
    %v9712 = vlaneseq
    %v9713 = vshrl.u32 %v9712, 7
    %v9714 = vsub.s32 %v9320, %v9713
    %v9715 = vrot.slane %v9103, %v9714
    %v9716 = vsel %vm9325, %v9715, %v9711
    %v9717 = vlaneseq
    %v9718 = vshrl.u32 %v9717, 7
    %v9719 = vsub.s32 %v9273, %v9718
    %v9720 = vrot.slane %v9104, %v9719
    %v9721 = vlaneseq
    %v9722 = vshrl.u32 %v9721, 7
    %v9723 = vsub.s32 %v9278, %v9722
    %v9724 = vrot.slane %v9105, %v9723
    %v9725 = vsel %vm9283, %v9724, %v9720
    %v9726 = vlaneseq
    %v9727 = vshrl.u32 %v9726, 7
    %v9728 = vsub.s32 %v9285, %v9727
    %v9729 = vrot.slane %v9106, %v9728
    %v9730 = vsel %vm9290, %v9729, %v9725
    %v9731 = vlaneseq
    %v9732 = vshrl.u32 %v9731, 7
    %v9733 = vsub.s32 %v9292, %v9732
    %v9734 = vrot.slane %v9107, %v9733
    %v9735 = vsel %vm9297, %v9734, %v9730
    %v9736 = vlaneseq
    %v9737 = vshrl.u32 %v9736, 7
    %v9738 = vsub.s32 %v9299, %v9737
    %v9739 = vrot.slane %v9108, %v9738
    %v9740 = vsel %vm9304, %v9739, %v9735
    %v9741 = vlaneseq
    %v9742 = vshrl.u32 %v9741, 7
    %v9743 = vsub.s32 %v9306, %v9742
    %v9744 = vrot.slane %v9109, %v9743
    %v9745 = vsel %vm9311, %v9744, %v9740
    %v9746 = vlaneseq
    %v9747 = vshrl.u32 %v9746, 7
    %v9748 = vsub.s32 %v9313, %v9747
    %v9749 = vrot.slane %v9110, %v9748
    %v9750 = vsel %vm9318, %v9749, %v9745
    %v9751 = vlaneseq
    %v9752 = vshrl.u32 %v9751, 7
    %v9753 = vsub.s32 %v9320, %v9752
    %v9754 = vrot.slane %v9111, %v9753
    %v9755 = vsel %vm9325, %v9754, %v9750
    %v9756 = vlaneseq
    %v9757 = vshrl.u32 %v9756, 7
    %v9758 = vsub.s32 %v9273, %v9757
    %v9759 = vrot.slane %v9112, %v9758
    %v9760 = vlaneseq
    %v9761 = vshrl.u32 %v9760, 7
    %v9762 = vsub.s32 %v9278, %v9761
    %v9763 = vrot.slane %v9113, %v9762
    %v9764 = vsel %vm9283, %v9763, %v9759
    %v9765 = vlaneseq
    %v9766 = vshrl.u32 %v9765, 7
    %v9767 = vsub.s32 %v9285, %v9766
    %v9768 = vrot.slane %v9114, %v9767
    %v9769 = vsel %vm9290, %v9768, %v9764
    %v9770 = vlaneseq
    %v9771 = vshrl.u32 %v9770, 7
    %v9772 = vsub.s32 %v9292, %v9771
    %v9773 = vrot.slane %v9115, %v9772
    %v9774 = vsel %vm9297, %v9773, %v9769
    %v9775 = vlaneseq
    %v9776 = vshrl.u32 %v9775, 7
    %v9777 = vsub.s32 %v9299, %v9776
    %v9778 = vrot.slane %v9116, %v9777
    %v9779 = vsel %vm9304, %v9778, %v9774
    %v9780 = vlaneseq
    %v9781 = vshrl.u32 %v9780, 7
    %v9782 = vsub.s32 %v9306, %v9781
    %v9783 = vrot.slane %v9117, %v9782
    %v9784 = vsel %vm9311, %v9783, %v9779
    %v9785 = vlaneseq
    %v9786 = vshrl.u32 %v9785, 7
    %v9787 = vsub.s32 %v9313, %v9786
    %v9788 = vrot.slane %v9118, %v9787
    %v9789 = vsel %vm9318, %v9788, %v9784
    %v9790 = vlaneseq
    %v9791 = vshrl.u32 %v9790, 7
    %v9792 = vsub.s32 %v9320, %v9791
    %v9793 = vrot.slane %v9119, %v9792
    %v9794 = vsel %vm9325, %v9793, %v9789
    %v9795 = vlaneseq
    %v9796 = vshrl.u32 %v9795, 7
    %v9797 = vsub.s32 %v9273, %v9796
    %v9798 = vrot.slane %v9120, %v9797
    %v9799 = vlaneseq
    %v9800 = vshrl.u32 %v9799, 7
    %v9801 = vsub.s32 %v9278, %v9800
    %v9802 = vrot.slane %v9121, %v9801
    %v9803 = vsel %vm9283, %v9802, %v9798
    %v9804 = vlaneseq
    %v9805 = vshrl.u32 %v9804, 7
    %v9806 = vsub.s32 %v9285, %v9805
    %v9807 = vrot.slane %v9122, %v9806
    %v9808 = vsel %vm9290, %v9807, %v9803
    %v9809 = vlaneseq
    %v9810 = vshrl.u32 %v9809, 7
    %v9811 = vsub.s32 %v9292, %v9810
    %v9812 = vrot.slane %v9123, %v9811
    %v9813 = vsel %vm9297, %v9812, %v9808
    %v9814 = vlaneseq
    %v9815 = vshrl.u32 %v9814, 7
    %v9816 = vsub.s32 %v9299, %v9815
    %v9817 = vrot.slane %v9124, %v9816
    %v9818 = vsel %vm9304, %v9817, %v9813
    %v9819 = vlaneseq
    %v9820 = vshrl.u32 %v9819, 7
    %v9821 = vsub.s32 %v9306, %v9820
    %v9822 = vrot.slane %v9125, %v9821
    %v9823 = vsel %vm9311, %v9822, %v9818
    %v9824 = vlaneseq
    %v9825 = vshrl.u32 %v9824, 7
    %v9826 = vsub.s32 %v9313, %v9825
    %v9827 = vrot.slane %v9126, %v9826
    %v9828 = vsel %vm9318, %v9827, %v9823
    %v9829 = vlaneseq
    %v9830 = vshrl.u32 %v9829, 7
    %v9831 = vsub.s32 %v9320, %v9830
    %v9832 = vrot.slane %v9127, %v9831
    %v9833 = vsel %vm9325, %v9832, %v9828
    %v9834 = vlaneseq
    %v9835 = vshrl.u32 %v9834, 7
    %v9836 = vsub.s32 %v9273, %v9835
    %v9837 = vrot.slane %v9128, %v9836
    %v9838 = vlaneseq
    %v9839 = vshrl.u32 %v9838, 7
    %v9840 = vsub.s32 %v9278, %v9839
    %v9841 = vrot.slane %v9129, %v9840
    %v9842 = vsel %vm9283, %v9841, %v9837
    %v9843 = vlaneseq
    %v9844 = vshrl.u32 %v9843, 7
    %v9845 = vsub.s32 %v9285, %v9844
    %v9846 = vrot.slane %v9130, %v9845
    %v9847 = vsel %vm9290, %v9846, %v9842
    %v9848 = vlaneseq
    %v9849 = vshrl.u32 %v9848, 7
    %v9850 = vsub.s32 %v9292, %v9849
    %v9851 = vrot.slane %v9131, %v9850
    %v9852 = vsel %vm9297, %v9851, %v9847
    %v9853 = vlaneseq
    %v9854 = vshrl.u32 %v9853, 7
    %v9855 = vsub.s32 %v9299, %v9854
    %v9856 = vrot.slane %v9132, %v9855
    %v9857 = vsel %vm9304, %v9856, %v9852
    %v9858 = vlaneseq
    %v9859 = vshrl.u32 %v9858, 7
    %v9860 = vsub.s32 %v9306, %v9859
    %v9861 = vrot.slane %v9133, %v9860
    %v9862 = vsel %vm9311, %v9861, %v9857
    %v9863 = vlaneseq
    %v9864 = vshrl.u32 %v9863, 7
    %v9865 = vsub.s32 %v9313, %v9864
    %v9866 = vrot.slane %v9134, %v9865
    %v9867 = vsel %vm9318, %v9866, %v9862
    %v9868 = vlaneseq
    %v9869 = vshrl.u32 %v9868, 7
    %v9870 = vsub.s32 %v9320, %v9869
    %v9871 = vrot.slane %v9135, %v9870
    %v9872 = vsel %vm9325, %v9871, %v9867
    %v9873 = vlaneseq
    %v9874 = vshrl.u32 %v9873, 7
    %v9875 = vsub.s32 %v9273, %v9874
    %v9876 = vrot.slane %v9136, %v9875
    %v9877 = vlaneseq
    %v9878 = vshrl.u32 %v9877, 7
    %v9879 = vsub.s32 %v9278, %v9878
    %v9880 = vrot.slane %v9137, %v9879
    %v9881 = vsel %vm9283, %v9880, %v9876
    %v9882 = vlaneseq
    %v9883 = vshrl.u32 %v9882, 7
    %v9884 = vsub.s32 %v9285, %v9883
    %v9885 = vrot.slane %v9138, %v9884
    %v9886 = vsel %vm9290, %v9885, %v9881
    %v9887 = vlaneseq
    %v9888 = vshrl.u32 %v9887, 7
    %v9889 = vsub.s32 %v9292, %v9888
    %v9890 = vrot.slane %v9139, %v9889
    %v9891 = vsel %vm9297, %v9890, %v9886
    %v9892 = vlaneseq
    %v9893 = vshrl.u32 %v9892, 7
    %v9894 = vsub.s32 %v9299, %v9893
    %v9895 = vrot.slane %v9140, %v9894
    %v9896 = vsel %vm9304, %v9895, %v9891
    %v9897 = vlaneseq
    %v9898 = vshrl.u32 %v9897, 7
    %v9899 = vsub.s32 %v9306, %v9898
    %v9900 = vrot.slane %v9141, %v9899
    %v9901 = vsel %vm9311, %v9900, %v9896
    %v9902 = vlaneseq
    %v9903 = vshrl.u32 %v9902, 7
    %v9904 = vsub.s32 %v9313, %v9903
    %v9905 = vrot.slane %v9142, %v9904
    %v9906 = vsel %vm9318, %v9905, %v9901
    %v9907 = vlaneseq
    %v9908 = vshrl.u32 %v9907, 7
    %v9909 = vsub.s32 %v9320, %v9908
    %v9910 = vrot.slane %v9143, %v9909
    %v9911 = vsel %vm9325, %v9910, %v9906
    %vm9912 = vcmask 1041409
    %v9913 = vsel %vm9912, %v9365, %v9326
    %vm9914 = vcmask 1042434
    %v9915 = vsel %vm9914, %v9404, %v9913
    %vm9916 = vcmask 1043459
    %v9917 = vsel %vm9916, %v9443, %v9915
    %vm9918 = vcmask 1044484
    %v9919 = vsel %vm9918, %v9482, %v9917
    %vm9920 = vcmask 1045509
    %v9921 = vsel %vm9920, %v9521, %v9919
    %vm9922 = vcmask 1046534
    %v9923 = vsel %vm9922, %v9560, %v9921
    %vm9924 = vcmask 1047559
    %v9925 = vsel %vm9924, %v9599, %v9923
    %v9926 = vsel %vm9912, %v9677, %v9638
    %v9927 = vsel %vm9914, %v9716, %v9926
    %v9928 = vsel %vm9916, %v9755, %v9927
    %v9929 = vsel %vm9918, %v9794, %v9928
    %v9930 = vsel %vm9920, %v9833, %v9929
    %v9931 = vsel %vm9922, %v9872, %v9930
    %v9932 = vsel %vm9924, %v9911, %v9931
    %vm9935 = vcmask 523264
    %9936 = vst.msk [vmem:[#allocation3] sm:$0xff] %vm9935, %v9925
    %9937 = vst.msk [vmem:[#allocation3 + $0x8] sm:$0xff] %vm9935, %v9932
    // Predicated region
    $region54: #{edge_nri_forward.1} parent=1 // pred_check
      _
    $region55: #{edge_nri_forward.1} parent=1 // pred_check_branch
      %9939 = sbr.rel (0) target = $region57
    $region56: #{edge_nri_forward.1} parent=1 // pred_region
      _
    $region57: #{edge_nri_forward.1} parent=1 // pred_fallthru
      _
    // Predicated region
    $region58: #{edge_nri_forward.1} parent=1 // pred_check
      _
    $region59: #{edge_nri_forward.1} parent=1 // pred_check_branch
      %9941 = sbr.rel (0) target = $region61
    $region60: #{edge_nri_forward.1} parent=1 // pred_region
      %s9943 = ssub.s32 256, 256
      %9944 = vsyncadd [#allocation4], %s9943
      %s9945 = sshll.u32 [#allocation3], 4
      %s9946 = int_to_ptr.vmem [resolvable:$true] %s9945
      %9951 = dma.vmem_to_hbm [thread:$0]  %s9946, 256, %s14, [#allocation4], 128, 128, 8
    $region61: #{edge_nri_forward.1} parent=1 // pred_fallthru
      _
    // Predicated region
    $region62: #{edge_nri_forward.1} parent=1 // pred_check
      _
    $region63: #{edge_nri_forward.1} parent=1 // pred_check_branch
      %9953 = sbr.rel (0) target = $region65
    $region64: #{edge_nri_forward.1} parent=1 // pred_region
      _
    $region65: #{edge_nri_forward.1} parent=1 // pred_fallthru
      _
    // Predicated region
    $region66: #{edge_nri_forward.1} parent=1 // pred_check
      _
    $region67: #{edge_nri_forward.1} parent=1 // pred_check_branch
      %9955 = sbr.rel (0) target = $region69
    $region68: #{edge_nri_forward.1} parent=1 // pred_region
      %9956 = dma.done [#allocation4], 256
    $region69: #{edge_nri_forward.1} parent=1 // pred_fallthru
      _
    %9957 = vsyncpa [#allocation4], 1

</llo_original>
